<compile_context>
chip_gen: v7x
topology: tpu7x:2x2x1
jax: 0.10.0
libtpu: 0.0.40
codegen_flags: <defaults>
</compile_context>

<pallas_src>
import functools

import jax
import jax.numpy as jnp
from jax.experimental import pallas as pl
from jax.experimental.pallas import tpu as pltpu


# ----------------------------------------------------------------------------
# embedding helpers (reference layout)
# ----------------------------------------------------------------------------
def harmonic_out_channels(L):
    return 3 * (1 + 2 * L)


def harmonic_embed(v, L):
    """Reference embedding, points-first layout (N, 3) -> (N, 3*(1+2L))."""
    feats = [v]
    for level in range(L):
        f = jnp.float32(2.0 ** level)
        feats.append(jnp.sin(f * v))
        feats.append(jnp.cos(f * v))
    return jnp.concatenate(feats, axis=-1)


# ----------------------------------------------------------------------------
# kernel-side embedding layout
# ----------------------------------------------------------------------------
def _extra_rows(L_pos, L_dir):
    # Rows used for the "extra" levels only one source family needs.
    return 8 if L_pos >= L_dir else 16


def _embedding_row_map(L_pos, L_dir):
    """For each row of the kernel embedding matrix E, the column index of the original
    h_in = [emb(x), emb(wi), emb(wo)] layout, or -1 for dead / pad rows."""
    n_pos, n_dir = harmonic_out_channels(L_pos), harmonic_out_channels(L_dir)
    offs = (0, n_pos, n_pos + n_dir)          # x, wi, wo base column offsets
    Ls = (L_pos, L_dir, L_dir)
    Lmin, Lmax = min(L_pos, L_dir), max(L_pos, L_dir)

    def block(kind, level, nrows):
        rows = []
        for r in range(nrows):
            src, coord = divmod(r, 3)
            if src > 2 or (level is not None and level >= Ls[src]):
                rows.append(-1)
                continue
            if kind == "v":
                rows.append(offs[src] + coord)
            elif kind == "sin":
                rows.append(offs[src] + 3 + 6 * level + coord)
            else:  # cos
                rows.append(offs[src] + 3 + 6 * level + 3 + coord)
        return rows

    rows = block("v", None, 16)
    for l in range(Lmin):
        rows += block("sin", l, 16) + block("cos", l, 16)
    nr = _extra_rows(L_pos, L_dir)
    for l in range(Lmin, Lmax):
        rows += block("sin", l, nr) + block("cos", l, nr)
    return rows


def _embed_blocks(v16, L_pos, L_dir):
    """f32 blocks whose axis-0 concatenation matches _embedding_row_map row order.
    All blocks are 16 or 8 rows -> aligned sublane concatenation."""
    Lmin, Lmax = min(L_pos, L_dir), max(L_pos, L_dir)
    blocks = [v16]
    s = c = None
    for l in range(Lmin):
        if l == 0:
            s, c = jnp.sin(v16), jnp.cos(v16)
        else:
            # double-angle recurrence (VPU only, no extra transcendentals)
            s, c = 2.0 * s * c, 2.0 * c * c - 1.0
        blocks += [s, c]
    if Lmax > Lmin:
        nr = _extra_rows(L_pos, L_dir)
        if Lmin == 0:
            base = v16[:nr]
            sx, cx = jnp.sin(base), jnp.cos(base)
        else:
            sx, cx = 2.0 * s[:nr] * c[:nr], 2.0 * c[:nr] * c[:nr] - 1.0
        blocks += [sx, cx]
        for _ in range(Lmin + 1, Lmax):
            sx, cx = 2.0 * sx * cx, 2.0 * cx * cx - 1.0
            blocks += [sx, cx]
    return blocks


def _embedding_rows(L_pos, L_dir):
    return len(_embedding_row_map(L_pos, L_dir))


# ----------------------------------------------------------------------------
# Pallas kernel
# ----------------------------------------------------------------------------
def _brdf_kernel(v_ref, *refs, L_pos, L_dir, num_hidden, skip):
    """One tile of TILE_N points, channels-first layout.

    v_ref : (16, TILE_N) f32 — rows [x(3), wi(3), wo(3), zeros(7)]
    refs  = (per-layer prepared params ..., out_ref)
      layer 0          : W0 (h0, K_E) bf16,           b0 (h0, 1) f32
      layer l>0 (skip) : Wf (h_l, h_{l-1}+K_E) bf16,  b  (h_l, 1) f32
      layer l>0 (no sk): Wh (h_l, h_{l-1}) bf16,      b  (h_l, 1) f32
      head             : Whd (3, h_last) bf16,        bhd (3, 1)  f32
    """
    out_ref = refs[-1]
    params = refs[:-1]

    # Build the full embedding operand once per tile (aligned block concatenation).
    blocks = _embed_blocks(v_ref[...], L_pos, L_dir)
    E_f32 = blocks[0] if len(blocks) == 1 else jnp.concatenate(blocks, axis=0)
    E = E_f32.astype(jnp.bfloat16)                       # (K_E, TILE_N)

    def mm(w_ref, a_bf16):
        return jnp.dot(w_ref[...], a_bf16, preferred_element_type=jnp.float32)

    idx = 0
    # ---- layer 0: single K_E-deep matmul ----
    W0, b0 = params[idx], params[idx + 1]
    idx += 2
    h = jnp.maximum(mm(W0, E) + b0[...], 0.0)            # (h0, TILE_N) f32

    # ---- hidden layers ----
    for _ in range(1, num_hidden):
        if skip:
            Wf, b = params[idx], params[idx + 1]
            idx += 2
            # Fused [Wh | Wskip] @ [h ; E] : one matmul per skip layer.
            hin = jnp.concatenate([h.astype(jnp.bfloat16), E], axis=0)
            pre = mm(Wf, hin) + b[...]
        else:
            Wh, b = params[idx], params[idx + 1]
            idx += 2
            pre = mm(Wh, h.astype(jnp.bfloat16)) + b[...]
        h = jnp.maximum(pre, 0.0)

    # ---- head + sigmoid ----
    Whd, bhd = params[idx], params[idx + 1]
    y = mm(Whd, h.astype(jnp.bfloat16)) + bhd[...]
    out_ref[...] = jax.nn.sigmoid(y)                      # (3, TILE_N) f32, lane-dense


# ----------------------------------------------------------------------------
# parameter preparation (transpose / permute / pad / cast, once in plain JAX)
# ----------------------------------------------------------------------------
def _expand_input_weight(Wt_in, row_map):
    """(out, in0) f32 -> (out, K_E) bf16 with columns permuted to the kernel's E-row
    order and dead / pad rows mapped to zero columns."""
    idx = jnp.asarray([max(r, 0) for r in row_map], dtype=jnp.int32)
    mask = jnp.asarray([1.0 if r >= 0 else 0.0 for r in row_map], dtype=Wt_in.dtype)
    return (Wt_in[:, idx] * mask[None, :]).astype(jnp.bfloat16)


def prepare_params(params, *, L_pos, L_dir, num_hidden, skip):
    row_map = _embedding_row_map(L_pos, L_dir)
    in0 = harmonic_out_channels(L_pos) + 2 * harmonic_out_channels(L_dir)

    prepared = []
    idx = 0
    for layer in range(num_hidden):
        W, b = params[idx], params[idx + 1]
        idx += 2
        Wt = W.T                                            # (out, fan_in)
        if layer == 0:
            assert Wt.shape[1] == in0
            prepared.append(_expand_input_weight(Wt, row_map))         # (h0, K_E)
        elif skip:
            hp = Wt.shape[1] - in0
            Wh = Wt[:, :hp].astype(jnp.bfloat16)                        # (h_l, hp)
            Wsk = _expand_input_weight(Wt[:, hp:], row_map)             # (h_l, K_E)
            prepared.append(jnp.concatenate([Wh, Wsk], axis=1))         # (h_l, hp+K_E)
        else:
            prepared.append(Wt.astype(jnp.bfloat16))
        prepared.append(b.T.astype(jnp.float32))                        # (out, 1)
    W, b = params[idx], params[idx + 1]
    prepared.append(W.T.astype(jnp.bfloat16))                           # (3, h_last)
    prepared.append(b.T.astype(jnp.float32))                            # (3, 1)
    return prepared


# ----------------------------------------------------------------------------
# wrapper
# ----------------------------------------------------------------------------
def brdf_forward(x, wi, wo, params, *, L_pos, L_dir, num_hidden, skip, tile_n=2048):
    """x, wi, wo: (N, 3) -> (N, 3). tile_n: multiple of 128; raise (4096-16384) for
    production N, but keep >= 2 grid steps per TensorCore on v7x."""
    assert num_hidden >= 1
    assert tile_n % 128 == 0, "tile_n must be a multiple of 128 (lane width)"
    N = x.shape[0]
    n_tiles = (N + tile_n - 1) // tile_n
    N_pad = n_tiles * tile_n

    # Single stacked channels-first input: rows [x(3), wi(3), wo(3), zeros(7)].
    v9 = jnp.concatenate(
        [x.astype(jnp.float32).T, wi.astype(jnp.float32).T, wo.astype(jnp.float32).T],
        axis=0)                                            # (9, N)
    v16 = jnp.pad(v9, ((0, 7), (0, N_pad - N)))            # (16, N_pad)

    prepared = prepare_params(params, L_pos=L_pos, L_dir=L_dir,
                              num_hidden=num_hidden, skip=skip)

    kernel = functools.partial(_brdf_kernel, L_pos=L_pos, L_dir=L_dir,
                               num_hidden=num_hidden, skip=skip)

    point_spec = pl.BlockSpec((16, tile_n), lambda i: (0, i))
    # Weights / biases: single full-extent block whose index never changes
    # (bind ndim with a default arg -> no late-binding closure bug).
    param_specs = [pl.BlockSpec(p.shape, lambda i, nd=p.ndim: (0,) * nd)
                   for p in prepared]

    # Advisory cost estimate so XLA schedules the surrounding transposes sensibly.
    weight_mats = prepared[0::2]
    flops = sum(2 * int(w.shape[0]) * int(w.shape[1]) for w in weight_mats) * N_pad
    transcendentals = ((32 if max(L_pos, L_dir) > 0 else 0) + 3) * N_pad
    bytes_accessed = N_pad * (16 + 3) * 4 + sum(
        int(p.size) * p.dtype.itemsize for p in prepared)
    cost = pl.CostEstimate(flops=int(flops),
                           transcendentals=int(transcendentals),
                           bytes_accessed=int(bytes_accessed))

    out_t = pl.pallas_call(
        kernel,
        out_shape=jax.ShapeDtypeStruct((3, N_pad), jnp.float32),
        grid_spec=pltpu.PrefetchScalarGridSpec(
            num_scalar_prefetch=0,
            grid=(n_tiles,),
            in_specs=[point_spec] + param_specs,
            out_specs=pl.BlockSpec((3, tile_n), lambda i: (0, i)),
        ),
        compiler_params=pltpu.CompilerParams(
            dimension_semantics=("parallel",),
        ),
        cost_estimate=cost,
    )(v16, *prepared)

    return out_t[:, :N].T                                  # back to (N, 3)


# ----------------------------------------------------------------------------
# deterministic parameter construction (PyTorch Linear-style init, original layout)
# ----------------------------------------------------------------------------
def init_params(key, in_channels, hidden_dims, out_channels, skip):
    params = []
    prev = in_channels
    for i, h in enumerate(hidden_dims):
        fan_in = prev + (in_channels if (i > 0 and skip) else 0)
        key, kw, kb = jax.random.split(key, 3)
        scale = 1.0 / jnp.sqrt(jnp.float32(fan_in))
        W = jax.random.uniform(kw, (fan_in, h), jnp.float32, -scale, scale)
        b = jax.random.uniform(kb, (1, h), jnp.float32, -scale, scale)
        params += [W, b]
        prev = h
    key, kw, kb = jax.random.split(key, 3)
    scale = 1.0 / jnp.sqrt(jnp.float32(prev))
    W = jax.random.uniform(kw, (prev, out_channels), jnp.float32, -scale, scale)
    b = jax.random.uniform(kb, (1, out_channels), jnp.float32, -scale, scale)
    params += [W, b]
    return params


# ----------------------------------------------------------------------------
# pure-JAX f32 reference (original points-first formulation)
# ----------------------------------------------------------------------------
def brdf_reference(x, wi, wo, params, *, L_pos, L_dir, num_hidden, skip):
    h_in = jnp.concatenate(
        [harmonic_embed(x, L_pos),
         harmonic_embed(wi, L_dir),
         harmonic_embed(wo, L_dir)],
        axis=-1,
    )
    h = h_in
    idx = 0
    for layer in range(num_hidden):
        W, b = params[idx], params[idx + 1]
        idx += 2
        if layer > 0 and skip:
            h = jnp.concatenate([h, h_in], axis=-1)
        h = jnp.maximum(h @ W + b, 0.0)
    W, b = params[idx], params[idx + 1]
    return jax.nn.sigmoid(h @ W + b)


# ----------------------------------------------------------------------------
# main
# ----------------------------------------------------------------------------
if __name__ == "__main__":
    # Module hyper-parameters (consistent with the PyTorch __init__).
    L_pos = 4                 # num_positional_levels
    L_dir = 2                 # num_directional_levels
    hidden_dims = [32, 32]
    skip = True

    in_channels = harmonic_out_channels(L_pos) + 2 * harmonic_out_channels(L_dir)  # 57

    key = jax.random.PRNGKey(0)
    key, kx, ki, ko, kp = jax.random.split(key, 5)

    # 4 grid steps at tile_n=2048 -> >=2 pipelined steps per v7x TensorCore.
    N = 8192
    x = jax.random.normal(kx, (N, 3), jnp.float32)
    wi = jax.random.normal(ki, (N, 3), jnp.float32)
    wo = jax.random.normal(ko, (N, 3), jnp.float32)

    params = init_params(kp, in_channels, hidden_dims, out_channels=3, skip=skip)

    out = brdf_forward(
        x, wi, wo, params,
        L_pos=L_pos, L_dir=L_dir, num_hidden=len(hidden_dims), skip=skip,
        tile_n=2048,
    )
    out = jax.block_until_ready(out)

    ref = brdf_reference(
        x, wi, wo, params,
        L_pos=L_pos, L_dir=L_dir, num_hidden=len(hidden_dims), skip=skip,
    )
    assert out.shape == (N, 3) and out.dtype == jnp.float32
    max_err = float(jnp.max(jnp.abs(out - ref)))
    # bf16 MXU operands (f32 accumulation) vs. f32 reference -> small numeric noise.
    assert max_err < 4e-2, f"mismatch vs. reference: max abs err {max_err}"

    print("KERNEL_OK")
</pallas_src>

<mosaic_0001>
module attributes {stable_mosaic.version = 11 : i64} {
  func.func @_brdf_kernel(%arg0: i32, %arg1: memref<16x2048xf32, #tpu.memory_space<vmem>>, %arg2: memref<32x112xbf16, #tpu.memory_space<vmem>>, %arg3: memref<32x1xf32, #tpu.memory_space<vmem>>, %arg4: memref<32x144xbf16, #tpu.memory_space<vmem>>, %arg5: memref<32x1xf32, #tpu.memory_space<vmem>>, %arg6: memref<3x32xbf16, #tpu.memory_space<vmem>>, %arg7: memref<3x1xf32, #tpu.memory_space<vmem>>, %arg8: memref<3x2048xf32, #tpu.memory_space<vmem>>) attributes {dimension_semantics = [#tpu.dimension_semantics<parallel>], iteration_bounds = array<i64: 4>, scalar_prefetch = 0 : i64, scratch_operands = 0 : i64, tpu.core_type = #tpu.core_type<tc>, window_params = [{transform_indices = @transform_0, window_bounds = array<i64: 16, 2048>}, {pipeline_mode = #tpu.pipeline_mode<synchronous>, transform_indices = @transform_1, window_bounds = array<i64: 32, 112>}, {pipeline_mode = #tpu.pipeline_mode<synchronous>, transform_indices = @transform_2, window_bounds = array<i64: 32, 1>}, {pipeline_mode = #tpu.pipeline_mode<synchronous>, transform_indices = @transform_3, window_bounds = array<i64: 32, 144>}, {pipeline_mode = #tpu.pipeline_mode<synchronous>, transform_indices = @transform_4, window_bounds = array<i64: 32, 1>}, {pipeline_mode = #tpu.pipeline_mode<synchronous>, transform_indices = @transform_5, window_bounds = array<i64: 3, 32>}, {pipeline_mode = #tpu.pipeline_mode<synchronous>, transform_indices = @transform_6, window_bounds = array<i64: 3, 1>}, {transform_indices = @transform_7, window_bounds = array<i64: 3, 2048>}]} {
    %c0 = arith.constant 0 : index
    %c0_0 = arith.constant 0 : index
    %0 = vector.load %arg1[%c0, %c0_0] : memref<16x2048xf32, #tpu.memory_space<vmem>>, vector<16x2048xf32>
    %1 = math.sin %0 : vector<16x2048xf32>
    %2 = math.cos %0 : vector<16x2048xf32>
    %cst = arith.constant 2.000000e+00 : f32
    %3 = vector.broadcast %cst : f32 to vector<16x2048xf32>
    %4 = arith.mulf %3, %1 : vector<16x2048xf32>
    %5 = arith.mulf %4, %2 : vector<16x2048xf32>
    %cst_1 = arith.constant 2.000000e+00 : f32
    %6 = vector.broadcast %cst_1 : f32 to vector<16x2048xf32>
    %7 = arith.mulf %6, %2 : vector<16x2048xf32>
    %8 = arith.mulf %7, %2 : vector<16x2048xf32>
    %cst_2 = arith.constant 1.000000e+00 : f32
    %9 = vector.broadcast %cst_2 : f32 to vector<16x2048xf32>
    %10 = arith.subf %8, %9 : vector<16x2048xf32>
    %11 = vector.extract_strided_slice %5 {offsets = [0, 0], sizes = [8, 2048], strides = [1, 1]} : vector<16x2048xf32> to vector<8x2048xf32>
    %cst_3 = arith.constant 2.000000e+00 : f32
    %12 = vector.broadcast %cst_3 : f32 to vector<8x2048xf32>
    %13 = arith.mulf %12, %11 : vector<8x2048xf32>
    %14 = vector.extract_strided_slice %10 {offsets = [0, 0], sizes = [8, 2048], strides = [1, 1]} : vector<16x2048xf32> to vector<8x2048xf32>
    %15 = arith.mulf %13, %14 : vector<8x2048xf32>
    %16 = vector.extract_strided_slice %10 {offsets = [0, 0], sizes = [8, 2048], strides = [1, 1]} : vector<16x2048xf32> to vector<8x2048xf32>
    %cst_4 = arith.constant 2.000000e+00 : f32
    %17 = vector.broadcast %cst_4 : f32 to vector<8x2048xf32>
    %18 = arith.mulf %17, %16 : vector<8x2048xf32>
    %19 = vector.extract_strided_slice %10 {offsets = [0, 0], sizes = [8, 2048], strides = [1, 1]} : vector<16x2048xf32> to vector<8x2048xf32>
    %20 = arith.mulf %18, %19 : vector<8x2048xf32>
    %cst_5 = arith.constant 1.000000e+00 : f32
    %21 = vector.broadcast %cst_5 : f32 to vector<8x2048xf32>
    %22 = arith.subf %20, %21 : vector<8x2048xf32>
    %cst_6 = arith.constant 2.000000e+00 : f32
    %23 = vector.broadcast %cst_6 : f32 to vector<8x2048xf32>
    %24 = arith.mulf %23, %15 : vector<8x2048xf32>
    %25 = arith.mulf %24, %22 : vector<8x2048xf32>
    %cst_7 = arith.constant 2.000000e+00 : f32
    %26 = vector.broadcast %cst_7 : f32 to vector<8x2048xf32>
    %27 = arith.mulf %26, %22 : vector<8x2048xf32>
    %28 = arith.mulf %27, %22 : vector<8x2048xf32>
    %cst_8 = arith.constant 1.000000e+00 : f32
    %29 = vector.broadcast %cst_8 : f32 to vector<8x2048xf32>
    %30 = arith.subf %28, %29 : vector<8x2048xf32>
    %31 = tpu.concatenate %0, %1, %2, %5, %10, %15, %22, %25, %30 in 0 : vector<16x2048xf32>, vector<16x2048xf32>, vector<16x2048xf32>, vector<16x2048xf32>, vector<16x2048xf32>, vector<8x2048xf32>, vector<8x2048xf32>, vector<8x2048xf32>, vector<8x2048xf32> -> vector<112x2048xf32>
    %32 = arith.truncf %31 : vector<112x2048xf32> to vector<112x2048xbf16>
    %c0_9 = arith.constant 0 : index
    %c0_10 = arith.constant 0 : index
    %33 = vector.load %arg2[%c0_9, %c0_10] : memref<32x112xbf16, #tpu.memory_space<vmem>>, vector<32x112xbf16>
    %cst_11 = arith.constant dense<0.000000e+00> : vector<32x2048xf32>
    %34 = tpu.matmul %33, %32, %cst_11 {dimension_numbers = #tpu.dot_dimension_numbers<[1], [0], [0], [1], [0, 0, 1, 1], [], []>} : vector<32x112xbf16>, vector<112x2048xbf16>, vector<32x2048xf32> -> vector<32x2048xf32>
    %c0_12 = arith.constant 0 : index
    %c0_13 = arith.constant 0 : index
    %35 = vector.load %arg3[%c0_12, %c0_13] : memref<32x1xf32, #tpu.memory_space<vmem>>, vector<32x1xf32>
    %36 = vector.broadcast %35 : vector<32x1xf32> to vector<32x2048xf32>
    %37 = arith.addf %34, %36 : vector<32x2048xf32>
    %cst_14 = arith.constant 0.000000e+00 : f32
    %38 = vector.broadcast %cst_14 : f32 to vector<32x2048xf32>
    %39 = arith.maximumf %37, %38 : vector<32x2048xf32>
    %40 = arith.truncf %39 : vector<32x2048xf32> to vector<32x2048xbf16>
    %41 = tpu.concatenate %40, %32 in 0 : vector<32x2048xbf16>, vector<112x2048xbf16> -> vector<144x2048xbf16>
    %c0_15 = arith.constant 0 : index
    %c0_16 = arith.constant 0 : index
    %42 = vector.load %arg4[%c0_15, %c0_16] : memref<32x144xbf16, #tpu.memory_space<vmem>>, vector<32x144xbf16>
    %cst_17 = arith.constant dense<0.000000e+00> : vector<32x2048xf32>
    %43 = tpu.matmul %42, %41, %cst_17 {dimension_numbers = #tpu.dot_dimension_numbers<[1], [0], [0], [1], [0, 0, 1, 1], [], []>} : vector<32x144xbf16>, vector<144x2048xbf16>, vector<32x2048xf32> -> vector<32x2048xf32>
    %c0_18 = arith.constant 0 : index
    %c0_19 = arith.constant 0 : index
    %44 = vector.load %arg5[%c0_18, %c0_19] : memref<32x1xf32, #tpu.memory_space<vmem>>, vector<32x1xf32>
    %45 = vector.broadcast %44 : vector<32x1xf32> to vector<32x2048xf32>
    %46 = arith.addf %43, %45 : vector<32x2048xf32>
    %cst_20 = arith.constant 0.000000e+00 : f32
    %47 = vector.broadcast %cst_20 : f32 to vector<32x2048xf32>
    %48 = arith.maximumf %46, %47 : vector<32x2048xf32>
    %49 = arith.truncf %48 : vector<32x2048xf32> to vector<32x2048xbf16>
    %c0_21 = arith.constant 0 : index
    %c0_22 = arith.constant 0 : index
    %50 = vector.load %arg6[%c0_21, %c0_22] : memref<3x32xbf16, #tpu.memory_space<vmem>>, vector<3x32xbf16>
    %cst_23 = arith.constant dense<0.000000e+00> : vector<3x2048xf32>
    %51 = tpu.matmul %50, %49, %cst_23 {dimension_numbers = #tpu.dot_dimension_numbers<[1], [0], [0], [1], [0, 0, 1, 1], [], []>} : vector<3x32xbf16>, vector<32x2048xbf16>, vector<3x2048xf32> -> vector<3x2048xf32>
    %c0_24 = arith.constant 0 : index
    %c0_25 = arith.constant 0 : index
    %52 = vector.load %arg7[%c0_24, %c0_25] : memref<3x1xf32, #tpu.memory_space<vmem>>, vector<3x1xf32>
    %53 = vector.broadcast %52 : vector<3x1xf32> to vector<3x2048xf32>
    %54 = arith.addf %51, %53 : vector<3x2048xf32>
    %55 = arith.negf %54 : vector<3x2048xf32>
    %56 = math.exp %55 : vector<3x2048xf32>
    %cst_26 = arith.constant 1.000000e+00 : f32
    %57 = vector.broadcast %cst_26 : f32 to vector<3x2048xf32>
    %58 = arith.addf %57, %56 : vector<3x2048xf32>
    %59 = arith.divf %57, %58 : vector<3x2048xf32>
    %c0_27 = arith.constant 0 : index
    %c0_28 = arith.constant 0 : index
    %60 = vector.load %arg8[%c0_27, %c0_28] : memref<3x2048xf32, #tpu.memory_space<vmem>>, vector<3x2048xf32>
    tpu.vector_store %arg8[%c0_27, %c0_28], %59 {strides = array<i32>} : memref<3x2048xf32, #tpu.memory_space<vmem>>, vector<3x2048xf32>,
    return
  }
  func.func @transform_0(%arg0: i32) -> (i32, i32) {
    %c0_i32 = arith.constant 0 : i32
    %c0_i32_0 = arith.constant 0 : i32
    return %c0_i32, %arg0 : i32, i32
  }
  func.func @transform_1(%arg0: i32) -> (i32, i32) {
    %c0_i32 = arith.constant 0 : i32
    %c0_i32_0 = arith.constant 0 : i32
    %c0_i32_1 = arith.constant 0 : i32
    return %c0_i32, %c0_i32_0 : i32, i32
  }
  func.func @transform_2(%arg0: i32) -> (i32, i32) {
    %c0_i32 = arith.constant 0 : i32
    %c0_i32_0 = arith.constant 0 : i32
    %c0_i32_1 = arith.constant 0 : i32
    return %c0_i32, %c0_i32_0 : i32, i32
  }
  func.func @transform_3(%arg0: i32) -> (i32, i32) {
    %c0_i32 = arith.constant 0 : i32
    %c0_i32_0 = arith.constant 0 : i32
    %c0_i32_1 = arith.constant 0 : i32
    return %c0_i32, %c0_i32_0 : i32, i32
  }
  func.func @transform_4(%arg0: i32) -> (i32, i32) {
    %c0_i32 = arith.constant 0 : i32
    %c0_i32_0 = arith.constant 0 : i32
    %c0_i32_1 = arith.constant 0 : i32
    return %c0_i32, %c0_i32_0 : i32, i32
  }
  func.func @transform_5(%arg0: i32) -> (i32, i32) {
    %c0_i32 = arith.constant 0 : i32
    %c0_i32_0 = arith.constant 0 : i32
    %c0_i32_1 = arith.constant 0 : i32
    return %c0_i32, %c0_i32_0 : i32, i32
  }
  func.func @transform_6(%arg0: i32) -> (i32, i32) {
    %c0_i32 = arith.constant 0 : i32
    %c0_i32_0 = arith.constant 0 : i32
    %c0_i32_1 = arith.constant 0 : i32
    return %c0_i32, %c0_i32_0 : i32, i32
  }
  func.func @transform_7(%arg0: i32) -> (i32, i32) {
    %c0_i32 = arith.constant 0 : i32
    %c0_i32_0 = arith.constant 0 : i32
    return %c0_i32, %arg0 : i32, i32
  }
}

</mosaic_0001>

<llo_original>
// kernel: tpu_custom_call.1
$region0: #{tpu_custom_call.1}
  #allocation0 [shape = 'u32[]', space=smem, size = 0x4, offset = 0x4, fixed_abs, tag = 'smem constant byte address 0x4 - core index']
  #allocation1 [shape = 'u32[144,128]{1,0:T(1,128)}', space=vmem, size = 0x12000, scoped, tag = 'internal scratch']
  %s0 = inlined_call_operand.hbm [shape: f32[16,8192], index: 0, kind: input, shape index: {}]
  %s1 = inlined_call_operand.vmem [shape: bf16[32,112], index: 1, kind: input, shape index: {}]
  %s2 = inlined_call_operand.vmem [shape: f32[32,1], index: 2, kind: input, shape index: {}]
  %s3 = inlined_call_operand.vmem [shape: bf16[32,144], index: 3, kind: input, shape index: {}]
  %s4 = inlined_call_operand.vmem [shape: f32[32,1], index: 4, kind: input, shape index: {}]
  %s5 = inlined_call_operand.vmem [shape: bf16[3,32], index: 5, kind: input, shape index: {}]
  %s6 = inlined_call_operand.vmem [shape: f32[3,1], index: 6, kind: input, shape index: {}]
  %s7 = inlined_call_operand.hbm [shape: f32[3,8192], index: 7, kind: output, shape index: {}]
  %s8 = sld [smem:[#allocation0]]
  $region65: #{tpu_custom_call.1} parent=0
    _
  %s10 = ssub.s32 1, %s8
  %s11 = scalar_select 0, %s10, %s8
  $region1: #{tpu_custom_call.1} parent=0
    #allocation2 [shape = 'u8[262144]{0}', space=vmem, size = 0x40000, scoped, tag = 'input window, operand 0']
    #allocation3 [shape = 's32[2]{0}', space=sflag, size = 0x8, scoped, tag = 'scoped memory for tpu_custom_call.1']
    #allocation4 [shape = 's32[2]{0}', space=sflag, size = 0x8, scoped, tag = 'scoped memory for tpu_custom_call.1']
    #allocation5 [shape = 'u8[65536]{0}', space=vmem, size = 0x10000, scoped, tag = 'output window, operand 0']
    %12 = vsyncpa [#allocation3], 0
    %s13 = scalar_lea.sflag [#allocation3], 1
    %14 = vsyncpa %s13, 0
    %15 = vsyncpa [#allocation4], 0
    %s16 = scalar_lea.sflag [#allocation4], 1
    %17 = vsyncpa %s16, 0
    loop: start=0, step=1, limit=6
    $region2: #{tpu_custom_call.1} parent=1 // loop_pre_header
      _
    $region3: #{tpu_custom_call.1} parent=1 // loop_header
      %s19 = sphi 0, %s23
      %p20 = scmp.ge.s32.totalorder %s19, 6
      %s29 = sphi 0, %s31
      %s32 = sphi 0, %s29
      %s33 = sphi 0, %s32
      %s49 = sphi 0, %s33
      %s53 = sphi 0, %s53
      %s55 = sphi 0, %s53
      %s56 = sphi 0, %s55
      %s70 = sphi 0, %s56
      %s74 = sphi 0, %s74
      %s76 = sphi 0, %s74
      %s77 = sphi 0, %s76
      %s91 = sphi 0, %s77
      %s95 = sphi 0, %s95
      %s97 = sphi 0, %s95
      %s98 = sphi 0, %s97
      %s112 = sphi 0, %s98
      %s116 = sphi 0, %s116
      %s118 = sphi 0, %s116
      %s119 = sphi 0, %s118
      %s133 = sphi 0, %s119
      %s137 = sphi 0, %s137
      %s139 = sphi 0, %s137
      %s140 = sphi 0, %s139
      %s154 = sphi 0, %s140
      %s158 = sphi 0, %s158
      %s160 = sphi 0, %s158
      %s161 = sphi 0, %s160
      %s175 = sphi 0, %s161
      %s181 = sphi 0, %s183
      %s184 = sphi 0, %s181
      %s185 = sphi 0, %s184
      %s201 = sphi 0, %s185
    $region4: #{tpu_custom_call.1} parent=1 // loop_header_branch
      %22 = sbr.rel (%p20) target = $region8
    $region5: #{tpu_custom_call.1} parent=1 // loop_body
      %s24 = ssub.s32 %s19, 1
      %s25 = ssub.s32 %s19, 2
      %s26 = sadd.s32 %s19, 1
      %s27 = ssub.s32 %s19, %s26
      %p28 = scmp.eq.s32.totalorder %s27, 0
      %s30 = sadd.s32 %s29, 1
      %s31 = scalar_select %p28, %s29, %s30
      %p34 = pneg %p28
      %p35 = scmp.eq.s32.totalorder %s19, 3
      %p36 = por %p34, %p35
      %p37 = scmp.ne.s32.totalorder %s29, %s32
      %p38 = scmp.eq.s32.totalorder %s19, 0
      %p39 = por %p37, %p38
      %p40 = scmp.ne.s32.totalorder %s29, %s32
      %p41 = scmp.eq.s32.totalorder %s24, 3
      %p42 = por %p40, %p41
      %p43 = scmp.ne.s32.totalorder %s32, %s33
      %p44 = scmp.eq.s32.totalorder %s24, 0
      %p45 = por %p43, %p44
      %p46 = scmp.ne.s32.totalorder %s32, %s33
      %p47 = scmp.eq.s32.totalorder %s25, 3
      %p48 = por %p46, %p47
      %p50 = scmp.ne.s32.totalorder %s33, %s49
      %p51 = scmp.eq.s32.totalorder %s25, 0
      %p52 = por %p50, %p51
      %s54 = sadd.s32 %s53, 1
      %p57 = scmp.eq.s32.totalorder %s19, 3
      %p58 = scmp.ne.s32.totalorder %s53, %s55
      %p59 = scmp.eq.s32.totalorder %s19, 0
      %p60 = por %p58, %p59
      %p61 = scmp.ne.s32.totalorder %s53, %s55
      %p62 = scmp.eq.s32.totalorder %s24, 3
      %p63 = por %p61, %p62
      %p64 = scmp.ne.s32.totalorder %s55, %s56
      %p65 = scmp.eq.s32.totalorder %s24, 0
      %p66 = por %p64, %p65
      %p67 = scmp.ne.s32.totalorder %s55, %s56
      %p68 = scmp.eq.s32.totalorder %s25, 3
      %p69 = por %p67, %p68
      %p71 = scmp.ne.s32.totalorder %s56, %s70
      %p72 = scmp.eq.s32.totalorder %s25, 0
      %p73 = por %p71, %p72
      %s75 = sadd.s32 %s74, 1
      %p78 = scmp.eq.s32.totalorder %s19, 3
      %p79 = scmp.ne.s32.totalorder %s74, %s76
      %p80 = scmp.eq.s32.totalorder %s19, 0
      %p81 = por %p79, %p80
      %p82 = scmp.ne.s32.totalorder %s74, %s76
      %p83 = scmp.eq.s32.totalorder %s24, 3
      %p84 = por %p82, %p83
      %p85 = scmp.ne.s32.totalorder %s76, %s77
      %p86 = scmp.eq.s32.totalorder %s24, 0
      %p87 = por %p85, %p86
      %p88 = scmp.ne.s32.totalorder %s76, %s77
      %p89 = scmp.eq.s32.totalorder %s25, 3
      %p90 = por %p88, %p89
      %p92 = scmp.ne.s32.totalorder %s77, %s91
      %p93 = scmp.eq.s32.totalorder %s25, 0
      %p94 = por %p92, %p93
      %s96 = sadd.s32 %s95, 1
      %p99 = scmp.eq.s32.totalorder %s19, 3
      %p100 = scmp.ne.s32.totalorder %s95, %s97
      %p101 = scmp.eq.s32.totalorder %s19, 0
      %p102 = por %p100, %p101
      %p103 = scmp.ne.s32.totalorder %s95, %s97
      %p104 = scmp.eq.s32.totalorder %s24, 3
      %p105 = por %p103, %p104
      %p106 = scmp.ne.s32.totalorder %s97, %s98
      %p107 = scmp.eq.s32.totalorder %s24, 0
      %p108 = por %p106, %p107
      %p109 = scmp.ne.s32.totalorder %s97, %s98
      %p110 = scmp.eq.s32.totalorder %s25, 3
      %p111 = por %p109, %p110
      %p113 = scmp.ne.s32.totalorder %s98, %s112
      %p114 = scmp.eq.s32.totalorder %s25, 0
      %p115 = por %p113, %p114
      %s117 = sadd.s32 %s116, 1
      %p120 = scmp.eq.s32.totalorder %s19, 3
      %p121 = scmp.ne.s32.totalorder %s116, %s118
      %p122 = scmp.eq.s32.totalorder %s19, 0
      %p123 = por %p121, %p122
      %p124 = scmp.ne.s32.totalorder %s116, %s118
      %p125 = scmp.eq.s32.totalorder %s24, 3
      %p126 = por %p124, %p125
      %p127 = scmp.ne.s32.totalorder %s118, %s119
      %p128 = scmp.eq.s32.totalorder %s24, 0
      %p129 = por %p127, %p128
      %p130 = scmp.ne.s32.totalorder %s118, %s119
      %p131 = scmp.eq.s32.totalorder %s25, 3
      %p132 = por %p130, %p131
      %p134 = scmp.ne.s32.totalorder %s119, %s133
      %p135 = scmp.eq.s32.totalorder %s25, 0
      %p136 = por %p134, %p135
      %s138 = sadd.s32 %s137, 1
      %p141 = scmp.eq.s32.totalorder %s19, 3
      %p142 = scmp.ne.s32.totalorder %s137, %s139
      %p143 = scmp.eq.s32.totalorder %s19, 0
      %p144 = por %p142, %p143
      %p145 = scmp.ne.s32.totalorder %s137, %s139
      %p146 = scmp.eq.s32.totalorder %s24, 3
      %p147 = por %p145, %p146
      %p148 = scmp.ne.s32.totalorder %s139, %s140
      %p149 = scmp.eq.s32.totalorder %s24, 0
      %p150 = por %p148, %p149
      %p151 = scmp.ne.s32.totalorder %s139, %s140
      %p152 = scmp.eq.s32.totalorder %s25, 3
      %p153 = por %p151, %p152
      %p155 = scmp.ne.s32.totalorder %s140, %s154
      %p156 = scmp.eq.s32.totalorder %s25, 0
      %p157 = por %p155, %p156
      %s159 = sadd.s32 %s158, 1
      %p162 = scmp.eq.s32.totalorder %s19, 3
      %p163 = scmp.ne.s32.totalorder %s158, %s160
      %p164 = scmp.eq.s32.totalorder %s19, 0
      %p165 = por %p163, %p164
      %p166 = scmp.ne.s32.totalorder %s158, %s160
      %p167 = scmp.eq.s32.totalorder %s24, 3
      %p168 = por %p166, %p167
      %p169 = scmp.ne.s32.totalorder %s160, %s161
      %p170 = scmp.eq.s32.totalorder %s24, 0
      %p171 = por %p169, %p170
      %p172 = scmp.ne.s32.totalorder %s160, %s161
      %p173 = scmp.eq.s32.totalorder %s25, 3
      %p174 = por %p172, %p173
      %p176 = scmp.ne.s32.totalorder %s161, %s175
      %p177 = scmp.eq.s32.totalorder %s25, 0
      %p178 = por %p176, %p177
      %s179 = ssub.s32 %s19, %s26
      %p180 = scmp.eq.s32.totalorder %s179, 0
      %s182 = sadd.s32 %s181, 1
      %s183 = scalar_select %p180, %s181, %s182
      %p186 = pneg %p180
      %p187 = scmp.eq.s32.totalorder %s19, 3
      %p188 = por %p186, %p187
      %p189 = scmp.ne.s32.totalorder %s181, %s184
      %p190 = scmp.eq.s32.totalorder %s19, 0
      %p191 = por %p189, %p190
      %p192 = scmp.ne.s32.totalorder %s181, %s184
      %p193 = scmp.eq.s32.totalorder %s24, 3
      %p194 = por %p192, %p193
      %p195 = scmp.ne.s32.totalorder %s184, %s185
      %p196 = scmp.eq.s32.totalorder %s24, 0
      %p197 = por %p195, %p196
      %p198 = scmp.ne.s32.totalorder %s184, %s185
      %p199 = scmp.eq.s32.totalorder %s25, 3
      %p200 = por %p198, %p199
      %p202 = scmp.ne.s32.totalorder %s185, %s201
      %p203 = scmp.eq.s32.totalorder %s25, 0
      %p204 = por %p202, %p203
      %p205 = scmp.le.s32.totalorder 1, %s19
      %p206 = scmp.lt.s32.totalorder %s19, 5
      %p207 = pnand %p205, %p206
      %p208 = pneg %p207
      // Predicated region
      $region9: #{tpu_custom_call.1} parent=5 // pred_check
        _
      $region10: #{tpu_custom_call.1} parent=5 // pred_check_branch
        %210 = sbr.rel (%p207) target = $region12
      $region11: #{tpu_custom_call.1} parent=5 // pred_region
        %s211 = ssub.s32 %s19, 1
        // Predicated region
        $region13: #{tpu_custom_call.1} parent=11 // pred_check
          %p212 = pneg %p66
        $region14: #{tpu_custom_call.1} parent=11 // pred_check_branch
          %214 = sbr.rel (%p212) target = $region16
        $region15: #{tpu_custom_call.1} parent=11 // pred_region
          _
        $region16: #{tpu_custom_call.1} parent=11 // pred_fallthru
          _
        // Predicated region
        $region17: #{tpu_custom_call.1} parent=11 // pred_check
          %p215 = pneg %p87
        $region18: #{tpu_custom_call.1} parent=11 // pred_check_branch
          %217 = sbr.rel (%p215) target = $region20
        $region19: #{tpu_custom_call.1} parent=11 // pred_region
          _
        $region20: #{tpu_custom_call.1} parent=11 // pred_fallthru
          _
        // Predicated region
        $region21: #{tpu_custom_call.1} parent=11 // pred_check
          %p218 = pneg %p108
        $region22: #{tpu_custom_call.1} parent=11 // pred_check_branch
          %220 = sbr.rel (%p218) target = $region24
        $region23: #{tpu_custom_call.1} parent=11 // pred_region
          _
        $region24: #{tpu_custom_call.1} parent=11 // pred_fallthru
          _
        // Predicated region
        $region25: #{tpu_custom_call.1} parent=11 // pred_check
          %p221 = pneg %p129
        $region26: #{tpu_custom_call.1} parent=11 // pred_check_branch
          %223 = sbr.rel (%p221) target = $region28
        $region27: #{tpu_custom_call.1} parent=11 // pred_region
          _
        $region28: #{tpu_custom_call.1} parent=11 // pred_fallthru
          _
        // Predicated region
        $region29: #{tpu_custom_call.1} parent=11 // pred_check
          %p224 = pneg %p150
        $region30: #{tpu_custom_call.1} parent=11 // pred_check_branch
          %226 = sbr.rel (%p224) target = $region32
        $region31: #{tpu_custom_call.1} parent=11 // pred_region
          _
        $region32: #{tpu_custom_call.1} parent=11 // pred_fallthru
          _
        // Predicated region
        $region33: #{tpu_custom_call.1} parent=11 // pred_check
          %p227 = pneg %p171
        $region34: #{tpu_custom_call.1} parent=11 // pred_check_branch
          %229 = sbr.rel (%p227) target = $region36
        $region35: #{tpu_custom_call.1} parent=11 // pred_region
          _
        $region36: #{tpu_custom_call.1} parent=11 // pred_fallthru
          _
      $region12: #{tpu_custom_call.1} parent=5 // pred_fallthru
        _
      %p230 = scmp.lt.s32.totalorder %s19, 4
      // Predicated region
      $region37: #{tpu_custom_call.1} parent=5 // pred_check
        %p231 = pneg %p230
      $region38: #{tpu_custom_call.1} parent=5 // pred_check_branch
        %233 = sbr.rel (%p231) target = $region40
      $region39: #{tpu_custom_call.1} parent=5 // pred_region
        // Predicated region
        $region41: #{tpu_custom_call.1} parent=39 // pred_check
          %p234 = pneg %p39
        $region42: #{tpu_custom_call.1} parent=39 // pred_check_branch
          %236 = sbr.rel (%p234) target = $region44
        $region43: #{tpu_custom_call.1} parent=39 // pred_region
          %s237 = sand.u32 %s29, 1
          %s238 = scalar_lea.sflag [#allocation3], %s237
          %s239 = sand.u32 %s29, 1
          %s240 = smul.addr %s239, 256
          %s241 = scalar_lea.vmem [#allocation2], %s240
          %s242 = smul.u32 16, %s19
          %s244 = ssub.s32 4096, 4096
          %245 = vsyncadd %s238, %s244
          %s246 = smul.addr %s242, 128
          %s247 = scalar_lea.hbm %s0, %s246
          %s248 = sshll.u32 %s241, 4
          %s249 = int_to_ptr.vmem [resolvable:$true] %s248
          %254 = dma.hbm_to_vmem [thread:$0]  %s247, 4096, %s249, %s238, 8192, 2048, 128
        $region44: #{tpu_custom_call.1} parent=39 // pred_fallthru
          _
      $region40: #{tpu_custom_call.1} parent=5 // pred_fallthru
        _
      %p255 = scmp.le.s32.totalorder 1, %s19
      %p256 = scmp.lt.s32.totalorder %s19, 5
      %p257 = pnand %p255, %p256
      %p258 = pneg %p257
      // Predicated region
      $region45: #{tpu_custom_call.1} parent=5 // pred_check
        _
      $region46: #{tpu_custom_call.1} parent=5 // pred_check_branch
        %260 = sbr.rel (%p257) target = $region48
      $region47: #{tpu_custom_call.1} parent=5 // pred_region
        %s261 = ssub.s32 %s19, 1
        %s262 = sand.u32 %s32, 1
        %s263 = scalar_lea.sflag [#allocation3], %s262
        %s264 = sand.u32 %s32, 1
        %s265 = smul.addr %s264, 256
        %s266 = scalar_lea.vmem [#allocation2], %s265
        // Predicated region
        $region49: #{tpu_custom_call.1} parent=47 // pred_check
          %p267 = pneg %p45
        $region50: #{tpu_custom_call.1} parent=47 // pred_check_branch
          %269 = sbr.rel (%p267) target = $region52
        $region51: #{tpu_custom_call.1} parent=47 // pred_region
          %270 = dma.done %s263, 4096
        $region52: #{tpu_custom_call.1} parent=47 // pred_fallthru
          _
        %s271 = sand.u32 %s32, 1
        %s272 = scalar_lea.sflag [#allocation3], %s271
        %s273 = sand.u32 %s32, 1
        %s274 = smul.addr %s273, 256
        %s275 = scalar_lea.vmem [#allocation2], %s274
        %p276 = pneg %p45
        %p277 = pneg %p42
        %p278 = pneg %p66
        %p279 = pneg %p63
        %p280 = pneg %p87
        %p281 = pneg %p84
        %p282 = pneg %p108
        %p283 = pneg %p105
        %p284 = pneg %p129
        %p285 = pneg %p126
        %p286 = pneg %p150
        %p287 = pneg %p147
        %p288 = pneg %p171
        %p289 = pneg %p168
        %p290 = pneg %p197
        %p291 = pneg %p194
        %s292 = sand.u32 %s184, 1
        %s293 = scalar_lea.sflag [#allocation4], %s292
        %s294 = sand.u32 %s184, 1
        %s295 = smul.addr %s294, 64
        %s296 = scalar_lea.vmem [#allocation5], %s295
        %s297 = smul.u32 16, %s24
        %s298 = smul.u32 16, %s24
        %v300 = vld [vmem:[%s266] sm:$0xff]
        %v301 = vld [vmem:[%s266 + $0x8] sm:$0xff]
        %v302 = vld [vmem:[%s266 + $0x10] sm:$0xff]
        %v303 = vld [vmem:[%s266 + $0x18] sm:$0xff]
        %v304 = vld [vmem:[%s266 + $0x20] sm:$0xff]
        %v305 = vld [vmem:[%s266 + $0x28] sm:$0xff]
        %v306 = vld [vmem:[%s266 + $0x30] sm:$0xff]
        %v307 = vld [vmem:[%s266 + $0x38] sm:$0xff]
        %v308 = vld [vmem:[%s266 + $0x40] sm:$0xff]
        %v309 = vld [vmem:[%s266 + $0x48] sm:$0xff]
        %v310 = vld [vmem:[%s266 + $0x50] sm:$0xff]
        %v311 = vld [vmem:[%s266 + $0x58] sm:$0xff]
        %v312 = vld [vmem:[%s266 + $0x60] sm:$0xff]
        %v313 = vld [vmem:[%s266 + $0x68] sm:$0xff]
        %v314 = vld [vmem:[%s266 + $0x70] sm:$0xff]
        %v315 = vld [vmem:[%s266 + $0x78] sm:$0xff]
        %v316 = vld [vmem:[%s266 + $0x80] sm:$0xff]
        %v317 = vld [vmem:[%s266 + $0x88] sm:$0xff]
        %v318 = vld [vmem:[%s266 + $0x90] sm:$0xff]
        %v319 = vld [vmem:[%s266 + $0x98] sm:$0xff]
        %v320 = vld [vmem:[%s266 + $0xa0] sm:$0xff]
        %v321 = vld [vmem:[%s266 + $0xa8] sm:$0xff]
        %v322 = vld [vmem:[%s266 + $0xb0] sm:$0xff]
        %v323 = vld [vmem:[%s266 + $0xb8] sm:$0xff]
        %v324 = vld [vmem:[%s266 + $0xc0] sm:$0xff]
        %v325 = vld [vmem:[%s266 + $0xc8] sm:$0xff]
        %v326 = vld [vmem:[%s266 + $0xd0] sm:$0xff]
        %v327 = vld [vmem:[%s266 + $0xd8] sm:$0xff]
        %v328 = vld [vmem:[%s266 + $0xe0] sm:$0xff]
        %v329 = vld [vmem:[%s266 + $0xe8] sm:$0xff]
        %v330 = vld [vmem:[%s266 + $0xf0] sm:$0xff]
        %v331 = vld [vmem:[%s266 + $0xf8] sm:$0xff]
        %v332 = vand.u32 2147483647, %v300
        %vm333 = vcmp.le.f32.partialorder %v332, 0.7853982
        %vm334 = vcmp.lt.s32.totalorder %v300, 0
        %v335 = vand.u32 %v300, 2139095040
        %v336 = vshrl.u32 %v335, 23
        %v337 = vsub.s32 %v336, 127
        %v338 = vand.u32 2147483647, %v300
        %v339 = vand.u32 %v338, 8388607
        %v340 = vor.u32 %v339, 8388608
        %v341 = vsub.s32 0, %v340
        %v342 = vadd.s32 %v337, 1
        %vm343 = vcmp.gt.s32.totalorder %v342, 0
        %v344 = vsel %vm343, %v342, 0
        %v345 = vshrl.u32 %v344, 5
        %v346 = vand.u32 %v344, 31
        %v347 = vsub.s32 32, %v346
        %v348 = vshrl.u32 683565275, %v347
        %v349 = vshll.u32 683565275, %v346
        %v350 = vshrl.u32 2475754826, %v347
        %v351 = vor.u32 %v349, %v350
        %v352 = vshll.u32 2475754826, %v346
        %v353 = vshrl.u32 2131351028, %v347
        %v354 = vor.u32 %v352, %v353
        %v355 = vshll.u32 2131351028, %v346
        %v356 = vshrl.u32 2102212464, %v347
        %v357 = vor.u32 %v355, %v356
        %v358 = vshll.u32 2102212464, %v346
        %v359 = vshrl.u32 920167782, %v347
        %v360 = vor.u32 %v358, %v359
        %v361 = vshll.u32 920167782, %v346
        %v362 = vshrl.u32 1326507024, %v347
        %v363 = vor.u32 %v361, %v362
        %vm364 = vcmp.lt.s32.totalorder %v345, 1
        %vm365 = vcmp.lt.s32.totalorder %v345, 2
        %vm366 = vcmp.lt.s32.totalorder %v345, 3
        %vm367 = vcmp.lt.s32.totalorder %v345, 4
        %v368 = vsel %vm364, %v348, %v351
        %v369 = vsel %vm367, %v357, 2102212464
        %v370 = vsel %vm366, %v354, %v369
        %v371 = vsel %vm365, %v368, %v370
        %v372 = vsel %vm364, %v351, %v354
        %v373 = vsel %vm367, %v360, 920167782
        %v374 = vsel %vm366, %v357, %v373
        %v375 = vsel %vm365, %v372, %v374
        %v376 = vsel %vm364, %v354, %v357
        %v377 = vsel %vm367, %v363, 1326507024
        %v378 = vsel %vm366, %v360, %v377
        %v379 = vsel %vm365, %v376, %v378
        %v380 = vshll.u32 %v340, 8
        %v381 = vmul.u32.u64.compose %v380, %v379
        %v382 = vextract.low.u32 %v381
        %v383 = vextract.high.u32 %v381
        %v384 = vmul.u32.u64.compose %v380, %v375
        %v385 = vextract.low.u32 %v384
        %v386 = vextract.high.u32 %v384
        %v387 = vmul.u32 %v380, %v371
        %v388 = vadd.s32 %v383, %v385
        %vm389 = vc.u32 %v383, %v385
        %v390 = vadd.s32 %v386, 1
        %v391 = vsel %vm389, %v390, %v386
        %v392 = vadd.s32 %v387, %v391
        %v393 = vadd.s32 %v392, 536870912
        %v394 = vshrl.u32 %v393, 30
        %v395 = vshll.u32 %v394, 30
        %v396 = vsub.s32 %v392, %v395
        %vm397 = vcmp.lt.s32.totalorder %v396, 0
        %v398 = vsub.s32 0, %v396
        %v399 = vsel %vm397, %v398, %v396
        %v400 = vclz %v399
        %v401 = vsub.s32 %v400, 2
        %vm402 = vcmp.gt.s32.totalorder 0, %v401
        %v403 = vsel %vm402, 0, %v401
        %v404 = vsub.s32 32, %v403
        %v405 = vshll.u32 %v396, %v403
        %v406 = vshrl.u32 %v388, %v404
        %v407 = vor.u32 %v405, %v406
        %v408 = vsub.s32 4294967266, %v403
        %v409 = vadd.s32 %v408, 127
        %v410 = vshll.u32 %v409, 23
        %v411 = vor.u32 4788187, %v410
        %v412 = vand.u32 2147483647, %v411
        %v414 = vcvt.s32.f32 %v407
        %v415 = vmul.f32 %v414, %v412
        %v416 = vxor.u32 %v415, 2147483648
        %v417 = vsel %vm334, %v416, %v415
        %v418 = vsub.s32 4, %v394
        %v419 = vsel %vm334, %v418, %v394
        %v420 = vsel %vm333, %v300, %v417
        %v421 = vsel %vm333, 0, %v419
        %v422 = vcosq.f32.pop %v420
        %v423 = vsinq.f32.pop %v420
        %vm424 = vweird.f32 %v300
        %v425 = vadd.s32 %v421, 3
        %v426 = vand.u32 %v425, 3
        %vm427 = vcmp.lt.s32.totalorder %v426, 2
        %vm428 = vcmp.eq.s32.totalorder %v426, 0
        %v429 = vxor.u32 %v423, 2147483648
        %v430 = vsel %vm428, %v422, %v429
        %vm431 = vcmp.eq.s32.totalorder %v426, 2
        %v432 = vxor.u32 %v422, 2147483648
        %v433 = vsel %vm431, %v432, %v423
        %v434 = vsel %vm427, %v430, %v433
        %v435 = vsel %vm424, nan, %v434
        %v436 = vand.u32 2147483647, %v301
        %vm437 = vcmp.le.f32.partialorder %v436, 0.7853982
        %vm438 = vcmp.lt.s32.totalorder %v301, 0
        %v439 = vand.u32 %v301, 2139095040
        %v440 = vshrl.u32 %v439, 23
        %v441 = vsub.s32 %v440, 127
        %v442 = vand.u32 2147483647, %v301
        %v443 = vand.u32 %v442, 8388607
        %v444 = vor.u32 %v443, 8388608
        %v445 = vsub.s32 0, %v444
        %v446 = vadd.s32 %v441, 1
        %vm447 = vcmp.gt.s32.totalorder %v446, 0
        %v448 = vsel %vm447, %v446, 0
        %v449 = vshrl.u32 %v448, 5
        %v450 = vand.u32 %v448, 31
        %v451 = vsub.s32 32, %v450
        %v452 = vshrl.u32 683565275, %v451
        %v453 = vshll.u32 683565275, %v450
        %v454 = vshrl.u32 2475754826, %v451
        %v455 = vor.u32 %v453, %v454
        %v456 = vshll.u32 2475754826, %v450
        %v457 = vshrl.u32 2131351028, %v451
        %v458 = vor.u32 %v456, %v457
        %v459 = vshll.u32 2131351028, %v450
        %v460 = vshrl.u32 2102212464, %v451
        %v461 = vor.u32 %v459, %v460
        %v462 = vshll.u32 2102212464, %v450
        %v463 = vshrl.u32 920167782, %v451
        %v464 = vor.u32 %v462, %v463
        %v465 = vshll.u32 920167782, %v450
        %v466 = vshrl.u32 1326507024, %v451
        %v467 = vor.u32 %v465, %v466
        %vm468 = vcmp.lt.s32.totalorder %v449, 1
        %vm469 = vcmp.lt.s32.totalorder %v449, 2
        %vm470 = vcmp.lt.s32.totalorder %v449, 3
        %vm471 = vcmp.lt.s32.totalorder %v449, 4
        %v472 = vsel %vm468, %v452, %v455
        %v473 = vsel %vm471, %v461, 2102212464
        %v474 = vsel %vm470, %v458, %v473
        %v475 = vsel %vm469, %v472, %v474
        %v476 = vsel %vm468, %v455, %v458
        %v477 = vsel %vm471, %v464, 920167782
        %v478 = vsel %vm470, %v461, %v477
        %v479 = vsel %vm469, %v476, %v478
        %v480 = vsel %vm468, %v458, %v461
        %v481 = vsel %vm471, %v467, 1326507024
        %v482 = vsel %vm470, %v464, %v481
        %v483 = vsel %vm469, %v480, %v482
        %v484 = vshll.u32 %v444, 8
        %v485 = vmul.u32.u64.compose %v484, %v483
        %v486 = vextract.low.u32 %v485
        %v487 = vextract.high.u32 %v485
        %v488 = vmul.u32.u64.compose %v484, %v479
        %v489 = vextract.low.u32 %v488
        %v490 = vextract.high.u32 %v488
        %v491 = vmul.u32 %v484, %v475
        %v492 = vadd.s32 %v487, %v489
        %vm493 = vc.u32 %v487, %v489
        %v494 = vadd.s32 %v490, 1
        %v495 = vsel %vm493, %v494, %v490
        %v496 = vadd.s32 %v491, %v495
        %v497 = vadd.s32 %v496, 536870912
        %v498 = vshrl.u32 %v497, 30
        %v499 = vshll.u32 %v498, 30
        %v500 = vsub.s32 %v496, %v499
        %vm501 = vcmp.lt.s32.totalorder %v500, 0
        %v502 = vsub.s32 0, %v500
        %v503 = vsel %vm501, %v502, %v500
        %v504 = vclz %v503
        %v505 = vsub.s32 %v504, 2
        %vm506 = vcmp.gt.s32.totalorder 0, %v505
        %v507 = vsel %vm506, 0, %v505
        %v508 = vsub.s32 32, %v507
        %v509 = vshll.u32 %v500, %v507
        %v510 = vshrl.u32 %v492, %v508
        %v511 = vor.u32 %v509, %v510
        %v512 = vsub.s32 4294967266, %v507
        %v513 = vadd.s32 %v512, 127
        %v514 = vshll.u32 %v513, 23
        %v515 = vor.u32 4788187, %v514
        %v516 = vand.u32 2147483647, %v515
        %v518 = vcvt.s32.f32 %v511
        %v519 = vmul.f32 %v518, %v516
        %v520 = vxor.u32 %v519, 2147483648
        %v521 = vsel %vm438, %v520, %v519
        %v522 = vsub.s32 4, %v498
        %v523 = vsel %vm438, %v522, %v498
        %v524 = vsel %vm437, %v301, %v521
        %v525 = vsel %vm437, 0, %v523
        %v526 = vcosq.f32.pop %v524
        %v527 = vsinq.f32.pop %v524
        %vm528 = vweird.f32 %v301
        %v529 = vadd.s32 %v525, 3
        %v530 = vand.u32 %v529, 3
        %vm531 = vcmp.lt.s32.totalorder %v530, 2
        %vm532 = vcmp.eq.s32.totalorder %v530, 0
        %v533 = vxor.u32 %v527, 2147483648
        %v534 = vsel %vm532, %v526, %v533
        %vm535 = vcmp.eq.s32.totalorder %v530, 2
        %v536 = vxor.u32 %v526, 2147483648
        %v537 = vsel %vm535, %v536, %v527
        %v538 = vsel %vm531, %v534, %v537
        %v539 = vsel %vm528, nan, %v538
        %v540 = vand.u32 2147483647, %v302
        %vm541 = vcmp.le.f32.partialorder %v540, 0.7853982
        %vm542 = vcmp.lt.s32.totalorder %v302, 0
        %v543 = vand.u32 %v302, 2139095040
        %v544 = vshrl.u32 %v543, 23
        %v545 = vsub.s32 %v544, 127
        %v546 = vand.u32 2147483647, %v302
        %v547 = vand.u32 %v546, 8388607
        %v548 = vor.u32 %v547, 8388608
        %v549 = vsub.s32 0, %v548
        %v550 = vadd.s32 %v545, 1
        %vm551 = vcmp.gt.s32.totalorder %v550, 0
        %v552 = vsel %vm551, %v550, 0
        %v553 = vshrl.u32 %v552, 5
        %v554 = vand.u32 %v552, 31
        %v555 = vsub.s32 32, %v554
        %v556 = vshrl.u32 683565275, %v555
        %v557 = vshll.u32 683565275, %v554
        %v558 = vshrl.u32 2475754826, %v555
        %v559 = vor.u32 %v557, %v558
        %v560 = vshll.u32 2475754826, %v554
        %v561 = vshrl.u32 2131351028, %v555
        %v562 = vor.u32 %v560, %v561
        %v563 = vshll.u32 2131351028, %v554
        %v564 = vshrl.u32 2102212464, %v555
        %v565 = vor.u32 %v563, %v564
        %v566 = vshll.u32 2102212464, %v554
        %v567 = vshrl.u32 920167782, %v555
        %v568 = vor.u32 %v566, %v567
        %v569 = vshll.u32 920167782, %v554
        %v570 = vshrl.u32 1326507024, %v555
        %v571 = vor.u32 %v569, %v570
        %vm572 = vcmp.lt.s32.totalorder %v553, 1
        %vm573 = vcmp.lt.s32.totalorder %v553, 2
        %vm574 = vcmp.lt.s32.totalorder %v553, 3
        %vm575 = vcmp.lt.s32.totalorder %v553, 4
        %v576 = vsel %vm572, %v556, %v559
        %v577 = vsel %vm575, %v565, 2102212464
        %v578 = vsel %vm574, %v562, %v577
        %v579 = vsel %vm573, %v576, %v578
        %v580 = vsel %vm572, %v559, %v562
        %v581 = vsel %vm575, %v568, 920167782
        %v582 = vsel %vm574, %v565, %v581
        %v583 = vsel %vm573, %v580, %v582
        %v584 = vsel %vm572, %v562, %v565
        %v585 = vsel %vm575, %v571, 1326507024
        %v586 = vsel %vm574, %v568, %v585
        %v587 = vsel %vm573, %v584, %v586
        %v588 = vshll.u32 %v548, 8
        %v589 = vmul.u32.u64.compose %v588, %v587
        %v590 = vextract.low.u32 %v589
        %v591 = vextract.high.u32 %v589
        %v592 = vmul.u32.u64.compose %v588, %v583
        %v593 = vextract.low.u32 %v592
        %v594 = vextract.high.u32 %v592
        %v595 = vmul.u32 %v588, %v579
        %v596 = vadd.s32 %v591, %v593
        %vm597 = vc.u32 %v591, %v593
        %v598 = vadd.s32 %v594, 1
        %v599 = vsel %vm597, %v598, %v594
        %v600 = vadd.s32 %v595, %v599
        %v601 = vadd.s32 %v600, 536870912
        %v602 = vshrl.u32 %v601, 30
        %v603 = vshll.u32 %v602, 30
        %v604 = vsub.s32 %v600, %v603
        %vm605 = vcmp.lt.s32.totalorder %v604, 0
        %v606 = vsub.s32 0, %v604
        %v607 = vsel %vm605, %v606, %v604
        %v608 = vclz %v607
        %v609 = vsub.s32 %v608, 2
        %vm610 = vcmp.gt.s32.totalorder 0, %v609
        %v611 = vsel %vm610, 0, %v609
        %v612 = vsub.s32 32, %v611
        %v613 = vshll.u32 %v604, %v611
        %v614 = vshrl.u32 %v596, %v612
        %v615 = vor.u32 %v613, %v614
        %v616 = vsub.s32 4294967266, %v611
        %v617 = vadd.s32 %v616, 127
        %v618 = vshll.u32 %v617, 23
        %v619 = vor.u32 4788187, %v618
        %v620 = vand.u32 2147483647, %v619
        %v622 = vcvt.s32.f32 %v615
        %v623 = vmul.f32 %v622, %v620
        %v624 = vxor.u32 %v623, 2147483648
        %v625 = vsel %vm542, %v624, %v623
        %v626 = vsub.s32 4, %v602
        %v627 = vsel %vm542, %v626, %v602
        %v628 = vsel %vm541, %v302, %v625
        %v629 = vsel %vm541, 0, %v627
        %v630 = vcosq.f32.pop %v628
        %v631 = vsinq.f32.pop %v628
        %vm632 = vweird.f32 %v302
        %v633 = vadd.s32 %v629, 3
        %v634 = vand.u32 %v633, 3
        %vm635 = vcmp.lt.s32.totalorder %v634, 2
        %vm636 = vcmp.eq.s32.totalorder %v634, 0
        %v637 = vxor.u32 %v631, 2147483648
        %v638 = vsel %vm636, %v630, %v637
        %vm639 = vcmp.eq.s32.totalorder %v634, 2
        %v640 = vxor.u32 %v630, 2147483648
        %v641 = vsel %vm639, %v640, %v631
        %v642 = vsel %vm635, %v638, %v641
        %v643 = vsel %vm632, nan, %v642
        %v644 = vand.u32 2147483647, %v303
        %vm645 = vcmp.le.f32.partialorder %v644, 0.7853982
        %vm646 = vcmp.lt.s32.totalorder %v303, 0
        %v647 = vand.u32 %v303, 2139095040
        %v648 = vshrl.u32 %v647, 23
        %v649 = vsub.s32 %v648, 127
        %v650 = vand.u32 2147483647, %v303
        %v651 = vand.u32 %v650, 8388607
        %v652 = vor.u32 %v651, 8388608
        %v653 = vsub.s32 0, %v652
        %v654 = vadd.s32 %v649, 1
        %vm655 = vcmp.gt.s32.totalorder %v654, 0
        %v656 = vsel %vm655, %v654, 0
        %v657 = vshrl.u32 %v656, 5
        %v658 = vand.u32 %v656, 31
        %v659 = vsub.s32 32, %v658
        %v660 = vshrl.u32 683565275, %v659
        %v661 = vshll.u32 683565275, %v658
        %v662 = vshrl.u32 2475754826, %v659
        %v663 = vor.u32 %v661, %v662
        %v664 = vshll.u32 2475754826, %v658
        %v665 = vshrl.u32 2131351028, %v659
        %v666 = vor.u32 %v664, %v665
        %v667 = vshll.u32 2131351028, %v658
        %v668 = vshrl.u32 2102212464, %v659
        %v669 = vor.u32 %v667, %v668
        %v670 = vshll.u32 2102212464, %v658
        %v671 = vshrl.u32 920167782, %v659
        %v672 = vor.u32 %v670, %v671
        %v673 = vshll.u32 920167782, %v658
        %v674 = vshrl.u32 1326507024, %v659
        %v675 = vor.u32 %v673, %v674
        %vm676 = vcmp.lt.s32.totalorder %v657, 1
        %vm677 = vcmp.lt.s32.totalorder %v657, 2
        %vm678 = vcmp.lt.s32.totalorder %v657, 3
        %vm679 = vcmp.lt.s32.totalorder %v657, 4
        %v680 = vsel %vm676, %v660, %v663
        %v681 = vsel %vm679, %v669, 2102212464
        %v682 = vsel %vm678, %v666, %v681
        %v683 = vsel %vm677, %v680, %v682
        %v684 = vsel %vm676, %v663, %v666
        %v685 = vsel %vm679, %v672, 920167782
        %v686 = vsel %vm678, %v669, %v685
        %v687 = vsel %vm677, %v684, %v686
        %v688 = vsel %vm676, %v666, %v669
        %v689 = vsel %vm679, %v675, 1326507024
        %v690 = vsel %vm678, %v672, %v689
        %v691 = vsel %vm677, %v688, %v690
        %v692 = vshll.u32 %v652, 8
        %v693 = vmul.u32.u64.compose %v692, %v691
        %v694 = vextract.low.u32 %v693
        %v695 = vextract.high.u32 %v693
        %v696 = vmul.u32.u64.compose %v692, %v687
        %v697 = vextract.low.u32 %v696
        %v698 = vextract.high.u32 %v696
        %v699 = vmul.u32 %v692, %v683
        %v700 = vadd.s32 %v695, %v697
        %vm701 = vc.u32 %v695, %v697
        %v702 = vadd.s32 %v698, 1
        %v703 = vsel %vm701, %v702, %v698
        %v704 = vadd.s32 %v699, %v703
        %v705 = vadd.s32 %v704, 536870912
        %v706 = vshrl.u32 %v705, 30
        %v707 = vshll.u32 %v706, 30
        %v708 = vsub.s32 %v704, %v707
        %vm709 = vcmp.lt.s32.totalorder %v708, 0
        %v710 = vsub.s32 0, %v708
        %v711 = vsel %vm709, %v710, %v708
        %v712 = vclz %v711
        %v713 = vsub.s32 %v712, 2
        %vm714 = vcmp.gt.s32.totalorder 0, %v713
        %v715 = vsel %vm714, 0, %v713
        %v716 = vsub.s32 32, %v715
        %v717 = vshll.u32 %v708, %v715
        %v718 = vshrl.u32 %v700, %v716
        %v719 = vor.u32 %v717, %v718
        %v720 = vsub.s32 4294967266, %v715
        %v721 = vadd.s32 %v720, 127
        %v722 = vshll.u32 %v721, 23
        %v723 = vor.u32 4788187, %v722
        %v724 = vand.u32 2147483647, %v723
        %v726 = vcvt.s32.f32 %v719
        %v727 = vmul.f32 %v726, %v724
        %v728 = vxor.u32 %v727, 2147483648
        %v729 = vsel %vm646, %v728, %v727
        %v730 = vsub.s32 4, %v706
        %v731 = vsel %vm646, %v730, %v706
        %v732 = vsel %vm645, %v303, %v729
        %v733 = vsel %vm645, 0, %v731
        %v734 = vcosq.f32.pop %v732
        %v735 = vsinq.f32.pop %v732
        %vm736 = vweird.f32 %v303
        %v737 = vadd.s32 %v733, 3
        %v738 = vand.u32 %v737, 3
        %vm739 = vcmp.lt.s32.totalorder %v738, 2
        %vm740 = vcmp.eq.s32.totalorder %v738, 0
        %v741 = vxor.u32 %v735, 2147483648
        %v742 = vsel %vm740, %v734, %v741
        %vm743 = vcmp.eq.s32.totalorder %v738, 2
        %v744 = vxor.u32 %v734, 2147483648
        %v745 = vsel %vm743, %v744, %v735
        %v746 = vsel %vm739, %v742, %v745
        %v747 = vsel %vm736, nan, %v746
        %v748 = vand.u32 2147483647, %v304
        %vm749 = vcmp.le.f32.partialorder %v748, 0.7853982
        %vm750 = vcmp.lt.s32.totalorder %v304, 0
        %v751 = vand.u32 %v304, 2139095040
        %v752 = vshrl.u32 %v751, 23
        %v753 = vsub.s32 %v752, 127
        %v754 = vand.u32 2147483647, %v304
        %v755 = vand.u32 %v754, 8388607
        %v756 = vor.u32 %v755, 8388608
        %v757 = vsub.s32 0, %v756
        %v758 = vadd.s32 %v753, 1
        %vm759 = vcmp.gt.s32.totalorder %v758, 0
        %v760 = vsel %vm759, %v758, 0
        %v761 = vshrl.u32 %v760, 5
        %v762 = vand.u32 %v760, 31
        %v763 = vsub.s32 32, %v762
        %v764 = vshrl.u32 683565275, %v763
        %v765 = vshll.u32 683565275, %v762
        %v766 = vshrl.u32 2475754826, %v763
        %v767 = vor.u32 %v765, %v766
        %v768 = vshll.u32 2475754826, %v762
        %v769 = vshrl.u32 2131351028, %v763
        %v770 = vor.u32 %v768, %v769
        %v771 = vshll.u32 2131351028, %v762
        %v772 = vshrl.u32 2102212464, %v763
        %v773 = vor.u32 %v771, %v772
        %v774 = vshll.u32 2102212464, %v762
        %v775 = vshrl.u32 920167782, %v763
        %v776 = vor.u32 %v774, %v775
        %v777 = vshll.u32 920167782, %v762
        %v778 = vshrl.u32 1326507024, %v763
        %v779 = vor.u32 %v777, %v778
        %vm780 = vcmp.lt.s32.totalorder %v761, 1
        %vm781 = vcmp.lt.s32.totalorder %v761, 2
        %vm782 = vcmp.lt.s32.totalorder %v761, 3
        %vm783 = vcmp.lt.s32.totalorder %v761, 4
        %v784 = vsel %vm780, %v764, %v767
        %v785 = vsel %vm783, %v773, 2102212464
        %v786 = vsel %vm782, %v770, %v785
        %v787 = vsel %vm781, %v784, %v786
        %v788 = vsel %vm780, %v767, %v770
        %v789 = vsel %vm783, %v776, 920167782
        %v790 = vsel %vm782, %v773, %v789
        %v791 = vsel %vm781, %v788, %v790
        %v792 = vsel %vm780, %v770, %v773
        %v793 = vsel %vm783, %v779, 1326507024
        %v794 = vsel %vm782, %v776, %v793
        %v795 = vsel %vm781, %v792, %v794
        %v796 = vshll.u32 %v756, 8
        %v797 = vmul.u32.u64.compose %v796, %v795
        %v798 = vextract.low.u32 %v797
        %v799 = vextract.high.u32 %v797
        %v800 = vmul.u32.u64.compose %v796, %v791
        %v801 = vextract.low.u32 %v800
        %v802 = vextract.high.u32 %v800
        %v803 = vmul.u32 %v796, %v787
        %v804 = vadd.s32 %v799, %v801
        %vm805 = vc.u32 %v799, %v801
        %v806 = vadd.s32 %v802, 1
        %v807 = vsel %vm805, %v806, %v802
        %v808 = vadd.s32 %v803, %v807
        %v809 = vadd.s32 %v808, 536870912
        %v810 = vshrl.u32 %v809, 30
        %v811 = vshll.u32 %v810, 30
        %v812 = vsub.s32 %v808, %v811
        %vm813 = vcmp.lt.s32.totalorder %v812, 0
        %v814 = vsub.s32 0, %v812
        %v815 = vsel %vm813, %v814, %v812
        %v816 = vclz %v815
        %v817 = vsub.s32 %v816, 2
        %vm818 = vcmp.gt.s32.totalorder 0, %v817
        %v819 = vsel %vm818, 0, %v817
        %v820 = vsub.s32 32, %v819
        %v821 = vshll.u32 %v812, %v819
        %v822 = vshrl.u32 %v804, %v820
        %v823 = vor.u32 %v821, %v822
        %v824 = vsub.s32 4294967266, %v819
        %v825 = vadd.s32 %v824, 127
        %v826 = vshll.u32 %v825, 23
        %v827 = vor.u32 4788187, %v826
        %v828 = vand.u32 2147483647, %v827
        %v830 = vcvt.s32.f32 %v823
        %v831 = vmul.f32 %v830, %v828
        %v832 = vxor.u32 %v831, 2147483648
        %v833 = vsel %vm750, %v832, %v831
        %v834 = vsub.s32 4, %v810
        %v835 = vsel %vm750, %v834, %v810
        %v836 = vsel %vm749, %v304, %v833
        %v837 = vsel %vm749, 0, %v835
        %v838 = vcosq.f32.pop %v836
        %v839 = vsinq.f32.pop %v836
        %vm840 = vweird.f32 %v304
        %v841 = vadd.s32 %v837, 3
        %v842 = vand.u32 %v841, 3
        %vm843 = vcmp.lt.s32.totalorder %v842, 2
        %vm844 = vcmp.eq.s32.totalorder %v842, 0
        %v845 = vxor.u32 %v839, 2147483648
        %v846 = vsel %vm844, %v838, %v845
        %vm847 = vcmp.eq.s32.totalorder %v842, 2
        %v848 = vxor.u32 %v838, 2147483648
        %v849 = vsel %vm847, %v848, %v839
        %v850 = vsel %vm843, %v846, %v849
        %v851 = vsel %vm840, nan, %v850
        %v852 = vand.u32 2147483647, %v305
        %vm853 = vcmp.le.f32.partialorder %v852, 0.7853982
        %vm854 = vcmp.lt.s32.totalorder %v305, 0
        %v855 = vand.u32 %v305, 2139095040
        %v856 = vshrl.u32 %v855, 23
        %v857 = vsub.s32 %v856, 127
        %v858 = vand.u32 2147483647, %v305
        %v859 = vand.u32 %v858, 8388607
        %v860 = vor.u32 %v859, 8388608
        %v861 = vsub.s32 0, %v860
        %v862 = vadd.s32 %v857, 1
        %vm863 = vcmp.gt.s32.totalorder %v862, 0
        %v864 = vsel %vm863, %v862, 0
        %v865 = vshrl.u32 %v864, 5
        %v866 = vand.u32 %v864, 31
        %v867 = vsub.s32 32, %v866
        %v868 = vshrl.u32 683565275, %v867
        %v869 = vshll.u32 683565275, %v866
        %v870 = vshrl.u32 2475754826, %v867
        %v871 = vor.u32 %v869, %v870
        %v872 = vshll.u32 2475754826, %v866
        %v873 = vshrl.u32 2131351028, %v867
        %v874 = vor.u32 %v872, %v873
        %v875 = vshll.u32 2131351028, %v866
        %v876 = vshrl.u32 2102212464, %v867
        %v877 = vor.u32 %v875, %v876
        %v878 = vshll.u32 2102212464, %v866
        %v879 = vshrl.u32 920167782, %v867
        %v880 = vor.u32 %v878, %v879
        %v881 = vshll.u32 920167782, %v866
        %v882 = vshrl.u32 1326507024, %v867
        %v883 = vor.u32 %v881, %v882
        %vm884 = vcmp.lt.s32.totalorder %v865, 1
        %vm885 = vcmp.lt.s32.totalorder %v865, 2
        %vm886 = vcmp.lt.s32.totalorder %v865, 3
        %vm887 = vcmp.lt.s32.totalorder %v865, 4
        %v888 = vsel %vm884, %v868, %v871
        %v889 = vsel %vm887, %v877, 2102212464
        %v890 = vsel %vm886, %v874, %v889
        %v891 = vsel %vm885, %v888, %v890
        %v892 = vsel %vm884, %v871, %v874
        %v893 = vsel %vm887, %v880, 920167782
        %v894 = vsel %vm886, %v877, %v893
        %v895 = vsel %vm885, %v892, %v894
        %v896 = vsel %vm884, %v874, %v877
        %v897 = vsel %vm887, %v883, 1326507024
        %v898 = vsel %vm886, %v880, %v897
        %v899 = vsel %vm885, %v896, %v898
        %v900 = vshll.u32 %v860, 8
        %v901 = vmul.u32.u64.compose %v900, %v899
        %v902 = vextract.low.u32 %v901
        %v903 = vextract.high.u32 %v901
        %v904 = vmul.u32.u64.compose %v900, %v895
        %v905 = vextract.low.u32 %v904
        %v906 = vextract.high.u32 %v904
        %v907 = vmul.u32 %v900, %v891
        %v908 = vadd.s32 %v903, %v905
        %vm909 = vc.u32 %v903, %v905
        %v910 = vadd.s32 %v906, 1
        %v911 = vsel %vm909, %v910, %v906
        %v912 = vadd.s32 %v907, %v911
        %v913 = vadd.s32 %v912, 536870912
        %v914 = vshrl.u32 %v913, 30
        %v915 = vshll.u32 %v914, 30
        %v916 = vsub.s32 %v912, %v915
        %vm917 = vcmp.lt.s32.totalorder %v916, 0
        %v918 = vsub.s32 0, %v916
        %v919 = vsel %vm917, %v918, %v916
        %v920 = vclz %v919
        %v921 = vsub.s32 %v920, 2
        %vm922 = vcmp.gt.s32.totalorder 0, %v921
        %v923 = vsel %vm922, 0, %v921
        %v924 = vsub.s32 32, %v923
        %v925 = vshll.u32 %v916, %v923
        %v926 = vshrl.u32 %v908, %v924
        %v927 = vor.u32 %v925, %v926
        %v928 = vsub.s32 4294967266, %v923
        %v929 = vadd.s32 %v928, 127
        %v930 = vshll.u32 %v929, 23
        %v931 = vor.u32 4788187, %v930
        %v932 = vand.u32 2147483647, %v931
        %v934 = vcvt.s32.f32 %v927
        %v935 = vmul.f32 %v934, %v932
        %v936 = vxor.u32 %v935, 2147483648
        %v937 = vsel %vm854, %v936, %v935
        %v938 = vsub.s32 4, %v914
        %v939 = vsel %vm854, %v938, %v914
        %v940 = vsel %vm853, %v305, %v937
        %v941 = vsel %vm853, 0, %v939
        %v942 = vcosq.f32.pop %v940
        %v943 = vsinq.f32.pop %v940
        %vm944 = vweird.f32 %v305
        %v945 = vadd.s32 %v941, 3
        %v946 = vand.u32 %v945, 3
        %vm947 = vcmp.lt.s32.totalorder %v946, 2
        %vm948 = vcmp.eq.s32.totalorder %v946, 0
        %v949 = vxor.u32 %v943, 2147483648
        %v950 = vsel %vm948, %v942, %v949
        %vm951 = vcmp.eq.s32.totalorder %v946, 2
        %v952 = vxor.u32 %v942, 2147483648
        %v953 = vsel %vm951, %v952, %v943
        %v954 = vsel %vm947, %v950, %v953
        %v955 = vsel %vm944, nan, %v954
        %v956 = vand.u32 2147483647, %v306
        %vm957 = vcmp.le.f32.partialorder %v956, 0.7853982
        %vm958 = vcmp.lt.s32.totalorder %v306, 0
        %v959 = vand.u32 %v306, 2139095040
        %v960 = vshrl.u32 %v959, 23
        %v961 = vsub.s32 %v960, 127
        %v962 = vand.u32 2147483647, %v306
        %v963 = vand.u32 %v962, 8388607
        %v964 = vor.u32 %v963, 8388608
        %v965 = vsub.s32 0, %v964
        %v966 = vadd.s32 %v961, 1
        %vm967 = vcmp.gt.s32.totalorder %v966, 0
        %v968 = vsel %vm967, %v966, 0
        %v969 = vshrl.u32 %v968, 5
        %v970 = vand.u32 %v968, 31
        %v971 = vsub.s32 32, %v970
        %v972 = vshrl.u32 683565275, %v971
        %v973 = vshll.u32 683565275, %v970
        %v974 = vshrl.u32 2475754826, %v971
        %v975 = vor.u32 %v973, %v974
        %v976 = vshll.u32 2475754826, %v970
        %v977 = vshrl.u32 2131351028, %v971
        %v978 = vor.u32 %v976, %v977
        %v979 = vshll.u32 2131351028, %v970
        %v980 = vshrl.u32 2102212464, %v971
        %v981 = vor.u32 %v979, %v980
        %v982 = vshll.u32 2102212464, %v970
        %v983 = vshrl.u32 920167782, %v971
        %v984 = vor.u32 %v982, %v983
        %v985 = vshll.u32 920167782, %v970
        %v986 = vshrl.u32 1326507024, %v971
        %v987 = vor.u32 %v985, %v986
        %vm988 = vcmp.lt.s32.totalorder %v969, 1
        %vm989 = vcmp.lt.s32.totalorder %v969, 2
        %vm990 = vcmp.lt.s32.totalorder %v969, 3
        %vm991 = vcmp.lt.s32.totalorder %v969, 4
        %v992 = vsel %vm988, %v972, %v975
        %v993 = vsel %vm991, %v981, 2102212464
        %v994 = vsel %vm990, %v978, %v993
        %v995 = vsel %vm989, %v992, %v994
        %v996 = vsel %vm988, %v975, %v978
        %v997 = vsel %vm991, %v984, 920167782
        %v998 = vsel %vm990, %v981, %v997
        %v999 = vsel %vm989, %v996, %v998
        %v1000 = vsel %vm988, %v978, %v981
        %v1001 = vsel %vm991, %v987, 1326507024
        %v1002 = vsel %vm990, %v984, %v1001
        %v1003 = vsel %vm989, %v1000, %v1002
        %v1004 = vshll.u32 %v964, 8
        %v1005 = vmul.u32.u64.compose %v1004, %v1003
        %v1006 = vextract.low.u32 %v1005
        %v1007 = vextract.high.u32 %v1005
        %v1008 = vmul.u32.u64.compose %v1004, %v999
        %v1009 = vextract.low.u32 %v1008
        %v1010 = vextract.high.u32 %v1008
        %v1011 = vmul.u32 %v1004, %v995
        %v1012 = vadd.s32 %v1007, %v1009
        %vm1013 = vc.u32 %v1007, %v1009
        %v1014 = vadd.s32 %v1010, 1
        %v1015 = vsel %vm1013, %v1014, %v1010
        %v1016 = vadd.s32 %v1011, %v1015
        %v1017 = vadd.s32 %v1016, 536870912
        %v1018 = vshrl.u32 %v1017, 30
        %v1019 = vshll.u32 %v1018, 30
        %v1020 = vsub.s32 %v1016, %v1019
        %vm1021 = vcmp.lt.s32.totalorder %v1020, 0
        %v1022 = vsub.s32 0, %v1020
        %v1023 = vsel %vm1021, %v1022, %v1020
        %v1024 = vclz %v1023
        %v1025 = vsub.s32 %v1024, 2
        %vm1026 = vcmp.gt.s32.totalorder 0, %v1025
        %v1027 = vsel %vm1026, 0, %v1025
        %v1028 = vsub.s32 32, %v1027
        %v1029 = vshll.u32 %v1020, %v1027
        %v1030 = vshrl.u32 %v1012, %v1028
        %v1031 = vor.u32 %v1029, %v1030
        %v1032 = vsub.s32 4294967266, %v1027
        %v1033 = vadd.s32 %v1032, 127
        %v1034 = vshll.u32 %v1033, 23
        %v1035 = vor.u32 4788187, %v1034
        %v1036 = vand.u32 2147483647, %v1035
        %v1038 = vcvt.s32.f32 %v1031
        %v1039 = vmul.f32 %v1038, %v1036
        %v1040 = vxor.u32 %v1039, 2147483648
        %v1041 = vsel %vm958, %v1040, %v1039
        %v1042 = vsub.s32 4, %v1018
        %v1043 = vsel %vm958, %v1042, %v1018
        %v1044 = vsel %vm957, %v306, %v1041
        %v1045 = vsel %vm957, 0, %v1043
        %v1046 = vcosq.f32.pop %v1044
        %v1047 = vsinq.f32.pop %v1044
        %vm1048 = vweird.f32 %v306
        %v1049 = vadd.s32 %v1045, 3
        %v1050 = vand.u32 %v1049, 3
        %vm1051 = vcmp.lt.s32.totalorder %v1050, 2
        %vm1052 = vcmp.eq.s32.totalorder %v1050, 0
        %v1053 = vxor.u32 %v1047, 2147483648
        %v1054 = vsel %vm1052, %v1046, %v1053
        %vm1055 = vcmp.eq.s32.totalorder %v1050, 2
        %v1056 = vxor.u32 %v1046, 2147483648
        %v1057 = vsel %vm1055, %v1056, %v1047
        %v1058 = vsel %vm1051, %v1054, %v1057
        %v1059 = vsel %vm1048, nan, %v1058
        %v1060 = vand.u32 2147483647, %v307
        %vm1061 = vcmp.le.f32.partialorder %v1060, 0.7853982
        %vm1062 = vcmp.lt.s32.totalorder %v307, 0
        %v1063 = vand.u32 %v307, 2139095040
        %v1064 = vshrl.u32 %v1063, 23
        %v1065 = vsub.s32 %v1064, 127
        %v1066 = vand.u32 2147483647, %v307
        %v1067 = vand.u32 %v1066, 8388607
        %v1068 = vor.u32 %v1067, 8388608
        %v1069 = vsub.s32 0, %v1068
        %v1070 = vadd.s32 %v1065, 1
        %vm1071 = vcmp.gt.s32.totalorder %v1070, 0
        %v1072 = vsel %vm1071, %v1070, 0
        %v1073 = vshrl.u32 %v1072, 5
        %v1074 = vand.u32 %v1072, 31
        %v1075 = vsub.s32 32, %v1074
        %v1076 = vshrl.u32 683565275, %v1075
        %v1077 = vshll.u32 683565275, %v1074
        %v1078 = vshrl.u32 2475754826, %v1075
        %v1079 = vor.u32 %v1077, %v1078
        %v1080 = vshll.u32 2475754826, %v1074
        %v1081 = vshrl.u32 2131351028, %v1075
        %v1082 = vor.u32 %v1080, %v1081
        %v1083 = vshll.u32 2131351028, %v1074
        %v1084 = vshrl.u32 2102212464, %v1075
        %v1085 = vor.u32 %v1083, %v1084
        %v1086 = vshll.u32 2102212464, %v1074
        %v1087 = vshrl.u32 920167782, %v1075
        %v1088 = vor.u32 %v1086, %v1087
        %v1089 = vshll.u32 920167782, %v1074
        %v1090 = vshrl.u32 1326507024, %v1075
        %v1091 = vor.u32 %v1089, %v1090
        %vm1092 = vcmp.lt.s32.totalorder %v1073, 1
        %vm1093 = vcmp.lt.s32.totalorder %v1073, 2
        %vm1094 = vcmp.lt.s32.totalorder %v1073, 3
        %vm1095 = vcmp.lt.s32.totalorder %v1073, 4
        %v1096 = vsel %vm1092, %v1076, %v1079
        %v1097 = vsel %vm1095, %v1085, 2102212464
        %v1098 = vsel %vm1094, %v1082, %v1097
        %v1099 = vsel %vm1093, %v1096, %v1098
        %v1100 = vsel %vm1092, %v1079, %v1082
        %v1101 = vsel %vm1095, %v1088, 920167782
        %v1102 = vsel %vm1094, %v1085, %v1101
        %v1103 = vsel %vm1093, %v1100, %v1102
        %v1104 = vsel %vm1092, %v1082, %v1085
        %v1105 = vsel %vm1095, %v1091, 1326507024
        %v1106 = vsel %vm1094, %v1088, %v1105
        %v1107 = vsel %vm1093, %v1104, %v1106
        %v1108 = vshll.u32 %v1068, 8
        %v1109 = vmul.u32.u64.compose %v1108, %v1107
        %v1110 = vextract.low.u32 %v1109
        %v1111 = vextract.high.u32 %v1109
        %v1112 = vmul.u32.u64.compose %v1108, %v1103
        %v1113 = vextract.low.u32 %v1112
        %v1114 = vextract.high.u32 %v1112
        %v1115 = vmul.u32 %v1108, %v1099
        %v1116 = vadd.s32 %v1111, %v1113
        %vm1117 = vc.u32 %v1111, %v1113
        %v1118 = vadd.s32 %v1114, 1
        %v1119 = vsel %vm1117, %v1118, %v1114
        %v1120 = vadd.s32 %v1115, %v1119
        %v1121 = vadd.s32 %v1120, 536870912
        %v1122 = vshrl.u32 %v1121, 30
        %v1123 = vshll.u32 %v1122, 30
        %v1124 = vsub.s32 %v1120, %v1123
        %vm1125 = vcmp.lt.s32.totalorder %v1124, 0
        %v1126 = vsub.s32 0, %v1124
        %v1127 = vsel %vm1125, %v1126, %v1124
        %v1128 = vclz %v1127
        %v1129 = vsub.s32 %v1128, 2
        %vm1130 = vcmp.gt.s32.totalorder 0, %v1129
        %v1131 = vsel %vm1130, 0, %v1129
        %v1132 = vsub.s32 32, %v1131
        %v1133 = vshll.u32 %v1124, %v1131
        %v1134 = vshrl.u32 %v1116, %v1132
        %v1135 = vor.u32 %v1133, %v1134
        %v1136 = vsub.s32 4294967266, %v1131
        %v1137 = vadd.s32 %v1136, 127
        %v1138 = vshll.u32 %v1137, 23
        %v1139 = vor.u32 4788187, %v1138
        %v1140 = vand.u32 2147483647, %v1139
        %v1142 = vcvt.s32.f32 %v1135
        %v1143 = vmul.f32 %v1142, %v1140
        %v1144 = vxor.u32 %v1143, 2147483648
        %v1145 = vsel %vm1062, %v1144, %v1143
        %v1146 = vsub.s32 4, %v1122
        %v1147 = vsel %vm1062, %v1146, %v1122
        %v1148 = vsel %vm1061, %v307, %v1145
        %v1149 = vsel %vm1061, 0, %v1147
        %v1150 = vcosq.f32.pop %v1148
        %v1151 = vsinq.f32.pop %v1148
        %vm1152 = vweird.f32 %v307
        %v1153 = vadd.s32 %v1149, 3
        %v1154 = vand.u32 %v1153, 3
        %vm1155 = vcmp.lt.s32.totalorder %v1154, 2
        %vm1156 = vcmp.eq.s32.totalorder %v1154, 0
        %v1157 = vxor.u32 %v1151, 2147483648
        %v1158 = vsel %vm1156, %v1150, %v1157
        %vm1159 = vcmp.eq.s32.totalorder %v1154, 2
        %v1160 = vxor.u32 %v1150, 2147483648
        %v1161 = vsel %vm1159, %v1160, %v1151
        %v1162 = vsel %vm1155, %v1158, %v1161
        %v1163 = vsel %vm1152, nan, %v1162
        %v1164 = vand.u32 2147483647, %v308
        %vm1165 = vcmp.le.f32.partialorder %v1164, 0.7853982
        %vm1166 = vcmp.lt.s32.totalorder %v308, 0
        %v1167 = vand.u32 %v308, 2139095040
        %v1168 = vshrl.u32 %v1167, 23
        %v1169 = vsub.s32 %v1168, 127
        %v1170 = vand.u32 2147483647, %v308
        %v1171 = vand.u32 %v1170, 8388607
        %v1172 = vor.u32 %v1171, 8388608
        %v1173 = vsub.s32 0, %v1172
        %v1174 = vadd.s32 %v1169, 1
        %vm1175 = vcmp.gt.s32.totalorder %v1174, 0
        %v1176 = vsel %vm1175, %v1174, 0
        %v1177 = vshrl.u32 %v1176, 5
        %v1178 = vand.u32 %v1176, 31
        %v1179 = vsub.s32 32, %v1178
        %v1180 = vshrl.u32 683565275, %v1179
        %v1181 = vshll.u32 683565275, %v1178
        %v1182 = vshrl.u32 2475754826, %v1179
        %v1183 = vor.u32 %v1181, %v1182
        %v1184 = vshll.u32 2475754826, %v1178
        %v1185 = vshrl.u32 2131351028, %v1179
        %v1186 = vor.u32 %v1184, %v1185
        %v1187 = vshll.u32 2131351028, %v1178
        %v1188 = vshrl.u32 2102212464, %v1179
        %v1189 = vor.u32 %v1187, %v1188
        %v1190 = vshll.u32 2102212464, %v1178
        %v1191 = vshrl.u32 920167782, %v1179
        %v1192 = vor.u32 %v1190, %v1191
        %v1193 = vshll.u32 920167782, %v1178
        %v1194 = vshrl.u32 1326507024, %v1179
        %v1195 = vor.u32 %v1193, %v1194
        %vm1196 = vcmp.lt.s32.totalorder %v1177, 1
        %vm1197 = vcmp.lt.s32.totalorder %v1177, 2
        %vm1198 = vcmp.lt.s32.totalorder %v1177, 3
        %vm1199 = vcmp.lt.s32.totalorder %v1177, 4
        %v1200 = vsel %vm1196, %v1180, %v1183
        %v1201 = vsel %vm1199, %v1189, 2102212464
        %v1202 = vsel %vm1198, %v1186, %v1201
        %v1203 = vsel %vm1197, %v1200, %v1202
        %v1204 = vsel %vm1196, %v1183, %v1186
        %v1205 = vsel %vm1199, %v1192, 920167782
        %v1206 = vsel %vm1198, %v1189, %v1205
        %v1207 = vsel %vm1197, %v1204, %v1206
        %v1208 = vsel %vm1196, %v1186, %v1189
        %v1209 = vsel %vm1199, %v1195, 1326507024
        %v1210 = vsel %vm1198, %v1192, %v1209
        %v1211 = vsel %vm1197, %v1208, %v1210
        %v1212 = vshll.u32 %v1172, 8
        %v1213 = vmul.u32.u64.compose %v1212, %v1211
        %v1214 = vextract.low.u32 %v1213
        %v1215 = vextract.high.u32 %v1213
        %v1216 = vmul.u32.u64.compose %v1212, %v1207
        %v1217 = vextract.low.u32 %v1216
        %v1218 = vextract.high.u32 %v1216
        %v1219 = vmul.u32 %v1212, %v1203
        %v1220 = vadd.s32 %v1215, %v1217
        %vm1221 = vc.u32 %v1215, %v1217
        %v1222 = vadd.s32 %v1218, 1
        %v1223 = vsel %vm1221, %v1222, %v1218
        %v1224 = vadd.s32 %v1219, %v1223
        %v1225 = vadd.s32 %v1224, 536870912
        %v1226 = vshrl.u32 %v1225, 30
        %v1227 = vshll.u32 %v1226, 30
        %v1228 = vsub.s32 %v1224, %v1227
        %vm1229 = vcmp.lt.s32.totalorder %v1228, 0
        %v1230 = vsub.s32 0, %v1228
        %v1231 = vsel %vm1229, %v1230, %v1228
        %v1232 = vclz %v1231
        %v1233 = vsub.s32 %v1232, 2
        %vm1234 = vcmp.gt.s32.totalorder 0, %v1233
        %v1235 = vsel %vm1234, 0, %v1233
        %v1236 = vsub.s32 32, %v1235
        %v1237 = vshll.u32 %v1228, %v1235
        %v1238 = vshrl.u32 %v1220, %v1236
        %v1239 = vor.u32 %v1237, %v1238
        %v1240 = vsub.s32 4294967266, %v1235
        %v1241 = vadd.s32 %v1240, 127
        %v1242 = vshll.u32 %v1241, 23
        %v1243 = vor.u32 4788187, %v1242
        %v1244 = vand.u32 2147483647, %v1243
        %v1246 = vcvt.s32.f32 %v1239
        %v1247 = vmul.f32 %v1246, %v1244
        %v1248 = vxor.u32 %v1247, 2147483648
        %v1249 = vsel %vm1166, %v1248, %v1247
        %v1250 = vsub.s32 4, %v1226
        %v1251 = vsel %vm1166, %v1250, %v1226
        %v1252 = vsel %vm1165, %v308, %v1249
        %v1253 = vsel %vm1165, 0, %v1251
        %v1254 = vcosq.f32.pop %v1252
        %v1255 = vsinq.f32.pop %v1252
        %vm1256 = vweird.f32 %v308
        %v1257 = vadd.s32 %v1253, 3
        %v1258 = vand.u32 %v1257, 3
        %vm1259 = vcmp.lt.s32.totalorder %v1258, 2
        %vm1260 = vcmp.eq.s32.totalorder %v1258, 0
        %v1261 = vxor.u32 %v1255, 2147483648
        %v1262 = vsel %vm1260, %v1254, %v1261
        %vm1263 = vcmp.eq.s32.totalorder %v1258, 2
        %v1264 = vxor.u32 %v1254, 2147483648
        %v1265 = vsel %vm1263, %v1264, %v1255
        %v1266 = vsel %vm1259, %v1262, %v1265
        %v1267 = vsel %vm1256, nan, %v1266
        %v1268 = vand.u32 2147483647, %v309
        %vm1269 = vcmp.le.f32.partialorder %v1268, 0.7853982
        %vm1270 = vcmp.lt.s32.totalorder %v309, 0
        %v1271 = vand.u32 %v309, 2139095040
        %v1272 = vshrl.u32 %v1271, 23
        %v1273 = vsub.s32 %v1272, 127
        %v1274 = vand.u32 2147483647, %v309
        %v1275 = vand.u32 %v1274, 8388607
        %v1276 = vor.u32 %v1275, 8388608
        %v1277 = vsub.s32 0, %v1276
        %v1278 = vadd.s32 %v1273, 1
        %vm1279 = vcmp.gt.s32.totalorder %v1278, 0
        %v1280 = vsel %vm1279, %v1278, 0
        %v1281 = vshrl.u32 %v1280, 5
        %v1282 = vand.u32 %v1280, 31
        %v1283 = vsub.s32 32, %v1282
        %v1284 = vshrl.u32 683565275, %v1283
        %v1285 = vshll.u32 683565275, %v1282
        %v1286 = vshrl.u32 2475754826, %v1283
        %v1287 = vor.u32 %v1285, %v1286
        %v1288 = vshll.u32 2475754826, %v1282
        %v1289 = vshrl.u32 2131351028, %v1283
        %v1290 = vor.u32 %v1288, %v1289
        %v1291 = vshll.u32 2131351028, %v1282
        %v1292 = vshrl.u32 2102212464, %v1283
        %v1293 = vor.u32 %v1291, %v1292
        %v1294 = vshll.u32 2102212464, %v1282
        %v1295 = vshrl.u32 920167782, %v1283
        %v1296 = vor.u32 %v1294, %v1295
        %v1297 = vshll.u32 920167782, %v1282
        %v1298 = vshrl.u32 1326507024, %v1283
        %v1299 = vor.u32 %v1297, %v1298
        %vm1300 = vcmp.lt.s32.totalorder %v1281, 1
        %vm1301 = vcmp.lt.s32.totalorder %v1281, 2
        %vm1302 = vcmp.lt.s32.totalorder %v1281, 3
        %vm1303 = vcmp.lt.s32.totalorder %v1281, 4
        %v1304 = vsel %vm1300, %v1284, %v1287
        %v1305 = vsel %vm1303, %v1293, 2102212464
        %v1306 = vsel %vm1302, %v1290, %v1305
        %v1307 = vsel %vm1301, %v1304, %v1306
        %v1308 = vsel %vm1300, %v1287, %v1290
        %v1309 = vsel %vm1303, %v1296, 920167782
        %v1310 = vsel %vm1302, %v1293, %v1309
        %v1311 = vsel %vm1301, %v1308, %v1310
        %v1312 = vsel %vm1300, %v1290, %v1293
        %v1313 = vsel %vm1303, %v1299, 1326507024
        %v1314 = vsel %vm1302, %v1296, %v1313
        %v1315 = vsel %vm1301, %v1312, %v1314
        %v1316 = vshll.u32 %v1276, 8
        %v1317 = vmul.u32.u64.compose %v1316, %v1315
        %v1318 = vextract.low.u32 %v1317
        %v1319 = vextract.high.u32 %v1317
        %v1320 = vmul.u32.u64.compose %v1316, %v1311
        %v1321 = vextract.low.u32 %v1320
        %v1322 = vextract.high.u32 %v1320
        %v1323 = vmul.u32 %v1316, %v1307
        %v1324 = vadd.s32 %v1319, %v1321
        %vm1325 = vc.u32 %v1319, %v1321
        %v1326 = vadd.s32 %v1322, 1
        %v1327 = vsel %vm1325, %v1326, %v1322
        %v1328 = vadd.s32 %v1323, %v1327
        %v1329 = vadd.s32 %v1328, 536870912
        %v1330 = vshrl.u32 %v1329, 30
        %v1331 = vshll.u32 %v1330, 30
        %v1332 = vsub.s32 %v1328, %v1331
        %vm1333 = vcmp.lt.s32.totalorder %v1332, 0
        %v1334 = vsub.s32 0, %v1332
        %v1335 = vsel %vm1333, %v1334, %v1332
        %v1336 = vclz %v1335
        %v1337 = vsub.s32 %v1336, 2
        %vm1338 = vcmp.gt.s32.totalorder 0, %v1337
        %v1339 = vsel %vm1338, 0, %v1337
        %v1340 = vsub.s32 32, %v1339
        %v1341 = vshll.u32 %v1332, %v1339
        %v1342 = vshrl.u32 %v1324, %v1340
        %v1343 = vor.u32 %v1341, %v1342
        %v1344 = vsub.s32 4294967266, %v1339
        %v1345 = vadd.s32 %v1344, 127
        %v1346 = vshll.u32 %v1345, 23
        %v1347 = vor.u32 4788187, %v1346
        %v1348 = vand.u32 2147483647, %v1347
        %v1350 = vcvt.s32.f32 %v1343
        %v1351 = vmul.f32 %v1350, %v1348
        %v1352 = vxor.u32 %v1351, 2147483648
        %v1353 = vsel %vm1270, %v1352, %v1351
        %v1354 = vsub.s32 4, %v1330
        %v1355 = vsel %vm1270, %v1354, %v1330
        %v1356 = vsel %vm1269, %v309, %v1353
        %v1357 = vsel %vm1269, 0, %v1355
        %v1358 = vcosq.f32.pop %v1356
        %v1359 = vsinq.f32.pop %v1356
        %vm1360 = vweird.f32 %v309
        %v1361 = vadd.s32 %v1357, 3
        %v1362 = vand.u32 %v1361, 3
        %vm1363 = vcmp.lt.s32.totalorder %v1362, 2
        %vm1364 = vcmp.eq.s32.totalorder %v1362, 0
        %v1365 = vxor.u32 %v1359, 2147483648
        %v1366 = vsel %vm1364, %v1358, %v1365
        %vm1367 = vcmp.eq.s32.totalorder %v1362, 2
        %v1368 = vxor.u32 %v1358, 2147483648
        %v1369 = vsel %vm1367, %v1368, %v1359
        %v1370 = vsel %vm1363, %v1366, %v1369
        %v1371 = vsel %vm1360, nan, %v1370
        %v1372 = vand.u32 2147483647, %v310
        %vm1373 = vcmp.le.f32.partialorder %v1372, 0.7853982
        %vm1374 = vcmp.lt.s32.totalorder %v310, 0
        %v1375 = vand.u32 %v310, 2139095040
        %v1376 = vshrl.u32 %v1375, 23
        %v1377 = vsub.s32 %v1376, 127
        %v1378 = vand.u32 2147483647, %v310
        %v1379 = vand.u32 %v1378, 8388607
        %v1380 = vor.u32 %v1379, 8388608
        %v1381 = vsub.s32 0, %v1380
        %v1382 = vadd.s32 %v1377, 1
        %vm1383 = vcmp.gt.s32.totalorder %v1382, 0
        %v1384 = vsel %vm1383, %v1382, 0
        %v1385 = vshrl.u32 %v1384, 5
        %v1386 = vand.u32 %v1384, 31
        %v1387 = vsub.s32 32, %v1386
        %v1388 = vshrl.u32 683565275, %v1387
        %v1389 = vshll.u32 683565275, %v1386
        %v1390 = vshrl.u32 2475754826, %v1387
        %v1391 = vor.u32 %v1389, %v1390
        %v1392 = vshll.u32 2475754826, %v1386
        %v1393 = vshrl.u32 2131351028, %v1387
        %v1394 = vor.u32 %v1392, %v1393
        %v1395 = vshll.u32 2131351028, %v1386
        %v1396 = vshrl.u32 2102212464, %v1387
        %v1397 = vor.u32 %v1395, %v1396
        %v1398 = vshll.u32 2102212464, %v1386
        %v1399 = vshrl.u32 920167782, %v1387
        %v1400 = vor.u32 %v1398, %v1399
        %v1401 = vshll.u32 920167782, %v1386
        %v1402 = vshrl.u32 1326507024, %v1387
        %v1403 = vor.u32 %v1401, %v1402
        %vm1404 = vcmp.lt.s32.totalorder %v1385, 1
        %vm1405 = vcmp.lt.s32.totalorder %v1385, 2
        %vm1406 = vcmp.lt.s32.totalorder %v1385, 3
        %vm1407 = vcmp.lt.s32.totalorder %v1385, 4
        %v1408 = vsel %vm1404, %v1388, %v1391
        %v1409 = vsel %vm1407, %v1397, 2102212464
        %v1410 = vsel %vm1406, %v1394, %v1409
        %v1411 = vsel %vm1405, %v1408, %v1410
        %v1412 = vsel %vm1404, %v1391, %v1394
        %v1413 = vsel %vm1407, %v1400, 920167782
        %v1414 = vsel %vm1406, %v1397, %v1413
        %v1415 = vsel %vm1405, %v1412, %v1414
        %v1416 = vsel %vm1404, %v1394, %v1397
        %v1417 = vsel %vm1407, %v1403, 1326507024
        %v1418 = vsel %vm1406, %v1400, %v1417
        %v1419 = vsel %vm1405, %v1416, %v1418
        %v1420 = vshll.u32 %v1380, 8
        %v1421 = vmul.u32.u64.compose %v1420, %v1419
        %v1422 = vextract.low.u32 %v1421
        %v1423 = vextract.high.u32 %v1421
        %v1424 = vmul.u32.u64.compose %v1420, %v1415
        %v1425 = vextract.low.u32 %v1424
        %v1426 = vextract.high.u32 %v1424
        %v1427 = vmul.u32 %v1420, %v1411
        %v1428 = vadd.s32 %v1423, %v1425
        %vm1429 = vc.u32 %v1423, %v1425
        %v1430 = vadd.s32 %v1426, 1
        %v1431 = vsel %vm1429, %v1430, %v1426
        %v1432 = vadd.s32 %v1427, %v1431
        %v1433 = vadd.s32 %v1432, 536870912
        %v1434 = vshrl.u32 %v1433, 30
        %v1435 = vshll.u32 %v1434, 30
        %v1436 = vsub.s32 %v1432, %v1435
        %vm1437 = vcmp.lt.s32.totalorder %v1436, 0
        %v1438 = vsub.s32 0, %v1436
        %v1439 = vsel %vm1437, %v1438, %v1436
        %v1440 = vclz %v1439
        %v1441 = vsub.s32 %v1440, 2
        %vm1442 = vcmp.gt.s32.totalorder 0, %v1441
        %v1443 = vsel %vm1442, 0, %v1441
        %v1444 = vsub.s32 32, %v1443
        %v1445 = vshll.u32 %v1436, %v1443
        %v1446 = vshrl.u32 %v1428, %v1444
        %v1447 = vor.u32 %v1445, %v1446
        %v1448 = vsub.s32 4294967266, %v1443
        %v1449 = vadd.s32 %v1448, 127
        %v1450 = vshll.u32 %v1449, 23
        %v1451 = vor.u32 4788187, %v1450
        %v1452 = vand.u32 2147483647, %v1451
        %v1454 = vcvt.s32.f32 %v1447
        %v1455 = vmul.f32 %v1454, %v1452
        %v1456 = vxor.u32 %v1455, 2147483648
        %v1457 = vsel %vm1374, %v1456, %v1455
        %v1458 = vsub.s32 4, %v1434
        %v1459 = vsel %vm1374, %v1458, %v1434
        %v1460 = vsel %vm1373, %v310, %v1457
        %v1461 = vsel %vm1373, 0, %v1459
        %v1462 = vcosq.f32.pop %v1460
        %v1463 = vsinq.f32.pop %v1460
        %vm1464 = vweird.f32 %v310
        %v1465 = vadd.s32 %v1461, 3
        %v1466 = vand.u32 %v1465, 3
        %vm1467 = vcmp.lt.s32.totalorder %v1466, 2
        %vm1468 = vcmp.eq.s32.totalorder %v1466, 0
        %v1469 = vxor.u32 %v1463, 2147483648
        %v1470 = vsel %vm1468, %v1462, %v1469
        %vm1471 = vcmp.eq.s32.totalorder %v1466, 2
        %v1472 = vxor.u32 %v1462, 2147483648
        %v1473 = vsel %vm1471, %v1472, %v1463
        %v1474 = vsel %vm1467, %v1470, %v1473
        %v1475 = vsel %vm1464, nan, %v1474
        %v1476 = vand.u32 2147483647, %v311
        %vm1477 = vcmp.le.f32.partialorder %v1476, 0.7853982
        %vm1478 = vcmp.lt.s32.totalorder %v311, 0
        %v1479 = vand.u32 %v311, 2139095040
        %v1480 = vshrl.u32 %v1479, 23
        %v1481 = vsub.s32 %v1480, 127
        %v1482 = vand.u32 2147483647, %v311
        %v1483 = vand.u32 %v1482, 8388607
        %v1484 = vor.u32 %v1483, 8388608
        %v1485 = vsub.s32 0, %v1484
        %v1486 = vadd.s32 %v1481, 1
        %vm1487 = vcmp.gt.s32.totalorder %v1486, 0
        %v1488 = vsel %vm1487, %v1486, 0
        %v1489 = vshrl.u32 %v1488, 5
        %v1490 = vand.u32 %v1488, 31
        %v1491 = vsub.s32 32, %v1490
        %v1492 = vshrl.u32 683565275, %v1491
        %v1493 = vshll.u32 683565275, %v1490
        %v1494 = vshrl.u32 2475754826, %v1491
        %v1495 = vor.u32 %v1493, %v1494
        %v1496 = vshll.u32 2475754826, %v1490
        %v1497 = vshrl.u32 2131351028, %v1491
        %v1498 = vor.u32 %v1496, %v1497
        %v1499 = vshll.u32 2131351028, %v1490
        %v1500 = vshrl.u32 2102212464, %v1491
        %v1501 = vor.u32 %v1499, %v1500
        %v1502 = vshll.u32 2102212464, %v1490
        %v1503 = vshrl.u32 920167782, %v1491
        %v1504 = vor.u32 %v1502, %v1503
        %v1505 = vshll.u32 920167782, %v1490
        %v1506 = vshrl.u32 1326507024, %v1491
        %v1507 = vor.u32 %v1505, %v1506
        %vm1508 = vcmp.lt.s32.totalorder %v1489, 1
        %vm1509 = vcmp.lt.s32.totalorder %v1489, 2
        %vm1510 = vcmp.lt.s32.totalorder %v1489, 3
        %vm1511 = vcmp.lt.s32.totalorder %v1489, 4
        %v1512 = vsel %vm1508, %v1492, %v1495
        %v1513 = vsel %vm1511, %v1501, 2102212464
        %v1514 = vsel %vm1510, %v1498, %v1513
        %v1515 = vsel %vm1509, %v1512, %v1514
        %v1516 = vsel %vm1508, %v1495, %v1498
        %v1517 = vsel %vm1511, %v1504, 920167782
        %v1518 = vsel %vm1510, %v1501, %v1517
        %v1519 = vsel %vm1509, %v1516, %v1518
        %v1520 = vsel %vm1508, %v1498, %v1501
        %v1521 = vsel %vm1511, %v1507, 1326507024
        %v1522 = vsel %vm1510, %v1504, %v1521
        %v1523 = vsel %vm1509, %v1520, %v1522
        %v1524 = vshll.u32 %v1484, 8
        %v1525 = vmul.u32.u64.compose %v1524, %v1523
        %v1526 = vextract.low.u32 %v1525
        %v1527 = vextract.high.u32 %v1525
        %v1528 = vmul.u32.u64.compose %v1524, %v1519
        %v1529 = vextract.low.u32 %v1528
        %v1530 = vextract.high.u32 %v1528
        %v1531 = vmul.u32 %v1524, %v1515
        %v1532 = vadd.s32 %v1527, %v1529
        %vm1533 = vc.u32 %v1527, %v1529
        %v1534 = vadd.s32 %v1530, 1
        %v1535 = vsel %vm1533, %v1534, %v1530
        %v1536 = vadd.s32 %v1531, %v1535
        %v1537 = vadd.s32 %v1536, 536870912
        %v1538 = vshrl.u32 %v1537, 30
        %v1539 = vshll.u32 %v1538, 30
        %v1540 = vsub.s32 %v1536, %v1539
        %vm1541 = vcmp.lt.s32.totalorder %v1540, 0
        %v1542 = vsub.s32 0, %v1540
        %v1543 = vsel %vm1541, %v1542, %v1540
        %v1544 = vclz %v1543
        %v1545 = vsub.s32 %v1544, 2
        %vm1546 = vcmp.gt.s32.totalorder 0, %v1545
        %v1547 = vsel %vm1546, 0, %v1545
        %v1548 = vsub.s32 32, %v1547
        %v1549 = vshll.u32 %v1540, %v1547
        %v1550 = vshrl.u32 %v1532, %v1548
        %v1551 = vor.u32 %v1549, %v1550
        %v1552 = vsub.s32 4294967266, %v1547
        %v1553 = vadd.s32 %v1552, 127
        %v1554 = vshll.u32 %v1553, 23
        %v1555 = vor.u32 4788187, %v1554
        %v1556 = vand.u32 2147483647, %v1555
        %v1558 = vcvt.s32.f32 %v1551
        %v1559 = vmul.f32 %v1558, %v1556
        %v1560 = vxor.u32 %v1559, 2147483648
        %v1561 = vsel %vm1478, %v1560, %v1559
        %v1562 = vsub.s32 4, %v1538
        %v1563 = vsel %vm1478, %v1562, %v1538
        %v1564 = vsel %vm1477, %v311, %v1561
        %v1565 = vsel %vm1477, 0, %v1563
        %v1566 = vcosq.f32.pop %v1564
        %v1567 = vsinq.f32.pop %v1564
        %vm1568 = vweird.f32 %v311
        %v1569 = vadd.s32 %v1565, 3
        %v1570 = vand.u32 %v1569, 3
        %vm1571 = vcmp.lt.s32.totalorder %v1570, 2
        %vm1572 = vcmp.eq.s32.totalorder %v1570, 0
        %v1573 = vxor.u32 %v1567, 2147483648
        %v1574 = vsel %vm1572, %v1566, %v1573
        %vm1575 = vcmp.eq.s32.totalorder %v1570, 2
        %v1576 = vxor.u32 %v1566, 2147483648
        %v1577 = vsel %vm1575, %v1576, %v1567
        %v1578 = vsel %vm1571, %v1574, %v1577
        %v1579 = vsel %vm1568, nan, %v1578
        %v1580 = vand.u32 2147483647, %v312
        %vm1581 = vcmp.le.f32.partialorder %v1580, 0.7853982
        %vm1582 = vcmp.lt.s32.totalorder %v312, 0
        %v1583 = vand.u32 %v312, 2139095040
        %v1584 = vshrl.u32 %v1583, 23
        %v1585 = vsub.s32 %v1584, 127
        %v1586 = vand.u32 2147483647, %v312
        %v1587 = vand.u32 %v1586, 8388607
        %v1588 = vor.u32 %v1587, 8388608
        %v1589 = vsub.s32 0, %v1588
        %v1590 = vadd.s32 %v1585, 1
        %vm1591 = vcmp.gt.s32.totalorder %v1590, 0
        %v1592 = vsel %vm1591, %v1590, 0
        %v1593 = vshrl.u32 %v1592, 5
        %v1594 = vand.u32 %v1592, 31
        %v1595 = vsub.s32 32, %v1594
        %v1596 = vshrl.u32 683565275, %v1595
        %v1597 = vshll.u32 683565275, %v1594
        %v1598 = vshrl.u32 2475754826, %v1595
        %v1599 = vor.u32 %v1597, %v1598
        %v1600 = vshll.u32 2475754826, %v1594
        %v1601 = vshrl.u32 2131351028, %v1595
        %v1602 = vor.u32 %v1600, %v1601
        %v1603 = vshll.u32 2131351028, %v1594
        %v1604 = vshrl.u32 2102212464, %v1595
        %v1605 = vor.u32 %v1603, %v1604
        %v1606 = vshll.u32 2102212464, %v1594
        %v1607 = vshrl.u32 920167782, %v1595
        %v1608 = vor.u32 %v1606, %v1607
        %v1609 = vshll.u32 920167782, %v1594
        %v1610 = vshrl.u32 1326507024, %v1595
        %v1611 = vor.u32 %v1609, %v1610
        %vm1612 = vcmp.lt.s32.totalorder %v1593, 1
        %vm1613 = vcmp.lt.s32.totalorder %v1593, 2
        %vm1614 = vcmp.lt.s32.totalorder %v1593, 3
        %vm1615 = vcmp.lt.s32.totalorder %v1593, 4
        %v1616 = vsel %vm1612, %v1596, %v1599
        %v1617 = vsel %vm1615, %v1605, 2102212464
        %v1618 = vsel %vm1614, %v1602, %v1617
        %v1619 = vsel %vm1613, %v1616, %v1618
        %v1620 = vsel %vm1612, %v1599, %v1602
        %v1621 = vsel %vm1615, %v1608, 920167782
        %v1622 = vsel %vm1614, %v1605, %v1621
        %v1623 = vsel %vm1613, %v1620, %v1622
        %v1624 = vsel %vm1612, %v1602, %v1605
        %v1625 = vsel %vm1615, %v1611, 1326507024
        %v1626 = vsel %vm1614, %v1608, %v1625
        %v1627 = vsel %vm1613, %v1624, %v1626
        %v1628 = vshll.u32 %v1588, 8
        %v1629 = vmul.u32.u64.compose %v1628, %v1627
        %v1630 = vextract.low.u32 %v1629
        %v1631 = vextract.high.u32 %v1629
        %v1632 = vmul.u32.u64.compose %v1628, %v1623
        %v1633 = vextract.low.u32 %v1632
        %v1634 = vextract.high.u32 %v1632
        %v1635 = vmul.u32 %v1628, %v1619
        %v1636 = vadd.s32 %v1631, %v1633
        %vm1637 = vc.u32 %v1631, %v1633
        %v1638 = vadd.s32 %v1634, 1
        %v1639 = vsel %vm1637, %v1638, %v1634
        %v1640 = vadd.s32 %v1635, %v1639
        %v1641 = vadd.s32 %v1640, 536870912
        %v1642 = vshrl.u32 %v1641, 30
        %v1643 = vshll.u32 %v1642, 30
        %v1644 = vsub.s32 %v1640, %v1643
        %vm1645 = vcmp.lt.s32.totalorder %v1644, 0
        %v1646 = vsub.s32 0, %v1644
        %v1647 = vsel %vm1645, %v1646, %v1644
        %v1648 = vclz %v1647
        %v1649 = vsub.s32 %v1648, 2
        %vm1650 = vcmp.gt.s32.totalorder 0, %v1649
        %v1651 = vsel %vm1650, 0, %v1649
        %v1652 = vsub.s32 32, %v1651
        %v1653 = vshll.u32 %v1644, %v1651
        %v1654 = vshrl.u32 %v1636, %v1652
        %v1655 = vor.u32 %v1653, %v1654
        %v1656 = vsub.s32 4294967266, %v1651
        %v1657 = vadd.s32 %v1656, 127
        %v1658 = vshll.u32 %v1657, 23
        %v1659 = vor.u32 4788187, %v1658
        %v1660 = vand.u32 2147483647, %v1659
        %v1662 = vcvt.s32.f32 %v1655
        %v1663 = vmul.f32 %v1662, %v1660
        %v1664 = vxor.u32 %v1663, 2147483648
        %v1665 = vsel %vm1582, %v1664, %v1663
        %v1666 = vsub.s32 4, %v1642
        %v1667 = vsel %vm1582, %v1666, %v1642
        %v1668 = vsel %vm1581, %v312, %v1665
        %v1669 = vsel %vm1581, 0, %v1667
        %v1670 = vcosq.f32.pop %v1668
        %v1671 = vsinq.f32.pop %v1668
        %vm1672 = vweird.f32 %v312
        %v1673 = vadd.s32 %v1669, 3
        %v1674 = vand.u32 %v1673, 3
        %vm1675 = vcmp.lt.s32.totalorder %v1674, 2
        %vm1676 = vcmp.eq.s32.totalorder %v1674, 0
        %v1677 = vxor.u32 %v1671, 2147483648
        %v1678 = vsel %vm1676, %v1670, %v1677
        %vm1679 = vcmp.eq.s32.totalorder %v1674, 2
        %v1680 = vxor.u32 %v1670, 2147483648
        %v1681 = vsel %vm1679, %v1680, %v1671
        %v1682 = vsel %vm1675, %v1678, %v1681
        %v1683 = vsel %vm1672, nan, %v1682
        %v1684 = vand.u32 2147483647, %v313
        %vm1685 = vcmp.le.f32.partialorder %v1684, 0.7853982
        %vm1686 = vcmp.lt.s32.totalorder %v313, 0
        %v1687 = vand.u32 %v313, 2139095040
        %v1688 = vshrl.u32 %v1687, 23
        %v1689 = vsub.s32 %v1688, 127
        %v1690 = vand.u32 2147483647, %v313
        %v1691 = vand.u32 %v1690, 8388607
        %v1692 = vor.u32 %v1691, 8388608
        %v1693 = vsub.s32 0, %v1692
        %v1694 = vadd.s32 %v1689, 1
        %vm1695 = vcmp.gt.s32.totalorder %v1694, 0
        %v1696 = vsel %vm1695, %v1694, 0
        %v1697 = vshrl.u32 %v1696, 5
        %v1698 = vand.u32 %v1696, 31
        %v1699 = vsub.s32 32, %v1698
        %v1700 = vshrl.u32 683565275, %v1699
        %v1701 = vshll.u32 683565275, %v1698
        %v1702 = vshrl.u32 2475754826, %v1699
        %v1703 = vor.u32 %v1701, %v1702
        %v1704 = vshll.u32 2475754826, %v1698
        %v1705 = vshrl.u32 2131351028, %v1699
        %v1706 = vor.u32 %v1704, %v1705
        %v1707 = vshll.u32 2131351028, %v1698
        %v1708 = vshrl.u32 2102212464, %v1699
        %v1709 = vor.u32 %v1707, %v1708
        %v1710 = vshll.u32 2102212464, %v1698
        %v1711 = vshrl.u32 920167782, %v1699
        %v1712 = vor.u32 %v1710, %v1711
        %v1713 = vshll.u32 920167782, %v1698
        %v1714 = vshrl.u32 1326507024, %v1699
        %v1715 = vor.u32 %v1713, %v1714
        %vm1716 = vcmp.lt.s32.totalorder %v1697, 1
        %vm1717 = vcmp.lt.s32.totalorder %v1697, 2
        %vm1718 = vcmp.lt.s32.totalorder %v1697, 3
        %vm1719 = vcmp.lt.s32.totalorder %v1697, 4
        %v1720 = vsel %vm1716, %v1700, %v1703
        %v1721 = vsel %vm1719, %v1709, 2102212464
        %v1722 = vsel %vm1718, %v1706, %v1721
        %v1723 = vsel %vm1717, %v1720, %v1722
        %v1724 = vsel %vm1716, %v1703, %v1706
        %v1725 = vsel %vm1719, %v1712, 920167782
        %v1726 = vsel %vm1718, %v1709, %v1725
        %v1727 = vsel %vm1717, %v1724, %v1726
        %v1728 = vsel %vm1716, %v1706, %v1709
        %v1729 = vsel %vm1719, %v1715, 1326507024
        %v1730 = vsel %vm1718, %v1712, %v1729
        %v1731 = vsel %vm1717, %v1728, %v1730
        %v1732 = vshll.u32 %v1692, 8
        %v1733 = vmul.u32.u64.compose %v1732, %v1731
        %v1734 = vextract.low.u32 %v1733
        %v1735 = vextract.high.u32 %v1733
        %v1736 = vmul.u32.u64.compose %v1732, %v1727
        %v1737 = vextract.low.u32 %v1736
        %v1738 = vextract.high.u32 %v1736
        %v1739 = vmul.u32 %v1732, %v1723
        %v1740 = vadd.s32 %v1735, %v1737
        %vm1741 = vc.u32 %v1735, %v1737
        %v1742 = vadd.s32 %v1738, 1
        %v1743 = vsel %vm1741, %v1742, %v1738
        %v1744 = vadd.s32 %v1739, %v1743
        %v1745 = vadd.s32 %v1744, 536870912
        %v1746 = vshrl.u32 %v1745, 30
        %v1747 = vshll.u32 %v1746, 30
        %v1748 = vsub.s32 %v1744, %v1747
        %vm1749 = vcmp.lt.s32.totalorder %v1748, 0
        %v1750 = vsub.s32 0, %v1748
        %v1751 = vsel %vm1749, %v1750, %v1748
        %v1752 = vclz %v1751
        %v1753 = vsub.s32 %v1752, 2
        %vm1754 = vcmp.gt.s32.totalorder 0, %v1753
        %v1755 = vsel %vm1754, 0, %v1753
        %v1756 = vsub.s32 32, %v1755
        %v1757 = vshll.u32 %v1748, %v1755
        %v1758 = vshrl.u32 %v1740, %v1756
        %v1759 = vor.u32 %v1757, %v1758
        %v1760 = vsub.s32 4294967266, %v1755
        %v1761 = vadd.s32 %v1760, 127
        %v1762 = vshll.u32 %v1761, 23
        %v1763 = vor.u32 4788187, %v1762
        %v1764 = vand.u32 2147483647, %v1763
        %v1766 = vcvt.s32.f32 %v1759
        %v1767 = vmul.f32 %v1766, %v1764
        %v1768 = vxor.u32 %v1767, 2147483648
        %v1769 = vsel %vm1686, %v1768, %v1767
        %v1770 = vsub.s32 4, %v1746
        %v1771 = vsel %vm1686, %v1770, %v1746
        %v1772 = vsel %vm1685, %v313, %v1769
        %v1773 = vsel %vm1685, 0, %v1771
        %v1774 = vcosq.f32.pop %v1772
        %v1775 = vsinq.f32.pop %v1772
        %vm1776 = vweird.f32 %v313
        %v1777 = vadd.s32 %v1773, 3
        %v1778 = vand.u32 %v1777, 3
        %vm1779 = vcmp.lt.s32.totalorder %v1778, 2
        %vm1780 = vcmp.eq.s32.totalorder %v1778, 0
        %v1781 = vxor.u32 %v1775, 2147483648
        %v1782 = vsel %vm1780, %v1774, %v1781
        %vm1783 = vcmp.eq.s32.totalorder %v1778, 2
        %v1784 = vxor.u32 %v1774, 2147483648
        %v1785 = vsel %vm1783, %v1784, %v1775
        %v1786 = vsel %vm1779, %v1782, %v1785
        %v1787 = vsel %vm1776, nan, %v1786
        %v1788 = vand.u32 2147483647, %v314
        %vm1789 = vcmp.le.f32.partialorder %v1788, 0.7853982
        %vm1790 = vcmp.lt.s32.totalorder %v314, 0
        %v1791 = vand.u32 %v314, 2139095040
        %v1792 = vshrl.u32 %v1791, 23
        %v1793 = vsub.s32 %v1792, 127
        %v1794 = vand.u32 2147483647, %v314
        %v1795 = vand.u32 %v1794, 8388607
        %v1796 = vor.u32 %v1795, 8388608
        %v1797 = vsub.s32 0, %v1796
        %v1798 = vadd.s32 %v1793, 1
        %vm1799 = vcmp.gt.s32.totalorder %v1798, 0
        %v1800 = vsel %vm1799, %v1798, 0
        %v1801 = vshrl.u32 %v1800, 5
        %v1802 = vand.u32 %v1800, 31
        %v1803 = vsub.s32 32, %v1802
        %v1804 = vshrl.u32 683565275, %v1803
        %v1805 = vshll.u32 683565275, %v1802
        %v1806 = vshrl.u32 2475754826, %v1803
        %v1807 = vor.u32 %v1805, %v1806
        %v1808 = vshll.u32 2475754826, %v1802
        %v1809 = vshrl.u32 2131351028, %v1803
        %v1810 = vor.u32 %v1808, %v1809
        %v1811 = vshll.u32 2131351028, %v1802
        %v1812 = vshrl.u32 2102212464, %v1803
        %v1813 = vor.u32 %v1811, %v1812
        %v1814 = vshll.u32 2102212464, %v1802
        %v1815 = vshrl.u32 920167782, %v1803
        %v1816 = vor.u32 %v1814, %v1815
        %v1817 = vshll.u32 920167782, %v1802
        %v1818 = vshrl.u32 1326507024, %v1803
        %v1819 = vor.u32 %v1817, %v1818
        %vm1820 = vcmp.lt.s32.totalorder %v1801, 1
        %vm1821 = vcmp.lt.s32.totalorder %v1801, 2
        %vm1822 = vcmp.lt.s32.totalorder %v1801, 3
        %vm1823 = vcmp.lt.s32.totalorder %v1801, 4
        %v1824 = vsel %vm1820, %v1804, %v1807
        %v1825 = vsel %vm1823, %v1813, 2102212464
        %v1826 = vsel %vm1822, %v1810, %v1825
        %v1827 = vsel %vm1821, %v1824, %v1826
        %v1828 = vsel %vm1820, %v1807, %v1810
        %v1829 = vsel %vm1823, %v1816, 920167782
        %v1830 = vsel %vm1822, %v1813, %v1829
        %v1831 = vsel %vm1821, %v1828, %v1830
        %v1832 = vsel %vm1820, %v1810, %v1813
        %v1833 = vsel %vm1823, %v1819, 1326507024
        %v1834 = vsel %vm1822, %v1816, %v1833
        %v1835 = vsel %vm1821, %v1832, %v1834
        %v1836 = vshll.u32 %v1796, 8
        %v1837 = vmul.u32.u64.compose %v1836, %v1835
        %v1838 = vextract.low.u32 %v1837
        %v1839 = vextract.high.u32 %v1837
        %v1840 = vmul.u32.u64.compose %v1836, %v1831
        %v1841 = vextract.low.u32 %v1840
        %v1842 = vextract.high.u32 %v1840
        %v1843 = vmul.u32 %v1836, %v1827
        %v1844 = vadd.s32 %v1839, %v1841
        %vm1845 = vc.u32 %v1839, %v1841
        %v1846 = vadd.s32 %v1842, 1
        %v1847 = vsel %vm1845, %v1846, %v1842
        %v1848 = vadd.s32 %v1843, %v1847
        %v1849 = vadd.s32 %v1848, 536870912
        %v1850 = vshrl.u32 %v1849, 30
        %v1851 = vshll.u32 %v1850, 30
        %v1852 = vsub.s32 %v1848, %v1851
        %vm1853 = vcmp.lt.s32.totalorder %v1852, 0
        %v1854 = vsub.s32 0, %v1852
        %v1855 = vsel %vm1853, %v1854, %v1852
        %v1856 = vclz %v1855
        %v1857 = vsub.s32 %v1856, 2
        %vm1858 = vcmp.gt.s32.totalorder 0, %v1857
        %v1859 = vsel %vm1858, 0, %v1857
        %v1860 = vsub.s32 32, %v1859
        %v1861 = vshll.u32 %v1852, %v1859
        %v1862 = vshrl.u32 %v1844, %v1860
        %v1863 = vor.u32 %v1861, %v1862
        %v1864 = vsub.s32 4294967266, %v1859
        %v1865 = vadd.s32 %v1864, 127
        %v1866 = vshll.u32 %v1865, 23
        %v1867 = vor.u32 4788187, %v1866
        %v1868 = vand.u32 2147483647, %v1867
        %v1870 = vcvt.s32.f32 %v1863
        %v1871 = vmul.f32 %v1870, %v1868
        %v1872 = vxor.u32 %v1871, 2147483648
        %v1873 = vsel %vm1790, %v1872, %v1871
        %v1874 = vsub.s32 4, %v1850
        %v1875 = vsel %vm1790, %v1874, %v1850
        %v1876 = vsel %vm1789, %v314, %v1873
        %v1877 = vsel %vm1789, 0, %v1875
        %v1878 = vcosq.f32.pop %v1876
        %v1879 = vsinq.f32.pop %v1876
        %vm1880 = vweird.f32 %v314
        %v1881 = vadd.s32 %v1877, 3
        %v1882 = vand.u32 %v1881, 3
        %vm1883 = vcmp.lt.s32.totalorder %v1882, 2
        %vm1884 = vcmp.eq.s32.totalorder %v1882, 0
        %v1885 = vxor.u32 %v1879, 2147483648
        %v1886 = vsel %vm1884, %v1878, %v1885
        %vm1887 = vcmp.eq.s32.totalorder %v1882, 2
        %v1888 = vxor.u32 %v1878, 2147483648
        %v1889 = vsel %vm1887, %v1888, %v1879
        %v1890 = vsel %vm1883, %v1886, %v1889
        %v1891 = vsel %vm1880, nan, %v1890
        %v1892 = vand.u32 2147483647, %v315
        %vm1893 = vcmp.le.f32.partialorder %v1892, 0.7853982
        %vm1894 = vcmp.lt.s32.totalorder %v315, 0
        %v1895 = vand.u32 %v315, 2139095040
        %v1896 = vshrl.u32 %v1895, 23
        %v1897 = vsub.s32 %v1896, 127
        %v1898 = vand.u32 2147483647, %v315
        %v1899 = vand.u32 %v1898, 8388607
        %v1900 = vor.u32 %v1899, 8388608
        %v1901 = vsub.s32 0, %v1900
        %v1902 = vadd.s32 %v1897, 1
        %vm1903 = vcmp.gt.s32.totalorder %v1902, 0
        %v1904 = vsel %vm1903, %v1902, 0
        %v1905 = vshrl.u32 %v1904, 5
        %v1906 = vand.u32 %v1904, 31
        %v1907 = vsub.s32 32, %v1906
        %v1908 = vshrl.u32 683565275, %v1907
        %v1909 = vshll.u32 683565275, %v1906
        %v1910 = vshrl.u32 2475754826, %v1907
        %v1911 = vor.u32 %v1909, %v1910
        %v1912 = vshll.u32 2475754826, %v1906
        %v1913 = vshrl.u32 2131351028, %v1907
        %v1914 = vor.u32 %v1912, %v1913
        %v1915 = vshll.u32 2131351028, %v1906
        %v1916 = vshrl.u32 2102212464, %v1907
        %v1917 = vor.u32 %v1915, %v1916
        %v1918 = vshll.u32 2102212464, %v1906
        %v1919 = vshrl.u32 920167782, %v1907
        %v1920 = vor.u32 %v1918, %v1919
        %v1921 = vshll.u32 920167782, %v1906
        %v1922 = vshrl.u32 1326507024, %v1907
        %v1923 = vor.u32 %v1921, %v1922
        %vm1924 = vcmp.lt.s32.totalorder %v1905, 1
        %vm1925 = vcmp.lt.s32.totalorder %v1905, 2
        %vm1926 = vcmp.lt.s32.totalorder %v1905, 3
        %vm1927 = vcmp.lt.s32.totalorder %v1905, 4
        %v1928 = vsel %vm1924, %v1908, %v1911
        %v1929 = vsel %vm1927, %v1917, 2102212464
        %v1930 = vsel %vm1926, %v1914, %v1929
        %v1931 = vsel %vm1925, %v1928, %v1930
        %v1932 = vsel %vm1924, %v1911, %v1914
        %v1933 = vsel %vm1927, %v1920, 920167782
        %v1934 = vsel %vm1926, %v1917, %v1933
        %v1935 = vsel %vm1925, %v1932, %v1934
        %v1936 = vsel %vm1924, %v1914, %v1917
        %v1937 = vsel %vm1927, %v1923, 1326507024
        %v1938 = vsel %vm1926, %v1920, %v1937
        %v1939 = vsel %vm1925, %v1936, %v1938
        %v1940 = vshll.u32 %v1900, 8
        %v1941 = vmul.u32.u64.compose %v1940, %v1939
        %v1942 = vextract.low.u32 %v1941
        %v1943 = vextract.high.u32 %v1941
        %v1944 = vmul.u32.u64.compose %v1940, %v1935
        %v1945 = vextract.low.u32 %v1944
        %v1946 = vextract.high.u32 %v1944
        %v1947 = vmul.u32 %v1940, %v1931
        %v1948 = vadd.s32 %v1943, %v1945
        %vm1949 = vc.u32 %v1943, %v1945
        %v1950 = vadd.s32 %v1946, 1
        %v1951 = vsel %vm1949, %v1950, %v1946
        %v1952 = vadd.s32 %v1947, %v1951
        %v1953 = vadd.s32 %v1952, 536870912
        %v1954 = vshrl.u32 %v1953, 30
        %v1955 = vshll.u32 %v1954, 30
        %v1956 = vsub.s32 %v1952, %v1955
        %vm1957 = vcmp.lt.s32.totalorder %v1956, 0
        %v1958 = vsub.s32 0, %v1956
        %v1959 = vsel %vm1957, %v1958, %v1956
        %v1960 = vclz %v1959
        %v1961 = vsub.s32 %v1960, 2
        %vm1962 = vcmp.gt.s32.totalorder 0, %v1961
        %v1963 = vsel %vm1962, 0, %v1961
        %v1964 = vsub.s32 32, %v1963
        %v1965 = vshll.u32 %v1956, %v1963
        %v1966 = vshrl.u32 %v1948, %v1964
        %v1967 = vor.u32 %v1965, %v1966
        %v1968 = vsub.s32 4294967266, %v1963
        %v1969 = vadd.s32 %v1968, 127
        %v1970 = vshll.u32 %v1969, 23
        %v1971 = vor.u32 4788187, %v1970
        %v1972 = vand.u32 2147483647, %v1971
        %v1974 = vcvt.s32.f32 %v1967
        %v1975 = vmul.f32 %v1974, %v1972
        %v1976 = vxor.u32 %v1975, 2147483648
        %v1977 = vsel %vm1894, %v1976, %v1975
        %v1978 = vsub.s32 4, %v1954
        %v1979 = vsel %vm1894, %v1978, %v1954
        %v1980 = vsel %vm1893, %v315, %v1977
        %v1981 = vsel %vm1893, 0, %v1979
        %v1982 = vcosq.f32.pop %v1980
        %v1983 = vsinq.f32.pop %v1980
        %vm1984 = vweird.f32 %v315
        %v1985 = vadd.s32 %v1981, 3
        %v1986 = vand.u32 %v1985, 3
        %vm1987 = vcmp.lt.s32.totalorder %v1986, 2
        %vm1988 = vcmp.eq.s32.totalorder %v1986, 0
        %v1989 = vxor.u32 %v1983, 2147483648
        %v1990 = vsel %vm1988, %v1982, %v1989
        %vm1991 = vcmp.eq.s32.totalorder %v1986, 2
        %v1992 = vxor.u32 %v1982, 2147483648
        %v1993 = vsel %vm1991, %v1992, %v1983
        %v1994 = vsel %vm1987, %v1990, %v1993
        %v1995 = vsel %vm1984, nan, %v1994
        %v1996 = vand.u32 2147483647, %v316
        %vm1997 = vcmp.le.f32.partialorder %v1996, 0.7853982
        %vm1998 = vcmp.lt.s32.totalorder %v316, 0
        %v1999 = vand.u32 %v316, 2139095040
        %v2000 = vshrl.u32 %v1999, 23
        %v2001 = vsub.s32 %v2000, 127
        %v2002 = vand.u32 2147483647, %v316
        %v2003 = vand.u32 %v2002, 8388607
        %v2004 = vor.u32 %v2003, 8388608
        %v2005 = vsub.s32 0, %v2004
        %v2006 = vadd.s32 %v2001, 1
        %vm2007 = vcmp.gt.s32.totalorder %v2006, 0
        %v2008 = vsel %vm2007, %v2006, 0
        %v2009 = vshrl.u32 %v2008, 5
        %v2010 = vand.u32 %v2008, 31
        %v2011 = vsub.s32 32, %v2010
        %v2012 = vshrl.u32 683565275, %v2011
        %v2013 = vshll.u32 683565275, %v2010
        %v2014 = vshrl.u32 2475754826, %v2011
        %v2015 = vor.u32 %v2013, %v2014
        %v2016 = vshll.u32 2475754826, %v2010
        %v2017 = vshrl.u32 2131351028, %v2011
        %v2018 = vor.u32 %v2016, %v2017
        %v2019 = vshll.u32 2131351028, %v2010
        %v2020 = vshrl.u32 2102212464, %v2011
        %v2021 = vor.u32 %v2019, %v2020
        %v2022 = vshll.u32 2102212464, %v2010
        %v2023 = vshrl.u32 920167782, %v2011
        %v2024 = vor.u32 %v2022, %v2023
        %v2025 = vshll.u32 920167782, %v2010
        %v2026 = vshrl.u32 1326507024, %v2011
        %v2027 = vor.u32 %v2025, %v2026
        %vm2028 = vcmp.lt.s32.totalorder %v2009, 1
        %vm2029 = vcmp.lt.s32.totalorder %v2009, 2
        %vm2030 = vcmp.lt.s32.totalorder %v2009, 3
        %vm2031 = vcmp.lt.s32.totalorder %v2009, 4
        %v2032 = vsel %vm2028, %v2012, %v2015
        %v2033 = vsel %vm2031, %v2021, 2102212464
        %v2034 = vsel %vm2030, %v2018, %v2033
        %v2035 = vsel %vm2029, %v2032, %v2034
        %v2036 = vsel %vm2028, %v2015, %v2018
        %v2037 = vsel %vm2031, %v2024, 920167782
        %v2038 = vsel %vm2030, %v2021, %v2037
        %v2039 = vsel %vm2029, %v2036, %v2038
        %v2040 = vsel %vm2028, %v2018, %v2021
        %v2041 = vsel %vm2031, %v2027, 1326507024
        %v2042 = vsel %vm2030, %v2024, %v2041
        %v2043 = vsel %vm2029, %v2040, %v2042
        %v2044 = vshll.u32 %v2004, 8
        %v2045 = vmul.u32.u64.compose %v2044, %v2043
        %v2046 = vextract.low.u32 %v2045
        %v2047 = vextract.high.u32 %v2045
        %v2048 = vmul.u32.u64.compose %v2044, %v2039
        %v2049 = vextract.low.u32 %v2048
        %v2050 = vextract.high.u32 %v2048
        %v2051 = vmul.u32 %v2044, %v2035
        %v2052 = vadd.s32 %v2047, %v2049
        %vm2053 = vc.u32 %v2047, %v2049
        %v2054 = vadd.s32 %v2050, 1
        %v2055 = vsel %vm2053, %v2054, %v2050
        %v2056 = vadd.s32 %v2051, %v2055
        %v2057 = vadd.s32 %v2056, 536870912
        %v2058 = vshrl.u32 %v2057, 30
        %v2059 = vshll.u32 %v2058, 30
        %v2060 = vsub.s32 %v2056, %v2059
        %vm2061 = vcmp.lt.s32.totalorder %v2060, 0
        %v2062 = vsub.s32 0, %v2060
        %v2063 = vsel %vm2061, %v2062, %v2060
        %v2064 = vclz %v2063
        %v2065 = vsub.s32 %v2064, 2
        %vm2066 = vcmp.gt.s32.totalorder 0, %v2065
        %v2067 = vsel %vm2066, 0, %v2065
        %v2068 = vsub.s32 32, %v2067
        %v2069 = vshll.u32 %v2060, %v2067
        %v2070 = vshrl.u32 %v2052, %v2068
        %v2071 = vor.u32 %v2069, %v2070
        %v2072 = vsub.s32 4294967266, %v2067
        %v2073 = vadd.s32 %v2072, 127
        %v2074 = vshll.u32 %v2073, 23
        %v2075 = vor.u32 4788187, %v2074
        %v2076 = vand.u32 2147483647, %v2075
        %v2078 = vcvt.s32.f32 %v2071
        %v2079 = vmul.f32 %v2078, %v2076
        %v2080 = vxor.u32 %v2079, 2147483648
        %v2081 = vsel %vm1998, %v2080, %v2079
        %v2082 = vsub.s32 4, %v2058
        %v2083 = vsel %vm1998, %v2082, %v2058
        %v2084 = vsel %vm1997, %v316, %v2081
        %v2085 = vsel %vm1997, 0, %v2083
        %v2086 = vcosq.f32.pop %v2084
        %v2087 = vsinq.f32.pop %v2084
        %vm2088 = vweird.f32 %v316
        %v2089 = vadd.s32 %v2085, 3
        %v2090 = vand.u32 %v2089, 3
        %vm2091 = vcmp.lt.s32.totalorder %v2090, 2
        %vm2092 = vcmp.eq.s32.totalorder %v2090, 0
        %v2093 = vxor.u32 %v2087, 2147483648
        %v2094 = vsel %vm2092, %v2086, %v2093
        %vm2095 = vcmp.eq.s32.totalorder %v2090, 2
        %v2096 = vxor.u32 %v2086, 2147483648
        %v2097 = vsel %vm2095, %v2096, %v2087
        %v2098 = vsel %vm2091, %v2094, %v2097
        %v2099 = vsel %vm2088, nan, %v2098
        %v2100 = vand.u32 2147483647, %v317
        %vm2101 = vcmp.le.f32.partialorder %v2100, 0.7853982
        %vm2102 = vcmp.lt.s32.totalorder %v317, 0
        %v2103 = vand.u32 %v317, 2139095040
        %v2104 = vshrl.u32 %v2103, 23
        %v2105 = vsub.s32 %v2104, 127
        %v2106 = vand.u32 2147483647, %v317
        %v2107 = vand.u32 %v2106, 8388607
        %v2108 = vor.u32 %v2107, 8388608
        %v2109 = vsub.s32 0, %v2108
        %v2110 = vadd.s32 %v2105, 1
        %vm2111 = vcmp.gt.s32.totalorder %v2110, 0
        %v2112 = vsel %vm2111, %v2110, 0
        %v2113 = vshrl.u32 %v2112, 5
        %v2114 = vand.u32 %v2112, 31
        %v2115 = vsub.s32 32, %v2114
        %v2116 = vshrl.u32 683565275, %v2115
        %v2117 = vshll.u32 683565275, %v2114
        %v2118 = vshrl.u32 2475754826, %v2115
        %v2119 = vor.u32 %v2117, %v2118
        %v2120 = vshll.u32 2475754826, %v2114
        %v2121 = vshrl.u32 2131351028, %v2115
        %v2122 = vor.u32 %v2120, %v2121
        %v2123 = vshll.u32 2131351028, %v2114
        %v2124 = vshrl.u32 2102212464, %v2115
        %v2125 = vor.u32 %v2123, %v2124
        %v2126 = vshll.u32 2102212464, %v2114
        %v2127 = vshrl.u32 920167782, %v2115
        %v2128 = vor.u32 %v2126, %v2127
        %v2129 = vshll.u32 920167782, %v2114
        %v2130 = vshrl.u32 1326507024, %v2115
        %v2131 = vor.u32 %v2129, %v2130
        %vm2132 = vcmp.lt.s32.totalorder %v2113, 1
        %vm2133 = vcmp.lt.s32.totalorder %v2113, 2
        %vm2134 = vcmp.lt.s32.totalorder %v2113, 3
        %vm2135 = vcmp.lt.s32.totalorder %v2113, 4
        %v2136 = vsel %vm2132, %v2116, %v2119
        %v2137 = vsel %vm2135, %v2125, 2102212464
        %v2138 = vsel %vm2134, %v2122, %v2137
        %v2139 = vsel %vm2133, %v2136, %v2138
        %v2140 = vsel %vm2132, %v2119, %v2122
        %v2141 = vsel %vm2135, %v2128, 920167782
        %v2142 = vsel %vm2134, %v2125, %v2141
        %v2143 = vsel %vm2133, %v2140, %v2142
        %v2144 = vsel %vm2132, %v2122, %v2125
        %v2145 = vsel %vm2135, %v2131, 1326507024
        %v2146 = vsel %vm2134, %v2128, %v2145
        %v2147 = vsel %vm2133, %v2144, %v2146
        %v2148 = vshll.u32 %v2108, 8
        %v2149 = vmul.u32.u64.compose %v2148, %v2147
        %v2150 = vextract.low.u32 %v2149
        %v2151 = vextract.high.u32 %v2149
        %v2152 = vmul.u32.u64.compose %v2148, %v2143
        %v2153 = vextract.low.u32 %v2152
        %v2154 = vextract.high.u32 %v2152
        %v2155 = vmul.u32 %v2148, %v2139
        %v2156 = vadd.s32 %v2151, %v2153
        %vm2157 = vc.u32 %v2151, %v2153
        %v2158 = vadd.s32 %v2154, 1
        %v2159 = vsel %vm2157, %v2158, %v2154
        %v2160 = vadd.s32 %v2155, %v2159
        %v2161 = vadd.s32 %v2160, 536870912
        %v2162 = vshrl.u32 %v2161, 30
        %v2163 = vshll.u32 %v2162, 30
        %v2164 = vsub.s32 %v2160, %v2163
        %vm2165 = vcmp.lt.s32.totalorder %v2164, 0
        %v2166 = vsub.s32 0, %v2164
        %v2167 = vsel %vm2165, %v2166, %v2164
        %v2168 = vclz %v2167
        %v2169 = vsub.s32 %v2168, 2
        %vm2170 = vcmp.gt.s32.totalorder 0, %v2169
        %v2171 = vsel %vm2170, 0, %v2169
        %v2172 = vsub.s32 32, %v2171
        %v2173 = vshll.u32 %v2164, %v2171
        %v2174 = vshrl.u32 %v2156, %v2172
        %v2175 = vor.u32 %v2173, %v2174
        %v2176 = vsub.s32 4294967266, %v2171
        %v2177 = vadd.s32 %v2176, 127
        %v2178 = vshll.u32 %v2177, 23
        %v2179 = vor.u32 4788187, %v2178
        %v2180 = vand.u32 2147483647, %v2179
        %v2182 = vcvt.s32.f32 %v2175
        %v2183 = vmul.f32 %v2182, %v2180
        %v2184 = vxor.u32 %v2183, 2147483648
        %v2185 = vsel %vm2102, %v2184, %v2183
        %v2186 = vsub.s32 4, %v2162
        %v2187 = vsel %vm2102, %v2186, %v2162
        %v2188 = vsel %vm2101, %v317, %v2185
        %v2189 = vsel %vm2101, 0, %v2187
        %v2190 = vcosq.f32.pop %v2188
        %v2191 = vsinq.f32.pop %v2188
        %vm2192 = vweird.f32 %v317
        %v2193 = vadd.s32 %v2189, 3
        %v2194 = vand.u32 %v2193, 3
        %vm2195 = vcmp.lt.s32.totalorder %v2194, 2
        %vm2196 = vcmp.eq.s32.totalorder %v2194, 0
        %v2197 = vxor.u32 %v2191, 2147483648
        %v2198 = vsel %vm2196, %v2190, %v2197
        %vm2199 = vcmp.eq.s32.totalorder %v2194, 2
        %v2200 = vxor.u32 %v2190, 2147483648
        %v2201 = vsel %vm2199, %v2200, %v2191
        %v2202 = vsel %vm2195, %v2198, %v2201
        %v2203 = vsel %vm2192, nan, %v2202
        %v2204 = vand.u32 2147483647, %v318
        %vm2205 = vcmp.le.f32.partialorder %v2204, 0.7853982
        %vm2206 = vcmp.lt.s32.totalorder %v318, 0
        %v2207 = vand.u32 %v318, 2139095040
        %v2208 = vshrl.u32 %v2207, 23
        %v2209 = vsub.s32 %v2208, 127
        %v2210 = vand.u32 2147483647, %v318
        %v2211 = vand.u32 %v2210, 8388607
        %v2212 = vor.u32 %v2211, 8388608
        %v2213 = vsub.s32 0, %v2212
        %v2214 = vadd.s32 %v2209, 1
        %vm2215 = vcmp.gt.s32.totalorder %v2214, 0
        %v2216 = vsel %vm2215, %v2214, 0
        %v2217 = vshrl.u32 %v2216, 5
        %v2218 = vand.u32 %v2216, 31
        %v2219 = vsub.s32 32, %v2218
        %v2220 = vshrl.u32 683565275, %v2219
        %v2221 = vshll.u32 683565275, %v2218
        %v2222 = vshrl.u32 2475754826, %v2219
        %v2223 = vor.u32 %v2221, %v2222
        %v2224 = vshll.u32 2475754826, %v2218
        %v2225 = vshrl.u32 2131351028, %v2219
        %v2226 = vor.u32 %v2224, %v2225
        %v2227 = vshll.u32 2131351028, %v2218
        %v2228 = vshrl.u32 2102212464, %v2219
        %v2229 = vor.u32 %v2227, %v2228
        %v2230 = vshll.u32 2102212464, %v2218
        %v2231 = vshrl.u32 920167782, %v2219
        %v2232 = vor.u32 %v2230, %v2231
        %v2233 = vshll.u32 920167782, %v2218
        %v2234 = vshrl.u32 1326507024, %v2219
        %v2235 = vor.u32 %v2233, %v2234
        %vm2236 = vcmp.lt.s32.totalorder %v2217, 1
        %vm2237 = vcmp.lt.s32.totalorder %v2217, 2
        %vm2238 = vcmp.lt.s32.totalorder %v2217, 3
        %vm2239 = vcmp.lt.s32.totalorder %v2217, 4
        %v2240 = vsel %vm2236, %v2220, %v2223
        %v2241 = vsel %vm2239, %v2229, 2102212464
        %v2242 = vsel %vm2238, %v2226, %v2241
        %v2243 = vsel %vm2237, %v2240, %v2242
        %v2244 = vsel %vm2236, %v2223, %v2226
        %v2245 = vsel %vm2239, %v2232, 920167782
        %v2246 = vsel %vm2238, %v2229, %v2245
        %v2247 = vsel %vm2237, %v2244, %v2246
        %v2248 = vsel %vm2236, %v2226, %v2229
        %v2249 = vsel %vm2239, %v2235, 1326507024
        %v2250 = vsel %vm2238, %v2232, %v2249
        %v2251 = vsel %vm2237, %v2248, %v2250
        %v2252 = vshll.u32 %v2212, 8
        %v2253 = vmul.u32.u64.compose %v2252, %v2251
        %v2254 = vextract.low.u32 %v2253
        %v2255 = vextract.high.u32 %v2253
        %v2256 = vmul.u32.u64.compose %v2252, %v2247
        %v2257 = vextract.low.u32 %v2256
        %v2258 = vextract.high.u32 %v2256
        %v2259 = vmul.u32 %v2252, %v2243
        %v2260 = vadd.s32 %v2255, %v2257
        %vm2261 = vc.u32 %v2255, %v2257
        %v2262 = vadd.s32 %v2258, 1
        %v2263 = vsel %vm2261, %v2262, %v2258
        %v2264 = vadd.s32 %v2259, %v2263
        %v2265 = vadd.s32 %v2264, 536870912
        %v2266 = vshrl.u32 %v2265, 30
        %v2267 = vshll.u32 %v2266, 30
        %v2268 = vsub.s32 %v2264, %v2267
        %vm2269 = vcmp.lt.s32.totalorder %v2268, 0
        %v2270 = vsub.s32 0, %v2268
        %v2271 = vsel %vm2269, %v2270, %v2268
        %v2272 = vclz %v2271
        %v2273 = vsub.s32 %v2272, 2
        %vm2274 = vcmp.gt.s32.totalorder 0, %v2273
        %v2275 = vsel %vm2274, 0, %v2273
        %v2276 = vsub.s32 32, %v2275
        %v2277 = vshll.u32 %v2268, %v2275
        %v2278 = vshrl.u32 %v2260, %v2276
        %v2279 = vor.u32 %v2277, %v2278
        %v2280 = vsub.s32 4294967266, %v2275
        %v2281 = vadd.s32 %v2280, 127
        %v2282 = vshll.u32 %v2281, 23
        %v2283 = vor.u32 4788187, %v2282
        %v2284 = vand.u32 2147483647, %v2283
        %v2286 = vcvt.s32.f32 %v2279
        %v2287 = vmul.f32 %v2286, %v2284
        %v2288 = vxor.u32 %v2287, 2147483648
        %v2289 = vsel %vm2206, %v2288, %v2287
        %v2290 = vsub.s32 4, %v2266
        %v2291 = vsel %vm2206, %v2290, %v2266
        %v2292 = vsel %vm2205, %v318, %v2289
        %v2293 = vsel %vm2205, 0, %v2291
        %v2294 = vcosq.f32.pop %v2292
        %v2295 = vsinq.f32.pop %v2292
        %vm2296 = vweird.f32 %v318
        %v2297 = vadd.s32 %v2293, 3
        %v2298 = vand.u32 %v2297, 3
        %vm2299 = vcmp.lt.s32.totalorder %v2298, 2
        %vm2300 = vcmp.eq.s32.totalorder %v2298, 0
        %v2301 = vxor.u32 %v2295, 2147483648
        %v2302 = vsel %vm2300, %v2294, %v2301
        %vm2303 = vcmp.eq.s32.totalorder %v2298, 2
        %v2304 = vxor.u32 %v2294, 2147483648
        %v2305 = vsel %vm2303, %v2304, %v2295
        %v2306 = vsel %vm2299, %v2302, %v2305
        %v2307 = vsel %vm2296, nan, %v2306
        %v2308 = vand.u32 2147483647, %v319
        %vm2309 = vcmp.le.f32.partialorder %v2308, 0.7853982
        %vm2310 = vcmp.lt.s32.totalorder %v319, 0
        %v2311 = vand.u32 %v319, 2139095040
        %v2312 = vshrl.u32 %v2311, 23
        %v2313 = vsub.s32 %v2312, 127
        %v2314 = vand.u32 2147483647, %v319
        %v2315 = vand.u32 %v2314, 8388607
        %v2316 = vor.u32 %v2315, 8388608
        %v2317 = vsub.s32 0, %v2316
        %v2318 = vadd.s32 %v2313, 1
        %vm2319 = vcmp.gt.s32.totalorder %v2318, 0
        %v2320 = vsel %vm2319, %v2318, 0
        %v2321 = vshrl.u32 %v2320, 5
        %v2322 = vand.u32 %v2320, 31
        %v2323 = vsub.s32 32, %v2322
        %v2324 = vshrl.u32 683565275, %v2323
        %v2325 = vshll.u32 683565275, %v2322
        %v2326 = vshrl.u32 2475754826, %v2323
        %v2327 = vor.u32 %v2325, %v2326
        %v2328 = vshll.u32 2475754826, %v2322
        %v2329 = vshrl.u32 2131351028, %v2323
        %v2330 = vor.u32 %v2328, %v2329
        %v2331 = vshll.u32 2131351028, %v2322
        %v2332 = vshrl.u32 2102212464, %v2323
        %v2333 = vor.u32 %v2331, %v2332
        %v2334 = vshll.u32 2102212464, %v2322
        %v2335 = vshrl.u32 920167782, %v2323
        %v2336 = vor.u32 %v2334, %v2335
        %v2337 = vshll.u32 920167782, %v2322
        %v2338 = vshrl.u32 1326507024, %v2323
        %v2339 = vor.u32 %v2337, %v2338
        %vm2340 = vcmp.lt.s32.totalorder %v2321, 1
        %vm2341 = vcmp.lt.s32.totalorder %v2321, 2
        %vm2342 = vcmp.lt.s32.totalorder %v2321, 3
        %vm2343 = vcmp.lt.s32.totalorder %v2321, 4
        %v2344 = vsel %vm2340, %v2324, %v2327
        %v2345 = vsel %vm2343, %v2333, 2102212464
        %v2346 = vsel %vm2342, %v2330, %v2345
        %v2347 = vsel %vm2341, %v2344, %v2346
        %v2348 = vsel %vm2340, %v2327, %v2330
        %v2349 = vsel %vm2343, %v2336, 920167782
        %v2350 = vsel %vm2342, %v2333, %v2349
        %v2351 = vsel %vm2341, %v2348, %v2350
        %v2352 = vsel %vm2340, %v2330, %v2333
        %v2353 = vsel %vm2343, %v2339, 1326507024
        %v2354 = vsel %vm2342, %v2336, %v2353
        %v2355 = vsel %vm2341, %v2352, %v2354
        %v2356 = vshll.u32 %v2316, 8
        %v2357 = vmul.u32.u64.compose %v2356, %v2355
        %v2358 = vextract.low.u32 %v2357
        %v2359 = vextract.high.u32 %v2357
        %v2360 = vmul.u32.u64.compose %v2356, %v2351
        %v2361 = vextract.low.u32 %v2360
        %v2362 = vextract.high.u32 %v2360
        %v2363 = vmul.u32 %v2356, %v2347
        %v2364 = vadd.s32 %v2359, %v2361
        %vm2365 = vc.u32 %v2359, %v2361
        %v2366 = vadd.s32 %v2362, 1
        %v2367 = vsel %vm2365, %v2366, %v2362
        %v2368 = vadd.s32 %v2363, %v2367
        %v2369 = vadd.s32 %v2368, 536870912
        %v2370 = vshrl.u32 %v2369, 30
        %v2371 = vshll.u32 %v2370, 30
        %v2372 = vsub.s32 %v2368, %v2371
        %vm2373 = vcmp.lt.s32.totalorder %v2372, 0
        %v2374 = vsub.s32 0, %v2372
        %v2375 = vsel %vm2373, %v2374, %v2372
        %v2376 = vclz %v2375
        %v2377 = vsub.s32 %v2376, 2
        %vm2378 = vcmp.gt.s32.totalorder 0, %v2377
        %v2379 = vsel %vm2378, 0, %v2377
        %v2380 = vsub.s32 32, %v2379
        %v2381 = vshll.u32 %v2372, %v2379
        %v2382 = vshrl.u32 %v2364, %v2380
        %v2383 = vor.u32 %v2381, %v2382
        %v2384 = vsub.s32 4294967266, %v2379
        %v2385 = vadd.s32 %v2384, 127
        %v2386 = vshll.u32 %v2385, 23
        %v2387 = vor.u32 4788187, %v2386
        %v2388 = vand.u32 2147483647, %v2387
        %v2390 = vcvt.s32.f32 %v2383
        %v2391 = vmul.f32 %v2390, %v2388
        %v2392 = vxor.u32 %v2391, 2147483648
        %v2393 = vsel %vm2310, %v2392, %v2391
        %v2394 = vsub.s32 4, %v2370
        %v2395 = vsel %vm2310, %v2394, %v2370
        %v2396 = vsel %vm2309, %v319, %v2393
        %v2397 = vsel %vm2309, 0, %v2395
        %v2398 = vcosq.f32.pop %v2396
        %v2399 = vsinq.f32.pop %v2396
        %vm2400 = vweird.f32 %v319
        %v2401 = vadd.s32 %v2397, 3
        %v2402 = vand.u32 %v2401, 3
        %vm2403 = vcmp.lt.s32.totalorder %v2402, 2
        %vm2404 = vcmp.eq.s32.totalorder %v2402, 0
        %v2405 = vxor.u32 %v2399, 2147483648
        %v2406 = vsel %vm2404, %v2398, %v2405
        %vm2407 = vcmp.eq.s32.totalorder %v2402, 2
        %v2408 = vxor.u32 %v2398, 2147483648
        %v2409 = vsel %vm2407, %v2408, %v2399
        %v2410 = vsel %vm2403, %v2406, %v2409
        %v2411 = vsel %vm2400, nan, %v2410
        %v2412 = vand.u32 2147483647, %v320
        %vm2413 = vcmp.le.f32.partialorder %v2412, 0.7853982
        %vm2414 = vcmp.lt.s32.totalorder %v320, 0
        %v2415 = vand.u32 %v320, 2139095040
        %v2416 = vshrl.u32 %v2415, 23
        %v2417 = vsub.s32 %v2416, 127
        %v2418 = vand.u32 2147483647, %v320
        %v2419 = vand.u32 %v2418, 8388607
        %v2420 = vor.u32 %v2419, 8388608
        %v2421 = vsub.s32 0, %v2420
        %v2422 = vadd.s32 %v2417, 1
        %vm2423 = vcmp.gt.s32.totalorder %v2422, 0
        %v2424 = vsel %vm2423, %v2422, 0
        %v2425 = vshrl.u32 %v2424, 5
        %v2426 = vand.u32 %v2424, 31
        %v2427 = vsub.s32 32, %v2426
        %v2428 = vshrl.u32 683565275, %v2427
        %v2429 = vshll.u32 683565275, %v2426
        %v2430 = vshrl.u32 2475754826, %v2427
        %v2431 = vor.u32 %v2429, %v2430
        %v2432 = vshll.u32 2475754826, %v2426
        %v2433 = vshrl.u32 2131351028, %v2427
        %v2434 = vor.u32 %v2432, %v2433
        %v2435 = vshll.u32 2131351028, %v2426
        %v2436 = vshrl.u32 2102212464, %v2427
        %v2437 = vor.u32 %v2435, %v2436
        %v2438 = vshll.u32 2102212464, %v2426
        %v2439 = vshrl.u32 920167782, %v2427
        %v2440 = vor.u32 %v2438, %v2439
        %v2441 = vshll.u32 920167782, %v2426
        %v2442 = vshrl.u32 1326507024, %v2427
        %v2443 = vor.u32 %v2441, %v2442
        %vm2444 = vcmp.lt.s32.totalorder %v2425, 1
        %vm2445 = vcmp.lt.s32.totalorder %v2425, 2
        %vm2446 = vcmp.lt.s32.totalorder %v2425, 3
        %vm2447 = vcmp.lt.s32.totalorder %v2425, 4
        %v2448 = vsel %vm2444, %v2428, %v2431
        %v2449 = vsel %vm2447, %v2437, 2102212464
        %v2450 = vsel %vm2446, %v2434, %v2449
        %v2451 = vsel %vm2445, %v2448, %v2450
        %v2452 = vsel %vm2444, %v2431, %v2434
        %v2453 = vsel %vm2447, %v2440, 920167782
        %v2454 = vsel %vm2446, %v2437, %v2453
        %v2455 = vsel %vm2445, %v2452, %v2454
        %v2456 = vsel %vm2444, %v2434, %v2437
        %v2457 = vsel %vm2447, %v2443, 1326507024
        %v2458 = vsel %vm2446, %v2440, %v2457
        %v2459 = vsel %vm2445, %v2456, %v2458
        %v2460 = vshll.u32 %v2420, 8
        %v2461 = vmul.u32.u64.compose %v2460, %v2459
        %v2462 = vextract.low.u32 %v2461
        %v2463 = vextract.high.u32 %v2461
        %v2464 = vmul.u32.u64.compose %v2460, %v2455
        %v2465 = vextract.low.u32 %v2464
        %v2466 = vextract.high.u32 %v2464
        %v2467 = vmul.u32 %v2460, %v2451
        %v2468 = vadd.s32 %v2463, %v2465
        %vm2469 = vc.u32 %v2463, %v2465
        %v2470 = vadd.s32 %v2466, 1
        %v2471 = vsel %vm2469, %v2470, %v2466
        %v2472 = vadd.s32 %v2467, %v2471
        %v2473 = vadd.s32 %v2472, 536870912
        %v2474 = vshrl.u32 %v2473, 30
        %v2475 = vshll.u32 %v2474, 30
        %v2476 = vsub.s32 %v2472, %v2475
        %vm2477 = vcmp.lt.s32.totalorder %v2476, 0
        %v2478 = vsub.s32 0, %v2476
        %v2479 = vsel %vm2477, %v2478, %v2476
        %v2480 = vclz %v2479
        %v2481 = vsub.s32 %v2480, 2
        %vm2482 = vcmp.gt.s32.totalorder 0, %v2481
        %v2483 = vsel %vm2482, 0, %v2481
        %v2484 = vsub.s32 32, %v2483
        %v2485 = vshll.u32 %v2476, %v2483
        %v2486 = vshrl.u32 %v2468, %v2484
        %v2487 = vor.u32 %v2485, %v2486
        %v2488 = vsub.s32 4294967266, %v2483
        %v2489 = vadd.s32 %v2488, 127
        %v2490 = vshll.u32 %v2489, 23
        %v2491 = vor.u32 4788187, %v2490
        %v2492 = vand.u32 2147483647, %v2491
        %v2494 = vcvt.s32.f32 %v2487
        %v2495 = vmul.f32 %v2494, %v2492
        %v2496 = vxor.u32 %v2495, 2147483648
        %v2497 = vsel %vm2414, %v2496, %v2495
        %v2498 = vsub.s32 4, %v2474
        %v2499 = vsel %vm2414, %v2498, %v2474
        %v2500 = vsel %vm2413, %v320, %v2497
        %v2501 = vsel %vm2413, 0, %v2499
        %v2502 = vcosq.f32.pop %v2500
        %v2503 = vsinq.f32.pop %v2500
        %vm2504 = vweird.f32 %v320
        %v2505 = vadd.s32 %v2501, 3
        %v2506 = vand.u32 %v2505, 3
        %vm2507 = vcmp.lt.s32.totalorder %v2506, 2
        %vm2508 = vcmp.eq.s32.totalorder %v2506, 0
        %v2509 = vxor.u32 %v2503, 2147483648
        %v2510 = vsel %vm2508, %v2502, %v2509
        %vm2511 = vcmp.eq.s32.totalorder %v2506, 2
        %v2512 = vxor.u32 %v2502, 2147483648
        %v2513 = vsel %vm2511, %v2512, %v2503
        %v2514 = vsel %vm2507, %v2510, %v2513
        %v2515 = vsel %vm2504, nan, %v2514
        %v2516 = vand.u32 2147483647, %v321
        %vm2517 = vcmp.le.f32.partialorder %v2516, 0.7853982
        %vm2518 = vcmp.lt.s32.totalorder %v321, 0
        %v2519 = vand.u32 %v321, 2139095040
        %v2520 = vshrl.u32 %v2519, 23
        %v2521 = vsub.s32 %v2520, 127
        %v2522 = vand.u32 2147483647, %v321
        %v2523 = vand.u32 %v2522, 8388607
        %v2524 = vor.u32 %v2523, 8388608
        %v2525 = vsub.s32 0, %v2524
        %v2526 = vadd.s32 %v2521, 1
        %vm2527 = vcmp.gt.s32.totalorder %v2526, 0
        %v2528 = vsel %vm2527, %v2526, 0
        %v2529 = vshrl.u32 %v2528, 5
        %v2530 = vand.u32 %v2528, 31
        %v2531 = vsub.s32 32, %v2530
        %v2532 = vshrl.u32 683565275, %v2531
        %v2533 = vshll.u32 683565275, %v2530
        %v2534 = vshrl.u32 2475754826, %v2531
        %v2535 = vor.u32 %v2533, %v2534
        %v2536 = vshll.u32 2475754826, %v2530
        %v2537 = vshrl.u32 2131351028, %v2531
        %v2538 = vor.u32 %v2536, %v2537
        %v2539 = vshll.u32 2131351028, %v2530
        %v2540 = vshrl.u32 2102212464, %v2531
        %v2541 = vor.u32 %v2539, %v2540
        %v2542 = vshll.u32 2102212464, %v2530
        %v2543 = vshrl.u32 920167782, %v2531
        %v2544 = vor.u32 %v2542, %v2543
        %v2545 = vshll.u32 920167782, %v2530
        %v2546 = vshrl.u32 1326507024, %v2531
        %v2547 = vor.u32 %v2545, %v2546
        %vm2548 = vcmp.lt.s32.totalorder %v2529, 1
        %vm2549 = vcmp.lt.s32.totalorder %v2529, 2
        %vm2550 = vcmp.lt.s32.totalorder %v2529, 3
        %vm2551 = vcmp.lt.s32.totalorder %v2529, 4
        %v2552 = vsel %vm2548, %v2532, %v2535
        %v2553 = vsel %vm2551, %v2541, 2102212464
        %v2554 = vsel %vm2550, %v2538, %v2553
        %v2555 = vsel %vm2549, %v2552, %v2554
        %v2556 = vsel %vm2548, %v2535, %v2538
        %v2557 = vsel %vm2551, %v2544, 920167782
        %v2558 = vsel %vm2550, %v2541, %v2557
        %v2559 = vsel %vm2549, %v2556, %v2558
        %v2560 = vsel %vm2548, %v2538, %v2541
        %v2561 = vsel %vm2551, %v2547, 1326507024
        %v2562 = vsel %vm2550, %v2544, %v2561
        %v2563 = vsel %vm2549, %v2560, %v2562
        %v2564 = vshll.u32 %v2524, 8
        %v2565 = vmul.u32.u64.compose %v2564, %v2563
        %v2566 = vextract.low.u32 %v2565
        %v2567 = vextract.high.u32 %v2565
        %v2568 = vmul.u32.u64.compose %v2564, %v2559
        %v2569 = vextract.low.u32 %v2568
        %v2570 = vextract.high.u32 %v2568
        %v2571 = vmul.u32 %v2564, %v2555
        %v2572 = vadd.s32 %v2567, %v2569
        %vm2573 = vc.u32 %v2567, %v2569
        %v2574 = vadd.s32 %v2570, 1
        %v2575 = vsel %vm2573, %v2574, %v2570
        %v2576 = vadd.s32 %v2571, %v2575
        %v2577 = vadd.s32 %v2576, 536870912
        %v2578 = vshrl.u32 %v2577, 30
        %v2579 = vshll.u32 %v2578, 30
        %v2580 = vsub.s32 %v2576, %v2579
        %vm2581 = vcmp.lt.s32.totalorder %v2580, 0
        %v2582 = vsub.s32 0, %v2580
        %v2583 = vsel %vm2581, %v2582, %v2580
        %v2584 = vclz %v2583
        %v2585 = vsub.s32 %v2584, 2
        %vm2586 = vcmp.gt.s32.totalorder 0, %v2585
        %v2587 = vsel %vm2586, 0, %v2585
        %v2588 = vsub.s32 32, %v2587
        %v2589 = vshll.u32 %v2580, %v2587
        %v2590 = vshrl.u32 %v2572, %v2588
        %v2591 = vor.u32 %v2589, %v2590
        %v2592 = vsub.s32 4294967266, %v2587
        %v2593 = vadd.s32 %v2592, 127
        %v2594 = vshll.u32 %v2593, 23
        %v2595 = vor.u32 4788187, %v2594
        %v2596 = vand.u32 2147483647, %v2595
        %v2598 = vcvt.s32.f32 %v2591
        %v2599 = vmul.f32 %v2598, %v2596
        %v2600 = vxor.u32 %v2599, 2147483648
        %v2601 = vsel %vm2518, %v2600, %v2599
        %v2602 = vsub.s32 4, %v2578
        %v2603 = vsel %vm2518, %v2602, %v2578
        %v2604 = vsel %vm2517, %v321, %v2601
        %v2605 = vsel %vm2517, 0, %v2603
        %v2606 = vcosq.f32.pop %v2604
        %v2607 = vsinq.f32.pop %v2604
        %vm2608 = vweird.f32 %v321
        %v2609 = vadd.s32 %v2605, 3
        %v2610 = vand.u32 %v2609, 3
        %vm2611 = vcmp.lt.s32.totalorder %v2610, 2
        %vm2612 = vcmp.eq.s32.totalorder %v2610, 0
        %v2613 = vxor.u32 %v2607, 2147483648
        %v2614 = vsel %vm2612, %v2606, %v2613
        %vm2615 = vcmp.eq.s32.totalorder %v2610, 2
        %v2616 = vxor.u32 %v2606, 2147483648
        %v2617 = vsel %vm2615, %v2616, %v2607
        %v2618 = vsel %vm2611, %v2614, %v2617
        %v2619 = vsel %vm2608, nan, %v2618
        %v2620 = vand.u32 2147483647, %v322
        %vm2621 = vcmp.le.f32.partialorder %v2620, 0.7853982
        %vm2622 = vcmp.lt.s32.totalorder %v322, 0
        %v2623 = vand.u32 %v322, 2139095040
        %v2624 = vshrl.u32 %v2623, 23
        %v2625 = vsub.s32 %v2624, 127
        %v2626 = vand.u32 2147483647, %v322
        %v2627 = vand.u32 %v2626, 8388607
        %v2628 = vor.u32 %v2627, 8388608
        %v2629 = vsub.s32 0, %v2628
        %v2630 = vadd.s32 %v2625, 1
        %vm2631 = vcmp.gt.s32.totalorder %v2630, 0
        %v2632 = vsel %vm2631, %v2630, 0
        %v2633 = vshrl.u32 %v2632, 5
        %v2634 = vand.u32 %v2632, 31
        %v2635 = vsub.s32 32, %v2634
        %v2636 = vshrl.u32 683565275, %v2635
        %v2637 = vshll.u32 683565275, %v2634
        %v2638 = vshrl.u32 2475754826, %v2635
        %v2639 = vor.u32 %v2637, %v2638
        %v2640 = vshll.u32 2475754826, %v2634
        %v2641 = vshrl.u32 2131351028, %v2635
        %v2642 = vor.u32 %v2640, %v2641
        %v2643 = vshll.u32 2131351028, %v2634
        %v2644 = vshrl.u32 2102212464, %v2635
        %v2645 = vor.u32 %v2643, %v2644
        %v2646 = vshll.u32 2102212464, %v2634
        %v2647 = vshrl.u32 920167782, %v2635
        %v2648 = vor.u32 %v2646, %v2647
        %v2649 = vshll.u32 920167782, %v2634
        %v2650 = vshrl.u32 1326507024, %v2635
        %v2651 = vor.u32 %v2649, %v2650
        %vm2652 = vcmp.lt.s32.totalorder %v2633, 1
        %vm2653 = vcmp.lt.s32.totalorder %v2633, 2
        %vm2654 = vcmp.lt.s32.totalorder %v2633, 3
        %vm2655 = vcmp.lt.s32.totalorder %v2633, 4
        %v2656 = vsel %vm2652, %v2636, %v2639
        %v2657 = vsel %vm2655, %v2645, 2102212464
        %v2658 = vsel %vm2654, %v2642, %v2657
        %v2659 = vsel %vm2653, %v2656, %v2658
        %v2660 = vsel %vm2652, %v2639, %v2642
        %v2661 = vsel %vm2655, %v2648, 920167782
        %v2662 = vsel %vm2654, %v2645, %v2661
        %v2663 = vsel %vm2653, %v2660, %v2662
        %v2664 = vsel %vm2652, %v2642, %v2645
        %v2665 = vsel %vm2655, %v2651, 1326507024
        %v2666 = vsel %vm2654, %v2648, %v2665
        %v2667 = vsel %vm2653, %v2664, %v2666
        %v2668 = vshll.u32 %v2628, 8
        %v2669 = vmul.u32.u64.compose %v2668, %v2667
        %v2670 = vextract.low.u32 %v2669
        %v2671 = vextract.high.u32 %v2669
        %v2672 = vmul.u32.u64.compose %v2668, %v2663
        %v2673 = vextract.low.u32 %v2672
        %v2674 = vextract.high.u32 %v2672
        %v2675 = vmul.u32 %v2668, %v2659
        %v2676 = vadd.s32 %v2671, %v2673
        %vm2677 = vc.u32 %v2671, %v2673
        %v2678 = vadd.s32 %v2674, 1
        %v2679 = vsel %vm2677, %v2678, %v2674
        %v2680 = vadd.s32 %v2675, %v2679
        %v2681 = vadd.s32 %v2680, 536870912
        %v2682 = vshrl.u32 %v2681, 30
        %v2683 = vshll.u32 %v2682, 30
        %v2684 = vsub.s32 %v2680, %v2683
        %vm2685 = vcmp.lt.s32.totalorder %v2684, 0
        %v2686 = vsub.s32 0, %v2684
        %v2687 = vsel %vm2685, %v2686, %v2684
        %v2688 = vclz %v2687
        %v2689 = vsub.s32 %v2688, 2
        %vm2690 = vcmp.gt.s32.totalorder 0, %v2689
        %v2691 = vsel %vm2690, 0, %v2689
        %v2692 = vsub.s32 32, %v2691
        %v2693 = vshll.u32 %v2684, %v2691
        %v2694 = vshrl.u32 %v2676, %v2692
        %v2695 = vor.u32 %v2693, %v2694
        %v2696 = vsub.s32 4294967266, %v2691
        %v2697 = vadd.s32 %v2696, 127
        %v2698 = vshll.u32 %v2697, 23
        %v2699 = vor.u32 4788187, %v2698
        %v2700 = vand.u32 2147483647, %v2699
        %v2702 = vcvt.s32.f32 %v2695
        %v2703 = vmul.f32 %v2702, %v2700
        %v2704 = vxor.u32 %v2703, 2147483648
        %v2705 = vsel %vm2622, %v2704, %v2703
        %v2706 = vsub.s32 4, %v2682
        %v2707 = vsel %vm2622, %v2706, %v2682
        %v2708 = vsel %vm2621, %v322, %v2705
        %v2709 = vsel %vm2621, 0, %v2707
        %v2710 = vcosq.f32.pop %v2708
        %v2711 = vsinq.f32.pop %v2708
        %vm2712 = vweird.f32 %v322
        %v2713 = vadd.s32 %v2709, 3
        %v2714 = vand.u32 %v2713, 3
        %vm2715 = vcmp.lt.s32.totalorder %v2714, 2
        %vm2716 = vcmp.eq.s32.totalorder %v2714, 0
        %v2717 = vxor.u32 %v2711, 2147483648
        %v2718 = vsel %vm2716, %v2710, %v2717
        %vm2719 = vcmp.eq.s32.totalorder %v2714, 2
        %v2720 = vxor.u32 %v2710, 2147483648
        %v2721 = vsel %vm2719, %v2720, %v2711
        %v2722 = vsel %vm2715, %v2718, %v2721
        %v2723 = vsel %vm2712, nan, %v2722
        %v2724 = vand.u32 2147483647, %v323
        %vm2725 = vcmp.le.f32.partialorder %v2724, 0.7853982
        %vm2726 = vcmp.lt.s32.totalorder %v323, 0
        %v2727 = vand.u32 %v323, 2139095040
        %v2728 = vshrl.u32 %v2727, 23
        %v2729 = vsub.s32 %v2728, 127
        %v2730 = vand.u32 2147483647, %v323
        %v2731 = vand.u32 %v2730, 8388607
        %v2732 = vor.u32 %v2731, 8388608
        %v2733 = vsub.s32 0, %v2732
        %v2734 = vadd.s32 %v2729, 1
        %vm2735 = vcmp.gt.s32.totalorder %v2734, 0
        %v2736 = vsel %vm2735, %v2734, 0
        %v2737 = vshrl.u32 %v2736, 5
        %v2738 = vand.u32 %v2736, 31
        %v2739 = vsub.s32 32, %v2738
        %v2740 = vshrl.u32 683565275, %v2739
        %v2741 = vshll.u32 683565275, %v2738
        %v2742 = vshrl.u32 2475754826, %v2739
        %v2743 = vor.u32 %v2741, %v2742
        %v2744 = vshll.u32 2475754826, %v2738
        %v2745 = vshrl.u32 2131351028, %v2739
        %v2746 = vor.u32 %v2744, %v2745
        %v2747 = vshll.u32 2131351028, %v2738
        %v2748 = vshrl.u32 2102212464, %v2739
        %v2749 = vor.u32 %v2747, %v2748
        %v2750 = vshll.u32 2102212464, %v2738
        %v2751 = vshrl.u32 920167782, %v2739
        %v2752 = vor.u32 %v2750, %v2751
        %v2753 = vshll.u32 920167782, %v2738
        %v2754 = vshrl.u32 1326507024, %v2739
        %v2755 = vor.u32 %v2753, %v2754
        %vm2756 = vcmp.lt.s32.totalorder %v2737, 1
        %vm2757 = vcmp.lt.s32.totalorder %v2737, 2
        %vm2758 = vcmp.lt.s32.totalorder %v2737, 3
        %vm2759 = vcmp.lt.s32.totalorder %v2737, 4
        %v2760 = vsel %vm2756, %v2740, %v2743
        %v2761 = vsel %vm2759, %v2749, 2102212464
        %v2762 = vsel %vm2758, %v2746, %v2761
        %v2763 = vsel %vm2757, %v2760, %v2762
        %v2764 = vsel %vm2756, %v2743, %v2746
        %v2765 = vsel %vm2759, %v2752, 920167782
        %v2766 = vsel %vm2758, %v2749, %v2765
        %v2767 = vsel %vm2757, %v2764, %v2766
        %v2768 = vsel %vm2756, %v2746, %v2749
        %v2769 = vsel %vm2759, %v2755, 1326507024
        %v2770 = vsel %vm2758, %v2752, %v2769
        %v2771 = vsel %vm2757, %v2768, %v2770
        %v2772 = vshll.u32 %v2732, 8
        %v2773 = vmul.u32.u64.compose %v2772, %v2771
        %v2774 = vextract.low.u32 %v2773
        %v2775 = vextract.high.u32 %v2773
        %v2776 = vmul.u32.u64.compose %v2772, %v2767
        %v2777 = vextract.low.u32 %v2776
        %v2778 = vextract.high.u32 %v2776
        %v2779 = vmul.u32 %v2772, %v2763
        %v2780 = vadd.s32 %v2775, %v2777
        %vm2781 = vc.u32 %v2775, %v2777
        %v2782 = vadd.s32 %v2778, 1
        %v2783 = vsel %vm2781, %v2782, %v2778
        %v2784 = vadd.s32 %v2779, %v2783
        %v2785 = vadd.s32 %v2784, 536870912
        %v2786 = vshrl.u32 %v2785, 30
        %v2787 = vshll.u32 %v2786, 30
        %v2788 = vsub.s32 %v2784, %v2787
        %vm2789 = vcmp.lt.s32.totalorder %v2788, 0
        %v2790 = vsub.s32 0, %v2788
        %v2791 = vsel %vm2789, %v2790, %v2788
        %v2792 = vclz %v2791
        %v2793 = vsub.s32 %v2792, 2
        %vm2794 = vcmp.gt.s32.totalorder 0, %v2793
        %v2795 = vsel %vm2794, 0, %v2793
        %v2796 = vsub.s32 32, %v2795
        %v2797 = vshll.u32 %v2788, %v2795
        %v2798 = vshrl.u32 %v2780, %v2796
        %v2799 = vor.u32 %v2797, %v2798
        %v2800 = vsub.s32 4294967266, %v2795
        %v2801 = vadd.s32 %v2800, 127
        %v2802 = vshll.u32 %v2801, 23
        %v2803 = vor.u32 4788187, %v2802
        %v2804 = vand.u32 2147483647, %v2803
        %v2806 = vcvt.s32.f32 %v2799
        %v2807 = vmul.f32 %v2806, %v2804
        %v2808 = vxor.u32 %v2807, 2147483648
        %v2809 = vsel %vm2726, %v2808, %v2807
        %v2810 = vsub.s32 4, %v2786
        %v2811 = vsel %vm2726, %v2810, %v2786
        %v2812 = vsel %vm2725, %v323, %v2809
        %v2813 = vsel %vm2725, 0, %v2811
        %v2814 = vcosq.f32.pop %v2812
        %v2815 = vsinq.f32.pop %v2812
        %vm2816 = vweird.f32 %v323
        %v2817 = vadd.s32 %v2813, 3
        %v2818 = vand.u32 %v2817, 3
        %vm2819 = vcmp.lt.s32.totalorder %v2818, 2
        %vm2820 = vcmp.eq.s32.totalorder %v2818, 0
        %v2821 = vxor.u32 %v2815, 2147483648
        %v2822 = vsel %vm2820, %v2814, %v2821
        %vm2823 = vcmp.eq.s32.totalorder %v2818, 2
        %v2824 = vxor.u32 %v2814, 2147483648
        %v2825 = vsel %vm2823, %v2824, %v2815
        %v2826 = vsel %vm2819, %v2822, %v2825
        %v2827 = vsel %vm2816, nan, %v2826
        %v2828 = vand.u32 2147483647, %v324
        %vm2829 = vcmp.le.f32.partialorder %v2828, 0.7853982
        %vm2830 = vcmp.lt.s32.totalorder %v324, 0
        %v2831 = vand.u32 %v324, 2139095040
        %v2832 = vshrl.u32 %v2831, 23
        %v2833 = vsub.s32 %v2832, 127
        %v2834 = vand.u32 2147483647, %v324
        %v2835 = vand.u32 %v2834, 8388607
        %v2836 = vor.u32 %v2835, 8388608
        %v2837 = vsub.s32 0, %v2836
        %v2838 = vadd.s32 %v2833, 1
        %vm2839 = vcmp.gt.s32.totalorder %v2838, 0
        %v2840 = vsel %vm2839, %v2838, 0
        %v2841 = vshrl.u32 %v2840, 5
        %v2842 = vand.u32 %v2840, 31
        %v2843 = vsub.s32 32, %v2842
        %v2844 = vshrl.u32 683565275, %v2843
        %v2845 = vshll.u32 683565275, %v2842
        %v2846 = vshrl.u32 2475754826, %v2843
        %v2847 = vor.u32 %v2845, %v2846
        %v2848 = vshll.u32 2475754826, %v2842
        %v2849 = vshrl.u32 2131351028, %v2843
        %v2850 = vor.u32 %v2848, %v2849
        %v2851 = vshll.u32 2131351028, %v2842
        %v2852 = vshrl.u32 2102212464, %v2843
        %v2853 = vor.u32 %v2851, %v2852
        %v2854 = vshll.u32 2102212464, %v2842
        %v2855 = vshrl.u32 920167782, %v2843
        %v2856 = vor.u32 %v2854, %v2855
        %v2857 = vshll.u32 920167782, %v2842
        %v2858 = vshrl.u32 1326507024, %v2843
        %v2859 = vor.u32 %v2857, %v2858
        %vm2860 = vcmp.lt.s32.totalorder %v2841, 1
        %vm2861 = vcmp.lt.s32.totalorder %v2841, 2
        %vm2862 = vcmp.lt.s32.totalorder %v2841, 3
        %vm2863 = vcmp.lt.s32.totalorder %v2841, 4
        %v2864 = vsel %vm2860, %v2844, %v2847
        %v2865 = vsel %vm2863, %v2853, 2102212464
        %v2866 = vsel %vm2862, %v2850, %v2865
        %v2867 = vsel %vm2861, %v2864, %v2866
        %v2868 = vsel %vm2860, %v2847, %v2850
        %v2869 = vsel %vm2863, %v2856, 920167782
        %v2870 = vsel %vm2862, %v2853, %v2869
        %v2871 = vsel %vm2861, %v2868, %v2870
        %v2872 = vsel %vm2860, %v2850, %v2853
        %v2873 = vsel %vm2863, %v2859, 1326507024
        %v2874 = vsel %vm2862, %v2856, %v2873
        %v2875 = vsel %vm2861, %v2872, %v2874
        %v2876 = vshll.u32 %v2836, 8
        %v2877 = vmul.u32.u64.compose %v2876, %v2875
        %v2878 = vextract.low.u32 %v2877
        %v2879 = vextract.high.u32 %v2877
        %v2880 = vmul.u32.u64.compose %v2876, %v2871
        %v2881 = vextract.low.u32 %v2880
        %v2882 = vextract.high.u32 %v2880
        %v2883 = vmul.u32 %v2876, %v2867
        %v2884 = vadd.s32 %v2879, %v2881
        %vm2885 = vc.u32 %v2879, %v2881
        %v2886 = vadd.s32 %v2882, 1
        %v2887 = vsel %vm2885, %v2886, %v2882
        %v2888 = vadd.s32 %v2883, %v2887
        %v2889 = vadd.s32 %v2888, 536870912
        %v2890 = vshrl.u32 %v2889, 30
        %v2891 = vshll.u32 %v2890, 30
        %v2892 = vsub.s32 %v2888, %v2891
        %vm2893 = vcmp.lt.s32.totalorder %v2892, 0
        %v2894 = vsub.s32 0, %v2892
        %v2895 = vsel %vm2893, %v2894, %v2892
        %v2896 = vclz %v2895
        %v2897 = vsub.s32 %v2896, 2
        %vm2898 = vcmp.gt.s32.totalorder 0, %v2897
        %v2899 = vsel %vm2898, 0, %v2897
        %v2900 = vsub.s32 32, %v2899
        %v2901 = vshll.u32 %v2892, %v2899
        %v2902 = vshrl.u32 %v2884, %v2900
        %v2903 = vor.u32 %v2901, %v2902
        %v2904 = vsub.s32 4294967266, %v2899
        %v2905 = vadd.s32 %v2904, 127
        %v2906 = vshll.u32 %v2905, 23
        %v2907 = vor.u32 4788187, %v2906
        %v2908 = vand.u32 2147483647, %v2907
        %v2910 = vcvt.s32.f32 %v2903
        %v2911 = vmul.f32 %v2910, %v2908
        %v2912 = vxor.u32 %v2911, 2147483648
        %v2913 = vsel %vm2830, %v2912, %v2911
        %v2914 = vsub.s32 4, %v2890
        %v2915 = vsel %vm2830, %v2914, %v2890
        %v2916 = vsel %vm2829, %v324, %v2913
        %v2917 = vsel %vm2829, 0, %v2915
        %v2918 = vcosq.f32.pop %v2916
        %v2919 = vsinq.f32.pop %v2916
        %vm2920 = vweird.f32 %v324
        %v2921 = vadd.s32 %v2917, 3
        %v2922 = vand.u32 %v2921, 3
        %vm2923 = vcmp.lt.s32.totalorder %v2922, 2
        %vm2924 = vcmp.eq.s32.totalorder %v2922, 0
        %v2925 = vxor.u32 %v2919, 2147483648
        %v2926 = vsel %vm2924, %v2918, %v2925
        %vm2927 = vcmp.eq.s32.totalorder %v2922, 2
        %v2928 = vxor.u32 %v2918, 2147483648
        %v2929 = vsel %vm2927, %v2928, %v2919
        %v2930 = vsel %vm2923, %v2926, %v2929
        %v2931 = vsel %vm2920, nan, %v2930
        %v2932 = vand.u32 2147483647, %v325
        %vm2933 = vcmp.le.f32.partialorder %v2932, 0.7853982
        %vm2934 = vcmp.lt.s32.totalorder %v325, 0
        %v2935 = vand.u32 %v325, 2139095040
        %v2936 = vshrl.u32 %v2935, 23
        %v2937 = vsub.s32 %v2936, 127
        %v2938 = vand.u32 2147483647, %v325
        %v2939 = vand.u32 %v2938, 8388607
        %v2940 = vor.u32 %v2939, 8388608
        %v2941 = vsub.s32 0, %v2940
        %v2942 = vadd.s32 %v2937, 1
        %vm2943 = vcmp.gt.s32.totalorder %v2942, 0
        %v2944 = vsel %vm2943, %v2942, 0
        %v2945 = vshrl.u32 %v2944, 5
        %v2946 = vand.u32 %v2944, 31
        %v2947 = vsub.s32 32, %v2946
        %v2948 = vshrl.u32 683565275, %v2947
        %v2949 = vshll.u32 683565275, %v2946
        %v2950 = vshrl.u32 2475754826, %v2947
        %v2951 = vor.u32 %v2949, %v2950
        %v2952 = vshll.u32 2475754826, %v2946
        %v2953 = vshrl.u32 2131351028, %v2947
        %v2954 = vor.u32 %v2952, %v2953
        %v2955 = vshll.u32 2131351028, %v2946
        %v2956 = vshrl.u32 2102212464, %v2947
        %v2957 = vor.u32 %v2955, %v2956
        %v2958 = vshll.u32 2102212464, %v2946
        %v2959 = vshrl.u32 920167782, %v2947
        %v2960 = vor.u32 %v2958, %v2959
        %v2961 = vshll.u32 920167782, %v2946
        %v2962 = vshrl.u32 1326507024, %v2947
        %v2963 = vor.u32 %v2961, %v2962
        %vm2964 = vcmp.lt.s32.totalorder %v2945, 1
        %vm2965 = vcmp.lt.s32.totalorder %v2945, 2
        %vm2966 = vcmp.lt.s32.totalorder %v2945, 3
        %vm2967 = vcmp.lt.s32.totalorder %v2945, 4
        %v2968 = vsel %vm2964, %v2948, %v2951
        %v2969 = vsel %vm2967, %v2957, 2102212464
        %v2970 = vsel %vm2966, %v2954, %v2969
        %v2971 = vsel %vm2965, %v2968, %v2970
        %v2972 = vsel %vm2964, %v2951, %v2954
        %v2973 = vsel %vm2967, %v2960, 920167782
        %v2974 = vsel %vm2966, %v2957, %v2973
        %v2975 = vsel %vm2965, %v2972, %v2974
        %v2976 = vsel %vm2964, %v2954, %v2957
        %v2977 = vsel %vm2967, %v2963, 1326507024
        %v2978 = vsel %vm2966, %v2960, %v2977
        %v2979 = vsel %vm2965, %v2976, %v2978
        %v2980 = vshll.u32 %v2940, 8
        %v2981 = vmul.u32.u64.compose %v2980, %v2979
        %v2982 = vextract.low.u32 %v2981
        %v2983 = vextract.high.u32 %v2981
        %v2984 = vmul.u32.u64.compose %v2980, %v2975
        %v2985 = vextract.low.u32 %v2984
        %v2986 = vextract.high.u32 %v2984
        %v2987 = vmul.u32 %v2980, %v2971
        %v2988 = vadd.s32 %v2983, %v2985
        %vm2989 = vc.u32 %v2983, %v2985
        %v2990 = vadd.s32 %v2986, 1
        %v2991 = vsel %vm2989, %v2990, %v2986
        %v2992 = vadd.s32 %v2987, %v2991
        %v2993 = vadd.s32 %v2992, 536870912
        %v2994 = vshrl.u32 %v2993, 30
        %v2995 = vshll.u32 %v2994, 30
        %v2996 = vsub.s32 %v2992, %v2995
        %vm2997 = vcmp.lt.s32.totalorder %v2996, 0
        %v2998 = vsub.s32 0, %v2996
        %v2999 = vsel %vm2997, %v2998, %v2996
        %v3000 = vclz %v2999
        %v3001 = vsub.s32 %v3000, 2
        %vm3002 = vcmp.gt.s32.totalorder 0, %v3001
        %v3003 = vsel %vm3002, 0, %v3001
        %v3004 = vsub.s32 32, %v3003
        %v3005 = vshll.u32 %v2996, %v3003
        %v3006 = vshrl.u32 %v2988, %v3004
        %v3007 = vor.u32 %v3005, %v3006
        %v3008 = vsub.s32 4294967266, %v3003
        %v3009 = vadd.s32 %v3008, 127
        %v3010 = vshll.u32 %v3009, 23
        %v3011 = vor.u32 4788187, %v3010
        %v3012 = vand.u32 2147483647, %v3011
        %v3014 = vcvt.s32.f32 %v3007
        %v3015 = vmul.f32 %v3014, %v3012
        %v3016 = vxor.u32 %v3015, 2147483648
        %v3017 = vsel %vm2934, %v3016, %v3015
        %v3018 = vsub.s32 4, %v2994
        %v3019 = vsel %vm2934, %v3018, %v2994
        %v3020 = vsel %vm2933, %v325, %v3017
        %v3021 = vsel %vm2933, 0, %v3019
        %v3022 = vcosq.f32.pop %v3020
        %v3023 = vsinq.f32.pop %v3020
        %vm3024 = vweird.f32 %v325
        %v3025 = vadd.s32 %v3021, 3
        %v3026 = vand.u32 %v3025, 3
        %vm3027 = vcmp.lt.s32.totalorder %v3026, 2
        %vm3028 = vcmp.eq.s32.totalorder %v3026, 0
        %v3029 = vxor.u32 %v3023, 2147483648
        %v3030 = vsel %vm3028, %v3022, %v3029
        %vm3031 = vcmp.eq.s32.totalorder %v3026, 2
        %v3032 = vxor.u32 %v3022, 2147483648
        %v3033 = vsel %vm3031, %v3032, %v3023
        %v3034 = vsel %vm3027, %v3030, %v3033
        %v3035 = vsel %vm3024, nan, %v3034
        %v3036 = vand.u32 2147483647, %v326
        %vm3037 = vcmp.le.f32.partialorder %v3036, 0.7853982
        %vm3038 = vcmp.lt.s32.totalorder %v326, 0
        %v3039 = vand.u32 %v326, 2139095040
        %v3040 = vshrl.u32 %v3039, 23
        %v3041 = vsub.s32 %v3040, 127
        %v3042 = vand.u32 2147483647, %v326
        %v3043 = vand.u32 %v3042, 8388607
        %v3044 = vor.u32 %v3043, 8388608
        %v3045 = vsub.s32 0, %v3044
        %v3046 = vadd.s32 %v3041, 1
        %vm3047 = vcmp.gt.s32.totalorder %v3046, 0
        %v3048 = vsel %vm3047, %v3046, 0
        %v3049 = vshrl.u32 %v3048, 5
        %v3050 = vand.u32 %v3048, 31
        %v3051 = vsub.s32 32, %v3050
        %v3052 = vshrl.u32 683565275, %v3051
        %v3053 = vshll.u32 683565275, %v3050
        %v3054 = vshrl.u32 2475754826, %v3051
        %v3055 = vor.u32 %v3053, %v3054
        %v3056 = vshll.u32 2475754826, %v3050
        %v3057 = vshrl.u32 2131351028, %v3051
        %v3058 = vor.u32 %v3056, %v3057
        %v3059 = vshll.u32 2131351028, %v3050
        %v3060 = vshrl.u32 2102212464, %v3051
        %v3061 = vor.u32 %v3059, %v3060
        %v3062 = vshll.u32 2102212464, %v3050
        %v3063 = vshrl.u32 920167782, %v3051
        %v3064 = vor.u32 %v3062, %v3063
        %v3065 = vshll.u32 920167782, %v3050
        %v3066 = vshrl.u32 1326507024, %v3051
        %v3067 = vor.u32 %v3065, %v3066
        %vm3068 = vcmp.lt.s32.totalorder %v3049, 1
        %vm3069 = vcmp.lt.s32.totalorder %v3049, 2
        %vm3070 = vcmp.lt.s32.totalorder %v3049, 3
        %vm3071 = vcmp.lt.s32.totalorder %v3049, 4
        %v3072 = vsel %vm3068, %v3052, %v3055
        %v3073 = vsel %vm3071, %v3061, 2102212464
        %v3074 = vsel %vm3070, %v3058, %v3073
        %v3075 = vsel %vm3069, %v3072, %v3074
        %v3076 = vsel %vm3068, %v3055, %v3058
        %v3077 = vsel %vm3071, %v3064, 920167782
        %v3078 = vsel %vm3070, %v3061, %v3077
        %v3079 = vsel %vm3069, %v3076, %v3078
        %v3080 = vsel %vm3068, %v3058, %v3061
        %v3081 = vsel %vm3071, %v3067, 1326507024
        %v3082 = vsel %vm3070, %v3064, %v3081
        %v3083 = vsel %vm3069, %v3080, %v3082
        %v3084 = vshll.u32 %v3044, 8
        %v3085 = vmul.u32.u64.compose %v3084, %v3083
        %v3086 = vextract.low.u32 %v3085
        %v3087 = vextract.high.u32 %v3085
        %v3088 = vmul.u32.u64.compose %v3084, %v3079
        %v3089 = vextract.low.u32 %v3088
        %v3090 = vextract.high.u32 %v3088
        %v3091 = vmul.u32 %v3084, %v3075
        %v3092 = vadd.s32 %v3087, %v3089
        %vm3093 = vc.u32 %v3087, %v3089
        %v3094 = vadd.s32 %v3090, 1
        %v3095 = vsel %vm3093, %v3094, %v3090
        %v3096 = vadd.s32 %v3091, %v3095
        %v3097 = vadd.s32 %v3096, 536870912
        %v3098 = vshrl.u32 %v3097, 30
        %v3099 = vshll.u32 %v3098, 30
        %v3100 = vsub.s32 %v3096, %v3099
        %vm3101 = vcmp.lt.s32.totalorder %v3100, 0
        %v3102 = vsub.s32 0, %v3100
        %v3103 = vsel %vm3101, %v3102, %v3100
        %v3104 = vclz %v3103
        %v3105 = vsub.s32 %v3104, 2
        %vm3106 = vcmp.gt.s32.totalorder 0, %v3105
        %v3107 = vsel %vm3106, 0, %v3105
        %v3108 = vsub.s32 32, %v3107
        %v3109 = vshll.u32 %v3100, %v3107
        %v3110 = vshrl.u32 %v3092, %v3108
        %v3111 = vor.u32 %v3109, %v3110
        %v3112 = vsub.s32 4294967266, %v3107
        %v3113 = vadd.s32 %v3112, 127
        %v3114 = vshll.u32 %v3113, 23
        %v3115 = vor.u32 4788187, %v3114
        %v3116 = vand.u32 2147483647, %v3115
        %v3118 = vcvt.s32.f32 %v3111
        %v3119 = vmul.f32 %v3118, %v3116
        %v3120 = vxor.u32 %v3119, 2147483648
        %v3121 = vsel %vm3038, %v3120, %v3119
        %v3122 = vsub.s32 4, %v3098
        %v3123 = vsel %vm3038, %v3122, %v3098
        %v3124 = vsel %vm3037, %v326, %v3121
        %v3125 = vsel %vm3037, 0, %v3123
        %v3126 = vcosq.f32.pop %v3124
        %v3127 = vsinq.f32.pop %v3124
        %vm3128 = vweird.f32 %v326
        %v3129 = vadd.s32 %v3125, 3
        %v3130 = vand.u32 %v3129, 3
        %vm3131 = vcmp.lt.s32.totalorder %v3130, 2
        %vm3132 = vcmp.eq.s32.totalorder %v3130, 0
        %v3133 = vxor.u32 %v3127, 2147483648
        %v3134 = vsel %vm3132, %v3126, %v3133
        %vm3135 = vcmp.eq.s32.totalorder %v3130, 2
        %v3136 = vxor.u32 %v3126, 2147483648
        %v3137 = vsel %vm3135, %v3136, %v3127
        %v3138 = vsel %vm3131, %v3134, %v3137
        %v3139 = vsel %vm3128, nan, %v3138
        %v3140 = vand.u32 2147483647, %v327
        %vm3141 = vcmp.le.f32.partialorder %v3140, 0.7853982
        %vm3142 = vcmp.lt.s32.totalorder %v327, 0
        %v3143 = vand.u32 %v327, 2139095040
        %v3144 = vshrl.u32 %v3143, 23
        %v3145 = vsub.s32 %v3144, 127
        %v3146 = vand.u32 2147483647, %v327
        %v3147 = vand.u32 %v3146, 8388607
        %v3148 = vor.u32 %v3147, 8388608
        %v3149 = vsub.s32 0, %v3148
        %v3150 = vadd.s32 %v3145, 1
        %vm3151 = vcmp.gt.s32.totalorder %v3150, 0
        %v3152 = vsel %vm3151, %v3150, 0
        %v3153 = vshrl.u32 %v3152, 5
        %v3154 = vand.u32 %v3152, 31
        %v3155 = vsub.s32 32, %v3154
        %v3156 = vshrl.u32 683565275, %v3155
        %v3157 = vshll.u32 683565275, %v3154
        %v3158 = vshrl.u32 2475754826, %v3155
        %v3159 = vor.u32 %v3157, %v3158
        %v3160 = vshll.u32 2475754826, %v3154
        %v3161 = vshrl.u32 2131351028, %v3155
        %v3162 = vor.u32 %v3160, %v3161
        %v3163 = vshll.u32 2131351028, %v3154
        %v3164 = vshrl.u32 2102212464, %v3155
        %v3165 = vor.u32 %v3163, %v3164
        %v3166 = vshll.u32 2102212464, %v3154
        %v3167 = vshrl.u32 920167782, %v3155
        %v3168 = vor.u32 %v3166, %v3167
        %v3169 = vshll.u32 920167782, %v3154
        %v3170 = vshrl.u32 1326507024, %v3155
        %v3171 = vor.u32 %v3169, %v3170
        %vm3172 = vcmp.lt.s32.totalorder %v3153, 1
        %vm3173 = vcmp.lt.s32.totalorder %v3153, 2
        %vm3174 = vcmp.lt.s32.totalorder %v3153, 3
        %vm3175 = vcmp.lt.s32.totalorder %v3153, 4
        %v3176 = vsel %vm3172, %v3156, %v3159
        %v3177 = vsel %vm3175, %v3165, 2102212464
        %v3178 = vsel %vm3174, %v3162, %v3177
        %v3179 = vsel %vm3173, %v3176, %v3178
        %v3180 = vsel %vm3172, %v3159, %v3162
        %v3181 = vsel %vm3175, %v3168, 920167782
        %v3182 = vsel %vm3174, %v3165, %v3181
        %v3183 = vsel %vm3173, %v3180, %v3182
        %v3184 = vsel %vm3172, %v3162, %v3165
        %v3185 = vsel %vm3175, %v3171, 1326507024
        %v3186 = vsel %vm3174, %v3168, %v3185
        %v3187 = vsel %vm3173, %v3184, %v3186
        %v3188 = vshll.u32 %v3148, 8
        %v3189 = vmul.u32.u64.compose %v3188, %v3187
        %v3190 = vextract.low.u32 %v3189
        %v3191 = vextract.high.u32 %v3189
        %v3192 = vmul.u32.u64.compose %v3188, %v3183
        %v3193 = vextract.low.u32 %v3192
        %v3194 = vextract.high.u32 %v3192
        %v3195 = vmul.u32 %v3188, %v3179
        %v3196 = vadd.s32 %v3191, %v3193
        %vm3197 = vc.u32 %v3191, %v3193
        %v3198 = vadd.s32 %v3194, 1
        %v3199 = vsel %vm3197, %v3198, %v3194
        %v3200 = vadd.s32 %v3195, %v3199
        %v3201 = vadd.s32 %v3200, 536870912
        %v3202 = vshrl.u32 %v3201, 30
        %v3203 = vshll.u32 %v3202, 30
        %v3204 = vsub.s32 %v3200, %v3203
        %vm3205 = vcmp.lt.s32.totalorder %v3204, 0
        %v3206 = vsub.s32 0, %v3204
        %v3207 = vsel %vm3205, %v3206, %v3204
        %v3208 = vclz %v3207
        %v3209 = vsub.s32 %v3208, 2
        %vm3210 = vcmp.gt.s32.totalorder 0, %v3209
        %v3211 = vsel %vm3210, 0, %v3209
        %v3212 = vsub.s32 32, %v3211
        %v3213 = vshll.u32 %v3204, %v3211
        %v3214 = vshrl.u32 %v3196, %v3212
        %v3215 = vor.u32 %v3213, %v3214
        %v3216 = vsub.s32 4294967266, %v3211
        %v3217 = vadd.s32 %v3216, 127
        %v3218 = vshll.u32 %v3217, 23
        %v3219 = vor.u32 4788187, %v3218
        %v3220 = vand.u32 2147483647, %v3219
        %v3222 = vcvt.s32.f32 %v3215
        %v3223 = vmul.f32 %v3222, %v3220
        %v3224 = vxor.u32 %v3223, 2147483648
        %v3225 = vsel %vm3142, %v3224, %v3223
        %v3226 = vsub.s32 4, %v3202
        %v3227 = vsel %vm3142, %v3226, %v3202
        %v3228 = vsel %vm3141, %v327, %v3225
        %v3229 = vsel %vm3141, 0, %v3227
        %v3230 = vcosq.f32.pop %v3228
        %v3231 = vsinq.f32.pop %v3228
        %vm3232 = vweird.f32 %v327
        %v3233 = vadd.s32 %v3229, 3
        %v3234 = vand.u32 %v3233, 3
        %vm3235 = vcmp.lt.s32.totalorder %v3234, 2
        %vm3236 = vcmp.eq.s32.totalorder %v3234, 0
        %v3237 = vxor.u32 %v3231, 2147483648
        %v3238 = vsel %vm3236, %v3230, %v3237
        %vm3239 = vcmp.eq.s32.totalorder %v3234, 2
        %v3240 = vxor.u32 %v3230, 2147483648
        %v3241 = vsel %vm3239, %v3240, %v3231
        %v3242 = vsel %vm3235, %v3238, %v3241
        %v3243 = vsel %vm3232, nan, %v3242
        %v3244 = vand.u32 2147483647, %v328
        %vm3245 = vcmp.le.f32.partialorder %v3244, 0.7853982
        %vm3246 = vcmp.lt.s32.totalorder %v328, 0
        %v3247 = vand.u32 %v328, 2139095040
        %v3248 = vshrl.u32 %v3247, 23
        %v3249 = vsub.s32 %v3248, 127
        %v3250 = vand.u32 2147483647, %v328
        %v3251 = vand.u32 %v3250, 8388607
        %v3252 = vor.u32 %v3251, 8388608
        %v3253 = vsub.s32 0, %v3252
        %v3254 = vadd.s32 %v3249, 1
        %vm3255 = vcmp.gt.s32.totalorder %v3254, 0
        %v3256 = vsel %vm3255, %v3254, 0
        %v3257 = vshrl.u32 %v3256, 5
        %v3258 = vand.u32 %v3256, 31
        %v3259 = vsub.s32 32, %v3258
        %v3260 = vshrl.u32 683565275, %v3259
        %v3261 = vshll.u32 683565275, %v3258
        %v3262 = vshrl.u32 2475754826, %v3259
        %v3263 = vor.u32 %v3261, %v3262
        %v3264 = vshll.u32 2475754826, %v3258
        %v3265 = vshrl.u32 2131351028, %v3259
        %v3266 = vor.u32 %v3264, %v3265
        %v3267 = vshll.u32 2131351028, %v3258
        %v3268 = vshrl.u32 2102212464, %v3259
        %v3269 = vor.u32 %v3267, %v3268
        %v3270 = vshll.u32 2102212464, %v3258
        %v3271 = vshrl.u32 920167782, %v3259
        %v3272 = vor.u32 %v3270, %v3271
        %v3273 = vshll.u32 920167782, %v3258
        %v3274 = vshrl.u32 1326507024, %v3259
        %v3275 = vor.u32 %v3273, %v3274
        %vm3276 = vcmp.lt.s32.totalorder %v3257, 1
        %vm3277 = vcmp.lt.s32.totalorder %v3257, 2
        %vm3278 = vcmp.lt.s32.totalorder %v3257, 3
        %vm3279 = vcmp.lt.s32.totalorder %v3257, 4
        %v3280 = vsel %vm3276, %v3260, %v3263
        %v3281 = vsel %vm3279, %v3269, 2102212464
        %v3282 = vsel %vm3278, %v3266, %v3281
        %v3283 = vsel %vm3277, %v3280, %v3282
        %v3284 = vsel %vm3276, %v3263, %v3266
        %v3285 = vsel %vm3279, %v3272, 920167782
        %v3286 = vsel %vm3278, %v3269, %v3285
        %v3287 = vsel %vm3277, %v3284, %v3286
        %v3288 = vsel %vm3276, %v3266, %v3269
        %v3289 = vsel %vm3279, %v3275, 1326507024
        %v3290 = vsel %vm3278, %v3272, %v3289
        %v3291 = vsel %vm3277, %v3288, %v3290
        %v3292 = vshll.u32 %v3252, 8
        %v3293 = vmul.u32.u64.compose %v3292, %v3291
        %v3294 = vextract.low.u32 %v3293
        %v3295 = vextract.high.u32 %v3293
        %v3296 = vmul.u32.u64.compose %v3292, %v3287
        %v3297 = vextract.low.u32 %v3296
        %v3298 = vextract.high.u32 %v3296
        %v3299 = vmul.u32 %v3292, %v3283
        %v3300 = vadd.s32 %v3295, %v3297
        %vm3301 = vc.u32 %v3295, %v3297
        %v3302 = vadd.s32 %v3298, 1
        %v3303 = vsel %vm3301, %v3302, %v3298
        %v3304 = vadd.s32 %v3299, %v3303
        %v3305 = vadd.s32 %v3304, 536870912
        %v3306 = vshrl.u32 %v3305, 30
        %v3307 = vshll.u32 %v3306, 30
        %v3308 = vsub.s32 %v3304, %v3307
        %vm3309 = vcmp.lt.s32.totalorder %v3308, 0
        %v3310 = vsub.s32 0, %v3308
        %v3311 = vsel %vm3309, %v3310, %v3308
        %v3312 = vclz %v3311
        %v3313 = vsub.s32 %v3312, 2
        %vm3314 = vcmp.gt.s32.totalorder 0, %v3313
        %v3315 = vsel %vm3314, 0, %v3313
        %v3316 = vsub.s32 32, %v3315
        %v3317 = vshll.u32 %v3308, %v3315
        %v3318 = vshrl.u32 %v3300, %v3316
        %v3319 = vor.u32 %v3317, %v3318
        %v3320 = vsub.s32 4294967266, %v3315
        %v3321 = vadd.s32 %v3320, 127
        %v3322 = vshll.u32 %v3321, 23
        %v3323 = vor.u32 4788187, %v3322
        %v3324 = vand.u32 2147483647, %v3323
        %v3326 = vcvt.s32.f32 %v3319
        %v3327 = vmul.f32 %v3326, %v3324
        %v3328 = vxor.u32 %v3327, 2147483648
        %v3329 = vsel %vm3246, %v3328, %v3327
        %v3330 = vsub.s32 4, %v3306
        %v3331 = vsel %vm3246, %v3330, %v3306
        %v3332 = vsel %vm3245, %v328, %v3329
        %v3333 = vsel %vm3245, 0, %v3331
        %v3334 = vcosq.f32.pop %v3332
        %v3335 = vsinq.f32.pop %v3332
        %vm3336 = vweird.f32 %v328
        %v3337 = vadd.s32 %v3333, 3
        %v3338 = vand.u32 %v3337, 3
        %vm3339 = vcmp.lt.s32.totalorder %v3338, 2
        %vm3340 = vcmp.eq.s32.totalorder %v3338, 0
        %v3341 = vxor.u32 %v3335, 2147483648
        %v3342 = vsel %vm3340, %v3334, %v3341
        %vm3343 = vcmp.eq.s32.totalorder %v3338, 2
        %v3344 = vxor.u32 %v3334, 2147483648
        %v3345 = vsel %vm3343, %v3344, %v3335
        %v3346 = vsel %vm3339, %v3342, %v3345
        %v3347 = vsel %vm3336, nan, %v3346
        %v3348 = vand.u32 2147483647, %v329
        %vm3349 = vcmp.le.f32.partialorder %v3348, 0.7853982
        %vm3350 = vcmp.lt.s32.totalorder %v329, 0
        %v3351 = vand.u32 %v329, 2139095040
        %v3352 = vshrl.u32 %v3351, 23
        %v3353 = vsub.s32 %v3352, 127
        %v3354 = vand.u32 2147483647, %v329
        %v3355 = vand.u32 %v3354, 8388607
        %v3356 = vor.u32 %v3355, 8388608
        %v3357 = vsub.s32 0, %v3356
        %v3358 = vadd.s32 %v3353, 1
        %vm3359 = vcmp.gt.s32.totalorder %v3358, 0
        %v3360 = vsel %vm3359, %v3358, 0
        %v3361 = vshrl.u32 %v3360, 5
        %v3362 = vand.u32 %v3360, 31
        %v3363 = vsub.s32 32, %v3362
        %v3364 = vshrl.u32 683565275, %v3363
        %v3365 = vshll.u32 683565275, %v3362
        %v3366 = vshrl.u32 2475754826, %v3363
        %v3367 = vor.u32 %v3365, %v3366
        %v3368 = vshll.u32 2475754826, %v3362
        %v3369 = vshrl.u32 2131351028, %v3363
        %v3370 = vor.u32 %v3368, %v3369
        %v3371 = vshll.u32 2131351028, %v3362
        %v3372 = vshrl.u32 2102212464, %v3363
        %v3373 = vor.u32 %v3371, %v3372
        %v3374 = vshll.u32 2102212464, %v3362
        %v3375 = vshrl.u32 920167782, %v3363
        %v3376 = vor.u32 %v3374, %v3375
        %v3377 = vshll.u32 920167782, %v3362
        %v3378 = vshrl.u32 1326507024, %v3363
        %v3379 = vor.u32 %v3377, %v3378
        %vm3380 = vcmp.lt.s32.totalorder %v3361, 1
        %vm3381 = vcmp.lt.s32.totalorder %v3361, 2
        %vm3382 = vcmp.lt.s32.totalorder %v3361, 3
        %vm3383 = vcmp.lt.s32.totalorder %v3361, 4
        %v3384 = vsel %vm3380, %v3364, %v3367
        %v3385 = vsel %vm3383, %v3373, 2102212464
        %v3386 = vsel %vm3382, %v3370, %v3385
        %v3387 = vsel %vm3381, %v3384, %v3386
        %v3388 = vsel %vm3380, %v3367, %v3370
        %v3389 = vsel %vm3383, %v3376, 920167782
        %v3390 = vsel %vm3382, %v3373, %v3389
        %v3391 = vsel %vm3381, %v3388, %v3390
        %v3392 = vsel %vm3380, %v3370, %v3373
        %v3393 = vsel %vm3383, %v3379, 1326507024
        %v3394 = vsel %vm3382, %v3376, %v3393
        %v3395 = vsel %vm3381, %v3392, %v3394
        %v3396 = vshll.u32 %v3356, 8
        %v3397 = vmul.u32.u64.compose %v3396, %v3395
        %v3398 = vextract.low.u32 %v3397
        %v3399 = vextract.high.u32 %v3397
        %v3400 = vmul.u32.u64.compose %v3396, %v3391
        %v3401 = vextract.low.u32 %v3400
        %v3402 = vextract.high.u32 %v3400
        %v3403 = vmul.u32 %v3396, %v3387
        %v3404 = vadd.s32 %v3399, %v3401
        %vm3405 = vc.u32 %v3399, %v3401
        %v3406 = vadd.s32 %v3402, 1
        %v3407 = vsel %vm3405, %v3406, %v3402
        %v3408 = vadd.s32 %v3403, %v3407
        %v3409 = vadd.s32 %v3408, 536870912
        %v3410 = vshrl.u32 %v3409, 30
        %v3411 = vshll.u32 %v3410, 30
        %v3412 = vsub.s32 %v3408, %v3411
        %vm3413 = vcmp.lt.s32.totalorder %v3412, 0
        %v3414 = vsub.s32 0, %v3412
        %v3415 = vsel %vm3413, %v3414, %v3412
        %v3416 = vclz %v3415
        %v3417 = vsub.s32 %v3416, 2
        %vm3418 = vcmp.gt.s32.totalorder 0, %v3417
        %v3419 = vsel %vm3418, 0, %v3417
        %v3420 = vsub.s32 32, %v3419
        %v3421 = vshll.u32 %v3412, %v3419
        %v3422 = vshrl.u32 %v3404, %v3420
        %v3423 = vor.u32 %v3421, %v3422
        %v3424 = vsub.s32 4294967266, %v3419
        %v3425 = vadd.s32 %v3424, 127
        %v3426 = vshll.u32 %v3425, 23
        %v3427 = vor.u32 4788187, %v3426
        %v3428 = vand.u32 2147483647, %v3427
        %v3430 = vcvt.s32.f32 %v3423
        %v3431 = vmul.f32 %v3430, %v3428
        %v3432 = vxor.u32 %v3431, 2147483648
        %v3433 = vsel %vm3350, %v3432, %v3431
        %v3434 = vsub.s32 4, %v3410
        %v3435 = vsel %vm3350, %v3434, %v3410
        %v3436 = vsel %vm3349, %v329, %v3433
        %v3437 = vsel %vm3349, 0, %v3435
        %v3438 = vcosq.f32.pop %v3436
        %v3439 = vsinq.f32.pop %v3436
        %vm3440 = vweird.f32 %v329
        %v3441 = vadd.s32 %v3437, 3
        %v3442 = vand.u32 %v3441, 3
        %vm3443 = vcmp.lt.s32.totalorder %v3442, 2
        %vm3444 = vcmp.eq.s32.totalorder %v3442, 0
        %v3445 = vxor.u32 %v3439, 2147483648
        %v3446 = vsel %vm3444, %v3438, %v3445
        %vm3447 = vcmp.eq.s32.totalorder %v3442, 2
        %v3448 = vxor.u32 %v3438, 2147483648
        %v3449 = vsel %vm3447, %v3448, %v3439
        %v3450 = vsel %vm3443, %v3446, %v3449
        %v3451 = vsel %vm3440, nan, %v3450
        %v3452 = vand.u32 2147483647, %v330
        %vm3453 = vcmp.le.f32.partialorder %v3452, 0.7853982
        %vm3454 = vcmp.lt.s32.totalorder %v330, 0
        %v3455 = vand.u32 %v330, 2139095040
        %v3456 = vshrl.u32 %v3455, 23
        %v3457 = vsub.s32 %v3456, 127
        %v3458 = vand.u32 2147483647, %v330
        %v3459 = vand.u32 %v3458, 8388607
        %v3460 = vor.u32 %v3459, 8388608
        %v3461 = vsub.s32 0, %v3460
        %v3462 = vadd.s32 %v3457, 1
        %vm3463 = vcmp.gt.s32.totalorder %v3462, 0
        %v3464 = vsel %vm3463, %v3462, 0
        %v3465 = vshrl.u32 %v3464, 5
        %v3466 = vand.u32 %v3464, 31
        %v3467 = vsub.s32 32, %v3466
        %v3468 = vshrl.u32 683565275, %v3467
        %v3469 = vshll.u32 683565275, %v3466
        %v3470 = vshrl.u32 2475754826, %v3467
        %v3471 = vor.u32 %v3469, %v3470
        %v3472 = vshll.u32 2475754826, %v3466
        %v3473 = vshrl.u32 2131351028, %v3467
        %v3474 = vor.u32 %v3472, %v3473
        %v3475 = vshll.u32 2131351028, %v3466
        %v3476 = vshrl.u32 2102212464, %v3467
        %v3477 = vor.u32 %v3475, %v3476
        %v3478 = vshll.u32 2102212464, %v3466
        %v3479 = vshrl.u32 920167782, %v3467
        %v3480 = vor.u32 %v3478, %v3479
        %v3481 = vshll.u32 920167782, %v3466
        %v3482 = vshrl.u32 1326507024, %v3467
        %v3483 = vor.u32 %v3481, %v3482
        %vm3484 = vcmp.lt.s32.totalorder %v3465, 1
        %vm3485 = vcmp.lt.s32.totalorder %v3465, 2
        %vm3486 = vcmp.lt.s32.totalorder %v3465, 3
        %vm3487 = vcmp.lt.s32.totalorder %v3465, 4
        %v3488 = vsel %vm3484, %v3468, %v3471
        %v3489 = vsel %vm3487, %v3477, 2102212464
        %v3490 = vsel %vm3486, %v3474, %v3489
        %v3491 = vsel %vm3485, %v3488, %v3490
        %v3492 = vsel %vm3484, %v3471, %v3474
        %v3493 = vsel %vm3487, %v3480, 920167782
        %v3494 = vsel %vm3486, %v3477, %v3493
        %v3495 = vsel %vm3485, %v3492, %v3494
        %v3496 = vsel %vm3484, %v3474, %v3477
        %v3497 = vsel %vm3487, %v3483, 1326507024
        %v3498 = vsel %vm3486, %v3480, %v3497
        %v3499 = vsel %vm3485, %v3496, %v3498
        %v3500 = vshll.u32 %v3460, 8
        %v3501 = vmul.u32.u64.compose %v3500, %v3499
        %v3502 = vextract.low.u32 %v3501
        %v3503 = vextract.high.u32 %v3501
        %v3504 = vmul.u32.u64.compose %v3500, %v3495
        %v3505 = vextract.low.u32 %v3504
        %v3506 = vextract.high.u32 %v3504
        %v3507 = vmul.u32 %v3500, %v3491
        %v3508 = vadd.s32 %v3503, %v3505
        %vm3509 = vc.u32 %v3503, %v3505
        %v3510 = vadd.s32 %v3506, 1
        %v3511 = vsel %vm3509, %v3510, %v3506
        %v3512 = vadd.s32 %v3507, %v3511
        %v3513 = vadd.s32 %v3512, 536870912
        %v3514 = vshrl.u32 %v3513, 30
        %v3515 = vshll.u32 %v3514, 30
        %v3516 = vsub.s32 %v3512, %v3515
        %vm3517 = vcmp.lt.s32.totalorder %v3516, 0
        %v3518 = vsub.s32 0, %v3516
        %v3519 = vsel %vm3517, %v3518, %v3516
        %v3520 = vclz %v3519
        %v3521 = vsub.s32 %v3520, 2
        %vm3522 = vcmp.gt.s32.totalorder 0, %v3521
        %v3523 = vsel %vm3522, 0, %v3521
        %v3524 = vsub.s32 32, %v3523
        %v3525 = vshll.u32 %v3516, %v3523
        %v3526 = vshrl.u32 %v3508, %v3524
        %v3527 = vor.u32 %v3525, %v3526
        %v3528 = vsub.s32 4294967266, %v3523
        %v3529 = vadd.s32 %v3528, 127
        %v3530 = vshll.u32 %v3529, 23
        %v3531 = vor.u32 4788187, %v3530
        %v3532 = vand.u32 2147483647, %v3531
        %v3534 = vcvt.s32.f32 %v3527
        %v3535 = vmul.f32 %v3534, %v3532
        %v3536 = vxor.u32 %v3535, 2147483648
        %v3537 = vsel %vm3454, %v3536, %v3535
        %v3538 = vsub.s32 4, %v3514
        %v3539 = vsel %vm3454, %v3538, %v3514
        %v3540 = vsel %vm3453, %v330, %v3537
        %v3541 = vsel %vm3453, 0, %v3539
        %v3542 = vcosq.f32.pop %v3540
        %v3543 = vsinq.f32.pop %v3540
        %vm3544 = vweird.f32 %v330
        %v3545 = vadd.s32 %v3541, 3
        %v3546 = vand.u32 %v3545, 3
        %vm3547 = vcmp.lt.s32.totalorder %v3546, 2
        %vm3548 = vcmp.eq.s32.totalorder %v3546, 0
        %v3549 = vxor.u32 %v3543, 2147483648
        %v3550 = vsel %vm3548, %v3542, %v3549
        %vm3551 = vcmp.eq.s32.totalorder %v3546, 2
        %v3552 = vxor.u32 %v3542, 2147483648
        %v3553 = vsel %vm3551, %v3552, %v3543
        %v3554 = vsel %vm3547, %v3550, %v3553
        %v3555 = vsel %vm3544, nan, %v3554
        %v3556 = vand.u32 2147483647, %v331
        %vm3557 = vcmp.le.f32.partialorder %v3556, 0.7853982
        %vm3558 = vcmp.lt.s32.totalorder %v331, 0
        %v3559 = vand.u32 %v331, 2139095040
        %v3560 = vshrl.u32 %v3559, 23
        %v3561 = vsub.s32 %v3560, 127
        %v3562 = vand.u32 2147483647, %v331
        %v3563 = vand.u32 %v3562, 8388607
        %v3564 = vor.u32 %v3563, 8388608
        %v3565 = vsub.s32 0, %v3564
        %v3566 = vadd.s32 %v3561, 1
        %vm3567 = vcmp.gt.s32.totalorder %v3566, 0
        %v3568 = vsel %vm3567, %v3566, 0
        %v3569 = vshrl.u32 %v3568, 5
        %v3570 = vand.u32 %v3568, 31
        %v3571 = vsub.s32 32, %v3570
        %v3572 = vshrl.u32 683565275, %v3571
        %v3573 = vshll.u32 683565275, %v3570
        %v3574 = vshrl.u32 2475754826, %v3571
        %v3575 = vor.u32 %v3573, %v3574
        %v3576 = vshll.u32 2475754826, %v3570
        %v3577 = vshrl.u32 2131351028, %v3571
        %v3578 = vor.u32 %v3576, %v3577
        %v3579 = vshll.u32 2131351028, %v3570
        %v3580 = vshrl.u32 2102212464, %v3571
        %v3581 = vor.u32 %v3579, %v3580
        %v3582 = vshll.u32 2102212464, %v3570
        %v3583 = vshrl.u32 920167782, %v3571
        %v3584 = vor.u32 %v3582, %v3583
        %v3585 = vshll.u32 920167782, %v3570
        %v3586 = vshrl.u32 1326507024, %v3571
        %v3587 = vor.u32 %v3585, %v3586
        %vm3588 = vcmp.lt.s32.totalorder %v3569, 1
        %vm3589 = vcmp.lt.s32.totalorder %v3569, 2
        %vm3590 = vcmp.lt.s32.totalorder %v3569, 3
        %vm3591 = vcmp.lt.s32.totalorder %v3569, 4
        %v3592 = vsel %vm3588, %v3572, %v3575
        %v3593 = vsel %vm3591, %v3581, 2102212464
        %v3594 = vsel %vm3590, %v3578, %v3593
        %v3595 = vsel %vm3589, %v3592, %v3594
        %v3596 = vsel %vm3588, %v3575, %v3578
        %v3597 = vsel %vm3591, %v3584, 920167782
        %v3598 = vsel %vm3590, %v3581, %v3597
        %v3599 = vsel %vm3589, %v3596, %v3598
        %v3600 = vsel %vm3588, %v3578, %v3581
        %v3601 = vsel %vm3591, %v3587, 1326507024
        %v3602 = vsel %vm3590, %v3584, %v3601
        %v3603 = vsel %vm3589, %v3600, %v3602
        %v3604 = vshll.u32 %v3564, 8
        %v3605 = vmul.u32.u64.compose %v3604, %v3603
        %v3606 = vextract.low.u32 %v3605
        %v3607 = vextract.high.u32 %v3605
        %v3608 = vmul.u32.u64.compose %v3604, %v3599
        %v3609 = vextract.low.u32 %v3608
        %v3610 = vextract.high.u32 %v3608
        %v3611 = vmul.u32 %v3604, %v3595
        %v3612 = vadd.s32 %v3607, %v3609
        %vm3613 = vc.u32 %v3607, %v3609
        %v3614 = vadd.s32 %v3610, 1
        %v3615 = vsel %vm3613, %v3614, %v3610
        %v3616 = vadd.s32 %v3611, %v3615
        %v3617 = vadd.s32 %v3616, 536870912
        %v3618 = vshrl.u32 %v3617, 30
        %v3619 = vshll.u32 %v3618, 30
        %v3620 = vsub.s32 %v3616, %v3619
        %vm3621 = vcmp.lt.s32.totalorder %v3620, 0
        %v3622 = vsub.s32 0, %v3620
        %v3623 = vsel %vm3621, %v3622, %v3620
        %v3624 = vclz %v3623
        %v3625 = vsub.s32 %v3624, 2
        %vm3626 = vcmp.gt.s32.totalorder 0, %v3625
        %v3627 = vsel %vm3626, 0, %v3625
        %v3628 = vsub.s32 32, %v3627
        %v3629 = vshll.u32 %v3620, %v3627
        %v3630 = vshrl.u32 %v3612, %v3628
        %v3631 = vor.u32 %v3629, %v3630
        %v3632 = vsub.s32 4294967266, %v3627
        %v3633 = vadd.s32 %v3632, 127
        %v3634 = vshll.u32 %v3633, 23
        %v3635 = vor.u32 4788187, %v3634
        %v3636 = vand.u32 2147483647, %v3635
        %v3638 = vcvt.s32.f32 %v3631
        %v3639 = vmul.f32 %v3638, %v3636
        %v3640 = vxor.u32 %v3639, 2147483648
        %v3641 = vsel %vm3558, %v3640, %v3639
        %v3642 = vsub.s32 4, %v3618
        %v3643 = vsel %vm3558, %v3642, %v3618
        %v3644 = vsel %vm3557, %v331, %v3641
        %v3645 = vsel %vm3557, 0, %v3643
        %v3646 = vcosq.f32.pop %v3644
        %v3647 = vsinq.f32.pop %v3644
        %vm3648 = vweird.f32 %v331
        %v3649 = vadd.s32 %v3645, 3
        %v3650 = vand.u32 %v3649, 3
        %vm3651 = vcmp.lt.s32.totalorder %v3650, 2
        %vm3652 = vcmp.eq.s32.totalorder %v3650, 0
        %v3653 = vxor.u32 %v3647, 2147483648
        %v3654 = vsel %vm3652, %v3646, %v3653
        %vm3655 = vcmp.eq.s32.totalorder %v3650, 2
        %v3656 = vxor.u32 %v3646, 2147483648
        %v3657 = vsel %vm3655, %v3656, %v3647
        %v3658 = vsel %vm3651, %v3654, %v3657
        %v3659 = vsel %vm3648, nan, %v3658
        %v3660 = vand.u32 2147483647, %v300
        %vm3661 = vcmp.le.f32.partialorder %v3660, 0.7853982
        %vm3662 = vcmp.lt.s32.totalorder %v300, 0
        %v3663 = vand.u32 %v300, 2139095040
        %v3664 = vshrl.u32 %v3663, 23
        %v3665 = vsub.s32 %v3664, 127
        %v3666 = vand.u32 2147483647, %v300
        %v3667 = vand.u32 %v3666, 8388607
        %v3668 = vor.u32 %v3667, 8388608
        %v3669 = vsub.s32 0, %v3668
        %v3670 = vadd.s32 %v3665, 1
        %vm3671 = vcmp.gt.s32.totalorder %v3670, 0
        %v3672 = vsel %vm3671, %v3670, 0
        %v3673 = vshrl.u32 %v3672, 5
        %v3674 = vand.u32 %v3672, 31
        %v3675 = vsub.s32 32, %v3674
        %v3676 = vshrl.u32 683565275, %v3675
        %v3677 = vshll.u32 683565275, %v3674
        %v3678 = vshrl.u32 2475754826, %v3675
        %v3679 = vor.u32 %v3677, %v3678
        %v3680 = vshll.u32 2475754826, %v3674
        %v3681 = vshrl.u32 2131351028, %v3675
        %v3682 = vor.u32 %v3680, %v3681
        %v3683 = vshll.u32 2131351028, %v3674
        %v3684 = vshrl.u32 2102212464, %v3675
        %v3685 = vor.u32 %v3683, %v3684
        %v3686 = vshll.u32 2102212464, %v3674
        %v3687 = vshrl.u32 920167782, %v3675
        %v3688 = vor.u32 %v3686, %v3687
        %v3689 = vshll.u32 920167782, %v3674
        %v3690 = vshrl.u32 1326507024, %v3675
        %v3691 = vor.u32 %v3689, %v3690
        %vm3692 = vcmp.lt.s32.totalorder %v3673, 1
        %vm3693 = vcmp.lt.s32.totalorder %v3673, 2
        %vm3694 = vcmp.lt.s32.totalorder %v3673, 3
        %vm3695 = vcmp.lt.s32.totalorder %v3673, 4
        %v3696 = vsel %vm3692, %v3676, %v3679
        %v3697 = vsel %vm3695, %v3685, 2102212464
        %v3698 = vsel %vm3694, %v3682, %v3697
        %v3699 = vsel %vm3693, %v3696, %v3698
        %v3700 = vsel %vm3692, %v3679, %v3682
        %v3701 = vsel %vm3695, %v3688, 920167782
        %v3702 = vsel %vm3694, %v3685, %v3701
        %v3703 = vsel %vm3693, %v3700, %v3702
        %v3704 = vsel %vm3692, %v3682, %v3685
        %v3705 = vsel %vm3695, %v3691, 1326507024
        %v3706 = vsel %vm3694, %v3688, %v3705
        %v3707 = vsel %vm3693, %v3704, %v3706
        %v3708 = vshll.u32 %v3668, 8
        %v3709 = vmul.u32.u64.compose %v3708, %v3707
        %v3710 = vextract.low.u32 %v3709
        %v3711 = vextract.high.u32 %v3709
        %v3712 = vmul.u32.u64.compose %v3708, %v3703
        %v3713 = vextract.low.u32 %v3712
        %v3714 = vextract.high.u32 %v3712
        %v3715 = vmul.u32 %v3708, %v3699
        %v3716 = vadd.s32 %v3711, %v3713
        %vm3717 = vc.u32 %v3711, %v3713
        %v3718 = vadd.s32 %v3714, 1
        %v3719 = vsel %vm3717, %v3718, %v3714
        %v3720 = vadd.s32 %v3715, %v3719
        %v3721 = vadd.s32 %v3720, 536870912
        %v3722 = vshrl.u32 %v3721, 30
        %v3723 = vshll.u32 %v3722, 30
        %v3724 = vsub.s32 %v3720, %v3723
        %vm3725 = vcmp.lt.s32.totalorder %v3724, 0
        %v3726 = vsub.s32 0, %v3724
        %v3727 = vsel %vm3725, %v3726, %v3724
        %v3728 = vclz %v3727
        %v3729 = vsub.s32 %v3728, 2
        %vm3730 = vcmp.gt.s32.totalorder 0, %v3729
        %v3731 = vsel %vm3730, 0, %v3729
        %v3732 = vsub.s32 32, %v3731
        %v3733 = vshll.u32 %v3724, %v3731
        %v3734 = vshrl.u32 %v3716, %v3732
        %v3735 = vor.u32 %v3733, %v3734
        %v3736 = vsub.s32 4294967266, %v3731
        %v3737 = vadd.s32 %v3736, 127
        %v3738 = vshll.u32 %v3737, 23
        %v3739 = vor.u32 4788187, %v3738
        %v3740 = vand.u32 2147483647, %v3739
        %v3742 = vcvt.s32.f32 %v3735
        %v3743 = vmul.f32 %v3742, %v3740
        %v3744 = vxor.u32 %v3743, 2147483648
        %v3745 = vsel %vm3662, %v3744, %v3743
        %v3746 = vsub.s32 4, %v3722
        %v3747 = vsel %vm3662, %v3746, %v3722
        %v3748 = vsel %vm3661, %v300, %v3745
        %v3749 = vsel %vm3661, 0, %v3747
        %v3750 = vcosq.f32.pop %v3748
        %v3751 = vsinq.f32.pop %v3748
        %vm3752 = vweird.f32 %v300
        %v3753 = vand.u32 %v3749, 3
        %vm3754 = vcmp.lt.s32.totalorder %v3753, 2
        %vm3755 = vcmp.eq.s32.totalorder %v3753, 0
        %v3756 = vxor.u32 %v3751, 2147483648
        %v3757 = vsel %vm3755, %v3750, %v3756
        %vm3758 = vcmp.eq.s32.totalorder %v3753, 2
        %v3759 = vxor.u32 %v3750, 2147483648
        %v3760 = vsel %vm3758, %v3759, %v3751
        %v3761 = vsel %vm3754, %v3757, %v3760
        %v3762 = vsel %vm3752, nan, %v3761
        %v3763 = vand.u32 2147483647, %v301
        %vm3764 = vcmp.le.f32.partialorder %v3763, 0.7853982
        %vm3765 = vcmp.lt.s32.totalorder %v301, 0
        %v3766 = vand.u32 %v301, 2139095040
        %v3767 = vshrl.u32 %v3766, 23
        %v3768 = vsub.s32 %v3767, 127
        %v3769 = vand.u32 2147483647, %v301
        %v3770 = vand.u32 %v3769, 8388607
        %v3771 = vor.u32 %v3770, 8388608
        %v3772 = vsub.s32 0, %v3771
        %v3773 = vadd.s32 %v3768, 1
        %vm3774 = vcmp.gt.s32.totalorder %v3773, 0
        %v3775 = vsel %vm3774, %v3773, 0
        %v3776 = vshrl.u32 %v3775, 5
        %v3777 = vand.u32 %v3775, 31
        %v3778 = vsub.s32 32, %v3777
        %v3779 = vshrl.u32 683565275, %v3778
        %v3780 = vshll.u32 683565275, %v3777
        %v3781 = vshrl.u32 2475754826, %v3778
        %v3782 = vor.u32 %v3780, %v3781
        %v3783 = vshll.u32 2475754826, %v3777
        %v3784 = vshrl.u32 2131351028, %v3778
        %v3785 = vor.u32 %v3783, %v3784
        %v3786 = vshll.u32 2131351028, %v3777
        %v3787 = vshrl.u32 2102212464, %v3778
        %v3788 = vor.u32 %v3786, %v3787
        %v3789 = vshll.u32 2102212464, %v3777
        %v3790 = vshrl.u32 920167782, %v3778
        %v3791 = vor.u32 %v3789, %v3790
        %v3792 = vshll.u32 920167782, %v3777
        %v3793 = vshrl.u32 1326507024, %v3778
        %v3794 = vor.u32 %v3792, %v3793
        %vm3795 = vcmp.lt.s32.totalorder %v3776, 1
        %vm3796 = vcmp.lt.s32.totalorder %v3776, 2
        %vm3797 = vcmp.lt.s32.totalorder %v3776, 3
        %vm3798 = vcmp.lt.s32.totalorder %v3776, 4
        %v3799 = vsel %vm3795, %v3779, %v3782
        %v3800 = vsel %vm3798, %v3788, 2102212464
        %v3801 = vsel %vm3797, %v3785, %v3800
        %v3802 = vsel %vm3796, %v3799, %v3801
        %v3803 = vsel %vm3795, %v3782, %v3785
        %v3804 = vsel %vm3798, %v3791, 920167782
        %v3805 = vsel %vm3797, %v3788, %v3804
        %v3806 = vsel %vm3796, %v3803, %v3805
        %v3807 = vsel %vm3795, %v3785, %v3788
        %v3808 = vsel %vm3798, %v3794, 1326507024
        %v3809 = vsel %vm3797, %v3791, %v3808
        %v3810 = vsel %vm3796, %v3807, %v3809
        %v3811 = vshll.u32 %v3771, 8
        %v3812 = vmul.u32.u64.compose %v3811, %v3810
        %v3813 = vextract.low.u32 %v3812
        %v3814 = vextract.high.u32 %v3812
        %v3815 = vmul.u32.u64.compose %v3811, %v3806
        %v3816 = vextract.low.u32 %v3815
        %v3817 = vextract.high.u32 %v3815
        %v3818 = vmul.u32 %v3811, %v3802
        %v3819 = vadd.s32 %v3814, %v3816
        %vm3820 = vc.u32 %v3814, %v3816
        %v3821 = vadd.s32 %v3817, 1
        %v3822 = vsel %vm3820, %v3821, %v3817
        %v3823 = vadd.s32 %v3818, %v3822
        %v3824 = vadd.s32 %v3823, 536870912
        %v3825 = vshrl.u32 %v3824, 30
        %v3826 = vshll.u32 %v3825, 30
        %v3827 = vsub.s32 %v3823, %v3826
        %vm3828 = vcmp.lt.s32.totalorder %v3827, 0
        %v3829 = vsub.s32 0, %v3827
        %v3830 = vsel %vm3828, %v3829, %v3827
        %v3831 = vclz %v3830
        %v3832 = vsub.s32 %v3831, 2
        %vm3833 = vcmp.gt.s32.totalorder 0, %v3832
        %v3834 = vsel %vm3833, 0, %v3832
        %v3835 = vsub.s32 32, %v3834
        %v3836 = vshll.u32 %v3827, %v3834
        %v3837 = vshrl.u32 %v3819, %v3835
        %v3838 = vor.u32 %v3836, %v3837
        %v3839 = vsub.s32 4294967266, %v3834
        %v3840 = vadd.s32 %v3839, 127
        %v3841 = vshll.u32 %v3840, 23
        %v3842 = vor.u32 4788187, %v3841
        %v3843 = vand.u32 2147483647, %v3842
        %v3845 = vcvt.s32.f32 %v3838
        %v3846 = vmul.f32 %v3845, %v3843
        %v3847 = vxor.u32 %v3846, 2147483648
        %v3848 = vsel %vm3765, %v3847, %v3846
        %v3849 = vsub.s32 4, %v3825
        %v3850 = vsel %vm3765, %v3849, %v3825
        %v3851 = vsel %vm3764, %v301, %v3848
        %v3852 = vsel %vm3764, 0, %v3850
        %v3853 = vcosq.f32.pop %v3851
        %v3854 = vsinq.f32.pop %v3851
        %vm3855 = vweird.f32 %v301
        %v3856 = vand.u32 %v3852, 3
        %vm3857 = vcmp.lt.s32.totalorder %v3856, 2
        %vm3858 = vcmp.eq.s32.totalorder %v3856, 0
        %v3859 = vxor.u32 %v3854, 2147483648
        %v3860 = vsel %vm3858, %v3853, %v3859
        %vm3861 = vcmp.eq.s32.totalorder %v3856, 2
        %v3862 = vxor.u32 %v3853, 2147483648
        %v3863 = vsel %vm3861, %v3862, %v3854
        %v3864 = vsel %vm3857, %v3860, %v3863
        %v3865 = vsel %vm3855, nan, %v3864
        %v3866 = vand.u32 2147483647, %v302
        %vm3867 = vcmp.le.f32.partialorder %v3866, 0.7853982
        %vm3868 = vcmp.lt.s32.totalorder %v302, 0
        %v3869 = vand.u32 %v302, 2139095040
        %v3870 = vshrl.u32 %v3869, 23
        %v3871 = vsub.s32 %v3870, 127
        %v3872 = vand.u32 2147483647, %v302
        %v3873 = vand.u32 %v3872, 8388607
        %v3874 = vor.u32 %v3873, 8388608
        %v3875 = vsub.s32 0, %v3874
        %v3876 = vadd.s32 %v3871, 1
        %vm3877 = vcmp.gt.s32.totalorder %v3876, 0
        %v3878 = vsel %vm3877, %v3876, 0
        %v3879 = vshrl.u32 %v3878, 5
        %v3880 = vand.u32 %v3878, 31
        %v3881 = vsub.s32 32, %v3880
        %v3882 = vshrl.u32 683565275, %v3881
        %v3883 = vshll.u32 683565275, %v3880
        %v3884 = vshrl.u32 2475754826, %v3881
        %v3885 = vor.u32 %v3883, %v3884
        %v3886 = vshll.u32 2475754826, %v3880
        %v3887 = vshrl.u32 2131351028, %v3881
        %v3888 = vor.u32 %v3886, %v3887
        %v3889 = vshll.u32 2131351028, %v3880
        %v3890 = vshrl.u32 2102212464, %v3881
        %v3891 = vor.u32 %v3889, %v3890
        %v3892 = vshll.u32 2102212464, %v3880
        %v3893 = vshrl.u32 920167782, %v3881
        %v3894 = vor.u32 %v3892, %v3893
        %v3895 = vshll.u32 920167782, %v3880
        %v3896 = vshrl.u32 1326507024, %v3881
        %v3897 = vor.u32 %v3895, %v3896
        %vm3898 = vcmp.lt.s32.totalorder %v3879, 1
        %vm3899 = vcmp.lt.s32.totalorder %v3879, 2
        %vm3900 = vcmp.lt.s32.totalorder %v3879, 3
        %vm3901 = vcmp.lt.s32.totalorder %v3879, 4
        %v3902 = vsel %vm3898, %v3882, %v3885
        %v3903 = vsel %vm3901, %v3891, 2102212464
        %v3904 = vsel %vm3900, %v3888, %v3903
        %v3905 = vsel %vm3899, %v3902, %v3904
        %v3906 = vsel %vm3898, %v3885, %v3888
        %v3907 = vsel %vm3901, %v3894, 920167782
        %v3908 = vsel %vm3900, %v3891, %v3907
        %v3909 = vsel %vm3899, %v3906, %v3908
        %v3910 = vsel %vm3898, %v3888, %v3891
        %v3911 = vsel %vm3901, %v3897, 1326507024
        %v3912 = vsel %vm3900, %v3894, %v3911
        %v3913 = vsel %vm3899, %v3910, %v3912
        %v3914 = vshll.u32 %v3874, 8
        %v3915 = vmul.u32.u64.compose %v3914, %v3913
        %v3916 = vextract.low.u32 %v3915
        %v3917 = vextract.high.u32 %v3915
        %v3918 = vmul.u32.u64.compose %v3914, %v3909
        %v3919 = vextract.low.u32 %v3918
        %v3920 = vextract.high.u32 %v3918
        %v3921 = vmul.u32 %v3914, %v3905
        %v3922 = vadd.s32 %v3917, %v3919
        %vm3923 = vc.u32 %v3917, %v3919
        %v3924 = vadd.s32 %v3920, 1
        %v3925 = vsel %vm3923, %v3924, %v3920
        %v3926 = vadd.s32 %v3921, %v3925
        %v3927 = vadd.s32 %v3926, 536870912
        %v3928 = vshrl.u32 %v3927, 30
        %v3929 = vshll.u32 %v3928, 30
        %v3930 = vsub.s32 %v3926, %v3929
        %vm3931 = vcmp.lt.s32.totalorder %v3930, 0
        %v3932 = vsub.s32 0, %v3930
        %v3933 = vsel %vm3931, %v3932, %v3930
        %v3934 = vclz %v3933
        %v3935 = vsub.s32 %v3934, 2
        %vm3936 = vcmp.gt.s32.totalorder 0, %v3935
        %v3937 = vsel %vm3936, 0, %v3935
        %v3938 = vsub.s32 32, %v3937
        %v3939 = vshll.u32 %v3930, %v3937
        %v3940 = vshrl.u32 %v3922, %v3938
        %v3941 = vor.u32 %v3939, %v3940
        %v3942 = vsub.s32 4294967266, %v3937
        %v3943 = vadd.s32 %v3942, 127
        %v3944 = vshll.u32 %v3943, 23
        %v3945 = vor.u32 4788187, %v3944
        %v3946 = vand.u32 2147483647, %v3945
        %v3948 = vcvt.s32.f32 %v3941
        %v3949 = vmul.f32 %v3948, %v3946
        %v3950 = vxor.u32 %v3949, 2147483648
        %v3951 = vsel %vm3868, %v3950, %v3949
        %v3952 = vsub.s32 4, %v3928
        %v3953 = vsel %vm3868, %v3952, %v3928
        %v3954 = vsel %vm3867, %v302, %v3951
        %v3955 = vsel %vm3867, 0, %v3953
        %v3956 = vcosq.f32.pop %v3954
        %v3957 = vsinq.f32.pop %v3954
        %vm3958 = vweird.f32 %v302
        %v3959 = vand.u32 %v3955, 3
        %vm3960 = vcmp.lt.s32.totalorder %v3959, 2
        %vm3961 = vcmp.eq.s32.totalorder %v3959, 0
        %v3962 = vxor.u32 %v3957, 2147483648
        %v3963 = vsel %vm3961, %v3956, %v3962
        %vm3964 = vcmp.eq.s32.totalorder %v3959, 2
        %v3965 = vxor.u32 %v3956, 2147483648
        %v3966 = vsel %vm3964, %v3965, %v3957
        %v3967 = vsel %vm3960, %v3963, %v3966
        %v3968 = vsel %vm3958, nan, %v3967
        %v3969 = vand.u32 2147483647, %v303
        %vm3970 = vcmp.le.f32.partialorder %v3969, 0.7853982
        %vm3971 = vcmp.lt.s32.totalorder %v303, 0
        %v3972 = vand.u32 %v303, 2139095040
        %v3973 = vshrl.u32 %v3972, 23
        %v3974 = vsub.s32 %v3973, 127
        %v3975 = vand.u32 2147483647, %v303
        %v3976 = vand.u32 %v3975, 8388607
        %v3977 = vor.u32 %v3976, 8388608
        %v3978 = vsub.s32 0, %v3977
        %v3979 = vadd.s32 %v3974, 1
        %vm3980 = vcmp.gt.s32.totalorder %v3979, 0
        %v3981 = vsel %vm3980, %v3979, 0
        %v3982 = vshrl.u32 %v3981, 5
        %v3983 = vand.u32 %v3981, 31
        %v3984 = vsub.s32 32, %v3983
        %v3985 = vshrl.u32 683565275, %v3984
        %v3986 = vshll.u32 683565275, %v3983
        %v3987 = vshrl.u32 2475754826, %v3984
        %v3988 = vor.u32 %v3986, %v3987
        %v3989 = vshll.u32 2475754826, %v3983
        %v3990 = vshrl.u32 2131351028, %v3984
        %v3991 = vor.u32 %v3989, %v3990
        %v3992 = vshll.u32 2131351028, %v3983
        %v3993 = vshrl.u32 2102212464, %v3984
        %v3994 = vor.u32 %v3992, %v3993
        %v3995 = vshll.u32 2102212464, %v3983
        %v3996 = vshrl.u32 920167782, %v3984
        %v3997 = vor.u32 %v3995, %v3996
        %v3998 = vshll.u32 920167782, %v3983
        %v3999 = vshrl.u32 1326507024, %v3984
        %v4000 = vor.u32 %v3998, %v3999
        %vm4001 = vcmp.lt.s32.totalorder %v3982, 1
        %vm4002 = vcmp.lt.s32.totalorder %v3982, 2
        %vm4003 = vcmp.lt.s32.totalorder %v3982, 3
        %vm4004 = vcmp.lt.s32.totalorder %v3982, 4
        %v4005 = vsel %vm4001, %v3985, %v3988
        %v4006 = vsel %vm4004, %v3994, 2102212464
        %v4007 = vsel %vm4003, %v3991, %v4006
        %v4008 = vsel %vm4002, %v4005, %v4007
        %v4009 = vsel %vm4001, %v3988, %v3991
        %v4010 = vsel %vm4004, %v3997, 920167782
        %v4011 = vsel %vm4003, %v3994, %v4010
        %v4012 = vsel %vm4002, %v4009, %v4011
        %v4013 = vsel %vm4001, %v3991, %v3994
        %v4014 = vsel %vm4004, %v4000, 1326507024
        %v4015 = vsel %vm4003, %v3997, %v4014
        %v4016 = vsel %vm4002, %v4013, %v4015
        %v4017 = vshll.u32 %v3977, 8
        %v4018 = vmul.u32.u64.compose %v4017, %v4016
        %v4019 = vextract.low.u32 %v4018
        %v4020 = vextract.high.u32 %v4018
        %v4021 = vmul.u32.u64.compose %v4017, %v4012
        %v4022 = vextract.low.u32 %v4021
        %v4023 = vextract.high.u32 %v4021
        %v4024 = vmul.u32 %v4017, %v4008
        %v4025 = vadd.s32 %v4020, %v4022
        %vm4026 = vc.u32 %v4020, %v4022
        %v4027 = vadd.s32 %v4023, 1
        %v4028 = vsel %vm4026, %v4027, %v4023
        %v4029 = vadd.s32 %v4024, %v4028
        %v4030 = vadd.s32 %v4029, 536870912
        %v4031 = vshrl.u32 %v4030, 30
        %v4032 = vshll.u32 %v4031, 30
        %v4033 = vsub.s32 %v4029, %v4032
        %vm4034 = vcmp.lt.s32.totalorder %v4033, 0
        %v4035 = vsub.s32 0, %v4033
        %v4036 = vsel %vm4034, %v4035, %v4033
        %v4037 = vclz %v4036
        %v4038 = vsub.s32 %v4037, 2
        %vm4039 = vcmp.gt.s32.totalorder 0, %v4038
        %v4040 = vsel %vm4039, 0, %v4038
        %v4041 = vsub.s32 32, %v4040
        %v4042 = vshll.u32 %v4033, %v4040
        %v4043 = vshrl.u32 %v4025, %v4041
        %v4044 = vor.u32 %v4042, %v4043
        %v4045 = vsub.s32 4294967266, %v4040
        %v4046 = vadd.s32 %v4045, 127
        %v4047 = vshll.u32 %v4046, 23
        %v4048 = vor.u32 4788187, %v4047
        %v4049 = vand.u32 2147483647, %v4048
        %v4051 = vcvt.s32.f32 %v4044
        %v4052 = vmul.f32 %v4051, %v4049
        %v4053 = vxor.u32 %v4052, 2147483648
        %v4054 = vsel %vm3971, %v4053, %v4052
        %v4055 = vsub.s32 4, %v4031
        %v4056 = vsel %vm3971, %v4055, %v4031
        %v4057 = vsel %vm3970, %v303, %v4054
        %v4058 = vsel %vm3970, 0, %v4056
        %v4059 = vcosq.f32.pop %v4057
        %v4060 = vsinq.f32.pop %v4057
        %vm4061 = vweird.f32 %v303
        %v4062 = vand.u32 %v4058, 3
        %vm4063 = vcmp.lt.s32.totalorder %v4062, 2
        %vm4064 = vcmp.eq.s32.totalorder %v4062, 0
        %v4065 = vxor.u32 %v4060, 2147483648
        %v4066 = vsel %vm4064, %v4059, %v4065
        %vm4067 = vcmp.eq.s32.totalorder %v4062, 2
        %v4068 = vxor.u32 %v4059, 2147483648
        %v4069 = vsel %vm4067, %v4068, %v4060
        %v4070 = vsel %vm4063, %v4066, %v4069
        %v4071 = vsel %vm4061, nan, %v4070
        %v4072 = vand.u32 2147483647, %v304
        %vm4073 = vcmp.le.f32.partialorder %v4072, 0.7853982
        %vm4074 = vcmp.lt.s32.totalorder %v304, 0
        %v4075 = vand.u32 %v304, 2139095040
        %v4076 = vshrl.u32 %v4075, 23
        %v4077 = vsub.s32 %v4076, 127
        %v4078 = vand.u32 2147483647, %v304
        %v4079 = vand.u32 %v4078, 8388607
        %v4080 = vor.u32 %v4079, 8388608
        %v4081 = vsub.s32 0, %v4080
        %v4082 = vadd.s32 %v4077, 1
        %vm4083 = vcmp.gt.s32.totalorder %v4082, 0
        %v4084 = vsel %vm4083, %v4082, 0
        %v4085 = vshrl.u32 %v4084, 5
        %v4086 = vand.u32 %v4084, 31
        %v4087 = vsub.s32 32, %v4086
        %v4088 = vshrl.u32 683565275, %v4087
        %v4089 = vshll.u32 683565275, %v4086
        %v4090 = vshrl.u32 2475754826, %v4087
        %v4091 = vor.u32 %v4089, %v4090
        %v4092 = vshll.u32 2475754826, %v4086
        %v4093 = vshrl.u32 2131351028, %v4087
        %v4094 = vor.u32 %v4092, %v4093
        %v4095 = vshll.u32 2131351028, %v4086
        %v4096 = vshrl.u32 2102212464, %v4087
        %v4097 = vor.u32 %v4095, %v4096
        %v4098 = vshll.u32 2102212464, %v4086
        %v4099 = vshrl.u32 920167782, %v4087
        %v4100 = vor.u32 %v4098, %v4099
        %v4101 = vshll.u32 920167782, %v4086
        %v4102 = vshrl.u32 1326507024, %v4087
        %v4103 = vor.u32 %v4101, %v4102
        %vm4104 = vcmp.lt.s32.totalorder %v4085, 1
        %vm4105 = vcmp.lt.s32.totalorder %v4085, 2
        %vm4106 = vcmp.lt.s32.totalorder %v4085, 3
        %vm4107 = vcmp.lt.s32.totalorder %v4085, 4
        %v4108 = vsel %vm4104, %v4088, %v4091
        %v4109 = vsel %vm4107, %v4097, 2102212464
        %v4110 = vsel %vm4106, %v4094, %v4109
        %v4111 = vsel %vm4105, %v4108, %v4110
        %v4112 = vsel %vm4104, %v4091, %v4094
        %v4113 = vsel %vm4107, %v4100, 920167782
        %v4114 = vsel %vm4106, %v4097, %v4113
        %v4115 = vsel %vm4105, %v4112, %v4114
        %v4116 = vsel %vm4104, %v4094, %v4097
        %v4117 = vsel %vm4107, %v4103, 1326507024
        %v4118 = vsel %vm4106, %v4100, %v4117
        %v4119 = vsel %vm4105, %v4116, %v4118
        %v4120 = vshll.u32 %v4080, 8
        %v4121 = vmul.u32.u64.compose %v4120, %v4119
        %v4122 = vextract.low.u32 %v4121
        %v4123 = vextract.high.u32 %v4121
        %v4124 = vmul.u32.u64.compose %v4120, %v4115
        %v4125 = vextract.low.u32 %v4124
        %v4126 = vextract.high.u32 %v4124
        %v4127 = vmul.u32 %v4120, %v4111
        %v4128 = vadd.s32 %v4123, %v4125
        %vm4129 = vc.u32 %v4123, %v4125
        %v4130 = vadd.s32 %v4126, 1
        %v4131 = vsel %vm4129, %v4130, %v4126
        %v4132 = vadd.s32 %v4127, %v4131
        %v4133 = vadd.s32 %v4132, 536870912
        %v4134 = vshrl.u32 %v4133, 30
        %v4135 = vshll.u32 %v4134, 30
        %v4136 = vsub.s32 %v4132, %v4135
        %vm4137 = vcmp.lt.s32.totalorder %v4136, 0
        %v4138 = vsub.s32 0, %v4136
        %v4139 = vsel %vm4137, %v4138, %v4136
        %v4140 = vclz %v4139
        %v4141 = vsub.s32 %v4140, 2
        %vm4142 = vcmp.gt.s32.totalorder 0, %v4141
        %v4143 = vsel %vm4142, 0, %v4141
        %v4144 = vsub.s32 32, %v4143
        %v4145 = vshll.u32 %v4136, %v4143
        %v4146 = vshrl.u32 %v4128, %v4144
        %v4147 = vor.u32 %v4145, %v4146
        %v4148 = vsub.s32 4294967266, %v4143
        %v4149 = vadd.s32 %v4148, 127
        %v4150 = vshll.u32 %v4149, 23
        %v4151 = vor.u32 4788187, %v4150
        %v4152 = vand.u32 2147483647, %v4151
        %v4154 = vcvt.s32.f32 %v4147
        %v4155 = vmul.f32 %v4154, %v4152
        %v4156 = vxor.u32 %v4155, 2147483648
        %v4157 = vsel %vm4074, %v4156, %v4155
        %v4158 = vsub.s32 4, %v4134
        %v4159 = vsel %vm4074, %v4158, %v4134
        %v4160 = vsel %vm4073, %v304, %v4157
        %v4161 = vsel %vm4073, 0, %v4159
        %v4162 = vcosq.f32.pop %v4160
        %v4163 = vsinq.f32.pop %v4160
        %vm4164 = vweird.f32 %v304
        %v4165 = vand.u32 %v4161, 3
        %vm4166 = vcmp.lt.s32.totalorder %v4165, 2
        %vm4167 = vcmp.eq.s32.totalorder %v4165, 0
        %v4168 = vxor.u32 %v4163, 2147483648
        %v4169 = vsel %vm4167, %v4162, %v4168
        %vm4170 = vcmp.eq.s32.totalorder %v4165, 2
        %v4171 = vxor.u32 %v4162, 2147483648
        %v4172 = vsel %vm4170, %v4171, %v4163
        %v4173 = vsel %vm4166, %v4169, %v4172
        %v4174 = vsel %vm4164, nan, %v4173
        %v4175 = vand.u32 2147483647, %v305
        %vm4176 = vcmp.le.f32.partialorder %v4175, 0.7853982
        %vm4177 = vcmp.lt.s32.totalorder %v305, 0
        %v4178 = vand.u32 %v305, 2139095040
        %v4179 = vshrl.u32 %v4178, 23
        %v4180 = vsub.s32 %v4179, 127
        %v4181 = vand.u32 2147483647, %v305
        %v4182 = vand.u32 %v4181, 8388607
        %v4183 = vor.u32 %v4182, 8388608
        %v4184 = vsub.s32 0, %v4183
        %v4185 = vadd.s32 %v4180, 1
        %vm4186 = vcmp.gt.s32.totalorder %v4185, 0
        %v4187 = vsel %vm4186, %v4185, 0
        %v4188 = vshrl.u32 %v4187, 5
        %v4189 = vand.u32 %v4187, 31
        %v4190 = vsub.s32 32, %v4189
        %v4191 = vshrl.u32 683565275, %v4190
        %v4192 = vshll.u32 683565275, %v4189
        %v4193 = vshrl.u32 2475754826, %v4190
        %v4194 = vor.u32 %v4192, %v4193
        %v4195 = vshll.u32 2475754826, %v4189
        %v4196 = vshrl.u32 2131351028, %v4190
        %v4197 = vor.u32 %v4195, %v4196
        %v4198 = vshll.u32 2131351028, %v4189
        %v4199 = vshrl.u32 2102212464, %v4190
        %v4200 = vor.u32 %v4198, %v4199
        %v4201 = vshll.u32 2102212464, %v4189
        %v4202 = vshrl.u32 920167782, %v4190
        %v4203 = vor.u32 %v4201, %v4202
        %v4204 = vshll.u32 920167782, %v4189
        %v4205 = vshrl.u32 1326507024, %v4190
        %v4206 = vor.u32 %v4204, %v4205
        %vm4207 = vcmp.lt.s32.totalorder %v4188, 1
        %vm4208 = vcmp.lt.s32.totalorder %v4188, 2
        %vm4209 = vcmp.lt.s32.totalorder %v4188, 3
        %vm4210 = vcmp.lt.s32.totalorder %v4188, 4
        %v4211 = vsel %vm4207, %v4191, %v4194
        %v4212 = vsel %vm4210, %v4200, 2102212464
        %v4213 = vsel %vm4209, %v4197, %v4212
        %v4214 = vsel %vm4208, %v4211, %v4213
        %v4215 = vsel %vm4207, %v4194, %v4197
        %v4216 = vsel %vm4210, %v4203, 920167782
        %v4217 = vsel %vm4209, %v4200, %v4216
        %v4218 = vsel %vm4208, %v4215, %v4217
        %v4219 = vsel %vm4207, %v4197, %v4200
        %v4220 = vsel %vm4210, %v4206, 1326507024
        %v4221 = vsel %vm4209, %v4203, %v4220
        %v4222 = vsel %vm4208, %v4219, %v4221
        %v4223 = vshll.u32 %v4183, 8
        %v4224 = vmul.u32.u64.compose %v4223, %v4222
        %v4225 = vextract.low.u32 %v4224
        %v4226 = vextract.high.u32 %v4224
        %v4227 = vmul.u32.u64.compose %v4223, %v4218
        %v4228 = vextract.low.u32 %v4227
        %v4229 = vextract.high.u32 %v4227
        %v4230 = vmul.u32 %v4223, %v4214
        %v4231 = vadd.s32 %v4226, %v4228
        %vm4232 = vc.u32 %v4226, %v4228
        %v4233 = vadd.s32 %v4229, 1
        %v4234 = vsel %vm4232, %v4233, %v4229
        %v4235 = vadd.s32 %v4230, %v4234
        %v4236 = vadd.s32 %v4235, 536870912
        %v4237 = vshrl.u32 %v4236, 30
        %v4238 = vshll.u32 %v4237, 30
        %v4239 = vsub.s32 %v4235, %v4238
        %vm4240 = vcmp.lt.s32.totalorder %v4239, 0
        %v4241 = vsub.s32 0, %v4239
        %v4242 = vsel %vm4240, %v4241, %v4239
        %v4243 = vclz %v4242
        %v4244 = vsub.s32 %v4243, 2
        %vm4245 = vcmp.gt.s32.totalorder 0, %v4244
        %v4246 = vsel %vm4245, 0, %v4244
        %v4247 = vsub.s32 32, %v4246
        %v4248 = vshll.u32 %v4239, %v4246
        %v4249 = vshrl.u32 %v4231, %v4247
        %v4250 = vor.u32 %v4248, %v4249
        %v4251 = vsub.s32 4294967266, %v4246
        %v4252 = vadd.s32 %v4251, 127
        %v4253 = vshll.u32 %v4252, 23
        %v4254 = vor.u32 4788187, %v4253
        %v4255 = vand.u32 2147483647, %v4254
        %v4257 = vcvt.s32.f32 %v4250
        %v4258 = vmul.f32 %v4257, %v4255
        %v4259 = vxor.u32 %v4258, 2147483648
        %v4260 = vsel %vm4177, %v4259, %v4258
        %v4261 = vsub.s32 4, %v4237
        %v4262 = vsel %vm4177, %v4261, %v4237
        %v4263 = vsel %vm4176, %v305, %v4260
        %v4264 = vsel %vm4176, 0, %v4262
        %v4265 = vcosq.f32.pop %v4263
        %v4266 = vsinq.f32.pop %v4263
        %vm4267 = vweird.f32 %v305
        %v4268 = vand.u32 %v4264, 3
        %vm4269 = vcmp.lt.s32.totalorder %v4268, 2
        %vm4270 = vcmp.eq.s32.totalorder %v4268, 0
        %v4271 = vxor.u32 %v4266, 2147483648
        %v4272 = vsel %vm4270, %v4265, %v4271
        %vm4273 = vcmp.eq.s32.totalorder %v4268, 2
        %v4274 = vxor.u32 %v4265, 2147483648
        %v4275 = vsel %vm4273, %v4274, %v4266
        %v4276 = vsel %vm4269, %v4272, %v4275
        %v4277 = vsel %vm4267, nan, %v4276
        %v4278 = vand.u32 2147483647, %v306
        %vm4279 = vcmp.le.f32.partialorder %v4278, 0.7853982
        %vm4280 = vcmp.lt.s32.totalorder %v306, 0
        %v4281 = vand.u32 %v306, 2139095040
        %v4282 = vshrl.u32 %v4281, 23
        %v4283 = vsub.s32 %v4282, 127
        %v4284 = vand.u32 2147483647, %v306
        %v4285 = vand.u32 %v4284, 8388607
        %v4286 = vor.u32 %v4285, 8388608
        %v4287 = vsub.s32 0, %v4286
        %v4288 = vadd.s32 %v4283, 1
        %vm4289 = vcmp.gt.s32.totalorder %v4288, 0
        %v4290 = vsel %vm4289, %v4288, 0
        %v4291 = vshrl.u32 %v4290, 5
        %v4292 = vand.u32 %v4290, 31
        %v4293 = vsub.s32 32, %v4292
        %v4294 = vshrl.u32 683565275, %v4293
        %v4295 = vshll.u32 683565275, %v4292
        %v4296 = vshrl.u32 2475754826, %v4293
        %v4297 = vor.u32 %v4295, %v4296
        %v4298 = vshll.u32 2475754826, %v4292
        %v4299 = vshrl.u32 2131351028, %v4293
        %v4300 = vor.u32 %v4298, %v4299
        %v4301 = vshll.u32 2131351028, %v4292
        %v4302 = vshrl.u32 2102212464, %v4293
        %v4303 = vor.u32 %v4301, %v4302
        %v4304 = vshll.u32 2102212464, %v4292
        %v4305 = vshrl.u32 920167782, %v4293
        %v4306 = vor.u32 %v4304, %v4305
        %v4307 = vshll.u32 920167782, %v4292
        %v4308 = vshrl.u32 1326507024, %v4293
        %v4309 = vor.u32 %v4307, %v4308
        %vm4310 = vcmp.lt.s32.totalorder %v4291, 1
        %vm4311 = vcmp.lt.s32.totalorder %v4291, 2
        %vm4312 = vcmp.lt.s32.totalorder %v4291, 3
        %vm4313 = vcmp.lt.s32.totalorder %v4291, 4
        %v4314 = vsel %vm4310, %v4294, %v4297
        %v4315 = vsel %vm4313, %v4303, 2102212464
        %v4316 = vsel %vm4312, %v4300, %v4315
        %v4317 = vsel %vm4311, %v4314, %v4316
        %v4318 = vsel %vm4310, %v4297, %v4300
        %v4319 = vsel %vm4313, %v4306, 920167782
        %v4320 = vsel %vm4312, %v4303, %v4319
        %v4321 = vsel %vm4311, %v4318, %v4320
        %v4322 = vsel %vm4310, %v4300, %v4303
        %v4323 = vsel %vm4313, %v4309, 1326507024
        %v4324 = vsel %vm4312, %v4306, %v4323
        %v4325 = vsel %vm4311, %v4322, %v4324
        %v4326 = vshll.u32 %v4286, 8
        %v4327 = vmul.u32.u64.compose %v4326, %v4325
        %v4328 = vextract.low.u32 %v4327
        %v4329 = vextract.high.u32 %v4327
        %v4330 = vmul.u32.u64.compose %v4326, %v4321
        %v4331 = vextract.low.u32 %v4330
        %v4332 = vextract.high.u32 %v4330
        %v4333 = vmul.u32 %v4326, %v4317
        %v4334 = vadd.s32 %v4329, %v4331
        %vm4335 = vc.u32 %v4329, %v4331
        %v4336 = vadd.s32 %v4332, 1
        %v4337 = vsel %vm4335, %v4336, %v4332
        %v4338 = vadd.s32 %v4333, %v4337
        %v4339 = vadd.s32 %v4338, 536870912
        %v4340 = vshrl.u32 %v4339, 30
        %v4341 = vshll.u32 %v4340, 30
        %v4342 = vsub.s32 %v4338, %v4341
        %vm4343 = vcmp.lt.s32.totalorder %v4342, 0
        %v4344 = vsub.s32 0, %v4342
        %v4345 = vsel %vm4343, %v4344, %v4342
        %v4346 = vclz %v4345
        %v4347 = vsub.s32 %v4346, 2
        %vm4348 = vcmp.gt.s32.totalorder 0, %v4347
        %v4349 = vsel %vm4348, 0, %v4347
        %v4350 = vsub.s32 32, %v4349
        %v4351 = vshll.u32 %v4342, %v4349
        %v4352 = vshrl.u32 %v4334, %v4350
        %v4353 = vor.u32 %v4351, %v4352
        %v4354 = vsub.s32 4294967266, %v4349
        %v4355 = vadd.s32 %v4354, 127
        %v4356 = vshll.u32 %v4355, 23
        %v4357 = vor.u32 4788187, %v4356
        %v4358 = vand.u32 2147483647, %v4357
        %v4360 = vcvt.s32.f32 %v4353
        %v4361 = vmul.f32 %v4360, %v4358
        %v4362 = vxor.u32 %v4361, 2147483648
        %v4363 = vsel %vm4280, %v4362, %v4361
        %v4364 = vsub.s32 4, %v4340
        %v4365 = vsel %vm4280, %v4364, %v4340
        %v4366 = vsel %vm4279, %v306, %v4363
        %v4367 = vsel %vm4279, 0, %v4365
        %v4368 = vcosq.f32.pop %v4366
        %v4369 = vsinq.f32.pop %v4366
        %vm4370 = vweird.f32 %v306
        %v4371 = vand.u32 %v4367, 3
        %vm4372 = vcmp.lt.s32.totalorder %v4371, 2
        %vm4373 = vcmp.eq.s32.totalorder %v4371, 0
        %v4374 = vxor.u32 %v4369, 2147483648
        %v4375 = vsel %vm4373, %v4368, %v4374
        %vm4376 = vcmp.eq.s32.totalorder %v4371, 2
        %v4377 = vxor.u32 %v4368, 2147483648
        %v4378 = vsel %vm4376, %v4377, %v4369
        %v4379 = vsel %vm4372, %v4375, %v4378
        %v4380 = vsel %vm4370, nan, %v4379
        %v4381 = vand.u32 2147483647, %v307
        %vm4382 = vcmp.le.f32.partialorder %v4381, 0.7853982
        %vm4383 = vcmp.lt.s32.totalorder %v307, 0
        %v4384 = vand.u32 %v307, 2139095040
        %v4385 = vshrl.u32 %v4384, 23
        %v4386 = vsub.s32 %v4385, 127
        %v4387 = vand.u32 2147483647, %v307
        %v4388 = vand.u32 %v4387, 8388607
        %v4389 = vor.u32 %v4388, 8388608
        %v4390 = vsub.s32 0, %v4389
        %v4391 = vadd.s32 %v4386, 1
        %vm4392 = vcmp.gt.s32.totalorder %v4391, 0
        %v4393 = vsel %vm4392, %v4391, 0
        %v4394 = vshrl.u32 %v4393, 5
        %v4395 = vand.u32 %v4393, 31
        %v4396 = vsub.s32 32, %v4395
        %v4397 = vshrl.u32 683565275, %v4396
        %v4398 = vshll.u32 683565275, %v4395
        %v4399 = vshrl.u32 2475754826, %v4396
        %v4400 = vor.u32 %v4398, %v4399
        %v4401 = vshll.u32 2475754826, %v4395
        %v4402 = vshrl.u32 2131351028, %v4396
        %v4403 = vor.u32 %v4401, %v4402
        %v4404 = vshll.u32 2131351028, %v4395
        %v4405 = vshrl.u32 2102212464, %v4396
        %v4406 = vor.u32 %v4404, %v4405
        %v4407 = vshll.u32 2102212464, %v4395
        %v4408 = vshrl.u32 920167782, %v4396
        %v4409 = vor.u32 %v4407, %v4408
        %v4410 = vshll.u32 920167782, %v4395
        %v4411 = vshrl.u32 1326507024, %v4396
        %v4412 = vor.u32 %v4410, %v4411
        %vm4413 = vcmp.lt.s32.totalorder %v4394, 1
        %vm4414 = vcmp.lt.s32.totalorder %v4394, 2
        %vm4415 = vcmp.lt.s32.totalorder %v4394, 3
        %vm4416 = vcmp.lt.s32.totalorder %v4394, 4
        %v4417 = vsel %vm4413, %v4397, %v4400
        %v4418 = vsel %vm4416, %v4406, 2102212464
        %v4419 = vsel %vm4415, %v4403, %v4418
        %v4420 = vsel %vm4414, %v4417, %v4419
        %v4421 = vsel %vm4413, %v4400, %v4403
        %v4422 = vsel %vm4416, %v4409, 920167782
        %v4423 = vsel %vm4415, %v4406, %v4422
        %v4424 = vsel %vm4414, %v4421, %v4423
        %v4425 = vsel %vm4413, %v4403, %v4406
        %v4426 = vsel %vm4416, %v4412, 1326507024
        %v4427 = vsel %vm4415, %v4409, %v4426
        %v4428 = vsel %vm4414, %v4425, %v4427
        %v4429 = vshll.u32 %v4389, 8
        %v4430 = vmul.u32.u64.compose %v4429, %v4428
        %v4431 = vextract.low.u32 %v4430
        %v4432 = vextract.high.u32 %v4430
        %v4433 = vmul.u32.u64.compose %v4429, %v4424
        %v4434 = vextract.low.u32 %v4433
        %v4435 = vextract.high.u32 %v4433
        %v4436 = vmul.u32 %v4429, %v4420
        %v4437 = vadd.s32 %v4432, %v4434
        %vm4438 = vc.u32 %v4432, %v4434
        %v4439 = vadd.s32 %v4435, 1
        %v4440 = vsel %vm4438, %v4439, %v4435
        %v4441 = vadd.s32 %v4436, %v4440
        %v4442 = vadd.s32 %v4441, 536870912
        %v4443 = vshrl.u32 %v4442, 30
        %v4444 = vshll.u32 %v4443, 30
        %v4445 = vsub.s32 %v4441, %v4444
        %vm4446 = vcmp.lt.s32.totalorder %v4445, 0
        %v4447 = vsub.s32 0, %v4445
        %v4448 = vsel %vm4446, %v4447, %v4445
        %v4449 = vclz %v4448
        %v4450 = vsub.s32 %v4449, 2
        %vm4451 = vcmp.gt.s32.totalorder 0, %v4450
        %v4452 = vsel %vm4451, 0, %v4450
        %v4453 = vsub.s32 32, %v4452
        %v4454 = vshll.u32 %v4445, %v4452
        %v4455 = vshrl.u32 %v4437, %v4453
        %v4456 = vor.u32 %v4454, %v4455
        %v4457 = vsub.s32 4294967266, %v4452
        %v4458 = vadd.s32 %v4457, 127
        %v4459 = vshll.u32 %v4458, 23
        %v4460 = vor.u32 4788187, %v4459
        %v4461 = vand.u32 2147483647, %v4460
        %v4463 = vcvt.s32.f32 %v4456
        %v4464 = vmul.f32 %v4463, %v4461
        %v4465 = vxor.u32 %v4464, 2147483648
        %v4466 = vsel %vm4383, %v4465, %v4464
        %v4467 = vsub.s32 4, %v4443
        %v4468 = vsel %vm4383, %v4467, %v4443
        %v4469 = vsel %vm4382, %v307, %v4466
        %v4470 = vsel %vm4382, 0, %v4468
        %v4471 = vcosq.f32.pop %v4469
        %v4472 = vsinq.f32.pop %v4469
        %vm4473 = vweird.f32 %v307
        %v4474 = vand.u32 %v4470, 3
        %vm4475 = vcmp.lt.s32.totalorder %v4474, 2
        %vm4476 = vcmp.eq.s32.totalorder %v4474, 0
        %v4477 = vxor.u32 %v4472, 2147483648
        %v4478 = vsel %vm4476, %v4471, %v4477
        %vm4479 = vcmp.eq.s32.totalorder %v4474, 2
        %v4480 = vxor.u32 %v4471, 2147483648
        %v4481 = vsel %vm4479, %v4480, %v4472
        %v4482 = vsel %vm4475, %v4478, %v4481
        %v4483 = vsel %vm4473, nan, %v4482
        %v4484 = vand.u32 2147483647, %v308
        %vm4485 = vcmp.le.f32.partialorder %v4484, 0.7853982
        %vm4486 = vcmp.lt.s32.totalorder %v308, 0
        %v4487 = vand.u32 %v308, 2139095040
        %v4488 = vshrl.u32 %v4487, 23
        %v4489 = vsub.s32 %v4488, 127
        %v4490 = vand.u32 2147483647, %v308
        %v4491 = vand.u32 %v4490, 8388607
        %v4492 = vor.u32 %v4491, 8388608
        %v4493 = vsub.s32 0, %v4492
        %v4494 = vadd.s32 %v4489, 1
        %vm4495 = vcmp.gt.s32.totalorder %v4494, 0
        %v4496 = vsel %vm4495, %v4494, 0
        %v4497 = vshrl.u32 %v4496, 5
        %v4498 = vand.u32 %v4496, 31
        %v4499 = vsub.s32 32, %v4498
        %v4500 = vshrl.u32 683565275, %v4499
        %v4501 = vshll.u32 683565275, %v4498
        %v4502 = vshrl.u32 2475754826, %v4499
        %v4503 = vor.u32 %v4501, %v4502
        %v4504 = vshll.u32 2475754826, %v4498
        %v4505 = vshrl.u32 2131351028, %v4499
        %v4506 = vor.u32 %v4504, %v4505
        %v4507 = vshll.u32 2131351028, %v4498
        %v4508 = vshrl.u32 2102212464, %v4499
        %v4509 = vor.u32 %v4507, %v4508
        %v4510 = vshll.u32 2102212464, %v4498
        %v4511 = vshrl.u32 920167782, %v4499
        %v4512 = vor.u32 %v4510, %v4511
        %v4513 = vshll.u32 920167782, %v4498
        %v4514 = vshrl.u32 1326507024, %v4499
        %v4515 = vor.u32 %v4513, %v4514
        %vm4516 = vcmp.lt.s32.totalorder %v4497, 1
        %vm4517 = vcmp.lt.s32.totalorder %v4497, 2
        %vm4518 = vcmp.lt.s32.totalorder %v4497, 3
        %vm4519 = vcmp.lt.s32.totalorder %v4497, 4
        %v4520 = vsel %vm4516, %v4500, %v4503
        %v4521 = vsel %vm4519, %v4509, 2102212464
        %v4522 = vsel %vm4518, %v4506, %v4521
        %v4523 = vsel %vm4517, %v4520, %v4522
        %v4524 = vsel %vm4516, %v4503, %v4506
        %v4525 = vsel %vm4519, %v4512, 920167782
        %v4526 = vsel %vm4518, %v4509, %v4525
        %v4527 = vsel %vm4517, %v4524, %v4526
        %v4528 = vsel %vm4516, %v4506, %v4509
        %v4529 = vsel %vm4519, %v4515, 1326507024
        %v4530 = vsel %vm4518, %v4512, %v4529
        %v4531 = vsel %vm4517, %v4528, %v4530
        %v4532 = vshll.u32 %v4492, 8
        %v4533 = vmul.u32.u64.compose %v4532, %v4531
        %v4534 = vextract.low.u32 %v4533
        %v4535 = vextract.high.u32 %v4533
        %v4536 = vmul.u32.u64.compose %v4532, %v4527
        %v4537 = vextract.low.u32 %v4536
        %v4538 = vextract.high.u32 %v4536
        %v4539 = vmul.u32 %v4532, %v4523
        %v4540 = vadd.s32 %v4535, %v4537
        %vm4541 = vc.u32 %v4535, %v4537
        %v4542 = vadd.s32 %v4538, 1
        %v4543 = vsel %vm4541, %v4542, %v4538
        %v4544 = vadd.s32 %v4539, %v4543
        %v4545 = vadd.s32 %v4544, 536870912
        %v4546 = vshrl.u32 %v4545, 30
        %v4547 = vshll.u32 %v4546, 30
        %v4548 = vsub.s32 %v4544, %v4547
        %vm4549 = vcmp.lt.s32.totalorder %v4548, 0
        %v4550 = vsub.s32 0, %v4548
        %v4551 = vsel %vm4549, %v4550, %v4548
        %v4552 = vclz %v4551
        %v4553 = vsub.s32 %v4552, 2
        %vm4554 = vcmp.gt.s32.totalorder 0, %v4553
        %v4555 = vsel %vm4554, 0, %v4553
        %v4556 = vsub.s32 32, %v4555
        %v4557 = vshll.u32 %v4548, %v4555
        %v4558 = vshrl.u32 %v4540, %v4556
        %v4559 = vor.u32 %v4557, %v4558
        %v4560 = vsub.s32 4294967266, %v4555
        %v4561 = vadd.s32 %v4560, 127
        %v4562 = vshll.u32 %v4561, 23
        %v4563 = vor.u32 4788187, %v4562
        %v4564 = vand.u32 2147483647, %v4563
        %v4566 = vcvt.s32.f32 %v4559
        %v4567 = vmul.f32 %v4566, %v4564
        %v4568 = vxor.u32 %v4567, 2147483648
        %v4569 = vsel %vm4486, %v4568, %v4567
        %v4570 = vsub.s32 4, %v4546
        %v4571 = vsel %vm4486, %v4570, %v4546
        %v4572 = vsel %vm4485, %v308, %v4569
        %v4573 = vsel %vm4485, 0, %v4571
        %v4574 = vcosq.f32.pop %v4572
        %v4575 = vsinq.f32.pop %v4572
        %vm4576 = vweird.f32 %v308
        %v4577 = vand.u32 %v4573, 3
        %vm4578 = vcmp.lt.s32.totalorder %v4577, 2
        %vm4579 = vcmp.eq.s32.totalorder %v4577, 0
        %v4580 = vxor.u32 %v4575, 2147483648
        %v4581 = vsel %vm4579, %v4574, %v4580
        %vm4582 = vcmp.eq.s32.totalorder %v4577, 2
        %v4583 = vxor.u32 %v4574, 2147483648
        %v4584 = vsel %vm4582, %v4583, %v4575
        %v4585 = vsel %vm4578, %v4581, %v4584
        %v4586 = vsel %vm4576, nan, %v4585
        %v4587 = vand.u32 2147483647, %v309
        %vm4588 = vcmp.le.f32.partialorder %v4587, 0.7853982
        %vm4589 = vcmp.lt.s32.totalorder %v309, 0
        %v4590 = vand.u32 %v309, 2139095040
        %v4591 = vshrl.u32 %v4590, 23
        %v4592 = vsub.s32 %v4591, 127
        %v4593 = vand.u32 2147483647, %v309
        %v4594 = vand.u32 %v4593, 8388607
        %v4595 = vor.u32 %v4594, 8388608
        %v4596 = vsub.s32 0, %v4595
        %v4597 = vadd.s32 %v4592, 1
        %vm4598 = vcmp.gt.s32.totalorder %v4597, 0
        %v4599 = vsel %vm4598, %v4597, 0
        %v4600 = vshrl.u32 %v4599, 5
        %v4601 = vand.u32 %v4599, 31
        %v4602 = vsub.s32 32, %v4601
        %v4603 = vshrl.u32 683565275, %v4602
        %v4604 = vshll.u32 683565275, %v4601
        %v4605 = vshrl.u32 2475754826, %v4602
        %v4606 = vor.u32 %v4604, %v4605
        %v4607 = vshll.u32 2475754826, %v4601
        %v4608 = vshrl.u32 2131351028, %v4602
        %v4609 = vor.u32 %v4607, %v4608
        %v4610 = vshll.u32 2131351028, %v4601
        %v4611 = vshrl.u32 2102212464, %v4602
        %v4612 = vor.u32 %v4610, %v4611
        %v4613 = vshll.u32 2102212464, %v4601
        %v4614 = vshrl.u32 920167782, %v4602
        %v4615 = vor.u32 %v4613, %v4614
        %v4616 = vshll.u32 920167782, %v4601
        %v4617 = vshrl.u32 1326507024, %v4602
        %v4618 = vor.u32 %v4616, %v4617
        %vm4619 = vcmp.lt.s32.totalorder %v4600, 1
        %vm4620 = vcmp.lt.s32.totalorder %v4600, 2
        %vm4621 = vcmp.lt.s32.totalorder %v4600, 3
        %vm4622 = vcmp.lt.s32.totalorder %v4600, 4
        %v4623 = vsel %vm4619, %v4603, %v4606
        %v4624 = vsel %vm4622, %v4612, 2102212464
        %v4625 = vsel %vm4621, %v4609, %v4624
        %v4626 = vsel %vm4620, %v4623, %v4625
        %v4627 = vsel %vm4619, %v4606, %v4609
        %v4628 = vsel %vm4622, %v4615, 920167782
        %v4629 = vsel %vm4621, %v4612, %v4628
        %v4630 = vsel %vm4620, %v4627, %v4629
        %v4631 = vsel %vm4619, %v4609, %v4612
        %v4632 = vsel %vm4622, %v4618, 1326507024
        %v4633 = vsel %vm4621, %v4615, %v4632
        %v4634 = vsel %vm4620, %v4631, %v4633
        %v4635 = vshll.u32 %v4595, 8
        %v4636 = vmul.u32.u64.compose %v4635, %v4634
        %v4637 = vextract.low.u32 %v4636
        %v4638 = vextract.high.u32 %v4636
        %v4639 = vmul.u32.u64.compose %v4635, %v4630
        %v4640 = vextract.low.u32 %v4639
        %v4641 = vextract.high.u32 %v4639
        %v4642 = vmul.u32 %v4635, %v4626
        %v4643 = vadd.s32 %v4638, %v4640
        %vm4644 = vc.u32 %v4638, %v4640
        %v4645 = vadd.s32 %v4641, 1
        %v4646 = vsel %vm4644, %v4645, %v4641
        %v4647 = vadd.s32 %v4642, %v4646
        %v4648 = vadd.s32 %v4647, 536870912
        %v4649 = vshrl.u32 %v4648, 30
        %v4650 = vshll.u32 %v4649, 30
        %v4651 = vsub.s32 %v4647, %v4650
        %vm4652 = vcmp.lt.s32.totalorder %v4651, 0
        %v4653 = vsub.s32 0, %v4651
        %v4654 = vsel %vm4652, %v4653, %v4651
        %v4655 = vclz %v4654
        %v4656 = vsub.s32 %v4655, 2
        %vm4657 = vcmp.gt.s32.totalorder 0, %v4656
        %v4658 = vsel %vm4657, 0, %v4656
        %v4659 = vsub.s32 32, %v4658
        %v4660 = vshll.u32 %v4651, %v4658
        %v4661 = vshrl.u32 %v4643, %v4659
        %v4662 = vor.u32 %v4660, %v4661
        %v4663 = vsub.s32 4294967266, %v4658
        %v4664 = vadd.s32 %v4663, 127
        %v4665 = vshll.u32 %v4664, 23
        %v4666 = vor.u32 4788187, %v4665
        %v4667 = vand.u32 2147483647, %v4666
        %v4669 = vcvt.s32.f32 %v4662
        %v4670 = vmul.f32 %v4669, %v4667
        %v4671 = vxor.u32 %v4670, 2147483648
        %v4672 = vsel %vm4589, %v4671, %v4670
        %v4673 = vsub.s32 4, %v4649
        %v4674 = vsel %vm4589, %v4673, %v4649
        %v4675 = vsel %vm4588, %v309, %v4672
        %v4676 = vsel %vm4588, 0, %v4674
        %v4677 = vcosq.f32.pop %v4675
        %v4678 = vsinq.f32.pop %v4675
        %vm4679 = vweird.f32 %v309
        %v4680 = vand.u32 %v4676, 3
        %vm4681 = vcmp.lt.s32.totalorder %v4680, 2
        %vm4682 = vcmp.eq.s32.totalorder %v4680, 0
        %v4683 = vxor.u32 %v4678, 2147483648
        %v4684 = vsel %vm4682, %v4677, %v4683
        %vm4685 = vcmp.eq.s32.totalorder %v4680, 2
        %v4686 = vxor.u32 %v4677, 2147483648
        %v4687 = vsel %vm4685, %v4686, %v4678
        %v4688 = vsel %vm4681, %v4684, %v4687
        %v4689 = vsel %vm4679, nan, %v4688
        %v4690 = vand.u32 2147483647, %v310
        %vm4691 = vcmp.le.f32.partialorder %v4690, 0.7853982
        %vm4692 = vcmp.lt.s32.totalorder %v310, 0
        %v4693 = vand.u32 %v310, 2139095040
        %v4694 = vshrl.u32 %v4693, 23
        %v4695 = vsub.s32 %v4694, 127
        %v4696 = vand.u32 2147483647, %v310
        %v4697 = vand.u32 %v4696, 8388607
        %v4698 = vor.u32 %v4697, 8388608
        %v4699 = vsub.s32 0, %v4698
        %v4700 = vadd.s32 %v4695, 1
        %vm4701 = vcmp.gt.s32.totalorder %v4700, 0
        %v4702 = vsel %vm4701, %v4700, 0
        %v4703 = vshrl.u32 %v4702, 5
        %v4704 = vand.u32 %v4702, 31
        %v4705 = vsub.s32 32, %v4704
        %v4706 = vshrl.u32 683565275, %v4705
        %v4707 = vshll.u32 683565275, %v4704
        %v4708 = vshrl.u32 2475754826, %v4705
        %v4709 = vor.u32 %v4707, %v4708
        %v4710 = vshll.u32 2475754826, %v4704
        %v4711 = vshrl.u32 2131351028, %v4705
        %v4712 = vor.u32 %v4710, %v4711
        %v4713 = vshll.u32 2131351028, %v4704
        %v4714 = vshrl.u32 2102212464, %v4705
        %v4715 = vor.u32 %v4713, %v4714
        %v4716 = vshll.u32 2102212464, %v4704
        %v4717 = vshrl.u32 920167782, %v4705
        %v4718 = vor.u32 %v4716, %v4717
        %v4719 = vshll.u32 920167782, %v4704
        %v4720 = vshrl.u32 1326507024, %v4705
        %v4721 = vor.u32 %v4719, %v4720
        %vm4722 = vcmp.lt.s32.totalorder %v4703, 1
        %vm4723 = vcmp.lt.s32.totalorder %v4703, 2
        %vm4724 = vcmp.lt.s32.totalorder %v4703, 3
        %vm4725 = vcmp.lt.s32.totalorder %v4703, 4
        %v4726 = vsel %vm4722, %v4706, %v4709
        %v4727 = vsel %vm4725, %v4715, 2102212464
        %v4728 = vsel %vm4724, %v4712, %v4727
        %v4729 = vsel %vm4723, %v4726, %v4728
        %v4730 = vsel %vm4722, %v4709, %v4712
        %v4731 = vsel %vm4725, %v4718, 920167782
        %v4732 = vsel %vm4724, %v4715, %v4731
        %v4733 = vsel %vm4723, %v4730, %v4732
        %v4734 = vsel %vm4722, %v4712, %v4715
        %v4735 = vsel %vm4725, %v4721, 1326507024
        %v4736 = vsel %vm4724, %v4718, %v4735
        %v4737 = vsel %vm4723, %v4734, %v4736
        %v4738 = vshll.u32 %v4698, 8
        %v4739 = vmul.u32.u64.compose %v4738, %v4737
        %v4740 = vextract.low.u32 %v4739
        %v4741 = vextract.high.u32 %v4739
        %v4742 = vmul.u32.u64.compose %v4738, %v4733
        %v4743 = vextract.low.u32 %v4742
        %v4744 = vextract.high.u32 %v4742
        %v4745 = vmul.u32 %v4738, %v4729
        %v4746 = vadd.s32 %v4741, %v4743
        %vm4747 = vc.u32 %v4741, %v4743
        %v4748 = vadd.s32 %v4744, 1
        %v4749 = vsel %vm4747, %v4748, %v4744
        %v4750 = vadd.s32 %v4745, %v4749
        %v4751 = vadd.s32 %v4750, 536870912
        %v4752 = vshrl.u32 %v4751, 30
        %v4753 = vshll.u32 %v4752, 30
        %v4754 = vsub.s32 %v4750, %v4753
        %vm4755 = vcmp.lt.s32.totalorder %v4754, 0
        %v4756 = vsub.s32 0, %v4754
        %v4757 = vsel %vm4755, %v4756, %v4754
        %v4758 = vclz %v4757
        %v4759 = vsub.s32 %v4758, 2
        %vm4760 = vcmp.gt.s32.totalorder 0, %v4759
        %v4761 = vsel %vm4760, 0, %v4759
        %v4762 = vsub.s32 32, %v4761
        %v4763 = vshll.u32 %v4754, %v4761
        %v4764 = vshrl.u32 %v4746, %v4762
        %v4765 = vor.u32 %v4763, %v4764
        %v4766 = vsub.s32 4294967266, %v4761
        %v4767 = vadd.s32 %v4766, 127
        %v4768 = vshll.u32 %v4767, 23
        %v4769 = vor.u32 4788187, %v4768
        %v4770 = vand.u32 2147483647, %v4769
        %v4772 = vcvt.s32.f32 %v4765
        %v4773 = vmul.f32 %v4772, %v4770
        %v4774 = vxor.u32 %v4773, 2147483648
        %v4775 = vsel %vm4692, %v4774, %v4773
        %v4776 = vsub.s32 4, %v4752
        %v4777 = vsel %vm4692, %v4776, %v4752
        %v4778 = vsel %vm4691, %v310, %v4775
        %v4779 = vsel %vm4691, 0, %v4777
        %v4780 = vcosq.f32.pop %v4778
        %v4781 = vsinq.f32.pop %v4778
        %vm4782 = vweird.f32 %v310
        %v4783 = vand.u32 %v4779, 3
        %vm4784 = vcmp.lt.s32.totalorder %v4783, 2
        %vm4785 = vcmp.eq.s32.totalorder %v4783, 0
        %v4786 = vxor.u32 %v4781, 2147483648
        %v4787 = vsel %vm4785, %v4780, %v4786
        %vm4788 = vcmp.eq.s32.totalorder %v4783, 2
        %v4789 = vxor.u32 %v4780, 2147483648
        %v4790 = vsel %vm4788, %v4789, %v4781
        %v4791 = vsel %vm4784, %v4787, %v4790
        %v4792 = vsel %vm4782, nan, %v4791
        %v4793 = vand.u32 2147483647, %v311
        %vm4794 = vcmp.le.f32.partialorder %v4793, 0.7853982
        %vm4795 = vcmp.lt.s32.totalorder %v311, 0
        %v4796 = vand.u32 %v311, 2139095040
        %v4797 = vshrl.u32 %v4796, 23
        %v4798 = vsub.s32 %v4797, 127
        %v4799 = vand.u32 2147483647, %v311
        %v4800 = vand.u32 %v4799, 8388607
        %v4801 = vor.u32 %v4800, 8388608
        %v4802 = vsub.s32 0, %v4801
        %v4803 = vadd.s32 %v4798, 1
        %vm4804 = vcmp.gt.s32.totalorder %v4803, 0
        %v4805 = vsel %vm4804, %v4803, 0
        %v4806 = vshrl.u32 %v4805, 5
        %v4807 = vand.u32 %v4805, 31
        %v4808 = vsub.s32 32, %v4807
        %v4809 = vshrl.u32 683565275, %v4808
        %v4810 = vshll.u32 683565275, %v4807
        %v4811 = vshrl.u32 2475754826, %v4808
        %v4812 = vor.u32 %v4810, %v4811
        %v4813 = vshll.u32 2475754826, %v4807
        %v4814 = vshrl.u32 2131351028, %v4808
        %v4815 = vor.u32 %v4813, %v4814
        %v4816 = vshll.u32 2131351028, %v4807
        %v4817 = vshrl.u32 2102212464, %v4808
        %v4818 = vor.u32 %v4816, %v4817
        %v4819 = vshll.u32 2102212464, %v4807
        %v4820 = vshrl.u32 920167782, %v4808
        %v4821 = vor.u32 %v4819, %v4820
        %v4822 = vshll.u32 920167782, %v4807
        %v4823 = vshrl.u32 1326507024, %v4808
        %v4824 = vor.u32 %v4822, %v4823
        %vm4825 = vcmp.lt.s32.totalorder %v4806, 1
        %vm4826 = vcmp.lt.s32.totalorder %v4806, 2
        %vm4827 = vcmp.lt.s32.totalorder %v4806, 3
        %vm4828 = vcmp.lt.s32.totalorder %v4806, 4
        %v4829 = vsel %vm4825, %v4809, %v4812
        %v4830 = vsel %vm4828, %v4818, 2102212464
        %v4831 = vsel %vm4827, %v4815, %v4830
        %v4832 = vsel %vm4826, %v4829, %v4831
        %v4833 = vsel %vm4825, %v4812, %v4815
        %v4834 = vsel %vm4828, %v4821, 920167782
        %v4835 = vsel %vm4827, %v4818, %v4834
        %v4836 = vsel %vm4826, %v4833, %v4835
        %v4837 = vsel %vm4825, %v4815, %v4818
        %v4838 = vsel %vm4828, %v4824, 1326507024
        %v4839 = vsel %vm4827, %v4821, %v4838
        %v4840 = vsel %vm4826, %v4837, %v4839
        %v4841 = vshll.u32 %v4801, 8
        %v4842 = vmul.u32.u64.compose %v4841, %v4840
        %v4843 = vextract.low.u32 %v4842
        %v4844 = vextract.high.u32 %v4842
        %v4845 = vmul.u32.u64.compose %v4841, %v4836
        %v4846 = vextract.low.u32 %v4845
        %v4847 = vextract.high.u32 %v4845
        %v4848 = vmul.u32 %v4841, %v4832
        %v4849 = vadd.s32 %v4844, %v4846
        %vm4850 = vc.u32 %v4844, %v4846
        %v4851 = vadd.s32 %v4847, 1
        %v4852 = vsel %vm4850, %v4851, %v4847
        %v4853 = vadd.s32 %v4848, %v4852
        %v4854 = vadd.s32 %v4853, 536870912
        %v4855 = vshrl.u32 %v4854, 30
        %v4856 = vshll.u32 %v4855, 30
        %v4857 = vsub.s32 %v4853, %v4856
        %vm4858 = vcmp.lt.s32.totalorder %v4857, 0
        %v4859 = vsub.s32 0, %v4857
        %v4860 = vsel %vm4858, %v4859, %v4857
        %v4861 = vclz %v4860
        %v4862 = vsub.s32 %v4861, 2
        %vm4863 = vcmp.gt.s32.totalorder 0, %v4862
        %v4864 = vsel %vm4863, 0, %v4862
        %v4865 = vsub.s32 32, %v4864
        %v4866 = vshll.u32 %v4857, %v4864
        %v4867 = vshrl.u32 %v4849, %v4865
        %v4868 = vor.u32 %v4866, %v4867
        %v4869 = vsub.s32 4294967266, %v4864
        %v4870 = vadd.s32 %v4869, 127
        %v4871 = vshll.u32 %v4870, 23
        %v4872 = vor.u32 4788187, %v4871
        %v4873 = vand.u32 2147483647, %v4872
        %v4875 = vcvt.s32.f32 %v4868
        %v4876 = vmul.f32 %v4875, %v4873
        %v4877 = vxor.u32 %v4876, 2147483648
        %v4878 = vsel %vm4795, %v4877, %v4876
        %v4879 = vsub.s32 4, %v4855
        %v4880 = vsel %vm4795, %v4879, %v4855
        %v4881 = vsel %vm4794, %v311, %v4878
        %v4882 = vsel %vm4794, 0, %v4880
        %v4883 = vcosq.f32.pop %v4881
        %v4884 = vsinq.f32.pop %v4881
        %vm4885 = vweird.f32 %v311
        %v4886 = vand.u32 %v4882, 3
        %vm4887 = vcmp.lt.s32.totalorder %v4886, 2
        %vm4888 = vcmp.eq.s32.totalorder %v4886, 0
        %v4889 = vxor.u32 %v4884, 2147483648
        %v4890 = vsel %vm4888, %v4883, %v4889
        %vm4891 = vcmp.eq.s32.totalorder %v4886, 2
        %v4892 = vxor.u32 %v4883, 2147483648
        %v4893 = vsel %vm4891, %v4892, %v4884
        %v4894 = vsel %vm4887, %v4890, %v4893
        %v4895 = vsel %vm4885, nan, %v4894
        %v4896 = vand.u32 2147483647, %v312
        %vm4897 = vcmp.le.f32.partialorder %v4896, 0.7853982
        %vm4898 = vcmp.lt.s32.totalorder %v312, 0
        %v4899 = vand.u32 %v312, 2139095040
        %v4900 = vshrl.u32 %v4899, 23
        %v4901 = vsub.s32 %v4900, 127
        %v4902 = vand.u32 2147483647, %v312
        %v4903 = vand.u32 %v4902, 8388607
        %v4904 = vor.u32 %v4903, 8388608
        %v4905 = vsub.s32 0, %v4904
        %v4906 = vadd.s32 %v4901, 1
        %vm4907 = vcmp.gt.s32.totalorder %v4906, 0
        %v4908 = vsel %vm4907, %v4906, 0
        %v4909 = vshrl.u32 %v4908, 5
        %v4910 = vand.u32 %v4908, 31
        %v4911 = vsub.s32 32, %v4910
        %v4912 = vshrl.u32 683565275, %v4911
        %v4913 = vshll.u32 683565275, %v4910
        %v4914 = vshrl.u32 2475754826, %v4911
        %v4915 = vor.u32 %v4913, %v4914
        %v4916 = vshll.u32 2475754826, %v4910
        %v4917 = vshrl.u32 2131351028, %v4911
        %v4918 = vor.u32 %v4916, %v4917
        %v4919 = vshll.u32 2131351028, %v4910
        %v4920 = vshrl.u32 2102212464, %v4911
        %v4921 = vor.u32 %v4919, %v4920
        %v4922 = vshll.u32 2102212464, %v4910
        %v4923 = vshrl.u32 920167782, %v4911
        %v4924 = vor.u32 %v4922, %v4923
        %v4925 = vshll.u32 920167782, %v4910
        %v4926 = vshrl.u32 1326507024, %v4911
        %v4927 = vor.u32 %v4925, %v4926
        %vm4928 = vcmp.lt.s32.totalorder %v4909, 1
        %vm4929 = vcmp.lt.s32.totalorder %v4909, 2
        %vm4930 = vcmp.lt.s32.totalorder %v4909, 3
        %vm4931 = vcmp.lt.s32.totalorder %v4909, 4
        %v4932 = vsel %vm4928, %v4912, %v4915
        %v4933 = vsel %vm4931, %v4921, 2102212464
        %v4934 = vsel %vm4930, %v4918, %v4933
        %v4935 = vsel %vm4929, %v4932, %v4934
        %v4936 = vsel %vm4928, %v4915, %v4918
        %v4937 = vsel %vm4931, %v4924, 920167782
        %v4938 = vsel %vm4930, %v4921, %v4937
        %v4939 = vsel %vm4929, %v4936, %v4938
        %v4940 = vsel %vm4928, %v4918, %v4921
        %v4941 = vsel %vm4931, %v4927, 1326507024
        %v4942 = vsel %vm4930, %v4924, %v4941
        %v4943 = vsel %vm4929, %v4940, %v4942
        %v4944 = vshll.u32 %v4904, 8
        %v4945 = vmul.u32.u64.compose %v4944, %v4943
        %v4946 = vextract.low.u32 %v4945
        %v4947 = vextract.high.u32 %v4945
        %v4948 = vmul.u32.u64.compose %v4944, %v4939
        %v4949 = vextract.low.u32 %v4948
        %v4950 = vextract.high.u32 %v4948
        %v4951 = vmul.u32 %v4944, %v4935
        %v4952 = vadd.s32 %v4947, %v4949
        %vm4953 = vc.u32 %v4947, %v4949
        %v4954 = vadd.s32 %v4950, 1
        %v4955 = vsel %vm4953, %v4954, %v4950
        %v4956 = vadd.s32 %v4951, %v4955
        %v4957 = vadd.s32 %v4956, 536870912
        %v4958 = vshrl.u32 %v4957, 30
        %v4959 = vshll.u32 %v4958, 30
        %v4960 = vsub.s32 %v4956, %v4959
        %vm4961 = vcmp.lt.s32.totalorder %v4960, 0
        %v4962 = vsub.s32 0, %v4960
        %v4963 = vsel %vm4961, %v4962, %v4960
        %v4964 = vclz %v4963
        %v4965 = vsub.s32 %v4964, 2
        %vm4966 = vcmp.gt.s32.totalorder 0, %v4965
        %v4967 = vsel %vm4966, 0, %v4965
        %v4968 = vsub.s32 32, %v4967
        %v4969 = vshll.u32 %v4960, %v4967
        %v4970 = vshrl.u32 %v4952, %v4968
        %v4971 = vor.u32 %v4969, %v4970
        %v4972 = vsub.s32 4294967266, %v4967
        %v4973 = vadd.s32 %v4972, 127
        %v4974 = vshll.u32 %v4973, 23
        %v4975 = vor.u32 4788187, %v4974
        %v4976 = vand.u32 2147483647, %v4975
        %v4978 = vcvt.s32.f32 %v4971
        %v4979 = vmul.f32 %v4978, %v4976
        %v4980 = vxor.u32 %v4979, 2147483648
        %v4981 = vsel %vm4898, %v4980, %v4979
        %v4982 = vsub.s32 4, %v4958
        %v4983 = vsel %vm4898, %v4982, %v4958
        %v4984 = vsel %vm4897, %v312, %v4981
        %v4985 = vsel %vm4897, 0, %v4983
        %v4986 = vcosq.f32.pop %v4984
        %v4987 = vsinq.f32.pop %v4984
        %vm4988 = vweird.f32 %v312
        %v4989 = vand.u32 %v4985, 3
        %vm4990 = vcmp.lt.s32.totalorder %v4989, 2
        %vm4991 = vcmp.eq.s32.totalorder %v4989, 0
        %v4992 = vxor.u32 %v4987, 2147483648
        %v4993 = vsel %vm4991, %v4986, %v4992
        %vm4994 = vcmp.eq.s32.totalorder %v4989, 2
        %v4995 = vxor.u32 %v4986, 2147483648
        %v4996 = vsel %vm4994, %v4995, %v4987
        %v4997 = vsel %vm4990, %v4993, %v4996
        %v4998 = vsel %vm4988, nan, %v4997
        %v4999 = vand.u32 2147483647, %v313
        %vm5000 = vcmp.le.f32.partialorder %v4999, 0.7853982
        %vm5001 = vcmp.lt.s32.totalorder %v313, 0
        %v5002 = vand.u32 %v313, 2139095040
        %v5003 = vshrl.u32 %v5002, 23
        %v5004 = vsub.s32 %v5003, 127
        %v5005 = vand.u32 2147483647, %v313
        %v5006 = vand.u32 %v5005, 8388607
        %v5007 = vor.u32 %v5006, 8388608
        %v5008 = vsub.s32 0, %v5007
        %v5009 = vadd.s32 %v5004, 1
        %vm5010 = vcmp.gt.s32.totalorder %v5009, 0
        %v5011 = vsel %vm5010, %v5009, 0
        %v5012 = vshrl.u32 %v5011, 5
        %v5013 = vand.u32 %v5011, 31
        %v5014 = vsub.s32 32, %v5013
        %v5015 = vshrl.u32 683565275, %v5014
        %v5016 = vshll.u32 683565275, %v5013
        %v5017 = vshrl.u32 2475754826, %v5014
        %v5018 = vor.u32 %v5016, %v5017
        %v5019 = vshll.u32 2475754826, %v5013
        %v5020 = vshrl.u32 2131351028, %v5014
        %v5021 = vor.u32 %v5019, %v5020
        %v5022 = vshll.u32 2131351028, %v5013
        %v5023 = vshrl.u32 2102212464, %v5014
        %v5024 = vor.u32 %v5022, %v5023
        %v5025 = vshll.u32 2102212464, %v5013
        %v5026 = vshrl.u32 920167782, %v5014
        %v5027 = vor.u32 %v5025, %v5026
        %v5028 = vshll.u32 920167782, %v5013
        %v5029 = vshrl.u32 1326507024, %v5014
        %v5030 = vor.u32 %v5028, %v5029
        %vm5031 = vcmp.lt.s32.totalorder %v5012, 1
        %vm5032 = vcmp.lt.s32.totalorder %v5012, 2
        %vm5033 = vcmp.lt.s32.totalorder %v5012, 3
        %vm5034 = vcmp.lt.s32.totalorder %v5012, 4
        %v5035 = vsel %vm5031, %v5015, %v5018
        %v5036 = vsel %vm5034, %v5024, 2102212464
        %v5037 = vsel %vm5033, %v5021, %v5036
        %v5038 = vsel %vm5032, %v5035, %v5037
        %v5039 = vsel %vm5031, %v5018, %v5021
        %v5040 = vsel %vm5034, %v5027, 920167782
        %v5041 = vsel %vm5033, %v5024, %v5040
        %v5042 = vsel %vm5032, %v5039, %v5041
        %v5043 = vsel %vm5031, %v5021, %v5024
        %v5044 = vsel %vm5034, %v5030, 1326507024
        %v5045 = vsel %vm5033, %v5027, %v5044
        %v5046 = vsel %vm5032, %v5043, %v5045
        %v5047 = vshll.u32 %v5007, 8
        %v5048 = vmul.u32.u64.compose %v5047, %v5046
        %v5049 = vextract.low.u32 %v5048
        %v5050 = vextract.high.u32 %v5048
        %v5051 = vmul.u32.u64.compose %v5047, %v5042
        %v5052 = vextract.low.u32 %v5051
        %v5053 = vextract.high.u32 %v5051
        %v5054 = vmul.u32 %v5047, %v5038
        %v5055 = vadd.s32 %v5050, %v5052
        %vm5056 = vc.u32 %v5050, %v5052
        %v5057 = vadd.s32 %v5053, 1
        %v5058 = vsel %vm5056, %v5057, %v5053
        %v5059 = vadd.s32 %v5054, %v5058
        %v5060 = vadd.s32 %v5059, 536870912
        %v5061 = vshrl.u32 %v5060, 30
        %v5062 = vshll.u32 %v5061, 30
        %v5063 = vsub.s32 %v5059, %v5062
        %vm5064 = vcmp.lt.s32.totalorder %v5063, 0
        %v5065 = vsub.s32 0, %v5063
        %v5066 = vsel %vm5064, %v5065, %v5063
        %v5067 = vclz %v5066
        %v5068 = vsub.s32 %v5067, 2
        %vm5069 = vcmp.gt.s32.totalorder 0, %v5068
        %v5070 = vsel %vm5069, 0, %v5068
        %v5071 = vsub.s32 32, %v5070
        %v5072 = vshll.u32 %v5063, %v5070
        %v5073 = vshrl.u32 %v5055, %v5071
        %v5074 = vor.u32 %v5072, %v5073
        %v5075 = vsub.s32 4294967266, %v5070
        %v5076 = vadd.s32 %v5075, 127
        %v5077 = vshll.u32 %v5076, 23
        %v5078 = vor.u32 4788187, %v5077
        %v5079 = vand.u32 2147483647, %v5078
        %v5081 = vcvt.s32.f32 %v5074
        %v5082 = vmul.f32 %v5081, %v5079
        %v5083 = vxor.u32 %v5082, 2147483648
        %v5084 = vsel %vm5001, %v5083, %v5082
        %v5085 = vsub.s32 4, %v5061
        %v5086 = vsel %vm5001, %v5085, %v5061
        %v5087 = vsel %vm5000, %v313, %v5084
        %v5088 = vsel %vm5000, 0, %v5086
        %v5089 = vcosq.f32.pop %v5087
        %v5090 = vsinq.f32.pop %v5087
        %vm5091 = vweird.f32 %v313
        %v5092 = vand.u32 %v5088, 3
        %vm5093 = vcmp.lt.s32.totalorder %v5092, 2
        %vm5094 = vcmp.eq.s32.totalorder %v5092, 0
        %v5095 = vxor.u32 %v5090, 2147483648
        %v5096 = vsel %vm5094, %v5089, %v5095
        %vm5097 = vcmp.eq.s32.totalorder %v5092, 2
        %v5098 = vxor.u32 %v5089, 2147483648
        %v5099 = vsel %vm5097, %v5098, %v5090
        %v5100 = vsel %vm5093, %v5096, %v5099
        %v5101 = vsel %vm5091, nan, %v5100
        %v5102 = vand.u32 2147483647, %v314
        %vm5103 = vcmp.le.f32.partialorder %v5102, 0.7853982
        %vm5104 = vcmp.lt.s32.totalorder %v314, 0
        %v5105 = vand.u32 %v314, 2139095040
        %v5106 = vshrl.u32 %v5105, 23
        %v5107 = vsub.s32 %v5106, 127
        %v5108 = vand.u32 2147483647, %v314
        %v5109 = vand.u32 %v5108, 8388607
        %v5110 = vor.u32 %v5109, 8388608
        %v5111 = vsub.s32 0, %v5110
        %v5112 = vadd.s32 %v5107, 1
        %vm5113 = vcmp.gt.s32.totalorder %v5112, 0
        %v5114 = vsel %vm5113, %v5112, 0
        %v5115 = vshrl.u32 %v5114, 5
        %v5116 = vand.u32 %v5114, 31
        %v5117 = vsub.s32 32, %v5116
        %v5118 = vshrl.u32 683565275, %v5117
        %v5119 = vshll.u32 683565275, %v5116
        %v5120 = vshrl.u32 2475754826, %v5117
        %v5121 = vor.u32 %v5119, %v5120
        %v5122 = vshll.u32 2475754826, %v5116
        %v5123 = vshrl.u32 2131351028, %v5117
        %v5124 = vor.u32 %v5122, %v5123
        %v5125 = vshll.u32 2131351028, %v5116
        %v5126 = vshrl.u32 2102212464, %v5117
        %v5127 = vor.u32 %v5125, %v5126
        %v5128 = vshll.u32 2102212464, %v5116
        %v5129 = vshrl.u32 920167782, %v5117
        %v5130 = vor.u32 %v5128, %v5129
        %v5131 = vshll.u32 920167782, %v5116
        %v5132 = vshrl.u32 1326507024, %v5117
        %v5133 = vor.u32 %v5131, %v5132
        %vm5134 = vcmp.lt.s32.totalorder %v5115, 1
        %vm5135 = vcmp.lt.s32.totalorder %v5115, 2
        %vm5136 = vcmp.lt.s32.totalorder %v5115, 3
        %vm5137 = vcmp.lt.s32.totalorder %v5115, 4
        %v5138 = vsel %vm5134, %v5118, %v5121
        %v5139 = vsel %vm5137, %v5127, 2102212464
        %v5140 = vsel %vm5136, %v5124, %v5139
        %v5141 = vsel %vm5135, %v5138, %v5140
        %v5142 = vsel %vm5134, %v5121, %v5124
        %v5143 = vsel %vm5137, %v5130, 920167782
        %v5144 = vsel %vm5136, %v5127, %v5143
        %v5145 = vsel %vm5135, %v5142, %v5144
        %v5146 = vsel %vm5134, %v5124, %v5127
        %v5147 = vsel %vm5137, %v5133, 1326507024
        %v5148 = vsel %vm5136, %v5130, %v5147
        %v5149 = vsel %vm5135, %v5146, %v5148
        %v5150 = vshll.u32 %v5110, 8
        %v5151 = vmul.u32.u64.compose %v5150, %v5149
        %v5152 = vextract.low.u32 %v5151
        %v5153 = vextract.high.u32 %v5151
        %v5154 = vmul.u32.u64.compose %v5150, %v5145
        %v5155 = vextract.low.u32 %v5154
        %v5156 = vextract.high.u32 %v5154
        %v5157 = vmul.u32 %v5150, %v5141
        %v5158 = vadd.s32 %v5153, %v5155
        %vm5159 = vc.u32 %v5153, %v5155
        %v5160 = vadd.s32 %v5156, 1
        %v5161 = vsel %vm5159, %v5160, %v5156
        %v5162 = vadd.s32 %v5157, %v5161
        %v5163 = vadd.s32 %v5162, 536870912
        %v5164 = vshrl.u32 %v5163, 30
        %v5165 = vshll.u32 %v5164, 30
        %v5166 = vsub.s32 %v5162, %v5165
        %vm5167 = vcmp.lt.s32.totalorder %v5166, 0
        %v5168 = vsub.s32 0, %v5166
        %v5169 = vsel %vm5167, %v5168, %v5166
        %v5170 = vclz %v5169
        %v5171 = vsub.s32 %v5170, 2
        %vm5172 = vcmp.gt.s32.totalorder 0, %v5171
        %v5173 = vsel %vm5172, 0, %v5171
        %v5174 = vsub.s32 32, %v5173
        %v5175 = vshll.u32 %v5166, %v5173
        %v5176 = vshrl.u32 %v5158, %v5174
        %v5177 = vor.u32 %v5175, %v5176
        %v5178 = vsub.s32 4294967266, %v5173
        %v5179 = vadd.s32 %v5178, 127
        %v5180 = vshll.u32 %v5179, 23
        %v5181 = vor.u32 4788187, %v5180
        %v5182 = vand.u32 2147483647, %v5181
        %v5184 = vcvt.s32.f32 %v5177
        %v5185 = vmul.f32 %v5184, %v5182
        %v5186 = vxor.u32 %v5185, 2147483648
        %v5187 = vsel %vm5104, %v5186, %v5185
        %v5188 = vsub.s32 4, %v5164
        %v5189 = vsel %vm5104, %v5188, %v5164
        %v5190 = vsel %vm5103, %v314, %v5187
        %v5191 = vsel %vm5103, 0, %v5189
        %v5192 = vcosq.f32.pop %v5190
        %v5193 = vsinq.f32.pop %v5190
        %vm5194 = vweird.f32 %v314
        %v5195 = vand.u32 %v5191, 3
        %vm5196 = vcmp.lt.s32.totalorder %v5195, 2
        %vm5197 = vcmp.eq.s32.totalorder %v5195, 0
        %v5198 = vxor.u32 %v5193, 2147483648
        %v5199 = vsel %vm5197, %v5192, %v5198
        %vm5200 = vcmp.eq.s32.totalorder %v5195, 2
        %v5201 = vxor.u32 %v5192, 2147483648
        %v5202 = vsel %vm5200, %v5201, %v5193
        %v5203 = vsel %vm5196, %v5199, %v5202
        %v5204 = vsel %vm5194, nan, %v5203
        %v5205 = vand.u32 2147483647, %v315
        %vm5206 = vcmp.le.f32.partialorder %v5205, 0.7853982
        %vm5207 = vcmp.lt.s32.totalorder %v315, 0
        %v5208 = vand.u32 %v315, 2139095040
        %v5209 = vshrl.u32 %v5208, 23
        %v5210 = vsub.s32 %v5209, 127
        %v5211 = vand.u32 2147483647, %v315
        %v5212 = vand.u32 %v5211, 8388607
        %v5213 = vor.u32 %v5212, 8388608
        %v5214 = vsub.s32 0, %v5213
        %v5215 = vadd.s32 %v5210, 1
        %vm5216 = vcmp.gt.s32.totalorder %v5215, 0
        %v5217 = vsel %vm5216, %v5215, 0
        %v5218 = vshrl.u32 %v5217, 5
        %v5219 = vand.u32 %v5217, 31
        %v5220 = vsub.s32 32, %v5219
        %v5221 = vshrl.u32 683565275, %v5220
        %v5222 = vshll.u32 683565275, %v5219
        %v5223 = vshrl.u32 2475754826, %v5220
        %v5224 = vor.u32 %v5222, %v5223
        %v5225 = vshll.u32 2475754826, %v5219
        %v5226 = vshrl.u32 2131351028, %v5220
        %v5227 = vor.u32 %v5225, %v5226
        %v5228 = vshll.u32 2131351028, %v5219
        %v5229 = vshrl.u32 2102212464, %v5220
        %v5230 = vor.u32 %v5228, %v5229
        %v5231 = vshll.u32 2102212464, %v5219
        %v5232 = vshrl.u32 920167782, %v5220
        %v5233 = vor.u32 %v5231, %v5232
        %v5234 = vshll.u32 920167782, %v5219
        %v5235 = vshrl.u32 1326507024, %v5220
        %v5236 = vor.u32 %v5234, %v5235
        %vm5237 = vcmp.lt.s32.totalorder %v5218, 1
        %vm5238 = vcmp.lt.s32.totalorder %v5218, 2
        %vm5239 = vcmp.lt.s32.totalorder %v5218, 3
        %vm5240 = vcmp.lt.s32.totalorder %v5218, 4
        %v5241 = vsel %vm5237, %v5221, %v5224
        %v5242 = vsel %vm5240, %v5230, 2102212464
        %v5243 = vsel %vm5239, %v5227, %v5242
        %v5244 = vsel %vm5238, %v5241, %v5243
        %v5245 = vsel %vm5237, %v5224, %v5227
        %v5246 = vsel %vm5240, %v5233, 920167782
        %v5247 = vsel %vm5239, %v5230, %v5246
        %v5248 = vsel %vm5238, %v5245, %v5247
        %v5249 = vsel %vm5237, %v5227, %v5230
        %v5250 = vsel %vm5240, %v5236, 1326507024
        %v5251 = vsel %vm5239, %v5233, %v5250
        %v5252 = vsel %vm5238, %v5249, %v5251
        %v5253 = vshll.u32 %v5213, 8
        %v5254 = vmul.u32.u64.compose %v5253, %v5252
        %v5255 = vextract.low.u32 %v5254
        %v5256 = vextract.high.u32 %v5254
        %v5257 = vmul.u32.u64.compose %v5253, %v5248
        %v5258 = vextract.low.u32 %v5257
        %v5259 = vextract.high.u32 %v5257
        %v5260 = vmul.u32 %v5253, %v5244
        %v5261 = vadd.s32 %v5256, %v5258
        %vm5262 = vc.u32 %v5256, %v5258
        %v5263 = vadd.s32 %v5259, 1
        %v5264 = vsel %vm5262, %v5263, %v5259
        %v5265 = vadd.s32 %v5260, %v5264
        %v5266 = vadd.s32 %v5265, 536870912
        %v5267 = vshrl.u32 %v5266, 30
        %v5268 = vshll.u32 %v5267, 30
        %v5269 = vsub.s32 %v5265, %v5268
        %vm5270 = vcmp.lt.s32.totalorder %v5269, 0
        %v5271 = vsub.s32 0, %v5269
        %v5272 = vsel %vm5270, %v5271, %v5269
        %v5273 = vclz %v5272
        %v5274 = vsub.s32 %v5273, 2
        %vm5275 = vcmp.gt.s32.totalorder 0, %v5274
        %v5276 = vsel %vm5275, 0, %v5274
        %v5277 = vsub.s32 32, %v5276
        %v5278 = vshll.u32 %v5269, %v5276
        %v5279 = vshrl.u32 %v5261, %v5277
        %v5280 = vor.u32 %v5278, %v5279
        %v5281 = vsub.s32 4294967266, %v5276
        %v5282 = vadd.s32 %v5281, 127
        %v5283 = vshll.u32 %v5282, 23
        %v5284 = vor.u32 4788187, %v5283
        %v5285 = vand.u32 2147483647, %v5284
        %v5287 = vcvt.s32.f32 %v5280
        %v5288 = vmul.f32 %v5287, %v5285
        %v5289 = vxor.u32 %v5288, 2147483648
        %v5290 = vsel %vm5207, %v5289, %v5288
        %v5291 = vsub.s32 4, %v5267
        %v5292 = vsel %vm5207, %v5291, %v5267
        %v5293 = vsel %vm5206, %v315, %v5290
        %v5294 = vsel %vm5206, 0, %v5292
        %v5295 = vcosq.f32.pop %v5293
        %v5296 = vsinq.f32.pop %v5293
        %vm5297 = vweird.f32 %v315
        %v5298 = vand.u32 %v5294, 3
        %vm5299 = vcmp.lt.s32.totalorder %v5298, 2
        %vm5300 = vcmp.eq.s32.totalorder %v5298, 0
        %v5301 = vxor.u32 %v5296, 2147483648
        %v5302 = vsel %vm5300, %v5295, %v5301
        %vm5303 = vcmp.eq.s32.totalorder %v5298, 2
        %v5304 = vxor.u32 %v5295, 2147483648
        %v5305 = vsel %vm5303, %v5304, %v5296
        %v5306 = vsel %vm5299, %v5302, %v5305
        %v5307 = vsel %vm5297, nan, %v5306
        %v5308 = vand.u32 2147483647, %v316
        %vm5309 = vcmp.le.f32.partialorder %v5308, 0.7853982
        %vm5310 = vcmp.lt.s32.totalorder %v316, 0
        %v5311 = vand.u32 %v316, 2139095040
        %v5312 = vshrl.u32 %v5311, 23
        %v5313 = vsub.s32 %v5312, 127
        %v5314 = vand.u32 2147483647, %v316
        %v5315 = vand.u32 %v5314, 8388607
        %v5316 = vor.u32 %v5315, 8388608
        %v5317 = vsub.s32 0, %v5316
        %v5318 = vadd.s32 %v5313, 1
        %vm5319 = vcmp.gt.s32.totalorder %v5318, 0
        %v5320 = vsel %vm5319, %v5318, 0
        %v5321 = vshrl.u32 %v5320, 5
        %v5322 = vand.u32 %v5320, 31
        %v5323 = vsub.s32 32, %v5322
        %v5324 = vshrl.u32 683565275, %v5323
        %v5325 = vshll.u32 683565275, %v5322
        %v5326 = vshrl.u32 2475754826, %v5323
        %v5327 = vor.u32 %v5325, %v5326
        %v5328 = vshll.u32 2475754826, %v5322
        %v5329 = vshrl.u32 2131351028, %v5323
        %v5330 = vor.u32 %v5328, %v5329
        %v5331 = vshll.u32 2131351028, %v5322
        %v5332 = vshrl.u32 2102212464, %v5323
        %v5333 = vor.u32 %v5331, %v5332
        %v5334 = vshll.u32 2102212464, %v5322
        %v5335 = vshrl.u32 920167782, %v5323
        %v5336 = vor.u32 %v5334, %v5335
        %v5337 = vshll.u32 920167782, %v5322
        %v5338 = vshrl.u32 1326507024, %v5323
        %v5339 = vor.u32 %v5337, %v5338
        %vm5340 = vcmp.lt.s32.totalorder %v5321, 1
        %vm5341 = vcmp.lt.s32.totalorder %v5321, 2
        %vm5342 = vcmp.lt.s32.totalorder %v5321, 3
        %vm5343 = vcmp.lt.s32.totalorder %v5321, 4
        %v5344 = vsel %vm5340, %v5324, %v5327
        %v5345 = vsel %vm5343, %v5333, 2102212464
        %v5346 = vsel %vm5342, %v5330, %v5345
        %v5347 = vsel %vm5341, %v5344, %v5346
        %v5348 = vsel %vm5340, %v5327, %v5330
        %v5349 = vsel %vm5343, %v5336, 920167782
        %v5350 = vsel %vm5342, %v5333, %v5349
        %v5351 = vsel %vm5341, %v5348, %v5350
        %v5352 = vsel %vm5340, %v5330, %v5333
        %v5353 = vsel %vm5343, %v5339, 1326507024
        %v5354 = vsel %vm5342, %v5336, %v5353
        %v5355 = vsel %vm5341, %v5352, %v5354
        %v5356 = vshll.u32 %v5316, 8
        %v5357 = vmul.u32.u64.compose %v5356, %v5355
        %v5358 = vextract.low.u32 %v5357
        %v5359 = vextract.high.u32 %v5357
        %v5360 = vmul.u32.u64.compose %v5356, %v5351
        %v5361 = vextract.low.u32 %v5360
        %v5362 = vextract.high.u32 %v5360
        %v5363 = vmul.u32 %v5356, %v5347
        %v5364 = vadd.s32 %v5359, %v5361
        %vm5365 = vc.u32 %v5359, %v5361
        %v5366 = vadd.s32 %v5362, 1
        %v5367 = vsel %vm5365, %v5366, %v5362
        %v5368 = vadd.s32 %v5363, %v5367
        %v5369 = vadd.s32 %v5368, 536870912
        %v5370 = vshrl.u32 %v5369, 30
        %v5371 = vshll.u32 %v5370, 30
        %v5372 = vsub.s32 %v5368, %v5371
        %vm5373 = vcmp.lt.s32.totalorder %v5372, 0
        %v5374 = vsub.s32 0, %v5372
        %v5375 = vsel %vm5373, %v5374, %v5372
        %v5376 = vclz %v5375
        %v5377 = vsub.s32 %v5376, 2
        %vm5378 = vcmp.gt.s32.totalorder 0, %v5377
        %v5379 = vsel %vm5378, 0, %v5377
        %v5380 = vsub.s32 32, %v5379
        %v5381 = vshll.u32 %v5372, %v5379
        %v5382 = vshrl.u32 %v5364, %v5380
        %v5383 = vor.u32 %v5381, %v5382
        %v5384 = vsub.s32 4294967266, %v5379
        %v5385 = vadd.s32 %v5384, 127
        %v5386 = vshll.u32 %v5385, 23
        %v5387 = vor.u32 4788187, %v5386
        %v5388 = vand.u32 2147483647, %v5387
        %v5390 = vcvt.s32.f32 %v5383
        %v5391 = vmul.f32 %v5390, %v5388
        %v5392 = vxor.u32 %v5391, 2147483648
        %v5393 = vsel %vm5310, %v5392, %v5391
        %v5394 = vsub.s32 4, %v5370
        %v5395 = vsel %vm5310, %v5394, %v5370
        %v5396 = vsel %vm5309, %v316, %v5393
        %v5397 = vsel %vm5309, 0, %v5395
        %v5398 = vcosq.f32.pop %v5396
        %v5399 = vsinq.f32.pop %v5396
        %vm5400 = vweird.f32 %v316
        %v5401 = vand.u32 %v5397, 3
        %vm5402 = vcmp.lt.s32.totalorder %v5401, 2
        %vm5403 = vcmp.eq.s32.totalorder %v5401, 0
        %v5404 = vxor.u32 %v5399, 2147483648
        %v5405 = vsel %vm5403, %v5398, %v5404
        %vm5406 = vcmp.eq.s32.totalorder %v5401, 2
        %v5407 = vxor.u32 %v5398, 2147483648
        %v5408 = vsel %vm5406, %v5407, %v5399
        %v5409 = vsel %vm5402, %v5405, %v5408
        %v5410 = vsel %vm5400, nan, %v5409
        %v5411 = vand.u32 2147483647, %v317
        %vm5412 = vcmp.le.f32.partialorder %v5411, 0.7853982
        %vm5413 = vcmp.lt.s32.totalorder %v317, 0
        %v5414 = vand.u32 %v317, 2139095040
        %v5415 = vshrl.u32 %v5414, 23
        %v5416 = vsub.s32 %v5415, 127
        %v5417 = vand.u32 2147483647, %v317
        %v5418 = vand.u32 %v5417, 8388607
        %v5419 = vor.u32 %v5418, 8388608
        %v5420 = vsub.s32 0, %v5419
        %v5421 = vadd.s32 %v5416, 1
        %vm5422 = vcmp.gt.s32.totalorder %v5421, 0
        %v5423 = vsel %vm5422, %v5421, 0
        %v5424 = vshrl.u32 %v5423, 5
        %v5425 = vand.u32 %v5423, 31
        %v5426 = vsub.s32 32, %v5425
        %v5427 = vshrl.u32 683565275, %v5426
        %v5428 = vshll.u32 683565275, %v5425
        %v5429 = vshrl.u32 2475754826, %v5426
        %v5430 = vor.u32 %v5428, %v5429
        %v5431 = vshll.u32 2475754826, %v5425
        %v5432 = vshrl.u32 2131351028, %v5426
        %v5433 = vor.u32 %v5431, %v5432
        %v5434 = vshll.u32 2131351028, %v5425
        %v5435 = vshrl.u32 2102212464, %v5426
        %v5436 = vor.u32 %v5434, %v5435
        %v5437 = vshll.u32 2102212464, %v5425
        %v5438 = vshrl.u32 920167782, %v5426
        %v5439 = vor.u32 %v5437, %v5438
        %v5440 = vshll.u32 920167782, %v5425
        %v5441 = vshrl.u32 1326507024, %v5426
        %v5442 = vor.u32 %v5440, %v5441
        %vm5443 = vcmp.lt.s32.totalorder %v5424, 1
        %vm5444 = vcmp.lt.s32.totalorder %v5424, 2
        %vm5445 = vcmp.lt.s32.totalorder %v5424, 3
        %vm5446 = vcmp.lt.s32.totalorder %v5424, 4
        %v5447 = vsel %vm5443, %v5427, %v5430
        %v5448 = vsel %vm5446, %v5436, 2102212464
        %v5449 = vsel %vm5445, %v5433, %v5448
        %v5450 = vsel %vm5444, %v5447, %v5449
        %v5451 = vsel %vm5443, %v5430, %v5433
        %v5452 = vsel %vm5446, %v5439, 920167782
        %v5453 = vsel %vm5445, %v5436, %v5452
        %v5454 = vsel %vm5444, %v5451, %v5453
        %v5455 = vsel %vm5443, %v5433, %v5436
        %v5456 = vsel %vm5446, %v5442, 1326507024
        %v5457 = vsel %vm5445, %v5439, %v5456
        %v5458 = vsel %vm5444, %v5455, %v5457
        %v5459 = vshll.u32 %v5419, 8
        %v5460 = vmul.u32.u64.compose %v5459, %v5458
        %v5461 = vextract.low.u32 %v5460
        %v5462 = vextract.high.u32 %v5460
        %v5463 = vmul.u32.u64.compose %v5459, %v5454
        %v5464 = vextract.low.u32 %v5463
        %v5465 = vextract.high.u32 %v5463
        %v5466 = vmul.u32 %v5459, %v5450
        %v5467 = vadd.s32 %v5462, %v5464
        %vm5468 = vc.u32 %v5462, %v5464
        %v5469 = vadd.s32 %v5465, 1
        %v5470 = vsel %vm5468, %v5469, %v5465
        %v5471 = vadd.s32 %v5466, %v5470
        %v5472 = vadd.s32 %v5471, 536870912
        %v5473 = vshrl.u32 %v5472, 30
        %v5474 = vshll.u32 %v5473, 30
        %v5475 = vsub.s32 %v5471, %v5474
        %vm5476 = vcmp.lt.s32.totalorder %v5475, 0
        %v5477 = vsub.s32 0, %v5475
        %v5478 = vsel %vm5476, %v5477, %v5475
        %v5479 = vclz %v5478
        %v5480 = vsub.s32 %v5479, 2
        %vm5481 = vcmp.gt.s32.totalorder 0, %v5480
        %v5482 = vsel %vm5481, 0, %v5480
        %v5483 = vsub.s32 32, %v5482
        %v5484 = vshll.u32 %v5475, %v5482
        %v5485 = vshrl.u32 %v5467, %v5483
        %v5486 = vor.u32 %v5484, %v5485
        %v5487 = vsub.s32 4294967266, %v5482
        %v5488 = vadd.s32 %v5487, 127
        %v5489 = vshll.u32 %v5488, 23
        %v5490 = vor.u32 4788187, %v5489
        %v5491 = vand.u32 2147483647, %v5490
        %v5493 = vcvt.s32.f32 %v5486
        %v5494 = vmul.f32 %v5493, %v5491
        %v5495 = vxor.u32 %v5494, 2147483648
        %v5496 = vsel %vm5413, %v5495, %v5494
        %v5497 = vsub.s32 4, %v5473
        %v5498 = vsel %vm5413, %v5497, %v5473
        %v5499 = vsel %vm5412, %v317, %v5496
        %v5500 = vsel %vm5412, 0, %v5498
        %v5501 = vcosq.f32.pop %v5499
        %v5502 = vsinq.f32.pop %v5499
        %vm5503 = vweird.f32 %v317
        %v5504 = vand.u32 %v5500, 3
        %vm5505 = vcmp.lt.s32.totalorder %v5504, 2
        %vm5506 = vcmp.eq.s32.totalorder %v5504, 0
        %v5507 = vxor.u32 %v5502, 2147483648
        %v5508 = vsel %vm5506, %v5501, %v5507
        %vm5509 = vcmp.eq.s32.totalorder %v5504, 2
        %v5510 = vxor.u32 %v5501, 2147483648
        %v5511 = vsel %vm5509, %v5510, %v5502
        %v5512 = vsel %vm5505, %v5508, %v5511
        %v5513 = vsel %vm5503, nan, %v5512
        %v5514 = vand.u32 2147483647, %v318
        %vm5515 = vcmp.le.f32.partialorder %v5514, 0.7853982
        %vm5516 = vcmp.lt.s32.totalorder %v318, 0
        %v5517 = vand.u32 %v318, 2139095040
        %v5518 = vshrl.u32 %v5517, 23
        %v5519 = vsub.s32 %v5518, 127
        %v5520 = vand.u32 2147483647, %v318
        %v5521 = vand.u32 %v5520, 8388607
        %v5522 = vor.u32 %v5521, 8388608
        %v5523 = vsub.s32 0, %v5522
        %v5524 = vadd.s32 %v5519, 1
        %vm5525 = vcmp.gt.s32.totalorder %v5524, 0
        %v5526 = vsel %vm5525, %v5524, 0
        %v5527 = vshrl.u32 %v5526, 5
        %v5528 = vand.u32 %v5526, 31
        %v5529 = vsub.s32 32, %v5528
        %v5530 = vshrl.u32 683565275, %v5529
        %v5531 = vshll.u32 683565275, %v5528
        %v5532 = vshrl.u32 2475754826, %v5529
        %v5533 = vor.u32 %v5531, %v5532
        %v5534 = vshll.u32 2475754826, %v5528
        %v5535 = vshrl.u32 2131351028, %v5529
        %v5536 = vor.u32 %v5534, %v5535
        %v5537 = vshll.u32 2131351028, %v5528
        %v5538 = vshrl.u32 2102212464, %v5529
        %v5539 = vor.u32 %v5537, %v5538
        %v5540 = vshll.u32 2102212464, %v5528
        %v5541 = vshrl.u32 920167782, %v5529
        %v5542 = vor.u32 %v5540, %v5541
        %v5543 = vshll.u32 920167782, %v5528
        %v5544 = vshrl.u32 1326507024, %v5529
        %v5545 = vor.u32 %v5543, %v5544
        %vm5546 = vcmp.lt.s32.totalorder %v5527, 1
        %vm5547 = vcmp.lt.s32.totalorder %v5527, 2
        %vm5548 = vcmp.lt.s32.totalorder %v5527, 3
        %vm5549 = vcmp.lt.s32.totalorder %v5527, 4
        %v5550 = vsel %vm5546, %v5530, %v5533
        %v5551 = vsel %vm5549, %v5539, 2102212464
        %v5552 = vsel %vm5548, %v5536, %v5551
        %v5553 = vsel %vm5547, %v5550, %v5552
        %v5554 = vsel %vm5546, %v5533, %v5536
        %v5555 = vsel %vm5549, %v5542, 920167782
        %v5556 = vsel %vm5548, %v5539, %v5555
        %v5557 = vsel %vm5547, %v5554, %v5556
        %v5558 = vsel %vm5546, %v5536, %v5539
        %v5559 = vsel %vm5549, %v5545, 1326507024
        %v5560 = vsel %vm5548, %v5542, %v5559
        %v5561 = vsel %vm5547, %v5558, %v5560
        %v5562 = vshll.u32 %v5522, 8
        %v5563 = vmul.u32.u64.compose %v5562, %v5561
        %v5564 = vextract.low.u32 %v5563
        %v5565 = vextract.high.u32 %v5563
        %v5566 = vmul.u32.u64.compose %v5562, %v5557
        %v5567 = vextract.low.u32 %v5566
        %v5568 = vextract.high.u32 %v5566
        %v5569 = vmul.u32 %v5562, %v5553
        %v5570 = vadd.s32 %v5565, %v5567
        %vm5571 = vc.u32 %v5565, %v5567
        %v5572 = vadd.s32 %v5568, 1
        %v5573 = vsel %vm5571, %v5572, %v5568
        %v5574 = vadd.s32 %v5569, %v5573
        %v5575 = vadd.s32 %v5574, 536870912
        %v5576 = vshrl.u32 %v5575, 30
        %v5577 = vshll.u32 %v5576, 30
        %v5578 = vsub.s32 %v5574, %v5577
        %vm5579 = vcmp.lt.s32.totalorder %v5578, 0
        %v5580 = vsub.s32 0, %v5578
        %v5581 = vsel %vm5579, %v5580, %v5578
        %v5582 = vclz %v5581
        %v5583 = vsub.s32 %v5582, 2
        %vm5584 = vcmp.gt.s32.totalorder 0, %v5583
        %v5585 = vsel %vm5584, 0, %v5583
        %v5586 = vsub.s32 32, %v5585
        %v5587 = vshll.u32 %v5578, %v5585
        %v5588 = vshrl.u32 %v5570, %v5586
        %v5589 = vor.u32 %v5587, %v5588
        %v5590 = vsub.s32 4294967266, %v5585
        %v5591 = vadd.s32 %v5590, 127
        %v5592 = vshll.u32 %v5591, 23
        %v5593 = vor.u32 4788187, %v5592
        %v5594 = vand.u32 2147483647, %v5593
        %v5596 = vcvt.s32.f32 %v5589
        %v5597 = vmul.f32 %v5596, %v5594
        %v5598 = vxor.u32 %v5597, 2147483648
        %v5599 = vsel %vm5516, %v5598, %v5597
        %v5600 = vsub.s32 4, %v5576
        %v5601 = vsel %vm5516, %v5600, %v5576
        %v5602 = vsel %vm5515, %v318, %v5599
        %v5603 = vsel %vm5515, 0, %v5601
        %v5604 = vcosq.f32.pop %v5602
        %v5605 = vsinq.f32.pop %v5602
        %vm5606 = vweird.f32 %v318
        %v5607 = vand.u32 %v5603, 3
        %vm5608 = vcmp.lt.s32.totalorder %v5607, 2
        %vm5609 = vcmp.eq.s32.totalorder %v5607, 0
        %v5610 = vxor.u32 %v5605, 2147483648
        %v5611 = vsel %vm5609, %v5604, %v5610
        %vm5612 = vcmp.eq.s32.totalorder %v5607, 2
        %v5613 = vxor.u32 %v5604, 2147483648
        %v5614 = vsel %vm5612, %v5613, %v5605
        %v5615 = vsel %vm5608, %v5611, %v5614
        %v5616 = vsel %vm5606, nan, %v5615
        %v5617 = vand.u32 2147483647, %v319
        %vm5618 = vcmp.le.f32.partialorder %v5617, 0.7853982
        %vm5619 = vcmp.lt.s32.totalorder %v319, 0
        %v5620 = vand.u32 %v319, 2139095040
        %v5621 = vshrl.u32 %v5620, 23
        %v5622 = vsub.s32 %v5621, 127
        %v5623 = vand.u32 2147483647, %v319
        %v5624 = vand.u32 %v5623, 8388607
        %v5625 = vor.u32 %v5624, 8388608
        %v5626 = vsub.s32 0, %v5625
        %v5627 = vadd.s32 %v5622, 1
        %vm5628 = vcmp.gt.s32.totalorder %v5627, 0
        %v5629 = vsel %vm5628, %v5627, 0
        %v5630 = vshrl.u32 %v5629, 5
        %v5631 = vand.u32 %v5629, 31
        %v5632 = vsub.s32 32, %v5631
        %v5633 = vshrl.u32 683565275, %v5632
        %v5634 = vshll.u32 683565275, %v5631
        %v5635 = vshrl.u32 2475754826, %v5632
        %v5636 = vor.u32 %v5634, %v5635
        %v5637 = vshll.u32 2475754826, %v5631
        %v5638 = vshrl.u32 2131351028, %v5632
        %v5639 = vor.u32 %v5637, %v5638
        %v5640 = vshll.u32 2131351028, %v5631
        %v5641 = vshrl.u32 2102212464, %v5632
        %v5642 = vor.u32 %v5640, %v5641
        %v5643 = vshll.u32 2102212464, %v5631
        %v5644 = vshrl.u32 920167782, %v5632
        %v5645 = vor.u32 %v5643, %v5644
        %v5646 = vshll.u32 920167782, %v5631
        %v5647 = vshrl.u32 1326507024, %v5632
        %v5648 = vor.u32 %v5646, %v5647
        %vm5649 = vcmp.lt.s32.totalorder %v5630, 1
        %vm5650 = vcmp.lt.s32.totalorder %v5630, 2
        %vm5651 = vcmp.lt.s32.totalorder %v5630, 3
        %vm5652 = vcmp.lt.s32.totalorder %v5630, 4
        %v5653 = vsel %vm5649, %v5633, %v5636
        %v5654 = vsel %vm5652, %v5642, 2102212464
        %v5655 = vsel %vm5651, %v5639, %v5654
        %v5656 = vsel %vm5650, %v5653, %v5655
        %v5657 = vsel %vm5649, %v5636, %v5639
        %v5658 = vsel %vm5652, %v5645, 920167782
        %v5659 = vsel %vm5651, %v5642, %v5658
        %v5660 = vsel %vm5650, %v5657, %v5659
        %v5661 = vsel %vm5649, %v5639, %v5642
        %v5662 = vsel %vm5652, %v5648, 1326507024
        %v5663 = vsel %vm5651, %v5645, %v5662
        %v5664 = vsel %vm5650, %v5661, %v5663
        %v5665 = vshll.u32 %v5625, 8
        %v5666 = vmul.u32.u64.compose %v5665, %v5664
        %v5667 = vextract.low.u32 %v5666
        %v5668 = vextract.high.u32 %v5666
        %v5669 = vmul.u32.u64.compose %v5665, %v5660
        %v5670 = vextract.low.u32 %v5669
        %v5671 = vextract.high.u32 %v5669
        %v5672 = vmul.u32 %v5665, %v5656
        %v5673 = vadd.s32 %v5668, %v5670
        %vm5674 = vc.u32 %v5668, %v5670
        %v5675 = vadd.s32 %v5671, 1
        %v5676 = vsel %vm5674, %v5675, %v5671
        %v5677 = vadd.s32 %v5672, %v5676
        %v5678 = vadd.s32 %v5677, 536870912
        %v5679 = vshrl.u32 %v5678, 30
        %v5680 = vshll.u32 %v5679, 30
        %v5681 = vsub.s32 %v5677, %v5680
        %vm5682 = vcmp.lt.s32.totalorder %v5681, 0
        %v5683 = vsub.s32 0, %v5681
        %v5684 = vsel %vm5682, %v5683, %v5681
        %v5685 = vclz %v5684
        %v5686 = vsub.s32 %v5685, 2
        %vm5687 = vcmp.gt.s32.totalorder 0, %v5686
        %v5688 = vsel %vm5687, 0, %v5686
        %v5689 = vsub.s32 32, %v5688
        %v5690 = vshll.u32 %v5681, %v5688
        %v5691 = vshrl.u32 %v5673, %v5689
        %v5692 = vor.u32 %v5690, %v5691
        %v5693 = vsub.s32 4294967266, %v5688
        %v5694 = vadd.s32 %v5693, 127
        %v5695 = vshll.u32 %v5694, 23
        %v5696 = vor.u32 4788187, %v5695
        %v5697 = vand.u32 2147483647, %v5696
        %v5699 = vcvt.s32.f32 %v5692
        %v5700 = vmul.f32 %v5699, %v5697
        %v5701 = vxor.u32 %v5700, 2147483648
        %v5702 = vsel %vm5619, %v5701, %v5700
        %v5703 = vsub.s32 4, %v5679
        %v5704 = vsel %vm5619, %v5703, %v5679
        %v5705 = vsel %vm5618, %v319, %v5702
        %v5706 = vsel %vm5618, 0, %v5704
        %v5707 = vcosq.f32.pop %v5705
        %v5708 = vsinq.f32.pop %v5705
        %vm5709 = vweird.f32 %v319
        %v5710 = vand.u32 %v5706, 3
        %vm5711 = vcmp.lt.s32.totalorder %v5710, 2
        %vm5712 = vcmp.eq.s32.totalorder %v5710, 0
        %v5713 = vxor.u32 %v5708, 2147483648
        %v5714 = vsel %vm5712, %v5707, %v5713
        %vm5715 = vcmp.eq.s32.totalorder %v5710, 2
        %v5716 = vxor.u32 %v5707, 2147483648
        %v5717 = vsel %vm5715, %v5716, %v5708
        %v5718 = vsel %vm5711, %v5714, %v5717
        %v5719 = vsel %vm5709, nan, %v5718
        %v5720 = vand.u32 2147483647, %v320
        %vm5721 = vcmp.le.f32.partialorder %v5720, 0.7853982
        %vm5722 = vcmp.lt.s32.totalorder %v320, 0
        %v5723 = vand.u32 %v320, 2139095040
        %v5724 = vshrl.u32 %v5723, 23
        %v5725 = vsub.s32 %v5724, 127
        %v5726 = vand.u32 2147483647, %v320
        %v5727 = vand.u32 %v5726, 8388607
        %v5728 = vor.u32 %v5727, 8388608
        %v5729 = vsub.s32 0, %v5728
        %v5730 = vadd.s32 %v5725, 1
        %vm5731 = vcmp.gt.s32.totalorder %v5730, 0
        %v5732 = vsel %vm5731, %v5730, 0
        %v5733 = vshrl.u32 %v5732, 5
        %v5734 = vand.u32 %v5732, 31
        %v5735 = vsub.s32 32, %v5734
        %v5736 = vshrl.u32 683565275, %v5735
        %v5737 = vshll.u32 683565275, %v5734
        %v5738 = vshrl.u32 2475754826, %v5735
        %v5739 = vor.u32 %v5737, %v5738
        %v5740 = vshll.u32 2475754826, %v5734
        %v5741 = vshrl.u32 2131351028, %v5735
        %v5742 = vor.u32 %v5740, %v5741
        %v5743 = vshll.u32 2131351028, %v5734
        %v5744 = vshrl.u32 2102212464, %v5735
        %v5745 = vor.u32 %v5743, %v5744
        %v5746 = vshll.u32 2102212464, %v5734
        %v5747 = vshrl.u32 920167782, %v5735
        %v5748 = vor.u32 %v5746, %v5747
        %v5749 = vshll.u32 920167782, %v5734
        %v5750 = vshrl.u32 1326507024, %v5735
        %v5751 = vor.u32 %v5749, %v5750
        %vm5752 = vcmp.lt.s32.totalorder %v5733, 1
        %vm5753 = vcmp.lt.s32.totalorder %v5733, 2
        %vm5754 = vcmp.lt.s32.totalorder %v5733, 3
        %vm5755 = vcmp.lt.s32.totalorder %v5733, 4
        %v5756 = vsel %vm5752, %v5736, %v5739
        %v5757 = vsel %vm5755, %v5745, 2102212464
        %v5758 = vsel %vm5754, %v5742, %v5757
        %v5759 = vsel %vm5753, %v5756, %v5758
        %v5760 = vsel %vm5752, %v5739, %v5742
        %v5761 = vsel %vm5755, %v5748, 920167782
        %v5762 = vsel %vm5754, %v5745, %v5761
        %v5763 = vsel %vm5753, %v5760, %v5762
        %v5764 = vsel %vm5752, %v5742, %v5745
        %v5765 = vsel %vm5755, %v5751, 1326507024
        %v5766 = vsel %vm5754, %v5748, %v5765
        %v5767 = vsel %vm5753, %v5764, %v5766
        %v5768 = vshll.u32 %v5728, 8
        %v5769 = vmul.u32.u64.compose %v5768, %v5767
        %v5770 = vextract.low.u32 %v5769
        %v5771 = vextract.high.u32 %v5769
        %v5772 = vmul.u32.u64.compose %v5768, %v5763
        %v5773 = vextract.low.u32 %v5772
        %v5774 = vextract.high.u32 %v5772
        %v5775 = vmul.u32 %v5768, %v5759
        %v5776 = vadd.s32 %v5771, %v5773
        %vm5777 = vc.u32 %v5771, %v5773
        %v5778 = vadd.s32 %v5774, 1
        %v5779 = vsel %vm5777, %v5778, %v5774
        %v5780 = vadd.s32 %v5775, %v5779
        %v5781 = vadd.s32 %v5780, 536870912
        %v5782 = vshrl.u32 %v5781, 30
        %v5783 = vshll.u32 %v5782, 30
        %v5784 = vsub.s32 %v5780, %v5783
        %vm5785 = vcmp.lt.s32.totalorder %v5784, 0
        %v5786 = vsub.s32 0, %v5784
        %v5787 = vsel %vm5785, %v5786, %v5784
        %v5788 = vclz %v5787
        %v5789 = vsub.s32 %v5788, 2
        %vm5790 = vcmp.gt.s32.totalorder 0, %v5789
        %v5791 = vsel %vm5790, 0, %v5789
        %v5792 = vsub.s32 32, %v5791
        %v5793 = vshll.u32 %v5784, %v5791
        %v5794 = vshrl.u32 %v5776, %v5792
        %v5795 = vor.u32 %v5793, %v5794
        %v5796 = vsub.s32 4294967266, %v5791
        %v5797 = vadd.s32 %v5796, 127
        %v5798 = vshll.u32 %v5797, 23
        %v5799 = vor.u32 4788187, %v5798
        %v5800 = vand.u32 2147483647, %v5799
        %v5802 = vcvt.s32.f32 %v5795
        %v5803 = vmul.f32 %v5802, %v5800
        %v5804 = vxor.u32 %v5803, 2147483648
        %v5805 = vsel %vm5722, %v5804, %v5803
        %v5806 = vsub.s32 4, %v5782
        %v5807 = vsel %vm5722, %v5806, %v5782
        %v5808 = vsel %vm5721, %v320, %v5805
        %v5809 = vsel %vm5721, 0, %v5807
        %v5810 = vcosq.f32.pop %v5808
        %v5811 = vsinq.f32.pop %v5808
        %vm5812 = vweird.f32 %v320
        %v5813 = vand.u32 %v5809, 3
        %vm5814 = vcmp.lt.s32.totalorder %v5813, 2
        %vm5815 = vcmp.eq.s32.totalorder %v5813, 0
        %v5816 = vxor.u32 %v5811, 2147483648
        %v5817 = vsel %vm5815, %v5810, %v5816
        %vm5818 = vcmp.eq.s32.totalorder %v5813, 2
        %v5819 = vxor.u32 %v5810, 2147483648
        %v5820 = vsel %vm5818, %v5819, %v5811
        %v5821 = vsel %vm5814, %v5817, %v5820
        %v5822 = vsel %vm5812, nan, %v5821
        %v5823 = vand.u32 2147483647, %v321
        %vm5824 = vcmp.le.f32.partialorder %v5823, 0.7853982
        %vm5825 = vcmp.lt.s32.totalorder %v321, 0
        %v5826 = vand.u32 %v321, 2139095040
        %v5827 = vshrl.u32 %v5826, 23
        %v5828 = vsub.s32 %v5827, 127
        %v5829 = vand.u32 2147483647, %v321
        %v5830 = vand.u32 %v5829, 8388607
        %v5831 = vor.u32 %v5830, 8388608
        %v5832 = vsub.s32 0, %v5831
        %v5833 = vadd.s32 %v5828, 1
        %vm5834 = vcmp.gt.s32.totalorder %v5833, 0
        %v5835 = vsel %vm5834, %v5833, 0
        %v5836 = vshrl.u32 %v5835, 5
        %v5837 = vand.u32 %v5835, 31
        %v5838 = vsub.s32 32, %v5837
        %v5839 = vshrl.u32 683565275, %v5838
        %v5840 = vshll.u32 683565275, %v5837
        %v5841 = vshrl.u32 2475754826, %v5838
        %v5842 = vor.u32 %v5840, %v5841
        %v5843 = vshll.u32 2475754826, %v5837
        %v5844 = vshrl.u32 2131351028, %v5838
        %v5845 = vor.u32 %v5843, %v5844
        %v5846 = vshll.u32 2131351028, %v5837
        %v5847 = vshrl.u32 2102212464, %v5838
        %v5848 = vor.u32 %v5846, %v5847
        %v5849 = vshll.u32 2102212464, %v5837
        %v5850 = vshrl.u32 920167782, %v5838
        %v5851 = vor.u32 %v5849, %v5850
        %v5852 = vshll.u32 920167782, %v5837
        %v5853 = vshrl.u32 1326507024, %v5838
        %v5854 = vor.u32 %v5852, %v5853
        %vm5855 = vcmp.lt.s32.totalorder %v5836, 1
        %vm5856 = vcmp.lt.s32.totalorder %v5836, 2
        %vm5857 = vcmp.lt.s32.totalorder %v5836, 3
        %vm5858 = vcmp.lt.s32.totalorder %v5836, 4
        %v5859 = vsel %vm5855, %v5839, %v5842
        %v5860 = vsel %vm5858, %v5848, 2102212464
        %v5861 = vsel %vm5857, %v5845, %v5860
        %v5862 = vsel %vm5856, %v5859, %v5861
        %v5863 = vsel %vm5855, %v5842, %v5845
        %v5864 = vsel %vm5858, %v5851, 920167782
        %v5865 = vsel %vm5857, %v5848, %v5864
        %v5866 = vsel %vm5856, %v5863, %v5865
        %v5867 = vsel %vm5855, %v5845, %v5848
        %v5868 = vsel %vm5858, %v5854, 1326507024
        %v5869 = vsel %vm5857, %v5851, %v5868
        %v5870 = vsel %vm5856, %v5867, %v5869
        %v5871 = vshll.u32 %v5831, 8
        %v5872 = vmul.u32.u64.compose %v5871, %v5870
        %v5873 = vextract.low.u32 %v5872
        %v5874 = vextract.high.u32 %v5872
        %v5875 = vmul.u32.u64.compose %v5871, %v5866
        %v5876 = vextract.low.u32 %v5875
        %v5877 = vextract.high.u32 %v5875
        %v5878 = vmul.u32 %v5871, %v5862
        %v5879 = vadd.s32 %v5874, %v5876
        %vm5880 = vc.u32 %v5874, %v5876
        %v5881 = vadd.s32 %v5877, 1
        %v5882 = vsel %vm5880, %v5881, %v5877
        %v5883 = vadd.s32 %v5878, %v5882
        %v5884 = vadd.s32 %v5883, 536870912
        %v5885 = vshrl.u32 %v5884, 30
        %v5886 = vshll.u32 %v5885, 30
        %v5887 = vsub.s32 %v5883, %v5886
        %vm5888 = vcmp.lt.s32.totalorder %v5887, 0
        %v5889 = vsub.s32 0, %v5887
        %v5890 = vsel %vm5888, %v5889, %v5887
        %v5891 = vclz %v5890
        %v5892 = vsub.s32 %v5891, 2
        %vm5893 = vcmp.gt.s32.totalorder 0, %v5892
        %v5894 = vsel %vm5893, 0, %v5892
        %v5895 = vsub.s32 32, %v5894
        %v5896 = vshll.u32 %v5887, %v5894
        %v5897 = vshrl.u32 %v5879, %v5895
        %v5898 = vor.u32 %v5896, %v5897
        %v5899 = vsub.s32 4294967266, %v5894
        %v5900 = vadd.s32 %v5899, 127
        %v5901 = vshll.u32 %v5900, 23
        %v5902 = vor.u32 4788187, %v5901
        %v5903 = vand.u32 2147483647, %v5902
        %v5905 = vcvt.s32.f32 %v5898
        %v5906 = vmul.f32 %v5905, %v5903
        %v5907 = vxor.u32 %v5906, 2147483648
        %v5908 = vsel %vm5825, %v5907, %v5906
        %v5909 = vsub.s32 4, %v5885
        %v5910 = vsel %vm5825, %v5909, %v5885
        %v5911 = vsel %vm5824, %v321, %v5908
        %v5912 = vsel %vm5824, 0, %v5910
        %v5913 = vcosq.f32.pop %v5911
        %v5914 = vsinq.f32.pop %v5911
        %vm5915 = vweird.f32 %v321
        %v5916 = vand.u32 %v5912, 3
        %vm5917 = vcmp.lt.s32.totalorder %v5916, 2
        %vm5918 = vcmp.eq.s32.totalorder %v5916, 0
        %v5919 = vxor.u32 %v5914, 2147483648
        %v5920 = vsel %vm5918, %v5913, %v5919
        %vm5921 = vcmp.eq.s32.totalorder %v5916, 2
        %v5922 = vxor.u32 %v5913, 2147483648
        %v5923 = vsel %vm5921, %v5922, %v5914
        %v5924 = vsel %vm5917, %v5920, %v5923
        %v5925 = vsel %vm5915, nan, %v5924
        %v5926 = vand.u32 2147483647, %v322
        %vm5927 = vcmp.le.f32.partialorder %v5926, 0.7853982
        %vm5928 = vcmp.lt.s32.totalorder %v322, 0
        %v5929 = vand.u32 %v322, 2139095040
        %v5930 = vshrl.u32 %v5929, 23
        %v5931 = vsub.s32 %v5930, 127
        %v5932 = vand.u32 2147483647, %v322
        %v5933 = vand.u32 %v5932, 8388607
        %v5934 = vor.u32 %v5933, 8388608
        %v5935 = vsub.s32 0, %v5934
        %v5936 = vadd.s32 %v5931, 1
        %vm5937 = vcmp.gt.s32.totalorder %v5936, 0
        %v5938 = vsel %vm5937, %v5936, 0
        %v5939 = vshrl.u32 %v5938, 5
        %v5940 = vand.u32 %v5938, 31
        %v5941 = vsub.s32 32, %v5940
        %v5942 = vshrl.u32 683565275, %v5941
        %v5943 = vshll.u32 683565275, %v5940
        %v5944 = vshrl.u32 2475754826, %v5941
        %v5945 = vor.u32 %v5943, %v5944
        %v5946 = vshll.u32 2475754826, %v5940
        %v5947 = vshrl.u32 2131351028, %v5941
        %v5948 = vor.u32 %v5946, %v5947
        %v5949 = vshll.u32 2131351028, %v5940
        %v5950 = vshrl.u32 2102212464, %v5941
        %v5951 = vor.u32 %v5949, %v5950
        %v5952 = vshll.u32 2102212464, %v5940
        %v5953 = vshrl.u32 920167782, %v5941
        %v5954 = vor.u32 %v5952, %v5953
        %v5955 = vshll.u32 920167782, %v5940
        %v5956 = vshrl.u32 1326507024, %v5941
        %v5957 = vor.u32 %v5955, %v5956
        %vm5958 = vcmp.lt.s32.totalorder %v5939, 1
        %vm5959 = vcmp.lt.s32.totalorder %v5939, 2
        %vm5960 = vcmp.lt.s32.totalorder %v5939, 3
        %vm5961 = vcmp.lt.s32.totalorder %v5939, 4
        %v5962 = vsel %vm5958, %v5942, %v5945
        %v5963 = vsel %vm5961, %v5951, 2102212464
        %v5964 = vsel %vm5960, %v5948, %v5963
        %v5965 = vsel %vm5959, %v5962, %v5964
        %v5966 = vsel %vm5958, %v5945, %v5948
        %v5967 = vsel %vm5961, %v5954, 920167782
        %v5968 = vsel %vm5960, %v5951, %v5967
        %v5969 = vsel %vm5959, %v5966, %v5968
        %v5970 = vsel %vm5958, %v5948, %v5951
        %v5971 = vsel %vm5961, %v5957, 1326507024
        %v5972 = vsel %vm5960, %v5954, %v5971
        %v5973 = vsel %vm5959, %v5970, %v5972
        %v5974 = vshll.u32 %v5934, 8
        %v5975 = vmul.u32.u64.compose %v5974, %v5973
        %v5976 = vextract.low.u32 %v5975
        %v5977 = vextract.high.u32 %v5975
        %v5978 = vmul.u32.u64.compose %v5974, %v5969
        %v5979 = vextract.low.u32 %v5978
        %v5980 = vextract.high.u32 %v5978
        %v5981 = vmul.u32 %v5974, %v5965
        %v5982 = vadd.s32 %v5977, %v5979
        %vm5983 = vc.u32 %v5977, %v5979
        %v5984 = vadd.s32 %v5980, 1
        %v5985 = vsel %vm5983, %v5984, %v5980
        %v5986 = vadd.s32 %v5981, %v5985
        %v5987 = vadd.s32 %v5986, 536870912
        %v5988 = vshrl.u32 %v5987, 30
        %v5989 = vshll.u32 %v5988, 30
        %v5990 = vsub.s32 %v5986, %v5989
        %vm5991 = vcmp.lt.s32.totalorder %v5990, 0
        %v5992 = vsub.s32 0, %v5990
        %v5993 = vsel %vm5991, %v5992, %v5990
        %v5994 = vclz %v5993
        %v5995 = vsub.s32 %v5994, 2
        %vm5996 = vcmp.gt.s32.totalorder 0, %v5995
        %v5997 = vsel %vm5996, 0, %v5995
        %v5998 = vsub.s32 32, %v5997
        %v5999 = vshll.u32 %v5990, %v5997
        %v6000 = vshrl.u32 %v5982, %v5998
        %v6001 = vor.u32 %v5999, %v6000
        %v6002 = vsub.s32 4294967266, %v5997
        %v6003 = vadd.s32 %v6002, 127
        %v6004 = vshll.u32 %v6003, 23
        %v6005 = vor.u32 4788187, %v6004
        %v6006 = vand.u32 2147483647, %v6005
        %v6008 = vcvt.s32.f32 %v6001
        %v6009 = vmul.f32 %v6008, %v6006
        %v6010 = vxor.u32 %v6009, 2147483648
        %v6011 = vsel %vm5928, %v6010, %v6009
        %v6012 = vsub.s32 4, %v5988
        %v6013 = vsel %vm5928, %v6012, %v5988
        %v6014 = vsel %vm5927, %v322, %v6011
        %v6015 = vsel %vm5927, 0, %v6013
        %v6016 = vcosq.f32.pop %v6014
        %v6017 = vsinq.f32.pop %v6014
        %vm6018 = vweird.f32 %v322
        %v6019 = vand.u32 %v6015, 3
        %vm6020 = vcmp.lt.s32.totalorder %v6019, 2
        %vm6021 = vcmp.eq.s32.totalorder %v6019, 0
        %v6022 = vxor.u32 %v6017, 2147483648
        %v6023 = vsel %vm6021, %v6016, %v6022
        %vm6024 = vcmp.eq.s32.totalorder %v6019, 2
        %v6025 = vxor.u32 %v6016, 2147483648
        %v6026 = vsel %vm6024, %v6025, %v6017
        %v6027 = vsel %vm6020, %v6023, %v6026
        %v6028 = vsel %vm6018, nan, %v6027
        %v6029 = vand.u32 2147483647, %v323
        %vm6030 = vcmp.le.f32.partialorder %v6029, 0.7853982
        %vm6031 = vcmp.lt.s32.totalorder %v323, 0
        %v6032 = vand.u32 %v323, 2139095040
        %v6033 = vshrl.u32 %v6032, 23
        %v6034 = vsub.s32 %v6033, 127
        %v6035 = vand.u32 2147483647, %v323
        %v6036 = vand.u32 %v6035, 8388607
        %v6037 = vor.u32 %v6036, 8388608
        %v6038 = vsub.s32 0, %v6037
        %v6039 = vadd.s32 %v6034, 1
        %vm6040 = vcmp.gt.s32.totalorder %v6039, 0
        %v6041 = vsel %vm6040, %v6039, 0
        %v6042 = vshrl.u32 %v6041, 5
        %v6043 = vand.u32 %v6041, 31
        %v6044 = vsub.s32 32, %v6043
        %v6045 = vshrl.u32 683565275, %v6044
        %v6046 = vshll.u32 683565275, %v6043
        %v6047 = vshrl.u32 2475754826, %v6044
        %v6048 = vor.u32 %v6046, %v6047
        %v6049 = vshll.u32 2475754826, %v6043
        %v6050 = vshrl.u32 2131351028, %v6044
        %v6051 = vor.u32 %v6049, %v6050
        %v6052 = vshll.u32 2131351028, %v6043
        %v6053 = vshrl.u32 2102212464, %v6044
        %v6054 = vor.u32 %v6052, %v6053
        %v6055 = vshll.u32 2102212464, %v6043
        %v6056 = vshrl.u32 920167782, %v6044
        %v6057 = vor.u32 %v6055, %v6056
        %v6058 = vshll.u32 920167782, %v6043
        %v6059 = vshrl.u32 1326507024, %v6044
        %v6060 = vor.u32 %v6058, %v6059
        %vm6061 = vcmp.lt.s32.totalorder %v6042, 1
        %vm6062 = vcmp.lt.s32.totalorder %v6042, 2
        %vm6063 = vcmp.lt.s32.totalorder %v6042, 3
        %vm6064 = vcmp.lt.s32.totalorder %v6042, 4
        %v6065 = vsel %vm6061, %v6045, %v6048
        %v6066 = vsel %vm6064, %v6054, 2102212464
        %v6067 = vsel %vm6063, %v6051, %v6066
        %v6068 = vsel %vm6062, %v6065, %v6067
        %v6069 = vsel %vm6061, %v6048, %v6051
        %v6070 = vsel %vm6064, %v6057, 920167782
        %v6071 = vsel %vm6063, %v6054, %v6070
        %v6072 = vsel %vm6062, %v6069, %v6071
        %v6073 = vsel %vm6061, %v6051, %v6054
        %v6074 = vsel %vm6064, %v6060, 1326507024
        %v6075 = vsel %vm6063, %v6057, %v6074
        %v6076 = vsel %vm6062, %v6073, %v6075
        %v6077 = vshll.u32 %v6037, 8
        %v6078 = vmul.u32.u64.compose %v6077, %v6076
        %v6079 = vextract.low.u32 %v6078
        %v6080 = vextract.high.u32 %v6078
        %v6081 = vmul.u32.u64.compose %v6077, %v6072
        %v6082 = vextract.low.u32 %v6081
        %v6083 = vextract.high.u32 %v6081
        %v6084 = vmul.u32 %v6077, %v6068
        %v6085 = vadd.s32 %v6080, %v6082
        %vm6086 = vc.u32 %v6080, %v6082
        %v6087 = vadd.s32 %v6083, 1
        %v6088 = vsel %vm6086, %v6087, %v6083
        %v6089 = vadd.s32 %v6084, %v6088
        %v6090 = vadd.s32 %v6089, 536870912
        %v6091 = vshrl.u32 %v6090, 30
        %v6092 = vshll.u32 %v6091, 30
        %v6093 = vsub.s32 %v6089, %v6092
        %vm6094 = vcmp.lt.s32.totalorder %v6093, 0
        %v6095 = vsub.s32 0, %v6093
        %v6096 = vsel %vm6094, %v6095, %v6093
        %v6097 = vclz %v6096
        %v6098 = vsub.s32 %v6097, 2
        %vm6099 = vcmp.gt.s32.totalorder 0, %v6098
        %v6100 = vsel %vm6099, 0, %v6098
        %v6101 = vsub.s32 32, %v6100
        %v6102 = vshll.u32 %v6093, %v6100
        %v6103 = vshrl.u32 %v6085, %v6101
        %v6104 = vor.u32 %v6102, %v6103
        %v6105 = vsub.s32 4294967266, %v6100
        %v6106 = vadd.s32 %v6105, 127
        %v6107 = vshll.u32 %v6106, 23
        %v6108 = vor.u32 4788187, %v6107
        %v6109 = vand.u32 2147483647, %v6108
        %v6111 = vcvt.s32.f32 %v6104
        %v6112 = vmul.f32 %v6111, %v6109
        %v6113 = vxor.u32 %v6112, 2147483648
        %v6114 = vsel %vm6031, %v6113, %v6112
        %v6115 = vsub.s32 4, %v6091
        %v6116 = vsel %vm6031, %v6115, %v6091
        %v6117 = vsel %vm6030, %v323, %v6114
        %v6118 = vsel %vm6030, 0, %v6116
        %v6119 = vcosq.f32.pop %v6117
        %v6120 = vsinq.f32.pop %v6117
        %vm6121 = vweird.f32 %v323
        %v6122 = vand.u32 %v6118, 3
        %vm6123 = vcmp.lt.s32.totalorder %v6122, 2
        %vm6124 = vcmp.eq.s32.totalorder %v6122, 0
        %v6125 = vxor.u32 %v6120, 2147483648
        %v6126 = vsel %vm6124, %v6119, %v6125
        %vm6127 = vcmp.eq.s32.totalorder %v6122, 2
        %v6128 = vxor.u32 %v6119, 2147483648
        %v6129 = vsel %vm6127, %v6128, %v6120
        %v6130 = vsel %vm6123, %v6126, %v6129
        %v6131 = vsel %vm6121, nan, %v6130
        %v6132 = vand.u32 2147483647, %v324
        %vm6133 = vcmp.le.f32.partialorder %v6132, 0.7853982
        %vm6134 = vcmp.lt.s32.totalorder %v324, 0
        %v6135 = vand.u32 %v324, 2139095040
        %v6136 = vshrl.u32 %v6135, 23
        %v6137 = vsub.s32 %v6136, 127
        %v6138 = vand.u32 2147483647, %v324
        %v6139 = vand.u32 %v6138, 8388607
        %v6140 = vor.u32 %v6139, 8388608
        %v6141 = vsub.s32 0, %v6140
        %v6142 = vadd.s32 %v6137, 1
        %vm6143 = vcmp.gt.s32.totalorder %v6142, 0
        %v6144 = vsel %vm6143, %v6142, 0
        %v6145 = vshrl.u32 %v6144, 5
        %v6146 = vand.u32 %v6144, 31
        %v6147 = vsub.s32 32, %v6146
        %v6148 = vshrl.u32 683565275, %v6147
        %v6149 = vshll.u32 683565275, %v6146
        %v6150 = vshrl.u32 2475754826, %v6147
        %v6151 = vor.u32 %v6149, %v6150
        %v6152 = vshll.u32 2475754826, %v6146
        %v6153 = vshrl.u32 2131351028, %v6147
        %v6154 = vor.u32 %v6152, %v6153
        %v6155 = vshll.u32 2131351028, %v6146
        %v6156 = vshrl.u32 2102212464, %v6147
        %v6157 = vor.u32 %v6155, %v6156
        %v6158 = vshll.u32 2102212464, %v6146
        %v6159 = vshrl.u32 920167782, %v6147
        %v6160 = vor.u32 %v6158, %v6159
        %v6161 = vshll.u32 920167782, %v6146
        %v6162 = vshrl.u32 1326507024, %v6147
        %v6163 = vor.u32 %v6161, %v6162
        %vm6164 = vcmp.lt.s32.totalorder %v6145, 1
        %vm6165 = vcmp.lt.s32.totalorder %v6145, 2
        %vm6166 = vcmp.lt.s32.totalorder %v6145, 3
        %vm6167 = vcmp.lt.s32.totalorder %v6145, 4
        %v6168 = vsel %vm6164, %v6148, %v6151
        %v6169 = vsel %vm6167, %v6157, 2102212464
        %v6170 = vsel %vm6166, %v6154, %v6169
        %v6171 = vsel %vm6165, %v6168, %v6170
        %v6172 = vsel %vm6164, %v6151, %v6154
        %v6173 = vsel %vm6167, %v6160, 920167782
        %v6174 = vsel %vm6166, %v6157, %v6173
        %v6175 = vsel %vm6165, %v6172, %v6174
        %v6176 = vsel %vm6164, %v6154, %v6157
        %v6177 = vsel %vm6167, %v6163, 1326507024
        %v6178 = vsel %vm6166, %v6160, %v6177
        %v6179 = vsel %vm6165, %v6176, %v6178
        %v6180 = vshll.u32 %v6140, 8
        %v6181 = vmul.u32.u64.compose %v6180, %v6179
        %v6182 = vextract.low.u32 %v6181
        %v6183 = vextract.high.u32 %v6181
        %v6184 = vmul.u32.u64.compose %v6180, %v6175
        %v6185 = vextract.low.u32 %v6184
        %v6186 = vextract.high.u32 %v6184
        %v6187 = vmul.u32 %v6180, %v6171
        %v6188 = vadd.s32 %v6183, %v6185
        %vm6189 = vc.u32 %v6183, %v6185
        %v6190 = vadd.s32 %v6186, 1
        %v6191 = vsel %vm6189, %v6190, %v6186
        %v6192 = vadd.s32 %v6187, %v6191
        %v6193 = vadd.s32 %v6192, 536870912
        %v6194 = vshrl.u32 %v6193, 30
        %v6195 = vshll.u32 %v6194, 30
        %v6196 = vsub.s32 %v6192, %v6195
        %vm6197 = vcmp.lt.s32.totalorder %v6196, 0
        %v6198 = vsub.s32 0, %v6196
        %v6199 = vsel %vm6197, %v6198, %v6196
        %v6200 = vclz %v6199
        %v6201 = vsub.s32 %v6200, 2
        %vm6202 = vcmp.gt.s32.totalorder 0, %v6201
        %v6203 = vsel %vm6202, 0, %v6201
        %v6204 = vsub.s32 32, %v6203
        %v6205 = vshll.u32 %v6196, %v6203
        %v6206 = vshrl.u32 %v6188, %v6204
        %v6207 = vor.u32 %v6205, %v6206
        %v6208 = vsub.s32 4294967266, %v6203
        %v6209 = vadd.s32 %v6208, 127
        %v6210 = vshll.u32 %v6209, 23
        %v6211 = vor.u32 4788187, %v6210
        %v6212 = vand.u32 2147483647, %v6211
        %v6214 = vcvt.s32.f32 %v6207
        %v6215 = vmul.f32 %v6214, %v6212
        %v6216 = vxor.u32 %v6215, 2147483648
        %v6217 = vsel %vm6134, %v6216, %v6215
        %v6218 = vsub.s32 4, %v6194
        %v6219 = vsel %vm6134, %v6218, %v6194
        %v6220 = vsel %vm6133, %v324, %v6217
        %v6221 = vsel %vm6133, 0, %v6219
        %v6222 = vcosq.f32.pop %v6220
        %v6223 = vsinq.f32.pop %v6220
        %vm6224 = vweird.f32 %v324
        %v6225 = vand.u32 %v6221, 3
        %vm6226 = vcmp.lt.s32.totalorder %v6225, 2
        %vm6227 = vcmp.eq.s32.totalorder %v6225, 0
        %v6228 = vxor.u32 %v6223, 2147483648
        %v6229 = vsel %vm6227, %v6222, %v6228
        %vm6230 = vcmp.eq.s32.totalorder %v6225, 2
        %v6231 = vxor.u32 %v6222, 2147483648
        %v6232 = vsel %vm6230, %v6231, %v6223
        %v6233 = vsel %vm6226, %v6229, %v6232
        %v6234 = vsel %vm6224, nan, %v6233
        %v6235 = vand.u32 2147483647, %v325
        %vm6236 = vcmp.le.f32.partialorder %v6235, 0.7853982
        %vm6237 = vcmp.lt.s32.totalorder %v325, 0
        %v6238 = vand.u32 %v325, 2139095040
        %v6239 = vshrl.u32 %v6238, 23
        %v6240 = vsub.s32 %v6239, 127
        %v6241 = vand.u32 2147483647, %v325
        %v6242 = vand.u32 %v6241, 8388607
        %v6243 = vor.u32 %v6242, 8388608
        %v6244 = vsub.s32 0, %v6243
        %v6245 = vadd.s32 %v6240, 1
        %vm6246 = vcmp.gt.s32.totalorder %v6245, 0
        %v6247 = vsel %vm6246, %v6245, 0
        %v6248 = vshrl.u32 %v6247, 5
        %v6249 = vand.u32 %v6247, 31
        %v6250 = vsub.s32 32, %v6249
        %v6251 = vshrl.u32 683565275, %v6250
        %v6252 = vshll.u32 683565275, %v6249
        %v6253 = vshrl.u32 2475754826, %v6250
        %v6254 = vor.u32 %v6252, %v6253
        %v6255 = vshll.u32 2475754826, %v6249
        %v6256 = vshrl.u32 2131351028, %v6250
        %v6257 = vor.u32 %v6255, %v6256
        %v6258 = vshll.u32 2131351028, %v6249
        %v6259 = vshrl.u32 2102212464, %v6250
        %v6260 = vor.u32 %v6258, %v6259
        %v6261 = vshll.u32 2102212464, %v6249
        %v6262 = vshrl.u32 920167782, %v6250
        %v6263 = vor.u32 %v6261, %v6262
        %v6264 = vshll.u32 920167782, %v6249
        %v6265 = vshrl.u32 1326507024, %v6250
        %v6266 = vor.u32 %v6264, %v6265
        %vm6267 = vcmp.lt.s32.totalorder %v6248, 1
        %vm6268 = vcmp.lt.s32.totalorder %v6248, 2
        %vm6269 = vcmp.lt.s32.totalorder %v6248, 3
        %vm6270 = vcmp.lt.s32.totalorder %v6248, 4
        %v6271 = vsel %vm6267, %v6251, %v6254
        %v6272 = vsel %vm6270, %v6260, 2102212464
        %v6273 = vsel %vm6269, %v6257, %v6272
        %v6274 = vsel %vm6268, %v6271, %v6273
        %v6275 = vsel %vm6267, %v6254, %v6257
        %v6276 = vsel %vm6270, %v6263, 920167782
        %v6277 = vsel %vm6269, %v6260, %v6276
        %v6278 = vsel %vm6268, %v6275, %v6277
        %v6279 = vsel %vm6267, %v6257, %v6260
        %v6280 = vsel %vm6270, %v6266, 1326507024
        %v6281 = vsel %vm6269, %v6263, %v6280
        %v6282 = vsel %vm6268, %v6279, %v6281
        %v6283 = vshll.u32 %v6243, 8
        %v6284 = vmul.u32.u64.compose %v6283, %v6282
        %v6285 = vextract.low.u32 %v6284
        %v6286 = vextract.high.u32 %v6284
        %v6287 = vmul.u32.u64.compose %v6283, %v6278
        %v6288 = vextract.low.u32 %v6287
        %v6289 = vextract.high.u32 %v6287
        %v6290 = vmul.u32 %v6283, %v6274
        %v6291 = vadd.s32 %v6286, %v6288
        %vm6292 = vc.u32 %v6286, %v6288
        %v6293 = vadd.s32 %v6289, 1
        %v6294 = vsel %vm6292, %v6293, %v6289
        %v6295 = vadd.s32 %v6290, %v6294
        %v6296 = vadd.s32 %v6295, 536870912
        %v6297 = vshrl.u32 %v6296, 30
        %v6298 = vshll.u32 %v6297, 30
        %v6299 = vsub.s32 %v6295, %v6298
        %vm6300 = vcmp.lt.s32.totalorder %v6299, 0
        %v6301 = vsub.s32 0, %v6299
        %v6302 = vsel %vm6300, %v6301, %v6299
        %v6303 = vclz %v6302
        %v6304 = vsub.s32 %v6303, 2
        %vm6305 = vcmp.gt.s32.totalorder 0, %v6304
        %v6306 = vsel %vm6305, 0, %v6304
        %v6307 = vsub.s32 32, %v6306
        %v6308 = vshll.u32 %v6299, %v6306
        %v6309 = vshrl.u32 %v6291, %v6307
        %v6310 = vor.u32 %v6308, %v6309
        %v6311 = vsub.s32 4294967266, %v6306
        %v6312 = vadd.s32 %v6311, 127
        %v6313 = vshll.u32 %v6312, 23
        %v6314 = vor.u32 4788187, %v6313
        %v6315 = vand.u32 2147483647, %v6314
        %v6317 = vcvt.s32.f32 %v6310
        %v6318 = vmul.f32 %v6317, %v6315
        %v6319 = vxor.u32 %v6318, 2147483648
        %v6320 = vsel %vm6237, %v6319, %v6318
        %v6321 = vsub.s32 4, %v6297
        %v6322 = vsel %vm6237, %v6321, %v6297
        %v6323 = vsel %vm6236, %v325, %v6320
        %v6324 = vsel %vm6236, 0, %v6322
        %v6325 = vcosq.f32.pop %v6323
        %v6326 = vsinq.f32.pop %v6323
        %vm6327 = vweird.f32 %v325
        %v6328 = vand.u32 %v6324, 3
        %vm6329 = vcmp.lt.s32.totalorder %v6328, 2
        %vm6330 = vcmp.eq.s32.totalorder %v6328, 0
        %v6331 = vxor.u32 %v6326, 2147483648
        %v6332 = vsel %vm6330, %v6325, %v6331
        %vm6333 = vcmp.eq.s32.totalorder %v6328, 2
        %v6334 = vxor.u32 %v6325, 2147483648
        %v6335 = vsel %vm6333, %v6334, %v6326
        %v6336 = vsel %vm6329, %v6332, %v6335
        %v6337 = vsel %vm6327, nan, %v6336
        %v6338 = vand.u32 2147483647, %v326
        %vm6339 = vcmp.le.f32.partialorder %v6338, 0.7853982
        %vm6340 = vcmp.lt.s32.totalorder %v326, 0
        %v6341 = vand.u32 %v326, 2139095040
        %v6342 = vshrl.u32 %v6341, 23
        %v6343 = vsub.s32 %v6342, 127
        %v6344 = vand.u32 2147483647, %v326
        %v6345 = vand.u32 %v6344, 8388607
        %v6346 = vor.u32 %v6345, 8388608
        %v6347 = vsub.s32 0, %v6346
        %v6348 = vadd.s32 %v6343, 1
        %vm6349 = vcmp.gt.s32.totalorder %v6348, 0
        %v6350 = vsel %vm6349, %v6348, 0
        %v6351 = vshrl.u32 %v6350, 5
        %v6352 = vand.u32 %v6350, 31
        %v6353 = vsub.s32 32, %v6352
        %v6354 = vshrl.u32 683565275, %v6353
        %v6355 = vshll.u32 683565275, %v6352
        %v6356 = vshrl.u32 2475754826, %v6353
        %v6357 = vor.u32 %v6355, %v6356
        %v6358 = vshll.u32 2475754826, %v6352
        %v6359 = vshrl.u32 2131351028, %v6353
        %v6360 = vor.u32 %v6358, %v6359
        %v6361 = vshll.u32 2131351028, %v6352
        %v6362 = vshrl.u32 2102212464, %v6353
        %v6363 = vor.u32 %v6361, %v6362
        %v6364 = vshll.u32 2102212464, %v6352
        %v6365 = vshrl.u32 920167782, %v6353
        %v6366 = vor.u32 %v6364, %v6365
        %v6367 = vshll.u32 920167782, %v6352
        %v6368 = vshrl.u32 1326507024, %v6353
        %v6369 = vor.u32 %v6367, %v6368
        %vm6370 = vcmp.lt.s32.totalorder %v6351, 1
        %vm6371 = vcmp.lt.s32.totalorder %v6351, 2
        %vm6372 = vcmp.lt.s32.totalorder %v6351, 3
        %vm6373 = vcmp.lt.s32.totalorder %v6351, 4
        %v6374 = vsel %vm6370, %v6354, %v6357
        %v6375 = vsel %vm6373, %v6363, 2102212464
        %v6376 = vsel %vm6372, %v6360, %v6375
        %v6377 = vsel %vm6371, %v6374, %v6376
        %v6378 = vsel %vm6370, %v6357, %v6360
        %v6379 = vsel %vm6373, %v6366, 920167782
        %v6380 = vsel %vm6372, %v6363, %v6379
        %v6381 = vsel %vm6371, %v6378, %v6380
        %v6382 = vsel %vm6370, %v6360, %v6363
        %v6383 = vsel %vm6373, %v6369, 1326507024
        %v6384 = vsel %vm6372, %v6366, %v6383
        %v6385 = vsel %vm6371, %v6382, %v6384
        %v6386 = vshll.u32 %v6346, 8
        %v6387 = vmul.u32.u64.compose %v6386, %v6385
        %v6388 = vextract.low.u32 %v6387
        %v6389 = vextract.high.u32 %v6387
        %v6390 = vmul.u32.u64.compose %v6386, %v6381
        %v6391 = vextract.low.u32 %v6390
        %v6392 = vextract.high.u32 %v6390
        %v6393 = vmul.u32 %v6386, %v6377
        %v6394 = vadd.s32 %v6389, %v6391
        %vm6395 = vc.u32 %v6389, %v6391
        %v6396 = vadd.s32 %v6392, 1
        %v6397 = vsel %vm6395, %v6396, %v6392
        %v6398 = vadd.s32 %v6393, %v6397
        %v6399 = vadd.s32 %v6398, 536870912
        %v6400 = vshrl.u32 %v6399, 30
        %v6401 = vshll.u32 %v6400, 30
        %v6402 = vsub.s32 %v6398, %v6401
        %vm6403 = vcmp.lt.s32.totalorder %v6402, 0
        %v6404 = vsub.s32 0, %v6402
        %v6405 = vsel %vm6403, %v6404, %v6402
        %v6406 = vclz %v6405
        %v6407 = vsub.s32 %v6406, 2
        %vm6408 = vcmp.gt.s32.totalorder 0, %v6407
        %v6409 = vsel %vm6408, 0, %v6407
        %v6410 = vsub.s32 32, %v6409
        %v6411 = vshll.u32 %v6402, %v6409
        %v6412 = vshrl.u32 %v6394, %v6410
        %v6413 = vor.u32 %v6411, %v6412
        %v6414 = vsub.s32 4294967266, %v6409
        %v6415 = vadd.s32 %v6414, 127
        %v6416 = vshll.u32 %v6415, 23
        %v6417 = vor.u32 4788187, %v6416
        %v6418 = vand.u32 2147483647, %v6417
        %v6420 = vcvt.s32.f32 %v6413
        %v6421 = vmul.f32 %v6420, %v6418
        %v6422 = vxor.u32 %v6421, 2147483648
        %v6423 = vsel %vm6340, %v6422, %v6421
        %v6424 = vsub.s32 4, %v6400
        %v6425 = vsel %vm6340, %v6424, %v6400
        %v6426 = vsel %vm6339, %v326, %v6423
        %v6427 = vsel %vm6339, 0, %v6425
        %v6428 = vcosq.f32.pop %v6426
        %v6429 = vsinq.f32.pop %v6426
        %vm6430 = vweird.f32 %v326
        %v6431 = vand.u32 %v6427, 3
        %vm6432 = vcmp.lt.s32.totalorder %v6431, 2
        %vm6433 = vcmp.eq.s32.totalorder %v6431, 0
        %v6434 = vxor.u32 %v6429, 2147483648
        %v6435 = vsel %vm6433, %v6428, %v6434
        %vm6436 = vcmp.eq.s32.totalorder %v6431, 2
        %v6437 = vxor.u32 %v6428, 2147483648
        %v6438 = vsel %vm6436, %v6437, %v6429
        %v6439 = vsel %vm6432, %v6435, %v6438
        %v6440 = vsel %vm6430, nan, %v6439
        %v6441 = vand.u32 2147483647, %v327
        %vm6442 = vcmp.le.f32.partialorder %v6441, 0.7853982
        %vm6443 = vcmp.lt.s32.totalorder %v327, 0
        %v6444 = vand.u32 %v327, 2139095040
        %v6445 = vshrl.u32 %v6444, 23
        %v6446 = vsub.s32 %v6445, 127
        %v6447 = vand.u32 2147483647, %v327
        %v6448 = vand.u32 %v6447, 8388607
        %v6449 = vor.u32 %v6448, 8388608
        %v6450 = vsub.s32 0, %v6449
        %v6451 = vadd.s32 %v6446, 1
        %vm6452 = vcmp.gt.s32.totalorder %v6451, 0
        %v6453 = vsel %vm6452, %v6451, 0
        %v6454 = vshrl.u32 %v6453, 5
        %v6455 = vand.u32 %v6453, 31
        %v6456 = vsub.s32 32, %v6455
        %v6457 = vshrl.u32 683565275, %v6456
        %v6458 = vshll.u32 683565275, %v6455
        %v6459 = vshrl.u32 2475754826, %v6456
        %v6460 = vor.u32 %v6458, %v6459
        %v6461 = vshll.u32 2475754826, %v6455
        %v6462 = vshrl.u32 2131351028, %v6456
        %v6463 = vor.u32 %v6461, %v6462
        %v6464 = vshll.u32 2131351028, %v6455
        %v6465 = vshrl.u32 2102212464, %v6456
        %v6466 = vor.u32 %v6464, %v6465
        %v6467 = vshll.u32 2102212464, %v6455
        %v6468 = vshrl.u32 920167782, %v6456
        %v6469 = vor.u32 %v6467, %v6468
        %v6470 = vshll.u32 920167782, %v6455
        %v6471 = vshrl.u32 1326507024, %v6456
        %v6472 = vor.u32 %v6470, %v6471
        %vm6473 = vcmp.lt.s32.totalorder %v6454, 1
        %vm6474 = vcmp.lt.s32.totalorder %v6454, 2
        %vm6475 = vcmp.lt.s32.totalorder %v6454, 3
        %vm6476 = vcmp.lt.s32.totalorder %v6454, 4
        %v6477 = vsel %vm6473, %v6457, %v6460
        %v6478 = vsel %vm6476, %v6466, 2102212464
        %v6479 = vsel %vm6475, %v6463, %v6478
        %v6480 = vsel %vm6474, %v6477, %v6479
        %v6481 = vsel %vm6473, %v6460, %v6463
        %v6482 = vsel %vm6476, %v6469, 920167782
        %v6483 = vsel %vm6475, %v6466, %v6482
        %v6484 = vsel %vm6474, %v6481, %v6483
        %v6485 = vsel %vm6473, %v6463, %v6466
        %v6486 = vsel %vm6476, %v6472, 1326507024
        %v6487 = vsel %vm6475, %v6469, %v6486
        %v6488 = vsel %vm6474, %v6485, %v6487
        %v6489 = vshll.u32 %v6449, 8
        %v6490 = vmul.u32.u64.compose %v6489, %v6488
        %v6491 = vextract.low.u32 %v6490
        %v6492 = vextract.high.u32 %v6490
        %v6493 = vmul.u32.u64.compose %v6489, %v6484
        %v6494 = vextract.low.u32 %v6493
        %v6495 = vextract.high.u32 %v6493
        %v6496 = vmul.u32 %v6489, %v6480
        %v6497 = vadd.s32 %v6492, %v6494
        %vm6498 = vc.u32 %v6492, %v6494
        %v6499 = vadd.s32 %v6495, 1
        %v6500 = vsel %vm6498, %v6499, %v6495
        %v6501 = vadd.s32 %v6496, %v6500
        %v6502 = vadd.s32 %v6501, 536870912
        %v6503 = vshrl.u32 %v6502, 30
        %v6504 = vshll.u32 %v6503, 30
        %v6505 = vsub.s32 %v6501, %v6504
        %vm6506 = vcmp.lt.s32.totalorder %v6505, 0
        %v6507 = vsub.s32 0, %v6505
        %v6508 = vsel %vm6506, %v6507, %v6505
        %v6509 = vclz %v6508
        %v6510 = vsub.s32 %v6509, 2
        %vm6511 = vcmp.gt.s32.totalorder 0, %v6510
        %v6512 = vsel %vm6511, 0, %v6510
        %v6513 = vsub.s32 32, %v6512
        %v6514 = vshll.u32 %v6505, %v6512
        %v6515 = vshrl.u32 %v6497, %v6513
        %v6516 = vor.u32 %v6514, %v6515
        %v6517 = vsub.s32 4294967266, %v6512
        %v6518 = vadd.s32 %v6517, 127
        %v6519 = vshll.u32 %v6518, 23
        %v6520 = vor.u32 4788187, %v6519
        %v6521 = vand.u32 2147483647, %v6520
        %v6523 = vcvt.s32.f32 %v6516
        %v6524 = vmul.f32 %v6523, %v6521
        %v6525 = vxor.u32 %v6524, 2147483648
        %v6526 = vsel %vm6443, %v6525, %v6524
        %v6527 = vsub.s32 4, %v6503
        %v6528 = vsel %vm6443, %v6527, %v6503
        %v6529 = vsel %vm6442, %v327, %v6526
        %v6530 = vsel %vm6442, 0, %v6528
        %v6531 = vcosq.f32.pop %v6529
        %v6532 = vsinq.f32.pop %v6529
        %vm6533 = vweird.f32 %v327
        %v6534 = vand.u32 %v6530, 3
        %vm6535 = vcmp.lt.s32.totalorder %v6534, 2
        %vm6536 = vcmp.eq.s32.totalorder %v6534, 0
        %v6537 = vxor.u32 %v6532, 2147483648
        %v6538 = vsel %vm6536, %v6531, %v6537
        %vm6539 = vcmp.eq.s32.totalorder %v6534, 2
        %v6540 = vxor.u32 %v6531, 2147483648
        %v6541 = vsel %vm6539, %v6540, %v6532
        %v6542 = vsel %vm6535, %v6538, %v6541
        %v6543 = vsel %vm6533, nan, %v6542
        %v6544 = vand.u32 2147483647, %v328
        %vm6545 = vcmp.le.f32.partialorder %v6544, 0.7853982
        %vm6546 = vcmp.lt.s32.totalorder %v328, 0
        %v6547 = vand.u32 %v328, 2139095040
        %v6548 = vshrl.u32 %v6547, 23
        %v6549 = vsub.s32 %v6548, 127
        %v6550 = vand.u32 2147483647, %v328
        %v6551 = vand.u32 %v6550, 8388607
        %v6552 = vor.u32 %v6551, 8388608
        %v6553 = vsub.s32 0, %v6552
        %v6554 = vadd.s32 %v6549, 1
        %vm6555 = vcmp.gt.s32.totalorder %v6554, 0
        %v6556 = vsel %vm6555, %v6554, 0
        %v6557 = vshrl.u32 %v6556, 5
        %v6558 = vand.u32 %v6556, 31
        %v6559 = vsub.s32 32, %v6558
        %v6560 = vshrl.u32 683565275, %v6559
        %v6561 = vshll.u32 683565275, %v6558
        %v6562 = vshrl.u32 2475754826, %v6559
        %v6563 = vor.u32 %v6561, %v6562
        %v6564 = vshll.u32 2475754826, %v6558
        %v6565 = vshrl.u32 2131351028, %v6559
        %v6566 = vor.u32 %v6564, %v6565
        %v6567 = vshll.u32 2131351028, %v6558
        %v6568 = vshrl.u32 2102212464, %v6559
        %v6569 = vor.u32 %v6567, %v6568
        %v6570 = vshll.u32 2102212464, %v6558
        %v6571 = vshrl.u32 920167782, %v6559
        %v6572 = vor.u32 %v6570, %v6571
        %v6573 = vshll.u32 920167782, %v6558
        %v6574 = vshrl.u32 1326507024, %v6559
        %v6575 = vor.u32 %v6573, %v6574
        %vm6576 = vcmp.lt.s32.totalorder %v6557, 1
        %vm6577 = vcmp.lt.s32.totalorder %v6557, 2
        %vm6578 = vcmp.lt.s32.totalorder %v6557, 3
        %vm6579 = vcmp.lt.s32.totalorder %v6557, 4
        %v6580 = vsel %vm6576, %v6560, %v6563
        %v6581 = vsel %vm6579, %v6569, 2102212464
        %v6582 = vsel %vm6578, %v6566, %v6581
        %v6583 = vsel %vm6577, %v6580, %v6582
        %v6584 = vsel %vm6576, %v6563, %v6566
        %v6585 = vsel %vm6579, %v6572, 920167782
        %v6586 = vsel %vm6578, %v6569, %v6585
        %v6587 = vsel %vm6577, %v6584, %v6586
        %v6588 = vsel %vm6576, %v6566, %v6569
        %v6589 = vsel %vm6579, %v6575, 1326507024
        %v6590 = vsel %vm6578, %v6572, %v6589
        %v6591 = vsel %vm6577, %v6588, %v6590
        %v6592 = vshll.u32 %v6552, 8
        %v6593 = vmul.u32.u64.compose %v6592, %v6591
        %v6594 = vextract.low.u32 %v6593
        %v6595 = vextract.high.u32 %v6593
        %v6596 = vmul.u32.u64.compose %v6592, %v6587
        %v6597 = vextract.low.u32 %v6596
        %v6598 = vextract.high.u32 %v6596
        %v6599 = vmul.u32 %v6592, %v6583
        %v6600 = vadd.s32 %v6595, %v6597
        %vm6601 = vc.u32 %v6595, %v6597
        %v6602 = vadd.s32 %v6598, 1
        %v6603 = vsel %vm6601, %v6602, %v6598
        %v6604 = vadd.s32 %v6599, %v6603
        %v6605 = vadd.s32 %v6604, 536870912
        %v6606 = vshrl.u32 %v6605, 30
        %v6607 = vshll.u32 %v6606, 30
        %v6608 = vsub.s32 %v6604, %v6607
        %vm6609 = vcmp.lt.s32.totalorder %v6608, 0
        %v6610 = vsub.s32 0, %v6608
        %v6611 = vsel %vm6609, %v6610, %v6608
        %v6612 = vclz %v6611
        %v6613 = vsub.s32 %v6612, 2
        %vm6614 = vcmp.gt.s32.totalorder 0, %v6613
        %v6615 = vsel %vm6614, 0, %v6613
        %v6616 = vsub.s32 32, %v6615
        %v6617 = vshll.u32 %v6608, %v6615
        %v6618 = vshrl.u32 %v6600, %v6616
        %v6619 = vor.u32 %v6617, %v6618
        %v6620 = vsub.s32 4294967266, %v6615
        %v6621 = vadd.s32 %v6620, 127
        %v6622 = vshll.u32 %v6621, 23
        %v6623 = vor.u32 4788187, %v6622
        %v6624 = vand.u32 2147483647, %v6623
        %v6626 = vcvt.s32.f32 %v6619
        %v6627 = vmul.f32 %v6626, %v6624
        %v6628 = vxor.u32 %v6627, 2147483648
        %v6629 = vsel %vm6546, %v6628, %v6627
        %v6630 = vsub.s32 4, %v6606
        %v6631 = vsel %vm6546, %v6630, %v6606
        %v6632 = vsel %vm6545, %v328, %v6629
        %v6633 = vsel %vm6545, 0, %v6631
        %v6634 = vcosq.f32.pop %v6632
        %v6635 = vsinq.f32.pop %v6632
        %vm6636 = vweird.f32 %v328
        %v6637 = vand.u32 %v6633, 3
        %vm6638 = vcmp.lt.s32.totalorder %v6637, 2
        %vm6639 = vcmp.eq.s32.totalorder %v6637, 0
        %v6640 = vxor.u32 %v6635, 2147483648
        %v6641 = vsel %vm6639, %v6634, %v6640
        %vm6642 = vcmp.eq.s32.totalorder %v6637, 2
        %v6643 = vxor.u32 %v6634, 2147483648
        %v6644 = vsel %vm6642, %v6643, %v6635
        %v6645 = vsel %vm6638, %v6641, %v6644
        %v6646 = vsel %vm6636, nan, %v6645
        %v6647 = vand.u32 2147483647, %v329
        %vm6648 = vcmp.le.f32.partialorder %v6647, 0.7853982
        %vm6649 = vcmp.lt.s32.totalorder %v329, 0
        %v6650 = vand.u32 %v329, 2139095040
        %v6651 = vshrl.u32 %v6650, 23
        %v6652 = vsub.s32 %v6651, 127
        %v6653 = vand.u32 2147483647, %v329
        %v6654 = vand.u32 %v6653, 8388607
        %v6655 = vor.u32 %v6654, 8388608
        %v6656 = vsub.s32 0, %v6655
        %v6657 = vadd.s32 %v6652, 1
        %vm6658 = vcmp.gt.s32.totalorder %v6657, 0
        %v6659 = vsel %vm6658, %v6657, 0
        %v6660 = vshrl.u32 %v6659, 5
        %v6661 = vand.u32 %v6659, 31
        %v6662 = vsub.s32 32, %v6661
        %v6663 = vshrl.u32 683565275, %v6662
        %v6664 = vshll.u32 683565275, %v6661
        %v6665 = vshrl.u32 2475754826, %v6662
        %v6666 = vor.u32 %v6664, %v6665
        %v6667 = vshll.u32 2475754826, %v6661
        %v6668 = vshrl.u32 2131351028, %v6662
        %v6669 = vor.u32 %v6667, %v6668
        %v6670 = vshll.u32 2131351028, %v6661
        %v6671 = vshrl.u32 2102212464, %v6662
        %v6672 = vor.u32 %v6670, %v6671
        %v6673 = vshll.u32 2102212464, %v6661
        %v6674 = vshrl.u32 920167782, %v6662
        %v6675 = vor.u32 %v6673, %v6674
        %v6676 = vshll.u32 920167782, %v6661
        %v6677 = vshrl.u32 1326507024, %v6662
        %v6678 = vor.u32 %v6676, %v6677
        %vm6679 = vcmp.lt.s32.totalorder %v6660, 1
        %vm6680 = vcmp.lt.s32.totalorder %v6660, 2
        %vm6681 = vcmp.lt.s32.totalorder %v6660, 3
        %vm6682 = vcmp.lt.s32.totalorder %v6660, 4
        %v6683 = vsel %vm6679, %v6663, %v6666
        %v6684 = vsel %vm6682, %v6672, 2102212464
        %v6685 = vsel %vm6681, %v6669, %v6684
        %v6686 = vsel %vm6680, %v6683, %v6685
        %v6687 = vsel %vm6679, %v6666, %v6669
        %v6688 = vsel %vm6682, %v6675, 920167782
        %v6689 = vsel %vm6681, %v6672, %v6688
        %v6690 = vsel %vm6680, %v6687, %v6689
        %v6691 = vsel %vm6679, %v6669, %v6672
        %v6692 = vsel %vm6682, %v6678, 1326507024
        %v6693 = vsel %vm6681, %v6675, %v6692
        %v6694 = vsel %vm6680, %v6691, %v6693
        %v6695 = vshll.u32 %v6655, 8
        %v6696 = vmul.u32.u64.compose %v6695, %v6694
        %v6697 = vextract.low.u32 %v6696
        %v6698 = vextract.high.u32 %v6696
        %v6699 = vmul.u32.u64.compose %v6695, %v6690
        %v6700 = vextract.low.u32 %v6699
        %v6701 = vextract.high.u32 %v6699
        %v6702 = vmul.u32 %v6695, %v6686
        %v6703 = vadd.s32 %v6698, %v6700
        %vm6704 = vc.u32 %v6698, %v6700
        %v6705 = vadd.s32 %v6701, 1
        %v6706 = vsel %vm6704, %v6705, %v6701
        %v6707 = vadd.s32 %v6702, %v6706
        %v6708 = vadd.s32 %v6707, 536870912
        %v6709 = vshrl.u32 %v6708, 30
        %v6710 = vshll.u32 %v6709, 30
        %v6711 = vsub.s32 %v6707, %v6710
        %vm6712 = vcmp.lt.s32.totalorder %v6711, 0
        %v6713 = vsub.s32 0, %v6711
        %v6714 = vsel %vm6712, %v6713, %v6711
        %v6715 = vclz %v6714
        %v6716 = vsub.s32 %v6715, 2
        %vm6717 = vcmp.gt.s32.totalorder 0, %v6716
        %v6718 = vsel %vm6717, 0, %v6716
        %v6719 = vsub.s32 32, %v6718
        %v6720 = vshll.u32 %v6711, %v6718
        %v6721 = vshrl.u32 %v6703, %v6719
        %v6722 = vor.u32 %v6720, %v6721
        %v6723 = vsub.s32 4294967266, %v6718
        %v6724 = vadd.s32 %v6723, 127
        %v6725 = vshll.u32 %v6724, 23
        %v6726 = vor.u32 4788187, %v6725
        %v6727 = vand.u32 2147483647, %v6726
        %v6729 = vcvt.s32.f32 %v6722
        %v6730 = vmul.f32 %v6729, %v6727
        %v6731 = vxor.u32 %v6730, 2147483648
        %v6732 = vsel %vm6649, %v6731, %v6730
        %v6733 = vsub.s32 4, %v6709
        %v6734 = vsel %vm6649, %v6733, %v6709
        %v6735 = vsel %vm6648, %v329, %v6732
        %v6736 = vsel %vm6648, 0, %v6734
        %v6737 = vcosq.f32.pop %v6735
        %v6738 = vsinq.f32.pop %v6735
        %vm6739 = vweird.f32 %v329
        %v6740 = vand.u32 %v6736, 3
        %vm6741 = vcmp.lt.s32.totalorder %v6740, 2
        %vm6742 = vcmp.eq.s32.totalorder %v6740, 0
        %v6743 = vxor.u32 %v6738, 2147483648
        %v6744 = vsel %vm6742, %v6737, %v6743
        %vm6745 = vcmp.eq.s32.totalorder %v6740, 2
        %v6746 = vxor.u32 %v6737, 2147483648
        %v6747 = vsel %vm6745, %v6746, %v6738
        %v6748 = vsel %vm6741, %v6744, %v6747
        %v6749 = vsel %vm6739, nan, %v6748
        %v6750 = vand.u32 2147483647, %v330
        %vm6751 = vcmp.le.f32.partialorder %v6750, 0.7853982
        %vm6752 = vcmp.lt.s32.totalorder %v330, 0
        %v6753 = vand.u32 %v330, 2139095040
        %v6754 = vshrl.u32 %v6753, 23
        %v6755 = vsub.s32 %v6754, 127
        %v6756 = vand.u32 2147483647, %v330
        %v6757 = vand.u32 %v6756, 8388607
        %v6758 = vor.u32 %v6757, 8388608
        %v6759 = vsub.s32 0, %v6758
        %v6760 = vadd.s32 %v6755, 1
        %vm6761 = vcmp.gt.s32.totalorder %v6760, 0
        %v6762 = vsel %vm6761, %v6760, 0
        %v6763 = vshrl.u32 %v6762, 5
        %v6764 = vand.u32 %v6762, 31
        %v6765 = vsub.s32 32, %v6764
        %v6766 = vshrl.u32 683565275, %v6765
        %v6767 = vshll.u32 683565275, %v6764
        %v6768 = vshrl.u32 2475754826, %v6765
        %v6769 = vor.u32 %v6767, %v6768
        %v6770 = vshll.u32 2475754826, %v6764
        %v6771 = vshrl.u32 2131351028, %v6765
        %v6772 = vor.u32 %v6770, %v6771
        %v6773 = vshll.u32 2131351028, %v6764
        %v6774 = vshrl.u32 2102212464, %v6765
        %v6775 = vor.u32 %v6773, %v6774
        %v6776 = vshll.u32 2102212464, %v6764
        %v6777 = vshrl.u32 920167782, %v6765
        %v6778 = vor.u32 %v6776, %v6777
        %v6779 = vshll.u32 920167782, %v6764
        %v6780 = vshrl.u32 1326507024, %v6765
        %v6781 = vor.u32 %v6779, %v6780
        %vm6782 = vcmp.lt.s32.totalorder %v6763, 1
        %vm6783 = vcmp.lt.s32.totalorder %v6763, 2
        %vm6784 = vcmp.lt.s32.totalorder %v6763, 3
        %vm6785 = vcmp.lt.s32.totalorder %v6763, 4
        %v6786 = vsel %vm6782, %v6766, %v6769
        %v6787 = vsel %vm6785, %v6775, 2102212464
        %v6788 = vsel %vm6784, %v6772, %v6787
        %v6789 = vsel %vm6783, %v6786, %v6788
        %v6790 = vsel %vm6782, %v6769, %v6772
        %v6791 = vsel %vm6785, %v6778, 920167782
        %v6792 = vsel %vm6784, %v6775, %v6791
        %v6793 = vsel %vm6783, %v6790, %v6792
        %v6794 = vsel %vm6782, %v6772, %v6775
        %v6795 = vsel %vm6785, %v6781, 1326507024
        %v6796 = vsel %vm6784, %v6778, %v6795
        %v6797 = vsel %vm6783, %v6794, %v6796
        %v6798 = vshll.u32 %v6758, 8
        %v6799 = vmul.u32.u64.compose %v6798, %v6797
        %v6800 = vextract.low.u32 %v6799
        %v6801 = vextract.high.u32 %v6799
        %v6802 = vmul.u32.u64.compose %v6798, %v6793
        %v6803 = vextract.low.u32 %v6802
        %v6804 = vextract.high.u32 %v6802
        %v6805 = vmul.u32 %v6798, %v6789
        %v6806 = vadd.s32 %v6801, %v6803
        %vm6807 = vc.u32 %v6801, %v6803
        %v6808 = vadd.s32 %v6804, 1
        %v6809 = vsel %vm6807, %v6808, %v6804
        %v6810 = vadd.s32 %v6805, %v6809
        %v6811 = vadd.s32 %v6810, 536870912
        %v6812 = vshrl.u32 %v6811, 30
        %v6813 = vshll.u32 %v6812, 30
        %v6814 = vsub.s32 %v6810, %v6813
        %vm6815 = vcmp.lt.s32.totalorder %v6814, 0
        %v6816 = vsub.s32 0, %v6814
        %v6817 = vsel %vm6815, %v6816, %v6814
        %v6818 = vclz %v6817
        %v6819 = vsub.s32 %v6818, 2
        %vm6820 = vcmp.gt.s32.totalorder 0, %v6819
        %v6821 = vsel %vm6820, 0, %v6819
        %v6822 = vsub.s32 32, %v6821
        %v6823 = vshll.u32 %v6814, %v6821
        %v6824 = vshrl.u32 %v6806, %v6822
        %v6825 = vor.u32 %v6823, %v6824
        %v6826 = vsub.s32 4294967266, %v6821
        %v6827 = vadd.s32 %v6826, 127
        %v6828 = vshll.u32 %v6827, 23
        %v6829 = vor.u32 4788187, %v6828
        %v6830 = vand.u32 2147483647, %v6829
        %v6832 = vcvt.s32.f32 %v6825
        %v6833 = vmul.f32 %v6832, %v6830
        %v6834 = vxor.u32 %v6833, 2147483648
        %v6835 = vsel %vm6752, %v6834, %v6833
        %v6836 = vsub.s32 4, %v6812
        %v6837 = vsel %vm6752, %v6836, %v6812
        %v6838 = vsel %vm6751, %v330, %v6835
        %v6839 = vsel %vm6751, 0, %v6837
        %v6840 = vcosq.f32.pop %v6838
        %v6841 = vsinq.f32.pop %v6838
        %vm6842 = vweird.f32 %v330
        %v6843 = vand.u32 %v6839, 3
        %vm6844 = vcmp.lt.s32.totalorder %v6843, 2
        %vm6845 = vcmp.eq.s32.totalorder %v6843, 0
        %v6846 = vxor.u32 %v6841, 2147483648
        %v6847 = vsel %vm6845, %v6840, %v6846
        %vm6848 = vcmp.eq.s32.totalorder %v6843, 2
        %v6849 = vxor.u32 %v6840, 2147483648
        %v6850 = vsel %vm6848, %v6849, %v6841
        %v6851 = vsel %vm6844, %v6847, %v6850
        %v6852 = vsel %vm6842, nan, %v6851
        %v6853 = vand.u32 2147483647, %v331
        %vm6854 = vcmp.le.f32.partialorder %v6853, 0.7853982
        %vm6855 = vcmp.lt.s32.totalorder %v331, 0
        %v6856 = vand.u32 %v331, 2139095040
        %v6857 = vshrl.u32 %v6856, 23
        %v6858 = vsub.s32 %v6857, 127
        %v6859 = vand.u32 2147483647, %v331
        %v6860 = vand.u32 %v6859, 8388607
        %v6861 = vor.u32 %v6860, 8388608
        %v6862 = vsub.s32 0, %v6861
        %v6863 = vadd.s32 %v6858, 1
        %vm6864 = vcmp.gt.s32.totalorder %v6863, 0
        %v6865 = vsel %vm6864, %v6863, 0
        %v6866 = vshrl.u32 %v6865, 5
        %v6867 = vand.u32 %v6865, 31
        %v6868 = vsub.s32 32, %v6867
        %v6869 = vshrl.u32 683565275, %v6868
        %v6870 = vshll.u32 683565275, %v6867
        %v6871 = vshrl.u32 2475754826, %v6868
        %v6872 = vor.u32 %v6870, %v6871
        %v6873 = vshll.u32 2475754826, %v6867
        %v6874 = vshrl.u32 2131351028, %v6868
        %v6875 = vor.u32 %v6873, %v6874
        %v6876 = vshll.u32 2131351028, %v6867
        %v6877 = vshrl.u32 2102212464, %v6868
        %v6878 = vor.u32 %v6876, %v6877
        %v6879 = vshll.u32 2102212464, %v6867
        %v6880 = vshrl.u32 920167782, %v6868
        %v6881 = vor.u32 %v6879, %v6880
        %v6882 = vshll.u32 920167782, %v6867
        %v6883 = vshrl.u32 1326507024, %v6868
        %v6884 = vor.u32 %v6882, %v6883
        %vm6885 = vcmp.lt.s32.totalorder %v6866, 1
        %vm6886 = vcmp.lt.s32.totalorder %v6866, 2
        %vm6887 = vcmp.lt.s32.totalorder %v6866, 3
        %vm6888 = vcmp.lt.s32.totalorder %v6866, 4
        %v6889 = vsel %vm6885, %v6869, %v6872
        %v6890 = vsel %vm6888, %v6878, 2102212464
        %v6891 = vsel %vm6887, %v6875, %v6890
        %v6892 = vsel %vm6886, %v6889, %v6891
        %v6893 = vsel %vm6885, %v6872, %v6875
        %v6894 = vsel %vm6888, %v6881, 920167782
        %v6895 = vsel %vm6887, %v6878, %v6894
        %v6896 = vsel %vm6886, %v6893, %v6895
        %v6897 = vsel %vm6885, %v6875, %v6878
        %v6898 = vsel %vm6888, %v6884, 1326507024
        %v6899 = vsel %vm6887, %v6881, %v6898
        %v6900 = vsel %vm6886, %v6897, %v6899
        %v6901 = vshll.u32 %v6861, 8
        %v6902 = vmul.u32.u64.compose %v6901, %v6900
        %v6903 = vextract.low.u32 %v6902
        %v6904 = vextract.high.u32 %v6902
        %v6905 = vmul.u32.u64.compose %v6901, %v6896
        %v6906 = vextract.low.u32 %v6905
        %v6907 = vextract.high.u32 %v6905
        %v6908 = vmul.u32 %v6901, %v6892
        %v6909 = vadd.s32 %v6904, %v6906
        %vm6910 = vc.u32 %v6904, %v6906
        %v6911 = vadd.s32 %v6907, 1
        %v6912 = vsel %vm6910, %v6911, %v6907
        %v6913 = vadd.s32 %v6908, %v6912
        %v6914 = vadd.s32 %v6913, 536870912
        %v6915 = vshrl.u32 %v6914, 30
        %v6916 = vshll.u32 %v6915, 30
        %v6917 = vsub.s32 %v6913, %v6916
        %vm6918 = vcmp.lt.s32.totalorder %v6917, 0
        %v6919 = vsub.s32 0, %v6917
        %v6920 = vsel %vm6918, %v6919, %v6917
        %v6921 = vclz %v6920
        %v6922 = vsub.s32 %v6921, 2
        %vm6923 = vcmp.gt.s32.totalorder 0, %v6922
        %v6924 = vsel %vm6923, 0, %v6922
        %v6925 = vsub.s32 32, %v6924
        %v6926 = vshll.u32 %v6917, %v6924
        %v6927 = vshrl.u32 %v6909, %v6925
        %v6928 = vor.u32 %v6926, %v6927
        %v6929 = vsub.s32 4294967266, %v6924
        %v6930 = vadd.s32 %v6929, 127
        %v6931 = vshll.u32 %v6930, 23
        %v6932 = vor.u32 4788187, %v6931
        %v6933 = vand.u32 2147483647, %v6932
        %v6935 = vcvt.s32.f32 %v6928
        %v6936 = vmul.f32 %v6935, %v6933
        %v6937 = vxor.u32 %v6936, 2147483648
        %v6938 = vsel %vm6855, %v6937, %v6936
        %v6939 = vsub.s32 4, %v6915
        %v6940 = vsel %vm6855, %v6939, %v6915
        %v6941 = vsel %vm6854, %v331, %v6938
        %v6942 = vsel %vm6854, 0, %v6940
        %v6943 = vcosq.f32.pop %v6941
        %v6944 = vsinq.f32.pop %v6941
        %vm6945 = vweird.f32 %v331
        %v6946 = vand.u32 %v6942, 3
        %vm6947 = vcmp.lt.s32.totalorder %v6946, 2
        %vm6948 = vcmp.eq.s32.totalorder %v6946, 0
        %v6949 = vxor.u32 %v6944, 2147483648
        %v6950 = vsel %vm6948, %v6943, %v6949
        %vm6951 = vcmp.eq.s32.totalorder %v6946, 2
        %v6952 = vxor.u32 %v6943, 2147483648
        %v6953 = vsel %vm6951, %v6952, %v6944
        %v6954 = vsel %vm6947, %v6950, %v6953
        %v6955 = vsel %vm6945, nan, %v6954
        %v6956 = vmul.f32 %v435, 2.0
        %v6957 = vmul.f32 %v539, 2.0
        %v6958 = vmul.f32 %v643, 2.0
        %v6959 = vmul.f32 %v747, 2.0
        %v6960 = vmul.f32 %v851, 2.0
        %v6961 = vmul.f32 %v955, 2.0
        %v6962 = vmul.f32 %v1059, 2.0
        %v6963 = vmul.f32 %v1163, 2.0
        %v6964 = vmul.f32 %v1267, 2.0
        %v6965 = vmul.f32 %v1371, 2.0
        %v6966 = vmul.f32 %v1475, 2.0
        %v6967 = vmul.f32 %v1579, 2.0
        %v6968 = vmul.f32 %v1683, 2.0
        %v6969 = vmul.f32 %v1787, 2.0
        %v6970 = vmul.f32 %v1891, 2.0
        %v6971 = vmul.f32 %v1995, 2.0
        %v6972 = vmul.f32 %v2099, 2.0
        %v6973 = vmul.f32 %v2203, 2.0
        %v6974 = vmul.f32 %v2307, 2.0
        %v6975 = vmul.f32 %v2411, 2.0
        %v6976 = vmul.f32 %v2515, 2.0
        %v6977 = vmul.f32 %v2619, 2.0
        %v6978 = vmul.f32 %v2723, 2.0
        %v6979 = vmul.f32 %v2827, 2.0
        %v6980 = vmul.f32 %v2931, 2.0
        %v6981 = vmul.f32 %v3035, 2.0
        %v6982 = vmul.f32 %v3139, 2.0
        %v6983 = vmul.f32 %v3243, 2.0
        %v6984 = vmul.f32 %v3347, 2.0
        %v6985 = vmul.f32 %v3451, 2.0
        %v6986 = vmul.f32 %v3555, 2.0
        %v6987 = vmul.f32 %v3659, 2.0
        %v6988 = vmul.f32 %v6956, %v3762
        %v6989 = vmul.f32 %v6957, %v3865
        %v6990 = vmul.f32 %v6958, %v3968
        %v6991 = vmul.f32 %v6959, %v4071
        %v6992 = vmul.f32 %v6960, %v4174
        %v6993 = vmul.f32 %v6961, %v4277
        %v6994 = vmul.f32 %v6962, %v4380
        %v6995 = vmul.f32 %v6963, %v4483
        %v6996 = vmul.f32 %v6964, %v4586
        %v6997 = vmul.f32 %v6965, %v4689
        %v6998 = vmul.f32 %v6966, %v4792
        %v6999 = vmul.f32 %v6967, %v4895
        %v7000 = vmul.f32 %v6968, %v4998
        %v7001 = vmul.f32 %v6969, %v5101
        %v7002 = vmul.f32 %v6970, %v5204
        %v7003 = vmul.f32 %v6971, %v5307
        %v7004 = vmul.f32 %v6972, %v5410
        %v7005 = vmul.f32 %v6973, %v5513
        %v7006 = vmul.f32 %v6974, %v5616
        %v7007 = vmul.f32 %v6975, %v5719
        %v7008 = vmul.f32 %v6976, %v5822
        %v7009 = vmul.f32 %v6977, %v5925
        %v7010 = vmul.f32 %v6978, %v6028
        %v7011 = vmul.f32 %v6979, %v6131
        %v7012 = vmul.f32 %v6980, %v6234
        %v7013 = vmul.f32 %v6981, %v6337
        %v7014 = vmul.f32 %v6982, %v6440
        %v7015 = vmul.f32 %v6983, %v6543
        %v7016 = vmul.f32 %v6984, %v6646
        %v7017 = vmul.f32 %v6985, %v6749
        %v7018 = vmul.f32 %v6986, %v6852
        %v7019 = vmul.f32 %v6987, %v6955
        %v7020 = vmul.f32 %v3762, 2.0
        %v7021 = vmul.f32 %v3865, 2.0
        %v7022 = vmul.f32 %v3968, 2.0
        %v7023 = vmul.f32 %v4071, 2.0
        %v7024 = vmul.f32 %v4174, 2.0
        %v7025 = vmul.f32 %v4277, 2.0
        %v7026 = vmul.f32 %v4380, 2.0
        %v7027 = vmul.f32 %v4483, 2.0
        %v7028 = vmul.f32 %v4586, 2.0
        %v7029 = vmul.f32 %v4689, 2.0
        %v7030 = vmul.f32 %v4792, 2.0
        %v7031 = vmul.f32 %v4895, 2.0
        %v7032 = vmul.f32 %v4998, 2.0
        %v7033 = vmul.f32 %v5101, 2.0
        %v7034 = vmul.f32 %v5204, 2.0
        %v7035 = vmul.f32 %v5307, 2.0
        %v7036 = vmul.f32 %v5410, 2.0
        %v7037 = vmul.f32 %v5513, 2.0
        %v7038 = vmul.f32 %v5616, 2.0
        %v7039 = vmul.f32 %v5719, 2.0
        %v7040 = vmul.f32 %v5822, 2.0
        %v7041 = vmul.f32 %v5925, 2.0
        %v7042 = vmul.f32 %v6028, 2.0
        %v7043 = vmul.f32 %v6131, 2.0
        %v7044 = vmul.f32 %v6234, 2.0
        %v7045 = vmul.f32 %v6337, 2.0
        %v7046 = vmul.f32 %v6440, 2.0
        %v7047 = vmul.f32 %v6543, 2.0
        %v7048 = vmul.f32 %v6646, 2.0
        %v7049 = vmul.f32 %v6749, 2.0
        %v7050 = vmul.f32 %v6852, 2.0
        %v7051 = vmul.f32 %v6955, 2.0
        %v7052 = vmul.f32 %v7020, %v3762
        %v7053 = vmul.f32 %v7021, %v3865
        %v7054 = vmul.f32 %v7022, %v3968
        %v7055 = vmul.f32 %v7023, %v4071
        %v7056 = vmul.f32 %v7024, %v4174
        %v7057 = vmul.f32 %v7025, %v4277
        %v7058 = vmul.f32 %v7026, %v4380
        %v7059 = vmul.f32 %v7027, %v4483
        %v7060 = vmul.f32 %v7028, %v4586
        %v7061 = vmul.f32 %v7029, %v4689
        %v7062 = vmul.f32 %v7030, %v4792
        %v7063 = vmul.f32 %v7031, %v4895
        %v7064 = vmul.f32 %v7032, %v4998
        %v7065 = vmul.f32 %v7033, %v5101
        %v7066 = vmul.f32 %v7034, %v5204
        %v7067 = vmul.f32 %v7035, %v5307
        %v7068 = vmul.f32 %v7036, %v5410
        %v7069 = vmul.f32 %v7037, %v5513
        %v7070 = vmul.f32 %v7038, %v5616
        %v7071 = vmul.f32 %v7039, %v5719
        %v7072 = vmul.f32 %v7040, %v5822
        %v7073 = vmul.f32 %v7041, %v5925
        %v7074 = vmul.f32 %v7042, %v6028
        %v7075 = vmul.f32 %v7043, %v6131
        %v7076 = vmul.f32 %v7044, %v6234
        %v7077 = vmul.f32 %v7045, %v6337
        %v7078 = vmul.f32 %v7046, %v6440
        %v7079 = vmul.f32 %v7047, %v6543
        %v7080 = vmul.f32 %v7048, %v6646
        %v7081 = vmul.f32 %v7049, %v6749
        %v7082 = vmul.f32 %v7050, %v6852
        %v7083 = vmul.f32 %v7051, %v6955
        %v7084 = vsub.f32 %v7052, 1.0
        %v7085 = vsub.f32 %v7053, 1.0
        %v7086 = vsub.f32 %v7054, 1.0
        %v7087 = vsub.f32 %v7055, 1.0
        %v7088 = vsub.f32 %v7056, 1.0
        %v7089 = vsub.f32 %v7057, 1.0
        %v7090 = vsub.f32 %v7058, 1.0
        %v7091 = vsub.f32 %v7059, 1.0
        %v7092 = vsub.f32 %v7060, 1.0
        %v7093 = vsub.f32 %v7061, 1.0
        %v7094 = vsub.f32 %v7062, 1.0
        %v7095 = vsub.f32 %v7063, 1.0
        %v7096 = vsub.f32 %v7064, 1.0
        %v7097 = vsub.f32 %v7065, 1.0
        %v7098 = vsub.f32 %v7066, 1.0
        %v7099 = vsub.f32 %v7067, 1.0
        %v7100 = vsub.f32 %v7068, 1.0
        %v7101 = vsub.f32 %v7069, 1.0
        %v7102 = vsub.f32 %v7070, 1.0
        %v7103 = vsub.f32 %v7071, 1.0
        %v7104 = vsub.f32 %v7072, 1.0
        %v7105 = vsub.f32 %v7073, 1.0
        %v7106 = vsub.f32 %v7074, 1.0
        %v7107 = vsub.f32 %v7075, 1.0
        %v7108 = vsub.f32 %v7076, 1.0
        %v7109 = vsub.f32 %v7077, 1.0
        %v7110 = vsub.f32 %v7078, 1.0
        %v7111 = vsub.f32 %v7079, 1.0
        %v7112 = vsub.f32 %v7080, 1.0
        %v7113 = vsub.f32 %v7081, 1.0
        %v7114 = vsub.f32 %v7082, 1.0
        %v7115 = vsub.f32 %v7083, 1.0
        %v7116 = vmul.f32 %v6988, 2.0
        %v7117 = vmul.f32 %v6989, 2.0
        %v7118 = vmul.f32 %v6990, 2.0
        %v7119 = vmul.f32 %v6991, 2.0
        %v7120 = vmul.f32 %v6992, 2.0
        %v7121 = vmul.f32 %v6993, 2.0
        %v7122 = vmul.f32 %v6994, 2.0
        %v7123 = vmul.f32 %v6995, 2.0
        %v7124 = vmul.f32 %v6996, 2.0
        %v7125 = vmul.f32 %v6997, 2.0
        %v7126 = vmul.f32 %v6998, 2.0
        %v7127 = vmul.f32 %v6999, 2.0
        %v7128 = vmul.f32 %v7000, 2.0
        %v7129 = vmul.f32 %v7001, 2.0
        %v7130 = vmul.f32 %v7002, 2.0
        %v7131 = vmul.f32 %v7003, 2.0
        %v7132 = vmul.f32 %v7116, %v7084
        %v7133 = vmul.f32 %v7117, %v7085
        %v7134 = vmul.f32 %v7118, %v7086
        %v7135 = vmul.f32 %v7119, %v7087
        %v7136 = vmul.f32 %v7120, %v7088
        %v7137 = vmul.f32 %v7121, %v7089
        %v7138 = vmul.f32 %v7122, %v7090
        %v7139 = vmul.f32 %v7123, %v7091
        %v7140 = vmul.f32 %v7124, %v7092
        %v7141 = vmul.f32 %v7125, %v7093
        %v7142 = vmul.f32 %v7126, %v7094
        %v7143 = vmul.f32 %v7127, %v7095
        %v7144 = vmul.f32 %v7128, %v7096
        %v7145 = vmul.f32 %v7129, %v7097
        %v7146 = vmul.f32 %v7130, %v7098
        %v7147 = vmul.f32 %v7131, %v7099
        %v7148 = vmul.f32 %v7084, 2.0
        %v7149 = vmul.f32 %v7085, 2.0
        %v7150 = vmul.f32 %v7086, 2.0
        %v7151 = vmul.f32 %v7087, 2.0
        %v7152 = vmul.f32 %v7088, 2.0
        %v7153 = vmul.f32 %v7089, 2.0
        %v7154 = vmul.f32 %v7090, 2.0
        %v7155 = vmul.f32 %v7091, 2.0
        %v7156 = vmul.f32 %v7092, 2.0
        %v7157 = vmul.f32 %v7093, 2.0
        %v7158 = vmul.f32 %v7094, 2.0
        %v7159 = vmul.f32 %v7095, 2.0
        %v7160 = vmul.f32 %v7096, 2.0
        %v7161 = vmul.f32 %v7097, 2.0
        %v7162 = vmul.f32 %v7098, 2.0
        %v7163 = vmul.f32 %v7099, 2.0
        %v7164 = vmul.f32 %v7148, %v7084
        %v7165 = vmul.f32 %v7149, %v7085
        %v7166 = vmul.f32 %v7150, %v7086
        %v7167 = vmul.f32 %v7151, %v7087
        %v7168 = vmul.f32 %v7152, %v7088
        %v7169 = vmul.f32 %v7153, %v7089
        %v7170 = vmul.f32 %v7154, %v7090
        %v7171 = vmul.f32 %v7155, %v7091
        %v7172 = vmul.f32 %v7156, %v7092
        %v7173 = vmul.f32 %v7157, %v7093
        %v7174 = vmul.f32 %v7158, %v7094
        %v7175 = vmul.f32 %v7159, %v7095
        %v7176 = vmul.f32 %v7160, %v7096
        %v7177 = vmul.f32 %v7161, %v7097
        %v7178 = vmul.f32 %v7162, %v7098
        %v7179 = vmul.f32 %v7163, %v7099
        %v7180 = vsub.f32 %v7164, 1.0
        %v7181 = vsub.f32 %v7165, 1.0
        %v7182 = vsub.f32 %v7166, 1.0
        %v7183 = vsub.f32 %v7167, 1.0
        %v7184 = vsub.f32 %v7168, 1.0
        %v7185 = vsub.f32 %v7169, 1.0
        %v7186 = vsub.f32 %v7170, 1.0
        %v7187 = vsub.f32 %v7171, 1.0
        %v7188 = vsub.f32 %v7172, 1.0
        %v7189 = vsub.f32 %v7173, 1.0
        %v7190 = vsub.f32 %v7174, 1.0
        %v7191 = vsub.f32 %v7175, 1.0
        %v7192 = vsub.f32 %v7176, 1.0
        %v7193 = vsub.f32 %v7177, 1.0
        %v7194 = vsub.f32 %v7178, 1.0
        %v7195 = vsub.f32 %v7179, 1.0
        %v7196 = vmul.f32 %v7132, 2.0
        %v7197 = vmul.f32 %v7133, 2.0
        %v7198 = vmul.f32 %v7134, 2.0
        %v7199 = vmul.f32 %v7135, 2.0
        %v7200 = vmul.f32 %v7136, 2.0
        %v7201 = vmul.f32 %v7137, 2.0
        %v7202 = vmul.f32 %v7138, 2.0
        %v7203 = vmul.f32 %v7139, 2.0
        %v7204 = vmul.f32 %v7140, 2.0
        %v7205 = vmul.f32 %v7141, 2.0
        %v7206 = vmul.f32 %v7142, 2.0
        %v7207 = vmul.f32 %v7143, 2.0
        %v7208 = vmul.f32 %v7144, 2.0
        %v7209 = vmul.f32 %v7145, 2.0
        %v7210 = vmul.f32 %v7146, 2.0
        %v7211 = vmul.f32 %v7147, 2.0
        %v7212 = vmul.f32 %v7196, %v7180
        %v7213 = vmul.f32 %v7197, %v7181
        %v7214 = vmul.f32 %v7198, %v7182
        %v7215 = vmul.f32 %v7199, %v7183
        %v7216 = vmul.f32 %v7200, %v7184
        %v7217 = vmul.f32 %v7201, %v7185
        %v7218 = vmul.f32 %v7202, %v7186
        %v7219 = vmul.f32 %v7203, %v7187
        %v7220 = vmul.f32 %v7204, %v7188
        %v7221 = vmul.f32 %v7205, %v7189
        %v7222 = vmul.f32 %v7206, %v7190
        %v7223 = vmul.f32 %v7207, %v7191
        %v7224 = vmul.f32 %v7208, %v7192
        %v7225 = vmul.f32 %v7209, %v7193
        %v7226 = vmul.f32 %v7210, %v7194
        %v7227 = vmul.f32 %v7211, %v7195
        %v7228 = vmul.f32 %v7180, 2.0
        %v7229 = vmul.f32 %v7181, 2.0
        %v7230 = vmul.f32 %v7182, 2.0
        %v7231 = vmul.f32 %v7183, 2.0
        %v7232 = vmul.f32 %v7184, 2.0
        %v7233 = vmul.f32 %v7185, 2.0
        %v7234 = vmul.f32 %v7186, 2.0
        %v7235 = vmul.f32 %v7187, 2.0
        %v7236 = vmul.f32 %v7188, 2.0
        %v7237 = vmul.f32 %v7189, 2.0
        %v7238 = vmul.f32 %v7190, 2.0
        %v7239 = vmul.f32 %v7191, 2.0
        %v7240 = vmul.f32 %v7192, 2.0
        %v7241 = vmul.f32 %v7193, 2.0
        %v7242 = vmul.f32 %v7194, 2.0
        %v7243 = vmul.f32 %v7195, 2.0
        %v7244 = vmul.f32 %v7228, %v7180
        %v7245 = vmul.f32 %v7229, %v7181
        %v7246 = vmul.f32 %v7230, %v7182
        %v7247 = vmul.f32 %v7231, %v7183
        %v7248 = vmul.f32 %v7232, %v7184
        %v7249 = vmul.f32 %v7233, %v7185
        %v7250 = vmul.f32 %v7234, %v7186
        %v7251 = vmul.f32 %v7235, %v7187
        %v7252 = vmul.f32 %v7236, %v7188
        %v7253 = vmul.f32 %v7237, %v7189
        %v7254 = vmul.f32 %v7238, %v7190
        %v7255 = vmul.f32 %v7239, %v7191
        %v7256 = vmul.f32 %v7240, %v7192
        %v7257 = vmul.f32 %v7241, %v7193
        %v7258 = vmul.f32 %v7242, %v7194
        %v7259 = vmul.f32 %v7243, %v7195
        %v7260 = vsub.f32 %v7244, 1.0
        %v7261 = vsub.f32 %v7245, 1.0
        %v7262 = vsub.f32 %v7246, 1.0
        %v7263 = vsub.f32 %v7247, 1.0
        %v7264 = vsub.f32 %v7248, 1.0
        %v7265 = vsub.f32 %v7249, 1.0
        %v7266 = vsub.f32 %v7250, 1.0
        %v7267 = vsub.f32 %v7251, 1.0
        %v7268 = vsub.f32 %v7252, 1.0
        %v7269 = vsub.f32 %v7253, 1.0
        %v7270 = vsub.f32 %v7254, 1.0
        %v7271 = vsub.f32 %v7255, 1.0
        %v7272 = vsub.f32 %v7256, 1.0
        %v7273 = vsub.f32 %v7257, 1.0
        %v7274 = vsub.f32 %v7258, 1.0
        %v7275 = vsub.f32 %v7259, 1.0
        %v7276 = vpack.c.bf16 %v316, %v300
        %v7277 = vpack.c.bf16 %v317, %v301
        %v7278 = vpack.c.bf16 %v318, %v302
        %v7279 = vpack.c.bf16 %v319, %v303
        %v7280 = vpack.c.bf16 %v320, %v304
        %v7281 = vpack.c.bf16 %v321, %v305
        %v7282 = vpack.c.bf16 %v322, %v306
        %v7283 = vpack.c.bf16 %v323, %v307
        %v7284 = vpack.c.bf16 %v324, %v308
        %v7285 = vpack.c.bf16 %v325, %v309
        %v7286 = vpack.c.bf16 %v326, %v310
        %v7287 = vpack.c.bf16 %v327, %v311
        %v7288 = vpack.c.bf16 %v328, %v312
        %v7289 = vpack.c.bf16 %v329, %v313
        %v7290 = vpack.c.bf16 %v330, %v314
        %v7291 = vpack.c.bf16 %v331, %v315
        %v7292 = vpack.c.bf16 %v2099, %v435
        %v7293 = vpack.c.bf16 %v2203, %v539
        %v7294 = vpack.c.bf16 %v2307, %v643
        %v7295 = vpack.c.bf16 %v2411, %v747
        %v7296 = vpack.c.bf16 %v2515, %v851
        %v7297 = vpack.c.bf16 %v2619, %v955
        %v7298 = vpack.c.bf16 %v2723, %v1059
        %v7299 = vpack.c.bf16 %v2827, %v1163
        %v7300 = vpack.c.bf16 %v2931, %v1267
        %v7301 = vpack.c.bf16 %v3035, %v1371
        %v7302 = vpack.c.bf16 %v3139, %v1475
        %v7303 = vpack.c.bf16 %v3243, %v1579
        %v7304 = vpack.c.bf16 %v3347, %v1683
        %v7305 = vpack.c.bf16 %v3451, %v1787
        %v7306 = vpack.c.bf16 %v3555, %v1891
        %v7307 = vpack.c.bf16 %v3659, %v1995
        %v7308 = vpack.c.bf16 %v5410, %v3762
        %v7309 = vpack.c.bf16 %v5513, %v3865
        %v7310 = vpack.c.bf16 %v5616, %v3968
        %v7311 = vpack.c.bf16 %v5719, %v4071
        %v7312 = vpack.c.bf16 %v5822, %v4174
        %v7313 = vpack.c.bf16 %v5925, %v4277
        %v7314 = vpack.c.bf16 %v6028, %v4380
        %v7315 = vpack.c.bf16 %v6131, %v4483
        %v7316 = vpack.c.bf16 %v6234, %v4586
        %v7317 = vpack.c.bf16 %v6337, %v4689
        %v7318 = vpack.c.bf16 %v6440, %v4792
        %v7319 = vpack.c.bf16 %v6543, %v4895
        %v7320 = vpack.c.bf16 %v6646, %v4998
        %v7321 = vpack.c.bf16 %v6749, %v5101
        %v7322 = vpack.c.bf16 %v6852, %v5204
        %v7323 = vpack.c.bf16 %v6955, %v5307
        %v7324 = vpack.c.bf16 %v7004, %v6988
        %v7325 = vpack.c.bf16 %v7005, %v6989
        %v7326 = vpack.c.bf16 %v7006, %v6990
        %v7327 = vpack.c.bf16 %v7007, %v6991
        %v7328 = vpack.c.bf16 %v7008, %v6992
        %v7329 = vpack.c.bf16 %v7009, %v6993
        %v7330 = vpack.c.bf16 %v7010, %v6994
        %v7331 = vpack.c.bf16 %v7011, %v6995
        %v7332 = vpack.c.bf16 %v7012, %v6996
        %v7333 = vpack.c.bf16 %v7013, %v6997
        %v7334 = vpack.c.bf16 %v7014, %v6998
        %v7335 = vpack.c.bf16 %v7015, %v6999
        %v7336 = vpack.c.bf16 %v7016, %v7000
        %v7337 = vpack.c.bf16 %v7017, %v7001
        %v7338 = vpack.c.bf16 %v7018, %v7002
        %v7339 = vpack.c.bf16 %v7019, %v7003
        %v7340 = vpack.c.bf16 %v7100, %v7084
        %v7341 = vpack.c.bf16 %v7101, %v7085
        %v7342 = vpack.c.bf16 %v7102, %v7086
        %v7343 = vpack.c.bf16 %v7103, %v7087
        %v7344 = vpack.c.bf16 %v7104, %v7088
        %v7345 = vpack.c.bf16 %v7105, %v7089
        %v7346 = vpack.c.bf16 %v7106, %v7090
        %v7347 = vpack.c.bf16 %v7107, %v7091
        %v7348 = vpack.c.bf16 %v7108, %v7092
        %v7349 = vpack.c.bf16 %v7109, %v7093
        %v7350 = vpack.c.bf16 %v7110, %v7094
        %v7351 = vpack.c.bf16 %v7111, %v7095
        %v7352 = vpack.c.bf16 %v7112, %v7096
        %v7353 = vpack.c.bf16 %v7113, %v7097
        %v7354 = vpack.c.bf16 %v7114, %v7098
        %v7355 = vpack.c.bf16 %v7115, %v7099
        %v7356 = vpack.c.bf16 %v7180, %v7132
        %v7357 = vpack.c.bf16 %v7181, %v7133
        %v7358 = vpack.c.bf16 %v7182, %v7134
        %v7359 = vpack.c.bf16 %v7183, %v7135
        %v7360 = vpack.c.bf16 %v7184, %v7136
        %v7361 = vpack.c.bf16 %v7185, %v7137
        %v7362 = vpack.c.bf16 %v7186, %v7138
        %v7363 = vpack.c.bf16 %v7187, %v7139
        %v7364 = vpack.c.bf16 %v7188, %v7140
        %v7365 = vpack.c.bf16 %v7189, %v7141
        %v7366 = vpack.c.bf16 %v7190, %v7142
        %v7367 = vpack.c.bf16 %v7191, %v7143
        %v7368 = vpack.c.bf16 %v7192, %v7144
        %v7369 = vpack.c.bf16 %v7193, %v7145
        %v7370 = vpack.c.bf16 %v7194, %v7146
        %v7371 = vpack.c.bf16 %v7195, %v7147
        %v7372 = vpack.c.bf16 %v7260, %v7212
        %v7373 = vpack.c.bf16 %v7261, %v7213
        %v7374 = vpack.c.bf16 %v7262, %v7214
        %v7375 = vpack.c.bf16 %v7263, %v7215
        %v7376 = vpack.c.bf16 %v7264, %v7216
        %v7377 = vpack.c.bf16 %v7265, %v7217
        %v7378 = vpack.c.bf16 %v7266, %v7218
        %v7379 = vpack.c.bf16 %v7267, %v7219
        %v7380 = vpack.c.bf16 %v7268, %v7220
        %v7381 = vpack.c.bf16 %v7269, %v7221
        %v7382 = vpack.c.bf16 %v7270, %v7222
        %v7383 = vpack.c.bf16 %v7271, %v7223
        %v7384 = vpack.c.bf16 %v7272, %v7224
        %v7385 = vpack.c.bf16 %v7273, %v7225
        %v7386 = vpack.c.bf16 %v7274, %v7226
        %v7387 = vpack.c.bf16 %v7275, %v7227
        %v7388 = vld [vmem:[%s1] sm:$0xf]
        %v7389 = vld [vmem:[%s1 + $0x4] sm:$0xf]
        %v7390 = vld [vmem:[%s1 + $0x8] sm:$0xf]
        %v7391 = vld [vmem:[%s1 + $0xc] sm:$0xf]
        %v7392 = vld [vmem:[%s2] sm:$0xff]
        %v7393 = vld [vmem:[%s2 + $0x8] sm:$0xff]
        %v7394 = vld [vmem:[%s2 + $0x10] sm:$0xff]
        %v7395 = vld [vmem:[%s2 + $0x18] sm:$0xff]
        %7397 = vset.pattern.permute.xlu0 0
        %7398 = vperm.xlu0 %7397, %v7392
        %v7399 = vpop.permute.xlu0 %7398
        %7402 = vset.pattern.permute.xlu0 0
        %7403 = vperm.xlu0 %7402, %v7393
        %v7404 = vpop.permute.xlu0 %7403
        %7407 = vset.pattern.permute.xlu0 0
        %7408 = vperm.xlu0 %7407, %v7394
        %v7409 = vpop.permute.xlu0 %7408
        %7412 = vset.pattern.permute.xlu0 0
        %7413 = vperm.xlu0 %7412, %v7395
        %v7414 = vpop.permute.xlu0 %7413
        %v7420 = vunpack.c.l.b16 %v7388
        %v7421 = vunpack.c.l.b16 %v7389
        %v7422 = vunpack.c.l.b16 %v7390
        %v7423 = vunpack.c.l.b16 %v7391
        %v7424 = vpack.c.b16 %v7421, %v7420
        %v7425 = vpack.c.b16 %v7423, %v7422
        %vm7426 = vcmask 916480
        %v7428 = vsel %vm7426, %v7424, 0
        %v7431 = vsel %vm7426, %v7425, 0
        %7433 = vmatprep.subr.bf16.mxu0 %v7277
        %7434 = vmatpush1.bf16.msra.mxu0 %v7276
        %7435 = vmatprep.subr.bf16.mxu0 %v7293
        %7436 = vmatpush1.bf16.msra.mxu0 %v7292
        %7437 = vmatprep.subr.bf16.mxu0 %v7309
        %7438 = vmatpush1.bf16.msra.mxu0 %v7308
        %7439 = vmatprep.subr.bf16.mxu0 %v7325
        %7440 = vmatpush1.bf16.msra.mxu0 %v7324
        %7441 = vmatprep.subr.bf16.mxu0 %v7341
        %7442 = vmatpush1.bf16.msra.mxu0 %v7340
        %7443 = vmatprep.subr.bf16.mxu0 %v7357
        %7444 = vmatpush1.bf16.msra.mxu0 %v7356
        %7445 = vmatprep.subr.bf16.mxu0 %v7373
        %7446 = vmatpush1.bf16.msra.mxu0 %v7372
        %7447 = vmatprep.subr.bf16.mxu0 0
        %7448 = vmatpush1.bf16.msra.mxu0 0
        %7449 = vmatprep.subr.bf16.mxu0 0
        %7450 = vmatpush1.bf16.msra.mxu0 0
        %7451 = vmatprep.subr.bf16.mxu0 0
        %7452 = vmatpush1.bf16.msra.mxu0 0
        %7453 = vmatprep.subr.bf16.mxu0 0
        %7454 = vmatpush1.bf16.msra.mxu0 0
        %7455 = vmatprep.subr.bf16.mxu0 0
        %7456 = vmatpush1.bf16.msra.mxu0 0
        %7457 = vmatprep.subr.bf16.mxu0 0
        %7458 = vmatpush1.bf16.msra.mxu0 0
        %7459 = vmatprep.subr.bf16.mxu0 0
        %7460 = vmatpush1.bf16.msra.mxu0 0
        %7461 = vmatprep.subr.bf16.mxu0 0
        %7462 = vmatpush1.bf16.msra.mxu0 0
        %7463 = vmatprep.subr.bf16.mxu0 0
        %7464 = vmatpush1.bf16.msra.mxu0 0
        %7465 = vmatprep.mubr.bf16.mxu0 0
        %7466 = vmatmul.mubr.bf16.gmra.mrb[0].mxu0 %v7428
        %v7467 = vpop.f32.mrb[0].mxu0
        %v7468 = vadd.f32 %v7399, %v7467
        %v7469 = vpop.f32.mrb[0].mxu0
        %v7470 = vadd.f32 %v7399, %v7469
        %v7471 = vpop.f32.mrb[0].mxu0
        %v7472 = vadd.f32 %v7404, %v7471
        %v7473 = vpop.f32.mrb[0].mxu0
        %v7474 = vadd.f32 %v7404, %v7473
        %7475 = vmatprep.mubr.bf16.mxu0 0
        %7476 = vmatmul.mubr.bf16.gmra.mrb[0].mxu0 %v7431
        %v7477 = vpop.f32.mrb[0].mxu0
        %v7478 = vadd.f32 %v7409, %v7477
        %v7479 = vpop.f32.mrb[0].mxu0
        %v7480 = vadd.f32 %v7409, %v7479
        %v7481 = vpop.f32.mrb[0].mxu0
        %v7482 = vadd.f32 %v7414, %v7481
        %v7483 = vpop.f32.mrb[0].mxu0
        %v7484 = vadd.f32 %v7414, %v7483
        %7485 = vdwg.mxu0
        %7486 = vmatprep.subr.bf16.mxu0 %v7279
        %7487 = vmatpush1.bf16.msra.mxu0 %v7278
        %7488 = vmatprep.subr.bf16.mxu0 %v7295
        %7489 = vmatpush1.bf16.msra.mxu0 %v7294
        %7490 = vmatprep.subr.bf16.mxu0 %v7311
        %7491 = vmatpush1.bf16.msra.mxu0 %v7310
        %7492 = vmatprep.subr.bf16.mxu0 %v7327
        %7493 = vmatpush1.bf16.msra.mxu0 %v7326
        %7494 = vmatprep.subr.bf16.mxu0 %v7343
        %7495 = vmatpush1.bf16.msra.mxu0 %v7342
        %7496 = vmatprep.subr.bf16.mxu0 %v7359
        %7497 = vmatpush1.bf16.msra.mxu0 %v7358
        %7498 = vmatprep.subr.bf16.mxu0 %v7375
        %7499 = vmatpush1.bf16.msra.mxu0 %v7374
        %7500 = vmatprep.subr.bf16.mxu0 0
        %7501 = vmatpush1.bf16.msra.mxu0 0
        %7502 = vmatprep.subr.bf16.mxu0 0
        %7503 = vmatpush1.bf16.msra.mxu0 0
        %7504 = vmatprep.subr.bf16.mxu0 0
        %7505 = vmatpush1.bf16.msra.mxu0 0
        %7506 = vmatprep.subr.bf16.mxu0 0
        %7507 = vmatpush1.bf16.msra.mxu0 0
        %7508 = vmatprep.subr.bf16.mxu0 0
        %7509 = vmatpush1.bf16.msra.mxu0 0
        %7510 = vmatprep.subr.bf16.mxu0 0
        %7511 = vmatpush1.bf16.msra.mxu0 0
        %7512 = vmatprep.subr.bf16.mxu0 0
        %7513 = vmatpush1.bf16.msra.mxu0 0
        %7514 = vmatprep.subr.bf16.mxu0 0
        %7515 = vmatpush1.bf16.msra.mxu0 0
        %7516 = vmatprep.subr.bf16.mxu0 0
        %7517 = vmatpush1.bf16.msra.mxu0 0
        %7518 = vmatprep.mubr.bf16.mxu0 0
        %7519 = vmatmul.mubr.bf16.gmra.mrb[0].mxu0 %v7428
        %v7520 = vpop.f32.mrb[0].mxu0
        %v7521 = vadd.f32 %v7399, %v7520
        %v7522 = vpop.f32.mrb[0].mxu0
        %v7523 = vadd.f32 %v7399, %v7522
        %v7524 = vpop.f32.mrb[0].mxu0
        %v7525 = vadd.f32 %v7404, %v7524
        %v7526 = vpop.f32.mrb[0].mxu0
        %v7527 = vadd.f32 %v7404, %v7526
        %7528 = vmatprep.mubr.bf16.mxu0 0
        %7529 = vmatmul.mubr.bf16.gmra.mrb[0].mxu0 %v7431
        %v7530 = vpop.f32.mrb[0].mxu0
        %v7531 = vadd.f32 %v7409, %v7530
        %v7532 = vpop.f32.mrb[0].mxu0
        %v7533 = vadd.f32 %v7409, %v7532
        %v7534 = vpop.f32.mrb[0].mxu0
        %v7535 = vadd.f32 %v7414, %v7534
        %v7536 = vpop.f32.mrb[0].mxu0
        %v7537 = vadd.f32 %v7414, %v7536
        %7538 = vdwg.mxu0
        %7539 = vmatprep.subr.bf16.mxu0 %v7281
        %7540 = vmatpush1.bf16.msra.mxu0 %v7280
        %7541 = vmatprep.subr.bf16.mxu0 %v7297
        %7542 = vmatpush1.bf16.msra.mxu0 %v7296
        %7543 = vmatprep.subr.bf16.mxu0 %v7313
        %7544 = vmatpush1.bf16.msra.mxu0 %v7312
        %7545 = vmatprep.subr.bf16.mxu0 %v7329
        %7546 = vmatpush1.bf16.msra.mxu0 %v7328
        %7547 = vmatprep.subr.bf16.mxu0 %v7345
        %7548 = vmatpush1.bf16.msra.mxu0 %v7344
        %7549 = vmatprep.subr.bf16.mxu0 %v7361
        %7550 = vmatpush1.bf16.msra.mxu0 %v7360
        %7551 = vmatprep.subr.bf16.mxu0 %v7377
        %7552 = vmatpush1.bf16.msra.mxu0 %v7376
        %7553 = vmatprep.subr.bf16.mxu0 0
        %7554 = vmatpush1.bf16.msra.mxu0 0
        %7555 = vmatprep.subr.bf16.mxu0 0
        %7556 = vmatpush1.bf16.msra.mxu0 0
        %7557 = vmatprep.subr.bf16.mxu0 0
        %7558 = vmatpush1.bf16.msra.mxu0 0
        %7559 = vmatprep.subr.bf16.mxu0 0
        %7560 = vmatpush1.bf16.msra.mxu0 0
        %7561 = vmatprep.subr.bf16.mxu0 0
        %7562 = vmatpush1.bf16.msra.mxu0 0
        %7563 = vmatprep.subr.bf16.mxu0 0
        %7564 = vmatpush1.bf16.msra.mxu0 0
        %7565 = vmatprep.subr.bf16.mxu0 0
        %7566 = vmatpush1.bf16.msra.mxu0 0
        %7567 = vmatprep.subr.bf16.mxu0 0
        %7568 = vmatpush1.bf16.msra.mxu0 0
        %7569 = vmatprep.subr.bf16.mxu0 0
        %7570 = vmatpush1.bf16.msra.mxu0 0
        %7571 = vmatprep.mubr.bf16.mxu0 0
        %7572 = vmatmul.mubr.bf16.gmra.mrb[0].mxu0 %v7428
        %v7573 = vpop.f32.mrb[0].mxu0
        %v7574 = vadd.f32 %v7399, %v7573
        %v7575 = vpop.f32.mrb[0].mxu0
        %v7576 = vadd.f32 %v7399, %v7575
        %v7577 = vpop.f32.mrb[0].mxu0
        %v7578 = vadd.f32 %v7404, %v7577
        %v7579 = vpop.f32.mrb[0].mxu0
        %v7580 = vadd.f32 %v7404, %v7579
        %7581 = vmatprep.mubr.bf16.mxu0 0
        %7582 = vmatmul.mubr.bf16.gmra.mrb[0].mxu0 %v7431
        %v7583 = vpop.f32.mrb[0].mxu0
        %v7584 = vadd.f32 %v7409, %v7583
        %v7585 = vpop.f32.mrb[0].mxu0
        %v7586 = vadd.f32 %v7409, %v7585
        %v7587 = vpop.f32.mrb[0].mxu0
        %v7588 = vadd.f32 %v7414, %v7587
        %v7589 = vpop.f32.mrb[0].mxu0
        %v7590 = vadd.f32 %v7414, %v7589
        %7591 = vdwg.mxu0
        %7592 = vmatprep.subr.bf16.mxu0 %v7283
        %7593 = vmatpush1.bf16.msra.mxu0 %v7282
        %7594 = vmatprep.subr.bf16.mxu0 %v7299
        %7595 = vmatpush1.bf16.msra.mxu0 %v7298
        %7596 = vmatprep.subr.bf16.mxu0 %v7315
        %7597 = vmatpush1.bf16.msra.mxu0 %v7314
        %7598 = vmatprep.subr.bf16.mxu0 %v7331
        %7599 = vmatpush1.bf16.msra.mxu0 %v7330
        %7600 = vmatprep.subr.bf16.mxu0 %v7347
        %7601 = vmatpush1.bf16.msra.mxu0 %v7346
        %7602 = vmatprep.subr.bf16.mxu0 %v7363
        %7603 = vmatpush1.bf16.msra.mxu0 %v7362
        %7604 = vmatprep.subr.bf16.mxu0 %v7379
        %7605 = vmatpush1.bf16.msra.mxu0 %v7378
        %7606 = vmatprep.subr.bf16.mxu0 0
        %7607 = vmatpush1.bf16.msra.mxu0 0
        %7608 = vmatprep.subr.bf16.mxu0 0
        %7609 = vmatpush1.bf16.msra.mxu0 0
        %7610 = vmatprep.subr.bf16.mxu0 0
        %7611 = vmatpush1.bf16.msra.mxu0 0
        %7612 = vmatprep.subr.bf16.mxu0 0
        %7613 = vmatpush1.bf16.msra.mxu0 0
        %7614 = vmatprep.subr.bf16.mxu0 0
        %7615 = vmatpush1.bf16.msra.mxu0 0
        %7616 = vmatprep.subr.bf16.mxu0 0
        %7617 = vmatpush1.bf16.msra.mxu0 0
        %7618 = vmatprep.subr.bf16.mxu0 0
        %7619 = vmatpush1.bf16.msra.mxu0 0
        %7620 = vmatprep.subr.bf16.mxu0 0
        %7621 = vmatpush1.bf16.msra.mxu0 0
        %7622 = vmatprep.subr.bf16.mxu0 0
        %7623 = vmatpush1.bf16.msra.mxu0 0
        %7624 = vmatprep.mubr.bf16.mxu0 0
        %7625 = vmatmul.mubr.bf16.gmra.mrb[0].mxu0 %v7428
        %v7626 = vpop.f32.mrb[0].mxu0
        %v7627 = vadd.f32 %v7399, %v7626
        %v7628 = vpop.f32.mrb[0].mxu0
        %v7629 = vadd.f32 %v7399, %v7628
        %v7630 = vpop.f32.mrb[0].mxu0
        %v7631 = vadd.f32 %v7404, %v7630
        %v7632 = vpop.f32.mrb[0].mxu0
        %v7633 = vadd.f32 %v7404, %v7632
        %7634 = vmatprep.mubr.bf16.mxu0 0
        %7635 = vmatmul.mubr.bf16.gmra.mrb[0].mxu0 %v7431
        %v7636 = vpop.f32.mrb[0].mxu0
        %v7637 = vadd.f32 %v7409, %v7636
        %v7638 = vpop.f32.mrb[0].mxu0
        %v7639 = vadd.f32 %v7409, %v7638
        %v7640 = vpop.f32.mrb[0].mxu0
        %v7641 = vadd.f32 %v7414, %v7640
        %v7642 = vpop.f32.mrb[0].mxu0
        %v7643 = vadd.f32 %v7414, %v7642
        %7644 = vdwg.mxu0
        %7645 = vmatprep.subr.bf16.mxu0 %v7285
        %7646 = vmatpush1.bf16.msra.mxu0 %v7284
        %7647 = vmatprep.subr.bf16.mxu0 %v7301
        %7648 = vmatpush1.bf16.msra.mxu0 %v7300
        %7649 = vmatprep.subr.bf16.mxu0 %v7317
        %7650 = vmatpush1.bf16.msra.mxu0 %v7316
        %7651 = vmatprep.subr.bf16.mxu0 %v7333
        %7652 = vmatpush1.bf16.msra.mxu0 %v7332
        %7653 = vmatprep.subr.bf16.mxu0 %v7349
        %7654 = vmatpush1.bf16.msra.mxu0 %v7348
        %7655 = vmatprep.subr.bf16.mxu0 %v7365
        %7656 = vmatpush1.bf16.msra.mxu0 %v7364
        %7657 = vmatprep.subr.bf16.mxu0 %v7381
        %7658 = vmatpush1.bf16.msra.mxu0 %v7380
        %7659 = vmatprep.subr.bf16.mxu0 0
        %7660 = vmatpush1.bf16.msra.mxu0 0
        %7661 = vmatprep.subr.bf16.mxu0 0
        %7662 = vmatpush1.bf16.msra.mxu0 0
        %7663 = vmatprep.subr.bf16.mxu0 0
        %7664 = vmatpush1.bf16.msra.mxu0 0
        %7665 = vmatprep.subr.bf16.mxu0 0
        %7666 = vmatpush1.bf16.msra.mxu0 0
        %7667 = vmatprep.subr.bf16.mxu0 0
        %7668 = vmatpush1.bf16.msra.mxu0 0
        %7669 = vmatprep.subr.bf16.mxu0 0
        %7670 = vmatpush1.bf16.msra.mxu0 0
        %7671 = vmatprep.subr.bf16.mxu0 0
        %7672 = vmatpush1.bf16.msra.mxu0 0
        %7673 = vmatprep.subr.bf16.mxu0 0
        %7674 = vmatpush1.bf16.msra.mxu0 0
        %7675 = vmatprep.subr.bf16.mxu0 0
        %7676 = vmatpush1.bf16.msra.mxu0 0
        %7677 = vmatprep.mubr.bf16.mxu0 0
        %7678 = vmatmul.mubr.bf16.gmra.mrb[0].mxu0 %v7428
        %v7679 = vpop.f32.mrb[0].mxu0
        %v7680 = vadd.f32 %v7399, %v7679
        %v7681 = vpop.f32.mrb[0].mxu0
        %v7682 = vadd.f32 %v7399, %v7681
        %v7683 = vpop.f32.mrb[0].mxu0
        %v7684 = vadd.f32 %v7404, %v7683
        %v7685 = vpop.f32.mrb[0].mxu0
        %v7686 = vadd.f32 %v7404, %v7685
        %7687 = vmatprep.mubr.bf16.mxu0 0
        %7688 = vmatmul.mubr.bf16.gmra.mrb[0].mxu0 %v7431
        %v7689 = vpop.f32.mrb[0].mxu0
        %v7690 = vadd.f32 %v7409, %v7689
        %v7691 = vpop.f32.mrb[0].mxu0
        %v7692 = vadd.f32 %v7409, %v7691
        %v7693 = vpop.f32.mrb[0].mxu0
        %v7694 = vadd.f32 %v7414, %v7693
        %v7695 = vpop.f32.mrb[0].mxu0
        %v7696 = vadd.f32 %v7414, %v7695
        %7697 = vdwg.mxu0
        %7698 = vmatprep.subr.bf16.mxu0 %v7287
        %7699 = vmatpush1.bf16.msra.mxu0 %v7286
        %7700 = vmatprep.subr.bf16.mxu0 %v7303
        %7701 = vmatpush1.bf16.msra.mxu0 %v7302
        %7702 = vmatprep.subr.bf16.mxu0 %v7319
        %7703 = vmatpush1.bf16.msra.mxu0 %v7318
        %7704 = vmatprep.subr.bf16.mxu0 %v7335
        %7705 = vmatpush1.bf16.msra.mxu0 %v7334
        %7706 = vmatprep.subr.bf16.mxu0 %v7351
        %7707 = vmatpush1.bf16.msra.mxu0 %v7350
        %7708 = vmatprep.subr.bf16.mxu0 %v7367
        %7709 = vmatpush1.bf16.msra.mxu0 %v7366
        %7710 = vmatprep.subr.bf16.mxu0 %v7383
        %7711 = vmatpush1.bf16.msra.mxu0 %v7382
        %7712 = vmatprep.subr.bf16.mxu0 0
        %7713 = vmatpush1.bf16.msra.mxu0 0
        %7714 = vmatprep.subr.bf16.mxu0 0
        %7715 = vmatpush1.bf16.msra.mxu0 0
        %7716 = vmatprep.subr.bf16.mxu0 0
        %7717 = vmatpush1.bf16.msra.mxu0 0
        %7718 = vmatprep.subr.bf16.mxu0 0
        %7719 = vmatpush1.bf16.msra.mxu0 0
        %7720 = vmatprep.subr.bf16.mxu0 0
        %7721 = vmatpush1.bf16.msra.mxu0 0
        %7722 = vmatprep.subr.bf16.mxu0 0
        %7723 = vmatpush1.bf16.msra.mxu0 0
        %7724 = vmatprep.subr.bf16.mxu0 0
        %7725 = vmatpush1.bf16.msra.mxu0 0
        %7726 = vmatprep.subr.bf16.mxu0 0
        %7727 = vmatpush1.bf16.msra.mxu0 0
        %7728 = vmatprep.subr.bf16.mxu0 0
        %7729 = vmatpush1.bf16.msra.mxu0 0
        %7730 = vmatprep.mubr.bf16.mxu0 0
        %7731 = vmatmul.mubr.bf16.gmra.mrb[0].mxu0 %v7428
        %v7732 = vpop.f32.mrb[0].mxu0
        %v7733 = vadd.f32 %v7399, %v7732
        %v7734 = vpop.f32.mrb[0].mxu0
        %v7735 = vadd.f32 %v7399, %v7734
        %v7736 = vpop.f32.mrb[0].mxu0
        %v7737 = vadd.f32 %v7404, %v7736
        %v7738 = vpop.f32.mrb[0].mxu0
        %v7739 = vadd.f32 %v7404, %v7738
        %7740 = vmatprep.mubr.bf16.mxu0 0
        %7741 = vmatmul.mubr.bf16.gmra.mrb[0].mxu0 %v7431
        %v7742 = vpop.f32.mrb[0].mxu0
        %v7743 = vadd.f32 %v7409, %v7742
        %v7744 = vpop.f32.mrb[0].mxu0
        %v7745 = vadd.f32 %v7409, %v7744
        %v7746 = vpop.f32.mrb[0].mxu0
        %v7747 = vadd.f32 %v7414, %v7746
        %v7748 = vpop.f32.mrb[0].mxu0
        %v7749 = vadd.f32 %v7414, %v7748
        %7750 = vdwg.mxu0
        %7751 = vmatprep.subr.bf16.mxu0 %v7289
        %7752 = vmatpush1.bf16.msra.mxu0 %v7288
        %7753 = vmatprep.subr.bf16.mxu0 %v7305
        %7754 = vmatpush1.bf16.msra.mxu0 %v7304
        %7755 = vmatprep.subr.bf16.mxu0 %v7321
        %7756 = vmatpush1.bf16.msra.mxu0 %v7320
        %7757 = vmatprep.subr.bf16.mxu0 %v7337
        %7758 = vmatpush1.bf16.msra.mxu0 %v7336
        %7759 = vmatprep.subr.bf16.mxu0 %v7353
        %7760 = vmatpush1.bf16.msra.mxu0 %v7352
        %7761 = vmatprep.subr.bf16.mxu0 %v7369
        %7762 = vmatpush1.bf16.msra.mxu0 %v7368
        %7763 = vmatprep.subr.bf16.mxu0 %v7385
        %7764 = vmatpush1.bf16.msra.mxu0 %v7384
        %7765 = vmatprep.subr.bf16.mxu0 0
        %7766 = vmatpush1.bf16.msra.mxu0 0
        %7767 = vmatprep.subr.bf16.mxu0 0
        %7768 = vmatpush1.bf16.msra.mxu0 0
        %7769 = vmatprep.subr.bf16.mxu0 0
        %7770 = vmatpush1.bf16.msra.mxu0 0
        %7771 = vmatprep.subr.bf16.mxu0 0
        %7772 = vmatpush1.bf16.msra.mxu0 0
        %7773 = vmatprep.subr.bf16.mxu0 0
        %7774 = vmatpush1.bf16.msra.mxu0 0
        %7775 = vmatprep.subr.bf16.mxu0 0
        %7776 = vmatpush1.bf16.msra.mxu0 0
        %7777 = vmatprep.subr.bf16.mxu0 0
        %7778 = vmatpush1.bf16.msra.mxu0 0
        %7779 = vmatprep.subr.bf16.mxu0 0
        %7780 = vmatpush1.bf16.msra.mxu0 0
        %7781 = vmatprep.subr.bf16.mxu0 0
        %7782 = vmatpush1.bf16.msra.mxu0 0
        %7783 = vmatprep.mubr.bf16.mxu0 0
        %7784 = vmatmul.mubr.bf16.gmra.mrb[0].mxu0 %v7428
        %v7785 = vpop.f32.mrb[0].mxu0
        %v7786 = vadd.f32 %v7399, %v7785
        %v7787 = vpop.f32.mrb[0].mxu0
        %v7788 = vadd.f32 %v7399, %v7787
        %v7789 = vpop.f32.mrb[0].mxu0
        %v7790 = vadd.f32 %v7404, %v7789
        %v7791 = vpop.f32.mrb[0].mxu0
        %v7792 = vadd.f32 %v7404, %v7791
        %7793 = vmatprep.mubr.bf16.mxu0 0
        %7794 = vmatmul.mubr.bf16.gmra.mrb[0].mxu0 %v7431
        %v7795 = vpop.f32.mrb[0].mxu0
        %v7796 = vadd.f32 %v7409, %v7795
        %v7797 = vpop.f32.mrb[0].mxu0
        %v7798 = vadd.f32 %v7409, %v7797
        %v7799 = vpop.f32.mrb[0].mxu0
        %v7800 = vadd.f32 %v7414, %v7799
        %v7801 = vpop.f32.mrb[0].mxu0
        %v7802 = vadd.f32 %v7414, %v7801
        %7803 = vdwg.mxu0
        %7804 = vmatprep.subr.bf16.mxu0 %v7291
        %7805 = vmatpush1.bf16.msra.mxu0 %v7290
        %7806 = vmatprep.subr.bf16.mxu0 %v7307
        %7807 = vmatpush1.bf16.msra.mxu0 %v7306
        %7808 = vmatprep.subr.bf16.mxu0 %v7323
        %7809 = vmatpush1.bf16.msra.mxu0 %v7322
        %7810 = vmatprep.subr.bf16.mxu0 %v7339
        %7811 = vmatpush1.bf16.msra.mxu0 %v7338
        %7812 = vmatprep.subr.bf16.mxu0 %v7355
        %7813 = vmatpush1.bf16.msra.mxu0 %v7354
        %7814 = vmatprep.subr.bf16.mxu0 %v7371
        %7815 = vmatpush1.bf16.msra.mxu0 %v7370
        %7816 = vmatprep.subr.bf16.mxu0 %v7387
        %7817 = vmatpush1.bf16.msra.mxu0 %v7386
        %7818 = vmatprep.subr.bf16.mxu0 0
        %7819 = vmatpush1.bf16.msra.mxu0 0
        %7820 = vmatprep.subr.bf16.mxu0 0
        %7821 = vmatpush1.bf16.msra.mxu0 0
        %7822 = vmatprep.subr.bf16.mxu0 0
        %7823 = vmatpush1.bf16.msra.mxu0 0
        %7824 = vmatprep.subr.bf16.mxu0 0
        %7825 = vmatpush1.bf16.msra.mxu0 0
        %7826 = vmatprep.subr.bf16.mxu0 0
        %7827 = vmatpush1.bf16.msra.mxu0 0
        %7828 = vmatprep.subr.bf16.mxu0 0
        %7829 = vmatpush1.bf16.msra.mxu0 0
        %7830 = vmatprep.subr.bf16.mxu0 0
        %7831 = vmatpush1.bf16.msra.mxu0 0
        %7832 = vmatprep.subr.bf16.mxu0 0
        %7833 = vmatpush1.bf16.msra.mxu0 0
        %7834 = vmatprep.subr.bf16.mxu0 0
        %7835 = vmatpush1.bf16.msra.mxu0 0
        %7836 = vmatprep.mubr.bf16.mxu0 0
        %7837 = vmatmul.mubr.bf16.gmra.mrb[0].mxu0 %v7428
        %v7838 = vpop.f32.mrb[0].mxu0
        %v7839 = vadd.f32 %v7399, %v7838
        %v7840 = vpop.f32.mrb[0].mxu0
        %v7841 = vadd.f32 %v7399, %v7840
        %v7842 = vpop.f32.mrb[0].mxu0
        %v7843 = vadd.f32 %v7404, %v7842
        %v7844 = vpop.f32.mrb[0].mxu0
        %v7845 = vadd.f32 %v7404, %v7844
        %7846 = vmatprep.mubr.bf16.mxu0 0
        %7847 = vmatmul.mubr.bf16.gmra.mrb[0].mxu0 %v7431
        %v7848 = vpop.f32.mrb[0].mxu0
        %v7849 = vadd.f32 %v7409, %v7848
        %v7850 = vpop.f32.mrb[0].mxu0
        %v7851 = vadd.f32 %v7409, %v7850
        %v7852 = vpop.f32.mrb[0].mxu0
        %v7853 = vadd.f32 %v7414, %v7852
        %v7854 = vpop.f32.mrb[0].mxu0
        %v7855 = vadd.f32 %v7414, %v7854
        %7856 = vdwg.mxu0
        %v7857 = vmax.f32 %v7468, 0.0
        %v7858 = vmax.f32 %v7470, 0.0
        %v7859 = vmax.f32 %v7521, 0.0
        %v7860 = vmax.f32 %v7523, 0.0
        %v7861 = vmax.f32 %v7574, 0.0
        %v7862 = vmax.f32 %v7576, 0.0
        %v7863 = vmax.f32 %v7627, 0.0
        %v7864 = vmax.f32 %v7629, 0.0
        %v7865 = vmax.f32 %v7680, 0.0
        %v7866 = vmax.f32 %v7682, 0.0
        %v7867 = vmax.f32 %v7733, 0.0
        %v7868 = vmax.f32 %v7735, 0.0
        %v7869 = vmax.f32 %v7786, 0.0
        %v7870 = vmax.f32 %v7788, 0.0
        %v7871 = vmax.f32 %v7839, 0.0
        %v7872 = vmax.f32 %v7841, 0.0
        %v7873 = vmax.f32 %v7472, 0.0
        %v7874 = vmax.f32 %v7474, 0.0
        %v7875 = vmax.f32 %v7525, 0.0
        %v7876 = vmax.f32 %v7527, 0.0
        %v7877 = vmax.f32 %v7578, 0.0
        %v7878 = vmax.f32 %v7580, 0.0
        %v7879 = vmax.f32 %v7631, 0.0
        %v7880 = vmax.f32 %v7633, 0.0
        %v7881 = vmax.f32 %v7684, 0.0
        %v7882 = vmax.f32 %v7686, 0.0
        %v7883 = vmax.f32 %v7737, 0.0
        %v7884 = vmax.f32 %v7739, 0.0
        %v7885 = vmax.f32 %v7790, 0.0
        %v7886 = vmax.f32 %v7792, 0.0
        %v7887 = vmax.f32 %v7843, 0.0
        %v7888 = vmax.f32 %v7845, 0.0
        %v7889 = vmax.f32 %v7478, 0.0
        %v7890 = vmax.f32 %v7480, 0.0
        %v7891 = vmax.f32 %v7531, 0.0
        %v7892 = vmax.f32 %v7533, 0.0
        %v7893 = vmax.f32 %v7584, 0.0
        %v7894 = vmax.f32 %v7586, 0.0
        %v7895 = vmax.f32 %v7637, 0.0
        %v7896 = vmax.f32 %v7639, 0.0
        %v7897 = vmax.f32 %v7690, 0.0
        %v7898 = vmax.f32 %v7692, 0.0
        %v7899 = vmax.f32 %v7743, 0.0
        %v7900 = vmax.f32 %v7745, 0.0
        %v7901 = vmax.f32 %v7796, 0.0
        %v7902 = vmax.f32 %v7798, 0.0
        %v7903 = vmax.f32 %v7849, 0.0
        %v7904 = vmax.f32 %v7851, 0.0
        %v7905 = vmax.f32 %v7482, 0.0
        %v7906 = vmax.f32 %v7484, 0.0
        %v7907 = vmax.f32 %v7535, 0.0
        %v7908 = vmax.f32 %v7537, 0.0
        %v7909 = vmax.f32 %v7588, 0.0
        %v7910 = vmax.f32 %v7590, 0.0
        %v7911 = vmax.f32 %v7641, 0.0
        %v7912 = vmax.f32 %v7643, 0.0
        %v7913 = vmax.f32 %v7694, 0.0
        %v7914 = vmax.f32 %v7696, 0.0
        %v7915 = vmax.f32 %v7747, 0.0
        %v7916 = vmax.f32 %v7749, 0.0
        %v7917 = vmax.f32 %v7800, 0.0
        %v7918 = vmax.f32 %v7802, 0.0
        %v7919 = vmax.f32 %v7853, 0.0
        %v7920 = vmax.f32 %v7855, 0.0
        %v7921 = vpack.c.bf16 %v7873, %v7857
        %v7922 = vpack.c.bf16 %v7874, %v7858
        %v7923 = vpack.c.bf16 %v7875, %v7859
        %v7924 = vpack.c.bf16 %v7876, %v7860
        %v7925 = vpack.c.bf16 %v7877, %v7861
        %v7926 = vpack.c.bf16 %v7878, %v7862
        %v7927 = vpack.c.bf16 %v7879, %v7863
        %v7928 = vpack.c.bf16 %v7880, %v7864
        %v7929 = vpack.c.bf16 %v7881, %v7865
        %v7930 = vpack.c.bf16 %v7882, %v7866
        %v7931 = vpack.c.bf16 %v7883, %v7867
        %v7932 = vpack.c.bf16 %v7884, %v7868
        %v7933 = vpack.c.bf16 %v7885, %v7869
        %v7934 = vpack.c.bf16 %v7886, %v7870
        %v7935 = vpack.c.bf16 %v7887, %v7871
        %v7936 = vpack.c.bf16 %v7888, %v7872
        %v7937 = vpack.c.bf16 %v7905, %v7889
        %v7938 = vpack.c.bf16 %v7906, %v7890
        %v7939 = vpack.c.bf16 %v7907, %v7891
        %v7940 = vpack.c.bf16 %v7908, %v7892
        %v7941 = vpack.c.bf16 %v7909, %v7893
        %v7942 = vpack.c.bf16 %v7910, %v7894
        %v7943 = vpack.c.bf16 %v7911, %v7895
        %v7944 = vpack.c.bf16 %v7912, %v7896
        %v7945 = vpack.c.bf16 %v7913, %v7897
        %v7946 = vpack.c.bf16 %v7914, %v7898
        %v7947 = vpack.c.bf16 %v7915, %v7899
        %v7948 = vpack.c.bf16 %v7916, %v7900
        %v7949 = vpack.c.bf16 %v7917, %v7901
        %v7950 = vpack.c.bf16 %v7918, %v7902
        %v7951 = vpack.c.bf16 %v7919, %v7903
        %v7952 = vpack.c.bf16 %v7920, %v7904
        %v7953 = vld [vmem:[%s3] sm:$0xff]
        %v7954 = vld [vmem:[%s3 + $0x8] sm:$0xff]
        %v7955 = vld [vmem:[%s3 + $0x10] sm:$0xff]
        %v7956 = vld [vmem:[%s3 + $0x18] sm:$0xff]
        %v7957 = vld [vmem:[%s4] sm:$0xff]
        %v7958 = vld [vmem:[%s4 + $0x8] sm:$0xff]
        %v7959 = vld [vmem:[%s4 + $0x10] sm:$0xff]
        %v7960 = vld [vmem:[%s4 + $0x18] sm:$0xff]
        %7962 = vset.pattern.permute.xlu0 0
        %7963 = vperm.xlu0 %7962, %v7957
        %v7964 = vpop.permute.xlu0 %7963
        %7967 = vset.pattern.permute.xlu0 0
        %7968 = vperm.xlu0 %7967, %v7958
        %v7969 = vpop.permute.xlu0 %7968
        %7972 = vset.pattern.permute.xlu0 0
        %7973 = vperm.xlu0 %7972, %v7959
        %v7974 = vpop.permute.xlu0 %7973
        %7977 = vset.pattern.permute.xlu0 0
        %7978 = vperm.xlu0 %7977, %v7960
        %v7979 = vpop.permute.xlu0 %7978
        %v7985 = vunpack.c.l.b16 %v7953
        %v7986 = vunpack.c.h.b16 %v7953
        %v7987 = vunpack.c.l.b16 %v7954
        %v7988 = vunpack.c.h.b16 %v7954
        %v7989 = vunpack.c.l.b16 %v7955
        %v7990 = vunpack.c.h.b16 %v7955
        %v7991 = vunpack.c.l.b16 %v7956
        %v7992 = vunpack.c.h.b16 %v7956
        %v7993 = vpack.c.b16 %v7987, %v7985
        %v7994 = vpack.c.b16 %v7988, %v7986
        %v7995 = vpack.c.b16 %v7991, %v7989
        %v7996 = vpack.c.b16 %v7992, %v7990
        %vm7999 = vcmask 130048
        %v8001 = vsel %vm7999, %v7994, 0
        %v8004 = vsel %vm7999, %v7996, 0
        %8006 = vmatprep.subr.bf16.mxu0 %v7922
        %8007 = vmatpush1.bf16.msra.mxu0 %v7921
        %8008 = vmatprep.subr.bf16.mxu0 %v7938
        %8009 = vmatpush1.bf16.msra.mxu0 %v7937
        %8010 = vmatprep.subr.bf16.mxu0 %v7277
        %8011 = vmatpush1.bf16.msra.mxu0 %v7276
        %8012 = vmatprep.subr.bf16.mxu0 %v7293
        %8013 = vmatpush1.bf16.msra.mxu0 %v7292
        %8014 = vmatprep.subr.bf16.mxu0 %v7309
        %8015 = vmatpush1.bf16.msra.mxu0 %v7308
        %8016 = vmatprep.subr.bf16.mxu0 %v7325
        %8017 = vmatpush1.bf16.msra.mxu0 %v7324
        %8018 = vmatprep.subr.bf16.mxu0 %v7341
        %8019 = vmatpush1.bf16.msra.mxu0 %v7340
        %8020 = vmatprep.subr.bf16.mxu0 %v7357
        %8021 = vmatpush1.bf16.msra.mxu0 %v7356
        %8022 = vmatprep.subr.bf16.mxu0 %v7373
        %8023 = vmatpush1.bf16.msra.mxu0 %v7372
        %8024 = vmatprep.subr.bf16.mxu0 0
        %8025 = vmatpush1.bf16.msra.mxu0 0
        %8026 = vmatprep.subr.bf16.mxu0 0
        %8027 = vmatpush1.bf16.msra.mxu0 0
        %8028 = vmatprep.subr.bf16.mxu0 0
        %8029 = vmatpush1.bf16.msra.mxu0 0
        %8030 = vmatprep.subr.bf16.mxu0 0
        %8031 = vmatpush1.bf16.msra.mxu0 0
        %8032 = vmatprep.subr.bf16.mxu0 0
        %8033 = vmatpush1.bf16.msra.mxu0 0
        %8034 = vmatprep.subr.bf16.mxu0 0
        %8035 = vmatpush1.bf16.msra.mxu0 0
        %8036 = vmatprep.subr.bf16.mxu0 0
        %8037 = vmatpush1.bf16.msra.mxu0 0
        %8038 = vmatprep.mubr.bf16.mxu0 %v8001
        %8039 = vmatmul.mubr.bf16.gmra.mrb[0].mxu0 %v7993
        %v8040 = vpop.f32.mrb[0].mxu0
        %v8041 = vadd.f32 %v7964, %v8040
        %v8042 = vpop.f32.mrb[0].mxu0
        %v8043 = vadd.f32 %v7964, %v8042
        %v8044 = vpop.f32.mrb[0].mxu0
        %v8045 = vadd.f32 %v7969, %v8044
        %v8046 = vpop.f32.mrb[0].mxu0
        %v8047 = vadd.f32 %v7969, %v8046
        %8048 = vmatprep.mubr.bf16.mxu0 %v8004
        %8049 = vmatmul.mubr.bf16.gmra.mrb[0].mxu0 %v7995
        %v8050 = vpop.f32.mrb[0].mxu0
        %v8051 = vadd.f32 %v7974, %v8050
        %v8052 = vpop.f32.mrb[0].mxu0
        %v8053 = vadd.f32 %v7974, %v8052
        %v8054 = vpop.f32.mrb[0].mxu0
        %v8055 = vadd.f32 %v7979, %v8054
        %v8056 = vpop.f32.mrb[0].mxu0
        %v8057 = vadd.f32 %v7979, %v8056
        %8058 = vdwg.mxu0
        %8059 = vmatprep.subr.bf16.mxu0 %v7924
        %8060 = vmatpush1.bf16.msra.mxu0 %v7923
        %8061 = vmatprep.subr.bf16.mxu0 %v7940
        %8062 = vmatpush1.bf16.msra.mxu0 %v7939
        %8063 = vmatprep.subr.bf16.mxu0 %v7279
        %8064 = vmatpush1.bf16.msra.mxu0 %v7278
        %8065 = vmatprep.subr.bf16.mxu0 %v7295
        %8066 = vmatpush1.bf16.msra.mxu0 %v7294
        %8067 = vmatprep.subr.bf16.mxu0 %v7311
        %8068 = vmatpush1.bf16.msra.mxu0 %v7310
        %8069 = vmatprep.subr.bf16.mxu0 %v7327
        %8070 = vmatpush1.bf16.msra.mxu0 %v7326
        %8071 = vmatprep.subr.bf16.mxu0 %v7343
        %8072 = vmatpush1.bf16.msra.mxu0 %v7342
        %8073 = vmatprep.subr.bf16.mxu0 %v7359
        %8074 = vmatpush1.bf16.msra.mxu0 %v7358
        %8075 = vmatprep.subr.bf16.mxu0 %v7375
        %8076 = vmatpush1.bf16.msra.mxu0 %v7374
        %8077 = vmatprep.subr.bf16.mxu0 0
        %8078 = vmatpush1.bf16.msra.mxu0 0
        %8079 = vmatprep.subr.bf16.mxu0 0
        %8080 = vmatpush1.bf16.msra.mxu0 0
        %8081 = vmatprep.subr.bf16.mxu0 0
        %8082 = vmatpush1.bf16.msra.mxu0 0
        %8083 = vmatprep.subr.bf16.mxu0 0
        %8084 = vmatpush1.bf16.msra.mxu0 0
        %8085 = vmatprep.subr.bf16.mxu0 0
        %8086 = vmatpush1.bf16.msra.mxu0 0
        %8087 = vmatprep.subr.bf16.mxu0 0
        %8088 = vmatpush1.bf16.msra.mxu0 0
        %8089 = vmatprep.subr.bf16.mxu0 0
        %8090 = vmatpush1.bf16.msra.mxu0 0
        %8091 = vmatprep.mubr.bf16.mxu0 %v8001
        %8092 = vmatmul.mubr.bf16.gmra.mrb[0].mxu0 %v7993
        %v8093 = vpop.f32.mrb[0].mxu0
        %v8094 = vadd.f32 %v7964, %v8093
        %v8095 = vpop.f32.mrb[0].mxu0
        %v8096 = vadd.f32 %v7964, %v8095
        %v8097 = vpop.f32.mrb[0].mxu0
        %v8098 = vadd.f32 %v7969, %v8097
        %v8099 = vpop.f32.mrb[0].mxu0
        %v8100 = vadd.f32 %v7969, %v8099
        %8101 = vmatprep.mubr.bf16.mxu0 %v8004
        %8102 = vmatmul.mubr.bf16.gmra.mrb[0].mxu0 %v7995
        %v8103 = vpop.f32.mrb[0].mxu0
        %v8104 = vadd.f32 %v7974, %v8103
        %v8105 = vpop.f32.mrb[0].mxu0
        %v8106 = vadd.f32 %v7974, %v8105
        %v8107 = vpop.f32.mrb[0].mxu0
        %v8108 = vadd.f32 %v7979, %v8107
        %v8109 = vpop.f32.mrb[0].mxu0
        %v8110 = vadd.f32 %v7979, %v8109
        %8111 = vdwg.mxu0
        %8112 = vmatprep.subr.bf16.mxu0 %v7926
        %8113 = vmatpush1.bf16.msra.mxu0 %v7925
        %8114 = vmatprep.subr.bf16.mxu0 %v7942
        %8115 = vmatpush1.bf16.msra.mxu0 %v7941
        %8116 = vmatprep.subr.bf16.mxu0 %v7281
        %8117 = vmatpush1.bf16.msra.mxu0 %v7280
        %8118 = vmatprep.subr.bf16.mxu0 %v7297
        %8119 = vmatpush1.bf16.msra.mxu0 %v7296
        %8120 = vmatprep.subr.bf16.mxu0 %v7313
        %8121 = vmatpush1.bf16.msra.mxu0 %v7312
        %8122 = vmatprep.subr.bf16.mxu0 %v7329
        %8123 = vmatpush1.bf16.msra.mxu0 %v7328
        %8124 = vmatprep.subr.bf16.mxu0 %v7345
        %8125 = vmatpush1.bf16.msra.mxu0 %v7344
        %8126 = vmatprep.subr.bf16.mxu0 %v7361
        %8127 = vmatpush1.bf16.msra.mxu0 %v7360
        %8128 = vmatprep.subr.bf16.mxu0 %v7377
        %8129 = vmatpush1.bf16.msra.mxu0 %v7376
        %8130 = vmatprep.subr.bf16.mxu0 0
        %8131 = vmatpush1.bf16.msra.mxu0 0
        %8132 = vmatprep.subr.bf16.mxu0 0
        %8133 = vmatpush1.bf16.msra.mxu0 0
        %8134 = vmatprep.subr.bf16.mxu0 0
        %8135 = vmatpush1.bf16.msra.mxu0 0
        %8136 = vmatprep.subr.bf16.mxu0 0
        %8137 = vmatpush1.bf16.msra.mxu0 0
        %8138 = vmatprep.subr.bf16.mxu0 0
        %8139 = vmatpush1.bf16.msra.mxu0 0
        %8140 = vmatprep.subr.bf16.mxu0 0
        %8141 = vmatpush1.bf16.msra.mxu0 0
        %8142 = vmatprep.subr.bf16.mxu0 0
        %8143 = vmatpush1.bf16.msra.mxu0 0
        %8144 = vmatprep.mubr.bf16.mxu0 %v8001
        %8145 = vmatmul.mubr.bf16.gmra.mrb[0].mxu0 %v7993
        %v8146 = vpop.f32.mrb[0].mxu0
        %v8147 = vadd.f32 %v7964, %v8146
        %v8148 = vpop.f32.mrb[0].mxu0
        %v8149 = vadd.f32 %v7964, %v8148
        %v8150 = vpop.f32.mrb[0].mxu0
        %v8151 = vadd.f32 %v7969, %v8150
        %v8152 = vpop.f32.mrb[0].mxu0
        %v8153 = vadd.f32 %v7969, %v8152
        %8154 = vmatprep.mubr.bf16.mxu0 %v8004
        %8155 = vmatmul.mubr.bf16.gmra.mrb[0].mxu0 %v7995
        %v8156 = vpop.f32.mrb[0].mxu0
        %v8157 = vadd.f32 %v7974, %v8156
        %v8158 = vpop.f32.mrb[0].mxu0
        %v8159 = vadd.f32 %v7974, %v8158
        %v8160 = vpop.f32.mrb[0].mxu0
        %v8161 = vadd.f32 %v7979, %v8160
        %v8162 = vpop.f32.mrb[0].mxu0
        %v8163 = vadd.f32 %v7979, %v8162
        %8164 = vdwg.mxu0
        %8165 = vmatprep.subr.bf16.mxu0 %v7928
        %8166 = vmatpush1.bf16.msra.mxu0 %v7927
        %8167 = vmatprep.subr.bf16.mxu0 %v7944
        %8168 = vmatpush1.bf16.msra.mxu0 %v7943
        %8169 = vmatprep.subr.bf16.mxu0 %v7283
        %8170 = vmatpush1.bf16.msra.mxu0 %v7282
        %8171 = vmatprep.subr.bf16.mxu0 %v7299
        %8172 = vmatpush1.bf16.msra.mxu0 %v7298
        %8173 = vmatprep.subr.bf16.mxu0 %v7315
        %8174 = vmatpush1.bf16.msra.mxu0 %v7314
        %8175 = vmatprep.subr.bf16.mxu0 %v7331
        %8176 = vmatpush1.bf16.msra.mxu0 %v7330
        %8177 = vmatprep.subr.bf16.mxu0 %v7347
        %8178 = vmatpush1.bf16.msra.mxu0 %v7346
        %8179 = vmatprep.subr.bf16.mxu0 %v7363
        %8180 = vmatpush1.bf16.msra.mxu0 %v7362
        %8181 = vmatprep.subr.bf16.mxu0 %v7379
        %8182 = vmatpush1.bf16.msra.mxu0 %v7378
        %8183 = vmatprep.subr.bf16.mxu0 0
        %8184 = vmatpush1.bf16.msra.mxu0 0
        %8185 = vmatprep.subr.bf16.mxu0 0
        %8186 = vmatpush1.bf16.msra.mxu0 0
        %8187 = vmatprep.subr.bf16.mxu0 0
        %8188 = vmatpush1.bf16.msra.mxu0 0
        %8189 = vmatprep.subr.bf16.mxu0 0
        %8190 = vmatpush1.bf16.msra.mxu0 0
        %8191 = vmatprep.subr.bf16.mxu0 0
        %8192 = vmatpush1.bf16.msra.mxu0 0
        %8193 = vmatprep.subr.bf16.mxu0 0
        %8194 = vmatpush1.bf16.msra.mxu0 0
        %8195 = vmatprep.subr.bf16.mxu0 0
        %8196 = vmatpush1.bf16.msra.mxu0 0
        %8197 = vmatprep.mubr.bf16.mxu0 %v8001
        %8198 = vmatmul.mubr.bf16.gmra.mrb[0].mxu0 %v7993
        %v8199 = vpop.f32.mrb[0].mxu0
        %v8200 = vadd.f32 %v7964, %v8199
        %v8201 = vpop.f32.mrb[0].mxu0
        %v8202 = vadd.f32 %v7964, %v8201
        %v8203 = vpop.f32.mrb[0].mxu0
        %v8204 = vadd.f32 %v7969, %v8203
        %v8205 = vpop.f32.mrb[0].mxu0
        %v8206 = vadd.f32 %v7969, %v8205
        %8207 = vmatprep.mubr.bf16.mxu0 %v8004
        %8208 = vmatmul.mubr.bf16.gmra.mrb[0].mxu0 %v7995
        %v8209 = vpop.f32.mrb[0].mxu0
        %v8210 = vadd.f32 %v7974, %v8209
        %v8211 = vpop.f32.mrb[0].mxu0
        %v8212 = vadd.f32 %v7974, %v8211
        %v8213 = vpop.f32.mrb[0].mxu0
        %v8214 = vadd.f32 %v7979, %v8213
        %v8215 = vpop.f32.mrb[0].mxu0
        %v8216 = vadd.f32 %v7979, %v8215
        %8217 = vdwg.mxu0
        %8218 = vmatprep.subr.bf16.mxu0 %v7930
        %8219 = vmatpush1.bf16.msra.mxu0 %v7929
        %8220 = vmatprep.subr.bf16.mxu0 %v7946
        %8221 = vmatpush1.bf16.msra.mxu0 %v7945
        %8222 = vmatprep.subr.bf16.mxu0 %v7285
        %8223 = vmatpush1.bf16.msra.mxu0 %v7284
        %8224 = vmatprep.subr.bf16.mxu0 %v7301
        %8225 = vmatpush1.bf16.msra.mxu0 %v7300
        %8226 = vmatprep.subr.bf16.mxu0 %v7317
        %8227 = vmatpush1.bf16.msra.mxu0 %v7316
        %8228 = vmatprep.subr.bf16.mxu0 %v7333
        %8229 = vmatpush1.bf16.msra.mxu0 %v7332
        %8230 = vmatprep.subr.bf16.mxu0 %v7349
        %8231 = vmatpush1.bf16.msra.mxu0 %v7348
        %8232 = vmatprep.subr.bf16.mxu0 %v7365
        %8233 = vmatpush1.bf16.msra.mxu0 %v7364
        %8234 = vmatprep.subr.bf16.mxu0 %v7381
        %8235 = vmatpush1.bf16.msra.mxu0 %v7380
        %8236 = vmatprep.subr.bf16.mxu0 0
        %8237 = vmatpush1.bf16.msra.mxu0 0
        %8238 = vmatprep.subr.bf16.mxu0 0
        %8239 = vmatpush1.bf16.msra.mxu0 0
        %8240 = vmatprep.subr.bf16.mxu0 0
        %8241 = vmatpush1.bf16.msra.mxu0 0
        %8242 = vmatprep.subr.bf16.mxu0 0
        %8243 = vmatpush1.bf16.msra.mxu0 0
        %8244 = vmatprep.subr.bf16.mxu0 0
        %8245 = vmatpush1.bf16.msra.mxu0 0
        %8246 = vmatprep.subr.bf16.mxu0 0
        %8247 = vmatpush1.bf16.msra.mxu0 0
        %8248 = vmatprep.subr.bf16.mxu0 0
        %8249 = vmatpush1.bf16.msra.mxu0 0
        %8250 = vmatprep.mubr.bf16.mxu0 %v8001
        %8251 = vmatmul.mubr.bf16.gmra.mrb[0].mxu0 %v7993
        %v8252 = vpop.f32.mrb[0].mxu0
        %v8253 = vadd.f32 %v7964, %v8252
        %v8254 = vpop.f32.mrb[0].mxu0
        %v8255 = vadd.f32 %v7964, %v8254
        %v8256 = vpop.f32.mrb[0].mxu0
        %v8257 = vadd.f32 %v7969, %v8256
        %v8258 = vpop.f32.mrb[0].mxu0
        %v8259 = vadd.f32 %v7969, %v8258
        %8260 = vmatprep.mubr.bf16.mxu0 %v8004
        %8261 = vmatmul.mubr.bf16.gmra.mrb[0].mxu0 %v7995
        %v8262 = vpop.f32.mrb[0].mxu0
        %v8263 = vadd.f32 %v7974, %v8262
        %v8264 = vpop.f32.mrb[0].mxu0
        %v8265 = vadd.f32 %v7974, %v8264
        %v8266 = vpop.f32.mrb[0].mxu0
        %v8267 = vadd.f32 %v7979, %v8266
        %v8268 = vpop.f32.mrb[0].mxu0
        %v8269 = vadd.f32 %v7979, %v8268
        %8270 = vdwg.mxu0
        %8271 = vmatprep.subr.bf16.mxu0 %v7932
        %8272 = vmatpush1.bf16.msra.mxu0 %v7931
        %8273 = vmatprep.subr.bf16.mxu0 %v7948
        %8274 = vmatpush1.bf16.msra.mxu0 %v7947
        %8275 = vmatprep.subr.bf16.mxu0 %v7287
        %8276 = vmatpush1.bf16.msra.mxu0 %v7286
        %8277 = vmatprep.subr.bf16.mxu0 %v7303
        %8278 = vmatpush1.bf16.msra.mxu0 %v7302
        %8279 = vmatprep.subr.bf16.mxu0 %v7319
        %8280 = vmatpush1.bf16.msra.mxu0 %v7318
        %8281 = vmatprep.subr.bf16.mxu0 %v7335
        %8282 = vmatpush1.bf16.msra.mxu0 %v7334
        %8283 = vmatprep.subr.bf16.mxu0 %v7351
        %8284 = vmatpush1.bf16.msra.mxu0 %v7350
        %8285 = vmatprep.subr.bf16.mxu0 %v7367
        %8286 = vmatpush1.bf16.msra.mxu0 %v7366
        %8287 = vmatprep.subr.bf16.mxu0 %v7383
        %8288 = vmatpush1.bf16.msra.mxu0 %v7382
        %8289 = vmatprep.subr.bf16.mxu0 0
        %8290 = vmatpush1.bf16.msra.mxu0 0
        %8291 = vmatprep.subr.bf16.mxu0 0
        %8292 = vmatpush1.bf16.msra.mxu0 0
        %8293 = vmatprep.subr.bf16.mxu0 0
        %8294 = vmatpush1.bf16.msra.mxu0 0
        %8295 = vmatprep.subr.bf16.mxu0 0
        %8296 = vmatpush1.bf16.msra.mxu0 0
        %8297 = vmatprep.subr.bf16.mxu0 0
        %8298 = vmatpush1.bf16.msra.mxu0 0
        %8299 = vmatprep.subr.bf16.mxu0 0
        %8300 = vmatpush1.bf16.msra.mxu0 0
        %8301 = vmatprep.subr.bf16.mxu0 0
        %8302 = vmatpush1.bf16.msra.mxu0 0
        %8303 = vmatprep.mubr.bf16.mxu0 %v8001
        %8304 = vmatmul.mubr.bf16.gmra.mrb[0].mxu0 %v7993
        %v8305 = vpop.f32.mrb[0].mxu0
        %v8306 = vadd.f32 %v7964, %v8305
        %v8307 = vpop.f32.mrb[0].mxu0
        %v8308 = vadd.f32 %v7964, %v8307
        %v8309 = vpop.f32.mrb[0].mxu0
        %v8310 = vadd.f32 %v7969, %v8309
        %v8311 = vpop.f32.mrb[0].mxu0
        %v8312 = vadd.f32 %v7969, %v8311
        %8313 = vmatprep.mubr.bf16.mxu0 %v8004
        %8314 = vmatmul.mubr.bf16.gmra.mrb[0].mxu0 %v7995
        %v8315 = vpop.f32.mrb[0].mxu0
        %v8316 = vadd.f32 %v7974, %v8315
        %v8317 = vpop.f32.mrb[0].mxu0
        %v8318 = vadd.f32 %v7974, %v8317
        %v8319 = vpop.f32.mrb[0].mxu0
        %v8320 = vadd.f32 %v7979, %v8319
        %v8321 = vpop.f32.mrb[0].mxu0
        %v8322 = vadd.f32 %v7979, %v8321
        %8323 = vdwg.mxu0
        %8324 = vmatprep.subr.bf16.mxu0 %v7934
        %8325 = vmatpush1.bf16.msra.mxu0 %v7933
        %8326 = vmatprep.subr.bf16.mxu0 %v7950
        %8327 = vmatpush1.bf16.msra.mxu0 %v7949
        %8328 = vmatprep.subr.bf16.mxu0 %v7289
        %8329 = vmatpush1.bf16.msra.mxu0 %v7288
        %8330 = vmatprep.subr.bf16.mxu0 %v7305
        %8331 = vmatpush1.bf16.msra.mxu0 %v7304
        %8332 = vmatprep.subr.bf16.mxu0 %v7321
        %8333 = vmatpush1.bf16.msra.mxu0 %v7320
        %8334 = vmatprep.subr.bf16.mxu0 %v7337
        %8335 = vmatpush1.bf16.msra.mxu0 %v7336
        %8336 = vmatprep.subr.bf16.mxu0 %v7353
        %8337 = vmatpush1.bf16.msra.mxu0 %v7352
        %8338 = vmatprep.subr.bf16.mxu0 %v7369
        %8339 = vmatpush1.bf16.msra.mxu0 %v7368
        %8340 = vmatprep.subr.bf16.mxu0 %v7385
        %8341 = vmatpush1.bf16.msra.mxu0 %v7384
        %8342 = vmatprep.subr.bf16.mxu0 0
        %8343 = vmatpush1.bf16.msra.mxu0 0
        %8344 = vmatprep.subr.bf16.mxu0 0
        %8345 = vmatpush1.bf16.msra.mxu0 0
        %8346 = vmatprep.subr.bf16.mxu0 0
        %8347 = vmatpush1.bf16.msra.mxu0 0
        %8348 = vmatprep.subr.bf16.mxu0 0
        %8349 = vmatpush1.bf16.msra.mxu0 0
        %8350 = vmatprep.subr.bf16.mxu0 0
        %8351 = vmatpush1.bf16.msra.mxu0 0
        %8352 = vmatprep.subr.bf16.mxu0 0
        %8353 = vmatpush1.bf16.msra.mxu0 0
        %8354 = vmatprep.subr.bf16.mxu0 0
        %8355 = vmatpush1.bf16.msra.mxu0 0
        %8356 = vmatprep.mubr.bf16.mxu0 %v8001
        %8357 = vmatmul.mubr.bf16.gmra.mrb[0].mxu0 %v7993
        %v8358 = vpop.f32.mrb[0].mxu0
        %v8359 = vadd.f32 %v7964, %v8358
        %v8360 = vpop.f32.mrb[0].mxu0
        %v8361 = vadd.f32 %v7964, %v8360
        %v8362 = vpop.f32.mrb[0].mxu0
        %v8363 = vadd.f32 %v7969, %v8362
        %v8364 = vpop.f32.mrb[0].mxu0
        %v8365 = vadd.f32 %v7969, %v8364
        %8366 = vmatprep.mubr.bf16.mxu0 %v8004
        %8367 = vmatmul.mubr.bf16.gmra.mrb[0].mxu0 %v7995
        %v8368 = vpop.f32.mrb[0].mxu0
        %v8369 = vadd.f32 %v7974, %v8368
        %v8370 = vpop.f32.mrb[0].mxu0
        %v8371 = vadd.f32 %v7974, %v8370
        %v8372 = vpop.f32.mrb[0].mxu0
        %v8373 = vadd.f32 %v7979, %v8372
        %v8374 = vpop.f32.mrb[0].mxu0
        %v8375 = vadd.f32 %v7979, %v8374
        %8376 = vdwg.mxu0
        %8377 = vmatprep.subr.bf16.mxu0 %v7936
        %8378 = vmatpush1.bf16.msra.mxu0 %v7935
        %8379 = vmatprep.subr.bf16.mxu0 %v7952
        %8380 = vmatpush1.bf16.msra.mxu0 %v7951
        %8381 = vmatprep.subr.bf16.mxu0 %v7291
        %8382 = vmatpush1.bf16.msra.mxu0 %v7290
        %8383 = vmatprep.subr.bf16.mxu0 %v7307
        %8384 = vmatpush1.bf16.msra.mxu0 %v7306
        %8385 = vmatprep.subr.bf16.mxu0 %v7323
        %8386 = vmatpush1.bf16.msra.mxu0 %v7322
        %8387 = vmatprep.subr.bf16.mxu0 %v7339
        %8388 = vmatpush1.bf16.msra.mxu0 %v7338
        %8389 = vmatprep.subr.bf16.mxu0 %v7355
        %8390 = vmatpush1.bf16.msra.mxu0 %v7354
        %8391 = vmatprep.subr.bf16.mxu0 %v7371
        %8392 = vmatpush1.bf16.msra.mxu0 %v7370
        %8393 = vmatprep.subr.bf16.mxu0 %v7387
        %8394 = vmatpush1.bf16.msra.mxu0 %v7386
        %8395 = vmatprep.subr.bf16.mxu0 0
        %8396 = vmatpush1.bf16.msra.mxu0 0
        %8397 = vmatprep.subr.bf16.mxu0 0
        %8398 = vmatpush1.bf16.msra.mxu0 0
        %8399 = vmatprep.subr.bf16.mxu0 0
        %8400 = vmatpush1.bf16.msra.mxu0 0
        %8401 = vmatprep.subr.bf16.mxu0 0
        %8402 = vmatpush1.bf16.msra.mxu0 0
        %8403 = vmatprep.subr.bf16.mxu0 0
        %8404 = vmatpush1.bf16.msra.mxu0 0
        %8405 = vmatprep.subr.bf16.mxu0 0
        %8406 = vmatpush1.bf16.msra.mxu0 0
        %8407 = vmatprep.subr.bf16.mxu0 0
        %8408 = vmatpush1.bf16.msra.mxu0 0
        %8409 = vmatprep.mubr.bf16.mxu0 %v8001
        %8410 = vmatmul.mubr.bf16.gmra.mrb[0].mxu0 %v7993
        %v8411 = vpop.f32.mrb[0].mxu0
        %v8412 = vadd.f32 %v7964, %v8411
        %v8413 = vpop.f32.mrb[0].mxu0
        %v8414 = vadd.f32 %v7964, %v8413
        %v8415 = vpop.f32.mrb[0].mxu0
        %v8416 = vadd.f32 %v7969, %v8415
        %v8417 = vpop.f32.mrb[0].mxu0
        %v8418 = vadd.f32 %v7969, %v8417
        %8419 = vmatprep.mubr.bf16.mxu0 %v8004
        %8420 = vmatmul.mubr.bf16.gmra.mrb[0].mxu0 %v7995
        %v8421 = vpop.f32.mrb[0].mxu0
        %v8422 = vadd.f32 %v7974, %v8421
        %v8423 = vpop.f32.mrb[0].mxu0
        %v8424 = vadd.f32 %v7974, %v8423
        %v8425 = vpop.f32.mrb[0].mxu0
        %v8426 = vadd.f32 %v7979, %v8425
        %v8427 = vpop.f32.mrb[0].mxu0
        %v8428 = vadd.f32 %v7979, %v8427
        %8429 = vdwg.mxu0
        %v8430 = vmax.f32 %v8041, 0.0
        %v8431 = vmax.f32 %v8043, 0.0
        %v8432 = vmax.f32 %v8094, 0.0
        %v8433 = vmax.f32 %v8096, 0.0
        %v8434 = vmax.f32 %v8147, 0.0
        %v8435 = vmax.f32 %v8149, 0.0
        %v8436 = vmax.f32 %v8200, 0.0
        %v8437 = vmax.f32 %v8202, 0.0
        %v8438 = vmax.f32 %v8253, 0.0
        %v8439 = vmax.f32 %v8255, 0.0
        %v8440 = vmax.f32 %v8306, 0.0
        %v8441 = vmax.f32 %v8308, 0.0
        %v8442 = vmax.f32 %v8359, 0.0
        %v8443 = vmax.f32 %v8361, 0.0
        %v8444 = vmax.f32 %v8412, 0.0
        %v8445 = vmax.f32 %v8414, 0.0
        %v8446 = vmax.f32 %v8045, 0.0
        %v8447 = vmax.f32 %v8047, 0.0
        %v8448 = vmax.f32 %v8098, 0.0
        %v8449 = vmax.f32 %v8100, 0.0
        %v8450 = vmax.f32 %v8151, 0.0
        %v8451 = vmax.f32 %v8153, 0.0
        %v8452 = vmax.f32 %v8204, 0.0
        %v8453 = vmax.f32 %v8206, 0.0
        %v8454 = vmax.f32 %v8257, 0.0
        %v8455 = vmax.f32 %v8259, 0.0
        %v8456 = vmax.f32 %v8310, 0.0
        %v8457 = vmax.f32 %v8312, 0.0
        %v8458 = vmax.f32 %v8363, 0.0
        %v8459 = vmax.f32 %v8365, 0.0
        %v8460 = vmax.f32 %v8416, 0.0
        %v8461 = vmax.f32 %v8418, 0.0
        %v8462 = vmax.f32 %v8051, 0.0
        %v8463 = vmax.f32 %v8053, 0.0
        %v8464 = vmax.f32 %v8104, 0.0
        %v8465 = vmax.f32 %v8106, 0.0
        %v8466 = vmax.f32 %v8157, 0.0
        %v8467 = vmax.f32 %v8159, 0.0
        %v8468 = vmax.f32 %v8210, 0.0
        %v8469 = vmax.f32 %v8212, 0.0
        %v8470 = vmax.f32 %v8263, 0.0
        %v8471 = vmax.f32 %v8265, 0.0
        %v8472 = vmax.f32 %v8316, 0.0
        %v8473 = vmax.f32 %v8318, 0.0
        %v8474 = vmax.f32 %v8369, 0.0
        %v8475 = vmax.f32 %v8371, 0.0
        %v8476 = vmax.f32 %v8422, 0.0
        %v8477 = vmax.f32 %v8424, 0.0
        %v8478 = vmax.f32 %v8055, 0.0
        %v8479 = vmax.f32 %v8057, 0.0
        %v8480 = vmax.f32 %v8108, 0.0
        %v8481 = vmax.f32 %v8110, 0.0
        %v8482 = vmax.f32 %v8161, 0.0
        %v8483 = vmax.f32 %v8163, 0.0
        %v8484 = vmax.f32 %v8214, 0.0
        %v8485 = vmax.f32 %v8216, 0.0
        %v8486 = vmax.f32 %v8267, 0.0
        %v8487 = vmax.f32 %v8269, 0.0
        %v8488 = vmax.f32 %v8320, 0.0
        %v8489 = vmax.f32 %v8322, 0.0
        %v8490 = vmax.f32 %v8373, 0.0
        %v8491 = vmax.f32 %v8375, 0.0
        %v8492 = vmax.f32 %v8426, 0.0
        %v8493 = vmax.f32 %v8428, 0.0
        %v8494 = vpack.c.bf16 %v8446, %v8430
        %v8495 = vpack.c.bf16 %v8447, %v8431
        %v8496 = vpack.c.bf16 %v8448, %v8432
        %v8497 = vpack.c.bf16 %v8449, %v8433
        %v8498 = vpack.c.bf16 %v8450, %v8434
        %v8499 = vpack.c.bf16 %v8451, %v8435
        %v8500 = vpack.c.bf16 %v8452, %v8436
        %v8501 = vpack.c.bf16 %v8453, %v8437
        %v8502 = vpack.c.bf16 %v8454, %v8438
        %v8503 = vpack.c.bf16 %v8455, %v8439
        %v8504 = vpack.c.bf16 %v8456, %v8440
        %v8505 = vpack.c.bf16 %v8457, %v8441
        %v8506 = vpack.c.bf16 %v8458, %v8442
        %v8507 = vpack.c.bf16 %v8459, %v8443
        %v8508 = vpack.c.bf16 %v8460, %v8444
        %v8509 = vpack.c.bf16 %v8461, %v8445
        %v8510 = vpack.c.bf16 %v8478, %v8462
        %v8511 = vpack.c.bf16 %v8479, %v8463
        %v8512 = vpack.c.bf16 %v8480, %v8464
        %v8513 = vpack.c.bf16 %v8481, %v8465
        %v8514 = vpack.c.bf16 %v8482, %v8466
        %v8515 = vpack.c.bf16 %v8483, %v8467
        %v8516 = vpack.c.bf16 %v8484, %v8468
        %v8517 = vpack.c.bf16 %v8485, %v8469
        %v8518 = vpack.c.bf16 %v8486, %v8470
        %v8519 = vpack.c.bf16 %v8487, %v8471
        %v8520 = vpack.c.bf16 %v8488, %v8472
        %v8521 = vpack.c.bf16 %v8489, %v8473
        %v8522 = vpack.c.bf16 %v8490, %v8474
        %v8523 = vpack.c.bf16 %v8491, %v8475
        %v8524 = vpack.c.bf16 %v8492, %v8476
        %v8525 = vpack.c.bf16 %v8493, %v8477
        %v8526 = vld [vmem:[%s5] sm:$0x3]
        %v8527 = vld [vmem:[%s6] sm:$0x7]
        %8529 = vset.pattern.permute.xlu0 0
        %8530 = vperm.xlu0 %8529, %v8527
        %v8531 = vpop.permute.xlu0 %8530
        %vm8533 = vcmask 261120
        %v8535 = vsel %vm8533, %v8526, 0
        %8537 = vmatprep.subr.bf16.mxu0 %v8495
        %8538 = vmatpush1.bf16.msra.mxu0 %v8494
        %8539 = vmatprep.subr.bf16.mxu0 %v8511
        %8540 = vmatpush1.bf16.msra.mxu0 %v8510
        %8541 = vmatprep.subr.bf16.mxu0 0
        %8542 = vmatpush1.bf16.msra.mxu0 0
        %8543 = vmatprep.subr.bf16.mxu0 0
        %8544 = vmatpush1.bf16.msra.mxu0 0
        %8545 = vmatprep.subr.bf16.mxu0 0
        %8546 = vmatpush1.bf16.msra.mxu0 0
        %8547 = vmatprep.subr.bf16.mxu0 0
        %8548 = vmatpush1.bf16.msra.mxu0 0
        %8549 = vmatprep.subr.bf16.mxu0 0
        %8550 = vmatpush1.bf16.msra.mxu0 0
        %8551 = vmatprep.subr.bf16.mxu0 0
        %8552 = vmatpush1.bf16.msra.mxu0 0
        %8553 = vmatprep.subr.bf16.mxu0 0
        %8554 = vmatpush1.bf16.msra.mxu0 0
        %8555 = vmatprep.subr.bf16.mxu0 0
        %8556 = vmatpush1.bf16.msra.mxu0 0
        %8557 = vmatprep.subr.bf16.mxu0 0
        %8558 = vmatpush1.bf16.msra.mxu0 0
        %8559 = vmatprep.subr.bf16.mxu0 0
        %8560 = vmatpush1.bf16.msra.mxu0 0
        %8561 = vmatprep.subr.bf16.mxu0 0
        %8562 = vmatpush1.bf16.msra.mxu0 0
        %8563 = vmatprep.subr.bf16.mxu0 0
        %8564 = vmatpush1.bf16.msra.mxu0 0
        %8565 = vmatprep.subr.bf16.mxu0 0
        %8566 = vmatpush1.bf16.msra.mxu0 0
        %8567 = vmatprep.subr.bf16.mxu0 0
        %8568 = vmatpush1.bf16.msra.mxu0 0
        %8569 = vmatprep.mubr.bf16.mxu0 0
        %8570 = vmatmul.mubr.bf16.gmra.mrb[0].mxu0 %v8535
        %v8571 = vpop.f32.mrb[0].mxu0
        %v8572 = vadd.f32 %v8531, %v8571
        %v8573 = vpop.f32.mrb[0].mxu0
        %v8574 = vadd.f32 %v8531, %v8573
        %v8575 = vpop.f32.mrb[0].mxu0
        %v8576 = vpop.f32.mrb[0].mxu0
        %8577 = vdwg.mxu0
        %8578 = vmatprep.subr.bf16.mxu0 %v8497
        %8579 = vmatpush1.bf16.msra.mxu0 %v8496
        %8580 = vmatprep.subr.bf16.mxu0 %v8513
        %8581 = vmatpush1.bf16.msra.mxu0 %v8512
        %8582 = vmatprep.subr.bf16.mxu0 0
        %8583 = vmatpush1.bf16.msra.mxu0 0
        %8584 = vmatprep.subr.bf16.mxu0 0
        %8585 = vmatpush1.bf16.msra.mxu0 0
        %8586 = vmatprep.subr.bf16.mxu0 0
        %8587 = vmatpush1.bf16.msra.mxu0 0
        %8588 = vmatprep.subr.bf16.mxu0 0
        %8589 = vmatpush1.bf16.msra.mxu0 0
        %8590 = vmatprep.subr.bf16.mxu0 0
        %8591 = vmatpush1.bf16.msra.mxu0 0
        %8592 = vmatprep.subr.bf16.mxu0 0
        %8593 = vmatpush1.bf16.msra.mxu0 0
        %8594 = vmatprep.subr.bf16.mxu0 0
        %8595 = vmatpush1.bf16.msra.mxu0 0
        %8596 = vmatprep.subr.bf16.mxu0 0
        %8597 = vmatpush1.bf16.msra.mxu0 0
        %8598 = vmatprep.subr.bf16.mxu0 0
        %8599 = vmatpush1.bf16.msra.mxu0 0
        %8600 = vmatprep.subr.bf16.mxu0 0
        %8601 = vmatpush1.bf16.msra.mxu0 0
        %8602 = vmatprep.subr.bf16.mxu0 0
        %8603 = vmatpush1.bf16.msra.mxu0 0
        %8604 = vmatprep.subr.bf16.mxu0 0
        %8605 = vmatpush1.bf16.msra.mxu0 0
        %8606 = vmatprep.subr.bf16.mxu0 0
        %8607 = vmatpush1.bf16.msra.mxu0 0
        %8608 = vmatprep.subr.bf16.mxu0 0
        %8609 = vmatpush1.bf16.msra.mxu0 0
        %8610 = vmatprep.mubr.bf16.mxu0 0
        %8611 = vmatmul.mubr.bf16.gmra.mrb[0].mxu0 %v8535
        %v8612 = vpop.f32.mrb[0].mxu0
        %v8613 = vadd.f32 %v8531, %v8612
        %v8614 = vpop.f32.mrb[0].mxu0
        %v8615 = vadd.f32 %v8531, %v8614
        %v8616 = vpop.f32.mrb[0].mxu0
        %v8617 = vpop.f32.mrb[0].mxu0
        %8618 = vdwg.mxu0
        %8619 = vmatprep.subr.bf16.mxu0 %v8499
        %8620 = vmatpush1.bf16.msra.mxu0 %v8498
        %8621 = vmatprep.subr.bf16.mxu0 %v8515
        %8622 = vmatpush1.bf16.msra.mxu0 %v8514
        %8623 = vmatprep.subr.bf16.mxu0 0
        %8624 = vmatpush1.bf16.msra.mxu0 0
        %8625 = vmatprep.subr.bf16.mxu0 0
        %8626 = vmatpush1.bf16.msra.mxu0 0
        %8627 = vmatprep.subr.bf16.mxu0 0
        %8628 = vmatpush1.bf16.msra.mxu0 0
        %8629 = vmatprep.subr.bf16.mxu0 0
        %8630 = vmatpush1.bf16.msra.mxu0 0
        %8631 = vmatprep.subr.bf16.mxu0 0
        %8632 = vmatpush1.bf16.msra.mxu0 0
        %8633 = vmatprep.subr.bf16.mxu0 0
        %8634 = vmatpush1.bf16.msra.mxu0 0
        %8635 = vmatprep.subr.bf16.mxu0 0
        %8636 = vmatpush1.bf16.msra.mxu0 0
        %8637 = vmatprep.subr.bf16.mxu0 0
        %8638 = vmatpush1.bf16.msra.mxu0 0
        %8639 = vmatprep.subr.bf16.mxu0 0
        %8640 = vmatpush1.bf16.msra.mxu0 0
        %8641 = vmatprep.subr.bf16.mxu0 0
        %8642 = vmatpush1.bf16.msra.mxu0 0
        %8643 = vmatprep.subr.bf16.mxu0 0
        %8644 = vmatpush1.bf16.msra.mxu0 0
        %8645 = vmatprep.subr.bf16.mxu0 0
        %8646 = vmatpush1.bf16.msra.mxu0 0
        %8647 = vmatprep.subr.bf16.mxu0 0
        %8648 = vmatpush1.bf16.msra.mxu0 0
        %8649 = vmatprep.subr.bf16.mxu0 0
        %8650 = vmatpush1.bf16.msra.mxu0 0
        %8651 = vmatprep.mubr.bf16.mxu0 0
        %8652 = vmatmul.mubr.bf16.gmra.mrb[0].mxu0 %v8535
        %v8653 = vpop.f32.mrb[0].mxu0
        %v8654 = vadd.f32 %v8531, %v8653
        %v8655 = vpop.f32.mrb[0].mxu0
        %v8656 = vadd.f32 %v8531, %v8655
        %v8657 = vpop.f32.mrb[0].mxu0
        %v8658 = vpop.f32.mrb[0].mxu0
        %8659 = vdwg.mxu0
        %8660 = vmatprep.subr.bf16.mxu0 %v8501
        %8661 = vmatpush1.bf16.msra.mxu0 %v8500
        %8662 = vmatprep.subr.bf16.mxu0 %v8517
        %8663 = vmatpush1.bf16.msra.mxu0 %v8516
        %8664 = vmatprep.subr.bf16.mxu0 0
        %8665 = vmatpush1.bf16.msra.mxu0 0
        %8666 = vmatprep.subr.bf16.mxu0 0
        %8667 = vmatpush1.bf16.msra.mxu0 0
        %8668 = vmatprep.subr.bf16.mxu0 0
        %8669 = vmatpush1.bf16.msra.mxu0 0
        %8670 = vmatprep.subr.bf16.mxu0 0
        %8671 = vmatpush1.bf16.msra.mxu0 0
        %8672 = vmatprep.subr.bf16.mxu0 0
        %8673 = vmatpush1.bf16.msra.mxu0 0
        %8674 = vmatprep.subr.bf16.mxu0 0
        %8675 = vmatpush1.bf16.msra.mxu0 0
        %8676 = vmatprep.subr.bf16.mxu0 0
        %8677 = vmatpush1.bf16.msra.mxu0 0
        %8678 = vmatprep.subr.bf16.mxu0 0
        %8679 = vmatpush1.bf16.msra.mxu0 0
        %8680 = vmatprep.subr.bf16.mxu0 0
        %8681 = vmatpush1.bf16.msra.mxu0 0
        %8682 = vmatprep.subr.bf16.mxu0 0
        %8683 = vmatpush1.bf16.msra.mxu0 0
        %8684 = vmatprep.subr.bf16.mxu0 0
        %8685 = vmatpush1.bf16.msra.mxu0 0
        %8686 = vmatprep.subr.bf16.mxu0 0
        %8687 = vmatpush1.bf16.msra.mxu0 0
        %8688 = vmatprep.subr.bf16.mxu0 0
        %8689 = vmatpush1.bf16.msra.mxu0 0
        %8690 = vmatprep.subr.bf16.mxu0 0
        %8691 = vmatpush1.bf16.msra.mxu0 0
        %8692 = vmatprep.mubr.bf16.mxu0 0
        %8693 = vmatmul.mubr.bf16.gmra.mrb[0].mxu0 %v8535
        %v8694 = vpop.f32.mrb[0].mxu0
        %v8695 = vadd.f32 %v8531, %v8694
        %v8696 = vpop.f32.mrb[0].mxu0
        %v8697 = vadd.f32 %v8531, %v8696
        %v8698 = vpop.f32.mrb[0].mxu0
        %v8699 = vpop.f32.mrb[0].mxu0
        %8700 = vdwg.mxu0
        %8701 = vmatprep.subr.bf16.mxu0 %v8503
        %8702 = vmatpush1.bf16.msra.mxu0 %v8502
        %8703 = vmatprep.subr.bf16.mxu0 %v8519
        %8704 = vmatpush1.bf16.msra.mxu0 %v8518
        %8705 = vmatprep.subr.bf16.mxu0 0
        %8706 = vmatpush1.bf16.msra.mxu0 0
        %8707 = vmatprep.subr.bf16.mxu0 0
        %8708 = vmatpush1.bf16.msra.mxu0 0
        %8709 = vmatprep.subr.bf16.mxu0 0
        %8710 = vmatpush1.bf16.msra.mxu0 0
        %8711 = vmatprep.subr.bf16.mxu0 0
        %8712 = vmatpush1.bf16.msra.mxu0 0
        %8713 = vmatprep.subr.bf16.mxu0 0
        %8714 = vmatpush1.bf16.msra.mxu0 0
        %8715 = vmatprep.subr.bf16.mxu0 0
        %8716 = vmatpush1.bf16.msra.mxu0 0
        %8717 = vmatprep.subr.bf16.mxu0 0
        %8718 = vmatpush1.bf16.msra.mxu0 0
        %8719 = vmatprep.subr.bf16.mxu0 0
        %8720 = vmatpush1.bf16.msra.mxu0 0
        %8721 = vmatprep.subr.bf16.mxu0 0
        %8722 = vmatpush1.bf16.msra.mxu0 0
        %8723 = vmatprep.subr.bf16.mxu0 0
        %8724 = vmatpush1.bf16.msra.mxu0 0
        %8725 = vmatprep.subr.bf16.mxu0 0
        %8726 = vmatpush1.bf16.msra.mxu0 0
        %8727 = vmatprep.subr.bf16.mxu0 0
        %8728 = vmatpush1.bf16.msra.mxu0 0
        %8729 = vmatprep.subr.bf16.mxu0 0
        %8730 = vmatpush1.bf16.msra.mxu0 0
        %8731 = vmatprep.subr.bf16.mxu0 0
        %8732 = vmatpush1.bf16.msra.mxu0 0
        %8733 = vmatprep.mubr.bf16.mxu0 0
        %8734 = vmatmul.mubr.bf16.gmra.mrb[0].mxu0 %v8535
        %v8735 = vpop.f32.mrb[0].mxu0
        %v8736 = vadd.f32 %v8531, %v8735
        %v8737 = vpop.f32.mrb[0].mxu0
        %v8738 = vadd.f32 %v8531, %v8737
        %v8739 = vpop.f32.mrb[0].mxu0
        %v8740 = vpop.f32.mrb[0].mxu0
        %8741 = vdwg.mxu0
        %8742 = vmatprep.subr.bf16.mxu0 %v8505
        %8743 = vmatpush1.bf16.msra.mxu0 %v8504
        %8744 = vmatprep.subr.bf16.mxu0 %v8521
        %8745 = vmatpush1.bf16.msra.mxu0 %v8520
        %8746 = vmatprep.subr.bf16.mxu0 0
        %8747 = vmatpush1.bf16.msra.mxu0 0
        %8748 = vmatprep.subr.bf16.mxu0 0
        %8749 = vmatpush1.bf16.msra.mxu0 0
        %8750 = vmatprep.subr.bf16.mxu0 0
        %8751 = vmatpush1.bf16.msra.mxu0 0
        %8752 = vmatprep.subr.bf16.mxu0 0
        %8753 = vmatpush1.bf16.msra.mxu0 0
        %8754 = vmatprep.subr.bf16.mxu0 0
        %8755 = vmatpush1.bf16.msra.mxu0 0
        %8756 = vmatprep.subr.bf16.mxu0 0
        %8757 = vmatpush1.bf16.msra.mxu0 0
        %8758 = vmatprep.subr.bf16.mxu0 0
        %8759 = vmatpush1.bf16.msra.mxu0 0
        %8760 = vmatprep.subr.bf16.mxu0 0
        %8761 = vmatpush1.bf16.msra.mxu0 0
        %8762 = vmatprep.subr.bf16.mxu0 0
        %8763 = vmatpush1.bf16.msra.mxu0 0
        %8764 = vmatprep.subr.bf16.mxu0 0
        %8765 = vmatpush1.bf16.msra.mxu0 0
        %8766 = vmatprep.subr.bf16.mxu0 0
        %8767 = vmatpush1.bf16.msra.mxu0 0
        %8768 = vmatprep.subr.bf16.mxu0 0
        %8769 = vmatpush1.bf16.msra.mxu0 0
        %8770 = vmatprep.subr.bf16.mxu0 0
        %8771 = vmatpush1.bf16.msra.mxu0 0
        %8772 = vmatprep.subr.bf16.mxu0 0
        %8773 = vmatpush1.bf16.msra.mxu0 0
        %8774 = vmatprep.mubr.bf16.mxu0 0
        %8775 = vmatmul.mubr.bf16.gmra.mrb[0].mxu0 %v8535
        %v8776 = vpop.f32.mrb[0].mxu0
        %v8777 = vadd.f32 %v8531, %v8776
        %v8778 = vpop.f32.mrb[0].mxu0
        %v8779 = vadd.f32 %v8531, %v8778
        %v8780 = vpop.f32.mrb[0].mxu0
        %v8781 = vpop.f32.mrb[0].mxu0
        %8782 = vdwg.mxu0
        %8783 = vmatprep.subr.bf16.mxu0 %v8507
        %8784 = vmatpush1.bf16.msra.mxu0 %v8506
        %8785 = vmatprep.subr.bf16.mxu0 %v8523
        %8786 = vmatpush1.bf16.msra.mxu0 %v8522
        %8787 = vmatprep.subr.bf16.mxu0 0
        %8788 = vmatpush1.bf16.msra.mxu0 0
        %8789 = vmatprep.subr.bf16.mxu0 0
        %8790 = vmatpush1.bf16.msra.mxu0 0
        %8791 = vmatprep.subr.bf16.mxu0 0
        %8792 = vmatpush1.bf16.msra.mxu0 0
        %8793 = vmatprep.subr.bf16.mxu0 0
        %8794 = vmatpush1.bf16.msra.mxu0 0
        %8795 = vmatprep.subr.bf16.mxu0 0
        %8796 = vmatpush1.bf16.msra.mxu0 0
        %8797 = vmatprep.subr.bf16.mxu0 0
        %8798 = vmatpush1.bf16.msra.mxu0 0
        %8799 = vmatprep.subr.bf16.mxu0 0
        %8800 = vmatpush1.bf16.msra.mxu0 0
        %8801 = vmatprep.subr.bf16.mxu0 0
        %8802 = vmatpush1.bf16.msra.mxu0 0
        %8803 = vmatprep.subr.bf16.mxu0 0
        %8804 = vmatpush1.bf16.msra.mxu0 0
        %8805 = vmatprep.subr.bf16.mxu0 0
        %8806 = vmatpush1.bf16.msra.mxu0 0
        %8807 = vmatprep.subr.bf16.mxu0 0
        %8808 = vmatpush1.bf16.msra.mxu0 0
        %8809 = vmatprep.subr.bf16.mxu0 0
        %8810 = vmatpush1.bf16.msra.mxu0 0
        %8811 = vmatprep.subr.bf16.mxu0 0
        %8812 = vmatpush1.bf16.msra.mxu0 0
        %8813 = vmatprep.subr.bf16.mxu0 0
        %8814 = vmatpush1.bf16.msra.mxu0 0
        %8815 = vmatprep.mubr.bf16.mxu0 0
        %8816 = vmatmul.mubr.bf16.gmra.mrb[0].mxu0 %v8535
        %v8817 = vpop.f32.mrb[0].mxu0
        %v8818 = vadd.f32 %v8531, %v8817
        %v8819 = vpop.f32.mrb[0].mxu0
        %v8820 = vadd.f32 %v8531, %v8819
        %v8821 = vpop.f32.mrb[0].mxu0
        %v8822 = vpop.f32.mrb[0].mxu0
        %8823 = vdwg.mxu0
        %8824 = vmatprep.subr.bf16.mxu0 %v8509
        %8825 = vmatpush1.bf16.msra.mxu0 %v8508
        %8826 = vmatprep.subr.bf16.mxu0 %v8525
        %8827 = vmatpush1.bf16.msra.mxu0 %v8524
        %8828 = vmatprep.subr.bf16.mxu0 0
        %8829 = vmatpush1.bf16.msra.mxu0 0
        %8830 = vmatprep.subr.bf16.mxu0 0
        %8831 = vmatpush1.bf16.msra.mxu0 0
        %8832 = vmatprep.subr.bf16.mxu0 0
        %8833 = vmatpush1.bf16.msra.mxu0 0
        %8834 = vmatprep.subr.bf16.mxu0 0
        %8835 = vmatpush1.bf16.msra.mxu0 0
        %8836 = vmatprep.subr.bf16.mxu0 0
        %8837 = vmatpush1.bf16.msra.mxu0 0
        %8838 = vmatprep.subr.bf16.mxu0 0
        %8839 = vmatpush1.bf16.msra.mxu0 0
        %8840 = vmatprep.subr.bf16.mxu0 0
        %8841 = vmatpush1.bf16.msra.mxu0 0
        %8842 = vmatprep.subr.bf16.mxu0 0
        %8843 = vmatpush1.bf16.msra.mxu0 0
        %8844 = vmatprep.subr.bf16.mxu0 0
        %8845 = vmatpush1.bf16.msra.mxu0 0
        %8846 = vmatprep.subr.bf16.mxu0 0
        %8847 = vmatpush1.bf16.msra.mxu0 0
        %8848 = vmatprep.subr.bf16.mxu0 0
        %8849 = vmatpush1.bf16.msra.mxu0 0
        %8850 = vmatprep.subr.bf16.mxu0 0
        %8851 = vmatpush1.bf16.msra.mxu0 0
        %8852 = vmatprep.subr.bf16.mxu0 0
        %8853 = vmatpush1.bf16.msra.mxu0 0
        %8854 = vmatprep.subr.bf16.mxu0 0
        %8855 = vmatpush1.bf16.msra.mxu0 0
        %8856 = vmatprep.mubr.bf16.mxu0 0
        %8857 = vmatmul.mubr.bf16.gmra.mrb[0].mxu0 %v8535
        %v8858 = vpop.f32.mrb[0].mxu0
        %v8859 = vadd.f32 %v8531, %v8858
        %v8860 = vpop.f32.mrb[0].mxu0
        %v8861 = vadd.f32 %v8531, %v8860
        %v8862 = vpop.f32.mrb[0].mxu0
        %v8863 = vpop.f32.mrb[0].mxu0
        %8864 = vdwg.mxu0
        %v8865 = vxor.u32 %v8572, 2147483648
        %v8866 = vxor.u32 %v8574, 2147483648
        %v8867 = vxor.u32 %v8613, 2147483648
        %v8868 = vxor.u32 %v8615, 2147483648
        %v8869 = vxor.u32 %v8654, 2147483648
        %v8870 = vxor.u32 %v8656, 2147483648
        %v8871 = vxor.u32 %v8695, 2147483648
        %v8872 = vxor.u32 %v8697, 2147483648
        %v8873 = vxor.u32 %v8736, 2147483648
        %v8874 = vxor.u32 %v8738, 2147483648
        %v8875 = vxor.u32 %v8777, 2147483648
        %v8876 = vxor.u32 %v8779, 2147483648
        %v8877 = vxor.u32 %v8818, 2147483648
        %v8878 = vxor.u32 %v8820, 2147483648
        %v8879 = vxor.u32 %v8859, 2147483648
        %v8880 = vxor.u32 %v8861, 2147483648
        %v8881 = vmul.f32 %v8865, 1.442695
        %v8882 = vpow.pop %v8881
        %v8883 = vmul.f32 %v8866, 1.442695
        %v8884 = vpow.pop %v8883
        %v8885 = vmul.f32 %v8867, 1.442695
        %v8886 = vpow.pop %v8885
        %v8887 = vmul.f32 %v8868, 1.442695
        %v8888 = vpow.pop %v8887
        %v8889 = vmul.f32 %v8869, 1.442695
        %v8890 = vpow.pop %v8889
        %v8891 = vmul.f32 %v8870, 1.442695
        %v8892 = vpow.pop %v8891
        %v8893 = vmul.f32 %v8871, 1.442695
        %v8894 = vpow.pop %v8893
        %v8895 = vmul.f32 %v8872, 1.442695
        %v8896 = vpow.pop %v8895
        %v8897 = vmul.f32 %v8873, 1.442695
        %v8898 = vpow.pop %v8897
        %v8899 = vmul.f32 %v8874, 1.442695
        %v8900 = vpow.pop %v8899
        %v8901 = vmul.f32 %v8875, 1.442695
        %v8902 = vpow.pop %v8901
        %v8903 = vmul.f32 %v8876, 1.442695
        %v8904 = vpow.pop %v8903
        %v8905 = vmul.f32 %v8877, 1.442695
        %v8906 = vpow.pop %v8905
        %v8907 = vmul.f32 %v8878, 1.442695
        %v8908 = vpow.pop %v8907
        %v8909 = vmul.f32 %v8879, 1.442695
        %v8910 = vpow.pop %v8909
        %v8911 = vmul.f32 %v8880, 1.442695
        %v8912 = vpow.pop %v8911
        %v8913 = vadd.f32 %v8882, 1.0
        %v8914 = vadd.f32 %v8884, 1.0
        %v8915 = vadd.f32 %v8886, 1.0
        %v8916 = vadd.f32 %v8888, 1.0
        %v8917 = vadd.f32 %v8890, 1.0
        %v8918 = vadd.f32 %v8892, 1.0
        %v8919 = vadd.f32 %v8894, 1.0
        %v8920 = vadd.f32 %v8896, 1.0
        %v8921 = vadd.f32 %v8898, 1.0
        %v8922 = vadd.f32 %v8900, 1.0
        %v8923 = vadd.f32 %v8902, 1.0
        %v8924 = vadd.f32 %v8904, 1.0
        %v8925 = vadd.f32 %v8906, 1.0
        %v8926 = vadd.f32 %v8908, 1.0
        %v8927 = vadd.f32 %v8910, 1.0
        %v8928 = vadd.f32 %v8912, 1.0
        %v8929 = vrcp.pop %v8913
        %v8930 = vmul.f32 1.0, %v8929
        %v8931 = vrcp.pop %v8914
        %v8932 = vmul.f32 1.0, %v8931
        %v8933 = vrcp.pop %v8915
        %v8934 = vmul.f32 1.0, %v8933
        %v8935 = vrcp.pop %v8916
        %v8936 = vmul.f32 1.0, %v8935
        %v8937 = vrcp.pop %v8917
        %v8938 = vmul.f32 1.0, %v8937
        %v8939 = vrcp.pop %v8918
        %v8940 = vmul.f32 1.0, %v8939
        %v8941 = vrcp.pop %v8919
        %v8942 = vmul.f32 1.0, %v8941
        %v8943 = vrcp.pop %v8920
        %v8944 = vmul.f32 1.0, %v8943
        %v8945 = vrcp.pop %v8921
        %v8946 = vmul.f32 1.0, %v8945
        %v8947 = vrcp.pop %v8922
        %v8948 = vmul.f32 1.0, %v8947
        %v8949 = vrcp.pop %v8923
        %v8950 = vmul.f32 1.0, %v8949
        %v8951 = vrcp.pop %v8924
        %v8952 = vmul.f32 1.0, %v8951
        %v8953 = vrcp.pop %v8925
        %v8954 = vmul.f32 1.0, %v8953
        %v8955 = vrcp.pop %v8926
        %v8956 = vmul.f32 1.0, %v8955
        %v8957 = vrcp.pop %v8927
        %v8958 = vmul.f32 1.0, %v8957
        %v8959 = vrcp.pop %v8928
        %v8960 = vmul.f32 1.0, %v8959
        %v8977 = vcombine.low %v8930, %v8932
        %v8978 = vcombine.low %v8934, %v8936
        %v8979 = vcombine.low %v8938, %v8940
        %v8980 = vcombine.low %v8942, %v8944
        %v8981 = vcombine.low %v8946, %v8948
        %v8982 = vcombine.low %v8950, %v8952
        %v8983 = vcombine.low %v8954, %v8956
        %v8984 = vcombine.low %v8958, %v8960
        %8993 = vst [vmem:[%s296] sm:$0x77] %v8977
        %8994 = vst [vmem:[%s296 + $0x8] sm:$0x77] %v8978
        %8995 = vst [vmem:[%s296 + $0x10] sm:$0x77] %v8979
        %8996 = vst [vmem:[%s296 + $0x18] sm:$0x77] %v8980
        %8997 = vst [vmem:[%s296 + $0x20] sm:$0x77] %v8981
        %8998 = vst [vmem:[%s296 + $0x28] sm:$0x77] %v8982
        %8999 = vst [vmem:[%s296 + $0x30] sm:$0x77] %v8983
        %9000 = vst [vmem:[%s296 + $0x38] sm:$0x77] %v8984
        %s9001 = sand.u32 %s184, 1
        %s9002 = scalar_lea.sflag [#allocation4], %s9001
        %s9003 = sand.u32 %s184, 1
        %s9004 = smul.addr %s9003, 64
        %s9005 = scalar_lea.vmem [#allocation5], %s9004
        // Predicated region
        $region53: #{tpu_custom_call.1} parent=47 // pred_check
          %p9006 = pneg %p194
        $region54: #{tpu_custom_call.1} parent=47 // pred_check_branch
          %9008 = sbr.rel (%p9006) target = $region56
        $region55: #{tpu_custom_call.1} parent=47 // pred_region
          %s9009 = smul.u32 16, %s24
          %s9011 = ssub.s32 1024, 1024
          %9012 = vsyncadd %s9002, %s9011
          %s9013 = smul.addr %s9009, 64
          %s9014 = scalar_lea.hbm %s7, %s9013
          %s9016 = sshll.u32 %s9005, 4
          %s9017 = int_to_ptr.vmem [resolvable:$true] %s9016
          %9019 = dma.vmem_to_hbm [thread:$0]  %s9017, 1024, %s9014, %s9002
        $region56: #{tpu_custom_call.1} parent=47 // pred_fallthru
          _
      $region48: #{tpu_custom_call.1} parent=5 // pred_fallthru
        _
      %p9020 = scmp.le.s32.totalorder 2, %s19
      // Predicated region
      $region57: #{tpu_custom_call.1} parent=5 // pred_check
        %p9021 = pneg %p9020
      $region58: #{tpu_custom_call.1} parent=5 // pred_check_branch
        %9023 = sbr.rel (%p9021) target = $region60
      $region59: #{tpu_custom_call.1} parent=5 // pred_region
        %s9024 = ssub.s32 %s19, 2
        // Predicated region
        $region61: #{tpu_custom_call.1} parent=59 // pred_check
          %p9025 = pneg %p200
        $region62: #{tpu_custom_call.1} parent=59 // pred_check_branch
          %9027 = sbr.rel (%p9025) target = $region64
        $region63: #{tpu_custom_call.1} parent=59 // pred_region
          %s9028 = sand.u32 %s185, 1
          %s9029 = scalar_lea.sflag [#allocation4], %s9028
          %s9030 = sand.u32 %s185, 1
          %s9031 = smul.addr %s9030, 64
          %s9032 = scalar_lea.vmem [#allocation5], %s9031
          %9033 = dma.done %s9029, 1024
        $region64: #{tpu_custom_call.1} parent=59 // pred_fallthru
          _
      $region60: #{tpu_custom_call.1} parent=5 // pred_fallthru
        _
    $region6: #{tpu_custom_call.1} parent=1 // loop_footer
      %s23 = sadd.s32 1, %s19
    $region7: #{tpu_custom_call.1} parent=1 // loop_footer_branch
      %18 = sbr.rel target = $region3
    $region8: #{tpu_custom_call.1} parent=1 // loop_exit
      _
    %9034 = vsyncpa [#allocation3], 1
    %s9035 = scalar_lea.sflag [#allocation3], 1
    %9036 = vsyncpa %s9035, 1
    %9037 = vsyncpa [#allocation4], 1
    %s9038 = scalar_lea.sflag [#allocation4], 1
    %9039 = vsyncpa %s9038, 1

</llo_original>
